<compile_context>
chip_gen: v7x
topology: tpu7x:2x2x1
jax: 0.10.0
libtpu: 0.0.40
codegen_flags: <defaults>
</compile_context>

<pallas_src>
import math
import functools

import jax
import jax.numpy as jnp
from jax.experimental import pallas as pl
from jax.experimental.pallas import tpu as pltpu


# ----------------------------- helpers -----------------------------

def _round_up(x, m):
    return ((x + m - 1) // m) * m


def _cdiv(a, b):
    return (a + b - 1) // b


# ----------------------------- Pallas kernels -----------------------------

def _mm_bn_kernel(x_ref, w_ref, sc_ref, sh_ref, o_ref, acc_ref, *, relu):
    """(tm, tk) @ (tk, tn) accumulated in an f32 VMEM scratch over the K grid axis;
    BN affine (+ ReLU) epilogue applied once at the final K step."""
    @pl.when(pl.program_id(2) == 0)
    def _():
        acc_ref[...] = jnp.zeros_like(acc_ref)

    acc_ref[...] += jnp.dot(x_ref[...], w_ref[...],
                            preferred_element_type=jnp.float32)

    @pl.when(pl.program_id(2) == pl.num_programs(2) - 1)
    def _():
        out = acc_ref[...] * sc_ref[...] + sh_ref[...]
        if relu:
            out = jnp.maximum(out, 0.0)
        o_ref[...] = out.astype(o_ref.dtype)


def _mm_bn_res_kernel(x_ref, w_ref, sc_ref, sh_ref, r_ref, o_ref, acc_ref, *, relu):
    """Same as _mm_bn_kernel plus a fused residual add in the epilogue."""
    @pl.when(pl.program_id(2) == 0)
    def _():
        acc_ref[...] = jnp.zeros_like(acc_ref)

    acc_ref[...] += jnp.dot(x_ref[...], w_ref[...],
                            preferred_element_type=jnp.float32)

    @pl.when(pl.program_id(2) == pl.num_programs(2) - 1)
    def _():
        out = (acc_ref[...] * sc_ref[...] + sh_ref[...]
               + r_ref[...].astype(jnp.float32))
        if relu:
            out = jnp.maximum(out, 0.0)
        o_ref[...] = out.astype(o_ref.dtype)


def _avgpool_kernel(x_ref, o_ref):
    # x: (N, S, C) bf16 -> mean over the spatial axis S, accumulated in f32.
    o_ref[...] = jnp.mean(x_ref[...].astype(jnp.float32), axis=1)


# ----------------------------- Pallas wrappers -----------------------------

def matmul_bn_act(x, w, scale, shift, residual, relu):
    """x: (M, K) bf16 (K multiple of 128), w: (K, Np) bf16 (Np multiple of 128),
    scale/shift: (1, Np) f32, residual: (M, Np) bf16 or None. Returns (M, Np) bf16."""
    M, K = x.shape
    _, Np_ = w.shape

    # M tiling: large M -> 512-row tiles (amortizes per-step overhead; ragged edge is
    # handled by Pallas block masking); small M -> one full-M tile (sublane-rounded).
    if M >= 512:
        Mp, tm = M, 512
    else:
        Mp = _round_up(M, 8)
        tm = Mp
        if Mp != M:
            x = jnp.pad(x, ((0, Mp - M), (0, 0)))
            if residual is not None:
                residual = jnp.pad(residual, ((0, Mp - M), (0, 0)))
    grid_m = _cdiv(Mp, tm)

    # N tiling: 256 lanes when possible (full MXU width on v6e/v7x), else 128 (v5e ok).
    tn = 256 if Np_ % 256 == 0 else 128
    grid_n = Np_ // tn

    # K tiling: single block for small K, otherwise a reduction grid axis so the
    # weight / patch blocks stay small enough to double-buffer in scoped VMEM.
    if K <= 2048:
        tk = K
    else:
        tk = 128
        for cand in (1024, 768, 512, 384, 256):
            if K % cand == 0:
                tk = cand
                break
    grid_k = K // tk

    kernel = _mm_bn_res_kernel if residual is not None else _mm_bn_kernel
    in_specs = [
        pl.BlockSpec((tm, tk), lambda i, j, k: (i, k)),
        pl.BlockSpec((tk, tn), lambda i, j, k: (k, j)),
        pl.BlockSpec((1, tn), lambda i, j, k: (0, j)),
        pl.BlockSpec((1, tn), lambda i, j, k: (0, j)),
    ]
    args = [x, w, scale, shift]
    if residual is not None:
        in_specs.append(pl.BlockSpec((tm, tn), lambda i, j, k: (i, j)))
        args.append(residual)

    out = pl.pallas_call(
        functools.partial(kernel, relu=relu),
        out_shape=jax.ShapeDtypeStruct((Mp, Np_), jnp.bfloat16),
        grid=(grid_m, grid_n, grid_k),
        in_specs=in_specs,
        out_specs=pl.BlockSpec((tm, tn), lambda i, j, k: (i, j)),
        scratch_shapes=[pltpu.VMEM((tm, tn), jnp.float32)],
        compiler_params=pltpu.CompilerParams(
            dimension_semantics=("parallel", "parallel", "arbitrary"),
            vmem_limit_bytes=32 * 1024 * 1024),
    )(*args)
    if Mp != M:
        out = out[:M]
    return out


def _im2col_3d(x, kernel, stride, padding, k_align=128):
    """x: (N, D, H, W, C) -> K-aligned patch matrix (M, Kp) in x.dtype (single
    materialization: the zero K-tail is appended inside the same concatenate)."""
    kd, kh, kw = kernel
    sd, sh, sw = stride
    pd, ph, pw = padding
    N, D, H, W, C = x.shape
    Do = (D + 2 * pd - kd) // sd + 1
    Ho = (H + 2 * ph - kh) // sh + 1
    Wo = (W + 2 * pw - kw) // sw + 1
    xp = jnp.pad(x, ((0, 0), (pd, pd), (ph, ph), (pw, pw), (0, 0)))
    pats = []
    for dz in range(kd):
        for dy in range(kh):
            for dx in range(kw):
                pats.append(xp[:, dz:dz + sd * Do:sd,
                               dy:dy + sh * Ho:sh,
                               dx:dx + sw * Wo:sw, :])
    K = kd * kh * kw * C
    Kp = _round_up(K, k_align)
    if Kp > K:
        pats.append(jnp.zeros((N, Do, Ho, Wo, Kp - K), x.dtype))
    cols = jnp.concatenate(pats, axis=-1).reshape(N * Do * Ho * Wo, Kp)
    return cols, (N, Do, Ho, Wo), K


def conv3d_bn_act(x, w, bn_scale, bn_shift, stride, padding, relu, residual=None):
    """x: (N, D, H, W, Ca) bf16 NDHWC, channels possibly zero-padded past the conv's
    true Cin. w: PyTorch layout (Cout, Cin, kd, kh, kw) f32. Returns NDHWC bf16 with
    output channels zero-padded up to a multiple of 128 (padded channels are exactly 0,
    since their weight columns and BN scale/shift are zero)."""
    Cout, Cin, kd, kh, kw = w.shape
    N, D, H, W, Ca = x.shape
    Np_ = _round_up(Cout, 128)

    if (kd, kh, kw) == (1, 1, 1) and padding == (0, 0, 0) and Ca % 128 == 0:
        # 1x1x1 shortcut conv: no im2col needed, just (optional) spatial striding.
        sd, sh_, sw = stride
        xs = x[:, ::sd, ::sh_, ::sw, :]
        dims = xs.shape[:4]
        cols = xs.reshape(-1, Ca)
    else:
        cols, dims, _ = _im2col_3d(x, (kd, kh, kw), stride, padding)

    # (Cout, Cin, kd, kh, kw) -> (kd, kh, kw, Ca, Np) zero-padded -> (K, Np) bf16,
    # row order matches the im2col tap-major / channel-minor layout.
    wt = jnp.transpose(w, (2, 3, 4, 1, 0))
    wt = jnp.pad(wt, ((0, 0), (0, 0), (0, 0), (0, Ca - Cin), (0, Np_ - Cout)))
    w_mat = wt.reshape(kd * kh * kw * Ca, Np_)
    if w_mat.shape[0] != cols.shape[1]:      # K alignment tail -> zero weight rows
        w_mat = jnp.pad(w_mat, ((0, cols.shape[1] - w_mat.shape[0]), (0, 0)))
    w_mat = w_mat.astype(jnp.bfloat16)

    sc = jnp.zeros((1, Np_), jnp.float32).at[0, :Cout].set(bn_scale)
    sh = jnp.zeros((1, Np_), jnp.float32).at[0, :Cout].set(bn_shift)

    res_mat = residual.reshape(-1, Np_) if residual is not None else None

    out = matmul_bn_act(cols, w_mat, sc, sh, res_mat, relu)
    n, Do, Ho, Wo = dims
    return out.reshape(n, Do, Ho, Wo, Np_)


def maxpool3d(x, kernel=3, stride=2, padding=1):
    """x: (N, D, H, W, C). PyTorch MaxPool3d(kernel, stride, padding) semantics.
    Implemented as a fused XLA pairwise-max tree over the k^3 shifted strided views
    (per perf review: a Pallas kernel here only adds a 27x pre-gather HBM blowup)."""
    k, s, p = kernel, stride, padding
    N, D, H, W, C = x.shape
    Do = (D + 2 * p - k) // s + 1
    Ho = (H + 2 * p - k) // s + 1
    Wo = (W + 2 * p - k) // s + 1
    xp = jnp.pad(x, ((0, 0), (p, p), (p, p), (p, p), (0, 0)),
                 constant_values=-jnp.inf)
    out = None
    for dz in range(k):
        for dy in range(k):
            for dx in range(k):
                v = xp[:, dz:dz + s * Do:s, dy:dy + s * Ho:s, dx:dx + s * Wo:s, :]
                out = v if out is None else jnp.maximum(out, v)
    return out


def adaptive_avgpool_111(x):
    """x: (N, D, H, W, C) bf16 -> (N, C) f32: AdaptiveAvgPool3d((1,1,1)) + flatten."""
    N, D, H, W, C = x.shape
    S = D * H * W
    xr = x.reshape(N, S, C)
    return pl.pallas_call(
        _avgpool_kernel,
        out_shape=jax.ShapeDtypeStruct((N, C), jnp.float32),
        grid=(1,),
        in_specs=[pl.BlockSpec((N, S, C), lambda i: (0, 0, 0))],
        out_specs=pl.BlockSpec((N, C), lambda i: (0, 0)),
    )(xr)


# ----------------------------- parameters -----------------------------

def _init_conv(key, cout, cin, k):
    kd, kh, kw = k
    fan_out = cout * kd * kh * kw               # kaiming_normal_(mode='fan_out', relu)
    std = math.sqrt(2.0 / fan_out)
    return jax.random.normal(key, (cout, cin, kd, kh, kw), jnp.float32) * std


def _bn_params(c, eps=1e-5):
    gamma = jnp.ones((c,), jnp.float32)
    beta = jnp.zeros((c,), jnp.float32)
    running_mean = jnp.zeros((c,), jnp.float32)
    running_var = jnp.ones((c,), jnp.float32)
    scale = gamma / jnp.sqrt(running_var + eps)
    shift = beta - running_mean * scale
    return scale, shift


def build_resnet_params(key, cfg):
    block_inplanes = [int(x * cfg["widen_factor"]) for x in cfg["block_inplanes"]]
    in_planes = block_inplanes[0]
    keys = iter(jax.random.split(key, 128))

    params = {
        "conv1_w": _init_conv(next(keys), in_planes, cfg["n_input_channels"],
                              (cfg["conv1_t_size"], 7, 7)),
        "bn1": _bn_params(in_planes),
    }

    layer_cfgs = [
        (block_inplanes[0], cfg["layers"][0], 1, 1),   # layer1 (head_conv default 1)
        (block_inplanes[1], cfg["layers"][1], 2, 1),   # layer2
        (block_inplanes[2], cfg["layers"][2], 2, 1),   # layer3
        (block_inplanes[3], cfg["layers"][3], 2, 1),   # layer4
    ]
    layers_p = []
    for planes, nblocks, stride, head_conv in layer_cfgs:
        blocks = []
        for b in range(nblocks):
            s = stride if b == 0 else 1
            p = {
                "conv1_w": _init_conv(next(keys), planes, in_planes, (head_conv, 3, 3)),
                "bn1": _bn_params(planes),
                "conv2_w": _init_conv(next(keys), planes, planes, (3, 3, 3)),
                "bn2": _bn_params(planes),
            }
            if s != 1 or in_planes != planes:   # shortcut_type 'B': conv1x1x1 + BN
                p["down_w"] = _init_conv(next(keys), planes, in_planes, (1, 1, 1))
                p["dbn"] = _bn_params(planes)
            blocks.append({"params": p, "stride": s, "head_conv": head_conv})
            in_planes = planes                   # BasicBlock expansion = 1
        layers_p.append(blocks)
    params["layers"] = layers_p
    return params


# ----------------------------- forward -----------------------------

def _basic_block_forward(x, p, stride, head_conv):
    shortcut = x
    out = conv3d_bn_act(x, p["conv1_w"], *p["bn1"],
                        stride=(stride, stride, stride),
                        padding=(head_conv // 2, 1, 1), relu=True)
    if "down_w" in p:
        shortcut = conv3d_bn_act(x, p["down_w"], *p["dbn"],
                                 stride=(stride, stride, stride),
                                 padding=(0, 0, 0), relu=False)
    # conv2 + BN + residual add + ReLU fused in one Pallas kernel call
    out = conv3d_bn_act(out, p["conv2_w"], *p["bn2"],
                        stride=(1, 1, 1), padding=(1, 1, 1), relu=True,
                        residual=shortcut)
    return out


def resnet_forward(x_ncdhw, params, cfg):
    # NCDHW (PyTorch) -> NDHWC (kernel layout); bf16 on the data path, f32 accumulate.
    x = jnp.transpose(x_ncdhw, (0, 2, 3, 4, 1)).astype(jnp.bfloat16)
    x = conv3d_bn_act(x, params["conv1_w"], *params["bn1"],
                      stride=(cfg["conv1_t_stride"], 2, 2),
                      padding=(cfg["conv1_t_size"] // 2, 3, 3), relu=True)
    if not cfg["no_max_pool"]:
        x = maxpool3d(x, kernel=3, stride=2, padding=1)
    for layer in params["layers"]:
        for blk in layer:
            x = _basic_block_forward(x, blk["params"], blk["stride"], blk["head_conv"])
    feat = adaptive_avgpool_111(x)                      # (N, Cpad) f32
    c_out = int(cfg["block_inplanes"][3] * cfg["widen_factor"])
    return feat[:, :c_out]                              # == x.view(x.size(0), -1)


# ----------------------------- main -----------------------------

if __name__ == "__main__":
    cfg = dict(
        block_inplanes=[4, 8, 16, 32],   # small synthetic widths
        layers=[1, 1, 1, 1],
        n_input_channels=3,
        conv1_t_size=7,
        conv1_t_stride=1,
        no_max_pool=False,
        widen_factor=1.0,
    )

    key = jax.random.PRNGKey(0)
    k_param, k_input = jax.random.split(key)
    params = build_resnet_params(k_param, cfg)

    # input: (batch=2, channels=3, depth=8, height=16, width=16), NCDHW like PyTorch
    x = jax.random.normal(k_input, (2, 3, 8, 16, 16), jnp.float32)

    fwd = jax.jit(lambda inp: resnet_forward(inp, params, cfg))
    out = fwd(x)
    out = jax.block_until_ready(out)
    assert out.shape == (2, int(cfg["block_inplanes"][3] * cfg["widen_factor"]))
    assert jnp.all(jnp.isfinite(out))
    print("KERNEL_OK")
</pallas_src>

<mosaic_0001>
module attributes {stable_mosaic.version = 11 : i64} {
  func.func @_mm_bn_kernel(%arg0: i32, %arg1: i32, %arg2: i32, %arg3: memref<512x1152xbf16, #tpu.memory_space<vmem>>, %arg4: memref<1152x128xbf16, #tpu.memory_space<vmem>>, %arg5: memref<1x128xf32, #tpu.memory_space<vmem>>, %arg6: memref<1x128xf32, #tpu.memory_space<vmem>>, %arg7: memref<512x128xbf16, #tpu.memory_space<vmem>>, %arg8: memref<512x128xf32, #tpu.memory_space<vmem>>) attributes {dimension_semantics = [#tpu.dimension_semantics<parallel>, #tpu.dimension_semantics<parallel>, #tpu.dimension_semantics<arbitrary>], iteration_bounds = array<i64: 2, 1, 1>, scalar_prefetch = 0 : i64, scratch_operands = 1 : i64, tpu.core_type = #tpu.core_type<tc>, window_params = [{transform_indices = @transform_0, window_bounds = array<i64: 512, 1152>}, {transform_indices = @transform_1, window_bounds = array<i64: 1152, 128>}, {transform_indices = @transform_2, window_bounds = array<i64: 1, 128>}, {transform_indices = @transform_3, window_bounds = array<i64: 1, 128>}, {transform_indices = @transform_4, window_bounds = array<i64: 512, 128>}]} {
    %c0_i32 = arith.constant 0 : i32
    %0 = arith.cmpi eq, %arg2, %c0_i32 : i32
    %1 = arith.extui %0 : i1 to i32
    %c0_i32_0 = arith.constant 0 : i32
    %2 = arith.cmpi ne, %1, %c0_i32_0 : i32
    scf.if %2 {
      %cst_10 = arith.constant 0.000000e+00 : f32
      %12 = vector.broadcast %cst_10 : f32 to vector<512x128xf32>
      %c0_11 = arith.constant 0 : index
      %c0_12 = arith.constant 0 : index
      %13 = vector.load %arg8[%c0_11, %c0_12] : memref<512x128xf32, #tpu.memory_space<vmem>>, vector<512x128xf32>
      tpu.vector_store %arg8[%c0_11, %c0_12], %12 {strides = array<i32>} : memref<512x128xf32, #tpu.memory_space<vmem>>, vector<512x128xf32>,
    } else {
    }
    %c0 = arith.constant 0 : index
    %c0_1 = arith.constant 0 : index
    %3 = vector.load %arg8[%c0, %c0_1] : memref<512x128xf32, #tpu.memory_space<vmem>>, vector<512x128xf32>
    %c0_2 = arith.constant 0 : index
    %c0_3 = arith.constant 0 : index
    %4 = vector.load %arg3[%c0_2, %c0_3] : memref<512x1152xbf16, #tpu.memory_space<vmem>>, vector<512x1152xbf16>
    %c0_4 = arith.constant 0 : index
    %c0_5 = arith.constant 0 : index
    %5 = vector.load %arg4[%c0_4, %c0_5] : memref<1152x128xbf16, #tpu.memory_space<vmem>>, vector<1152x128xbf16>
    %cst = arith.constant dense<0.000000e+00> : vector<512x128xf32>
    %6 = tpu.matmul %4, %5, %cst {dimension_numbers = #tpu.dot_dimension_numbers<[1], [0], [0], [1], [0, 0, 1, 1], [], []>} : vector<512x1152xbf16>, vector<1152x128xbf16>, vector<512x128xf32> -> vector<512x128xf32>
    %7 = arith.addf %3, %6 : vector<512x128xf32>
    %c0_6 = arith.constant 0 : index
    %c0_7 = arith.constant 0 : index
    %8 = vector.load %arg8[%c0_6, %c0_7] : memref<512x128xf32, #tpu.memory_space<vmem>>, vector<512x128xf32>
    tpu.vector_store %arg8[%c0_6, %c0_7], %7 {strides = array<i32>} : memref<512x128xf32, #tpu.memory_space<vmem>>, vector<512x128xf32>,
    %c0_i32_8 = arith.constant 0 : i32
    %9 = arith.cmpi eq, %arg2, %c0_i32_8 : i32
    %10 = arith.extui %9 : i1 to i32
    %c0_i32_9 = arith.constant 0 : i32
    %11 = arith.cmpi ne, %10, %c0_i32_9 : i32
    scf.if %11 {
      %c0_10 = arith.constant 0 : index
      %c0_11 = arith.constant 0 : index
      %12 = vector.load %arg8[%c0_10, %c0_11] : memref<512x128xf32, #tpu.memory_space<vmem>>, vector<512x128xf32>
      %c0_12 = arith.constant 0 : index
      %c0_13 = arith.constant 0 : index
      %13 = vector.load %arg5[%c0_12, %c0_13] : memref<1x128xf32, #tpu.memory_space<vmem>>, vector<1x128xf32>
      %14 = vector.broadcast %13 : vector<1x128xf32> to vector<512x128xf32>
      %15 = arith.mulf %12, %14 : vector<512x128xf32>
      %c0_14 = arith.constant 0 : index
      %c0_15 = arith.constant 0 : index
      %16 = vector.load %arg6[%c0_14, %c0_15] : memref<1x128xf32, #tpu.memory_space<vmem>>, vector<1x128xf32>
      %17 = vector.broadcast %16 : vector<1x128xf32> to vector<512x128xf32>
      %18 = arith.addf %15, %17 : vector<512x128xf32>
      %cst_16 = arith.constant 0.000000e+00 : f32
      %19 = vector.broadcast %cst_16 : f32 to vector<512x128xf32>
      %20 = arith.maximumf %18, %19 : vector<512x128xf32>
      %21 = arith.truncf %20 : vector<512x128xf32> to vector<512x128xbf16>
      %c0_17 = arith.constant 0 : index
      %c0_18 = arith.constant 0 : index
      %22 = vector.load %arg7[%c0_17, %c0_18] : memref<512x128xbf16, #tpu.memory_space<vmem>>, vector<512x128xbf16>
      tpu.vector_store %arg7[%c0_17, %c0_18], %21 {strides = array<i32>} : memref<512x128xbf16, #tpu.memory_space<vmem>>, vector<512x128xbf16>,
    } else {
    }
    return
  }
  func.func @transform_0(%arg0: i32, %arg1: i32, %arg2: i32) -> (i32, i32) {
    %c0_i32 = arith.constant 0 : i32
    return %arg0, %arg2 : i32, i32
  }
  func.func @transform_1(%arg0: i32, %arg1: i32, %arg2: i32) -> (i32, i32) {
    %c0_i32 = arith.constant 0 : i32
    return %arg2, %arg1 : i32, i32
  }
  func.func @transform_2(%arg0: i32, %arg1: i32, %arg2: i32) -> (i32, i32) {
    %c0_i32 = arith.constant 0 : i32
    %c0_i32_0 = arith.constant 0 : i32
    return %c0_i32, %arg1 : i32, i32
  }
  func.func @transform_3(%arg0: i32, %arg1: i32, %arg2: i32) -> (i32, i32) {
    %c0_i32 = arith.constant 0 : i32
    %c0_i32_0 = arith.constant 0 : i32
    return %c0_i32, %arg1 : i32, i32
  }
  func.func @transform_4(%arg0: i32, %arg1: i32, %arg2: i32) -> (i32, i32) {
    %c0_i32 = arith.constant 0 : i32
    return %arg0, %arg1 : i32, i32
  }
}

module attributes {stable_mosaic.version = 11 : i64} {
  func.func @_mm_bn_kernel(%arg0: i32, %arg1: i32, %arg2: i32, %arg3: memref<128x1152xbf16, #tpu.memory_space<vmem>>, %arg4: memref<1152x128xbf16, #tpu.memory_space<vmem>>, %arg5: memref<1x128xf32, #tpu.memory_space<vmem>>, %arg6: memref<1x128xf32, #tpu.memory_space<vmem>>, %arg7: memref<128x128xbf16, #tpu.memory_space<vmem>>, %arg8: memref<128x128xf32, #tpu.memory_space<vmem>>) attributes {dimension_semantics = [#tpu.dimension_semantics<parallel>, #tpu.dimension_semantics<parallel>, #tpu.dimension_semantics<arbitrary>], iteration_bounds = array<i64: 1, 1, 1>, scalar_prefetch = 0 : i64, scratch_operands = 1 : i64, tpu.core_type = #tpu.core_type<tc>, window_params = [{transform_indices = @transform_0, window_bounds = array<i64: 128, 1152>}, {transform_indices = @transform_1, window_bounds = array<i64: 1152, 128>}, {transform_indices = @transform_2, window_bounds = array<i64: 1, 128>}, {transform_indices = @transform_3, window_bounds = array<i64: 1, 128>}, {transform_indices = @transform_4, window_bounds = array<i64: 128, 128>}]} {
    %c0_i32 = arith.constant 0 : i32
    %0 = arith.cmpi eq, %arg2, %c0_i32 : i32
    %1 = arith.extui %0 : i1 to i32
    %c0_i32_0 = arith.constant 0 : i32
    %2 = arith.cmpi ne, %1, %c0_i32_0 : i32
    scf.if %2 {
      %cst_10 = arith.constant 0.000000e+00 : f32
      %12 = vector.broadcast %cst_10 : f32 to vector<128x128xf32>
      %c0_11 = arith.constant 0 : index
      %c0_12 = arith.constant 0 : index
      %13 = vector.load %arg8[%c0_11, %c0_12] : memref<128x128xf32, #tpu.memory_space<vmem>>, vector<128x128xf32>
      tpu.vector_store %arg8[%c0_11, %c0_12], %12 {strides = array<i32>} : memref<128x128xf32, #tpu.memory_space<vmem>>, vector<128x128xf32>,
    } else {
    }
    %c0 = arith.constant 0 : index
    %c0_1 = arith.constant 0 : index
    %3 = vector.load %arg8[%c0, %c0_1] : memref<128x128xf32, #tpu.memory_space<vmem>>, vector<128x128xf32>
    %c0_2 = arith.constant 0 : index
    %c0_3 = arith.constant 0 : index
    %4 = vector.load %arg3[%c0_2, %c0_3] : memref<128x1152xbf16, #tpu.memory_space<vmem>>, vector<128x1152xbf16>
    %c0_4 = arith.constant 0 : index
    %c0_5 = arith.constant 0 : index
    %5 = vector.load %arg4[%c0_4, %c0_5] : memref<1152x128xbf16, #tpu.memory_space<vmem>>, vector<1152x128xbf16>
    %cst = arith.constant dense<0.000000e+00> : vector<128x128xf32>
    %6 = tpu.matmul %4, %5, %cst {dimension_numbers = #tpu.dot_dimension_numbers<[1], [0], [0], [1], [0, 0, 1, 1], [], []>} : vector<128x1152xbf16>, vector<1152x128xbf16>, vector<128x128xf32> -> vector<128x128xf32>
    %7 = arith.addf %3, %6 : vector<128x128xf32>
    %c0_6 = arith.constant 0 : index
    %c0_7 = arith.constant 0 : index
    %8 = vector.load %arg8[%c0_6, %c0_7] : memref<128x128xf32, #tpu.memory_space<vmem>>, vector<128x128xf32>
    tpu.vector_store %arg8[%c0_6, %c0_7], %7 {strides = array<i32>} : memref<128x128xf32, #tpu.memory_space<vmem>>, vector<128x128xf32>,
    %c0_i32_8 = arith.constant 0 : i32
    %9 = arith.cmpi eq, %arg2, %c0_i32_8 : i32
    %10 = arith.extui %9 : i1 to i32
    %c0_i32_9 = arith.constant 0 : i32
    %11 = arith.cmpi ne, %10, %c0_i32_9 : i32
    scf.if %11 {
      %c0_10 = arith.constant 0 : index
      %c0_11 = arith.constant 0 : index
      %12 = vector.load %arg8[%c0_10, %c0_11] : memref<128x128xf32, #tpu.memory_space<vmem>>, vector<128x128xf32>
      %c0_12 = arith.constant 0 : index
      %c0_13 = arith.constant 0 : index
      %13 = vector.load %arg5[%c0_12, %c0_13] : memref<1x128xf32, #tpu.memory_space<vmem>>, vector<1x128xf32>
      %14 = vector.broadcast %13 : vector<1x128xf32> to vector<128x128xf32>
      %15 = arith.mulf %12, %14 : vector<128x128xf32>
      %c0_14 = arith.constant 0 : index
      %c0_15 = arith.constant 0 : index
      %16 = vector.load %arg6[%c0_14, %c0_15] : memref<1x128xf32, #tpu.memory_space<vmem>>, vector<1x128xf32>
      %17 = vector.broadcast %16 : vector<1x128xf32> to vector<128x128xf32>
      %18 = arith.addf %15, %17 : vector<128x128xf32>
      %cst_16 = arith.constant 0.000000e+00 : f32
      %19 = vector.broadcast %cst_16 : f32 to vector<128x128xf32>
      %20 = arith.maximumf %18, %19 : vector<128x128xf32>
      %21 = arith.truncf %20 : vector<128x128xf32> to vector<128x128xbf16>
      %c0_17 = arith.constant 0 : index
      %c0_18 = arith.constant 0 : index
      %22 = vector.load %arg7[%c0_17, %c0_18] : memref<128x128xbf16, #tpu.memory_space<vmem>>, vector<128x128xbf16>
      tpu.vector_store %arg7[%c0_17, %c0_18], %21 {strides = array<i32>} : memref<128x128xbf16, #tpu.memory_space<vmem>>, vector<128x128xbf16>,
    } else {
    }
    return
  }
  func.func @transform_0(%arg0: i32, %arg1: i32, %arg2: i32) -> (i32, i32) {
    %c0_i32 = arith.constant 0 : i32
    return %arg0, %arg2 : i32, i32
  }
  func.func @transform_1(%arg0: i32, %arg1: i32, %arg2: i32) -> (i32, i32) {
    %c0_i32 = arith.constant 0 : i32
    return %arg2, %arg1 : i32, i32
  }
  func.func @transform_2(%arg0: i32, %arg1: i32, %arg2: i32) -> (i32, i32) {
    %c0_i32 = arith.constant 0 : i32
    %c0_i32_0 = arith.constant 0 : i32
    return %c0_i32, %arg1 : i32, i32
  }
  func.func @transform_3(%arg0: i32, %arg1: i32, %arg2: i32) -> (i32, i32) {
    %c0_i32 = arith.constant 0 : i32
    %c0_i32_0 = arith.constant 0 : i32
    return %c0_i32, %arg1 : i32, i32
  }
  func.func @transform_4(%arg0: i32, %arg1: i32, %arg2: i32) -> (i32, i32) {
    %c0_i32 = arith.constant 0 : i32
    return %arg0, %arg1 : i32, i32
  }
}

module attributes {stable_mosaic.version = 11 : i64} {
  func.func @_mm_bn_res_kernel(%arg0: i32, %arg1: i32, %arg2: i32, %arg3: memref<128x384xbf16, #tpu.memory_space<vmem>>, %arg4: memref<384x128xbf16, #tpu.memory_space<vmem>>, %arg5: memref<1x128xf32, #tpu.memory_space<vmem>>, %arg6: memref<1x128xf32, #tpu.memory_space<vmem>>, %arg7: memref<128x128xbf16, #tpu.memory_space<vmem>>, %arg8: memref<128x128xbf16, #tpu.memory_space<vmem>>, %arg9: memref<128x128xf32, #tpu.memory_space<vmem>>) attributes {dimension_semantics = [#tpu.dimension_semantics<parallel>, #tpu.dimension_semantics<parallel>, #tpu.dimension_semantics<arbitrary>], iteration_bounds = array<i64: 1, 1, 9>, scalar_prefetch = 0 : i64, scratch_operands = 1 : i64, tpu.core_type = #tpu.core_type<tc>, window_params = [{transform_indices = @transform_0, window_bounds = array<i64: 128, 384>}, {transform_indices = @transform_1, window_bounds = array<i64: 384, 128>}, {transform_indices = @transform_2, window_bounds = array<i64: 1, 128>}, {transform_indices = @transform_3, window_bounds = array<i64: 1, 128>}, {transform_indices = @transform_4, window_bounds = array<i64: 128, 128>}, {transform_indices = @transform_5, window_bounds = array<i64: 128, 128>}]} {
    %c0_i32 = arith.constant 0 : i32
    %0 = arith.cmpi eq, %arg2, %c0_i32 : i32
    %1 = arith.extui %0 : i1 to i32
    %c0_i32_0 = arith.constant 0 : i32
    %2 = arith.cmpi ne, %1, %c0_i32_0 : i32
    scf.if %2 {
      %cst_9 = arith.constant 0.000000e+00 : f32
      %12 = vector.broadcast %cst_9 : f32 to vector<128x128xf32>
      %c0_10 = arith.constant 0 : index
      %c0_11 = arith.constant 0 : index
      %13 = vector.load %arg9[%c0_10, %c0_11] : memref<128x128xf32, #tpu.memory_space<vmem>>, vector<128x128xf32>
      tpu.vector_store %arg9[%c0_10, %c0_11], %12 {strides = array<i32>} : memref<128x128xf32, #tpu.memory_space<vmem>>, vector<128x128xf32>,
    } else {
    }
    %c0 = arith.constant 0 : index
    %c0_1 = arith.constant 0 : index
    %3 = vector.load %arg9[%c0, %c0_1] : memref<128x128xf32, #tpu.memory_space<vmem>>, vector<128x128xf32>
    %c0_2 = arith.constant 0 : index
    %c0_3 = arith.constant 0 : index
    %4 = vector.load %arg3[%c0_2, %c0_3] : memref<128x384xbf16, #tpu.memory_space<vmem>>, vector<128x384xbf16>
    %c0_4 = arith.constant 0 : index
    %c0_5 = arith.constant 0 : index
    %5 = vector.load %arg4[%c0_4, %c0_5] : memref<384x128xbf16, #tpu.memory_space<vmem>>, vector<384x128xbf16>
    %cst = arith.constant dense<0.000000e+00> : vector<128x128xf32>
    %6 = tpu.matmul %4, %5, %cst {dimension_numbers = #tpu.dot_dimension_numbers<[1], [0], [0], [1], [0, 0, 1, 1], [], []>} : vector<128x384xbf16>, vector<384x128xbf16>, vector<128x128xf32> -> vector<128x128xf32>
    %7 = arith.addf %3, %6 : vector<128x128xf32>
    %c0_6 = arith.constant 0 : index
    %c0_7 = arith.constant 0 : index
    %8 = vector.load %arg9[%c0_6, %c0_7] : memref<128x128xf32, #tpu.memory_space<vmem>>, vector<128x128xf32>
    tpu.vector_store %arg9[%c0_6, %c0_7], %7 {strides = array<i32>} : memref<128x128xf32, #tpu.memory_space<vmem>>, vector<128x128xf32>,
    %c8_i32 = arith.constant 8 : i32
    %9 = arith.cmpi eq, %arg2, %c8_i32 : i32
    %10 = arith.extui %9 : i1 to i32
    %c0_i32_8 = arith.constant 0 : i32
    %11 = arith.cmpi ne, %10, %c0_i32_8 : i32
    scf.if %11 {
      %c0_9 = arith.constant 0 : index
      %c0_10 = arith.constant 0 : index
      %12 = vector.load %arg9[%c0_9, %c0_10] : memref<128x128xf32, #tpu.memory_space<vmem>>, vector<128x128xf32>
      %c0_11 = arith.constant 0 : index
      %c0_12 = arith.constant 0 : index
      %13 = vector.load %arg5[%c0_11, %c0_12] : memref<1x128xf32, #tpu.memory_space<vmem>>, vector<1x128xf32>
      %14 = vector.broadcast %13 : vector<1x128xf32> to vector<128x128xf32>
      %15 = arith.mulf %12, %14 : vector<128x128xf32>
      %c0_13 = arith.constant 0 : index
      %c0_14 = arith.constant 0 : index
      %16 = vector.load %arg6[%c0_13, %c0_14] : memref<1x128xf32, #tpu.memory_space<vmem>>, vector<1x128xf32>
      %17 = vector.broadcast %16 : vector<1x128xf32> to vector<128x128xf32>
      %18 = arith.addf %15, %17 : vector<128x128xf32>
      %c0_15 = arith.constant 0 : index
      %c0_16 = arith.constant 0 : index
      %19 = vector.load %arg7[%c0_15, %c0_16] : memref<128x128xbf16, #tpu.memory_space<vmem>>, vector<128x128xbf16>
      %20 = arith.extf %19 : vector<128x128xbf16> to vector<128x128xf32>
      %21 = arith.addf %18, %20 : vector<128x128xf32>
      %cst_17 = arith.constant 0.000000e+00 : f32
      %22 = vector.broadcast %cst_17 : f32 to vector<128x128xf32>
      %23 = arith.maximumf %21, %22 : vector<128x128xf32>
      %24 = arith.truncf %23 : vector<128x128xf32> to vector<128x128xbf16>
      %c0_18 = arith.constant 0 : index
      %c0_19 = arith.constant 0 : index
      %25 = vector.load %arg8[%c0_18, %c0_19] : memref<128x128xbf16, #tpu.memory_space<vmem>>, vector<128x128xbf16>
      tpu.vector_store %arg8[%c0_18, %c0_19], %24 {strides = array<i32>} : memref<128x128xbf16, #tpu.memory_space<vmem>>, vector<128x128xbf16>,
    } else {
    }
    return
  }
  func.func @transform_0(%arg0: i32, %arg1: i32, %arg2: i32) -> (i32, i32) {
    %c0_i32 = arith.constant 0 : i32
    return %arg0, %arg2 : i32, i32
  }
  func.func @transform_1(%arg0: i32, %arg1: i32, %arg2: i32) -> (i32, i32) {
    %c0_i32 = arith.constant 0 : i32
    return %arg2, %arg1 : i32, i32
  }
  func.func @transform_2(%arg0: i32, %arg1: i32, %arg2: i32) -> (i32, i32) {
    %c0_i32 = arith.constant 0 : i32
    %c0_i32_0 = arith.constant 0 : i32
    return %c0_i32, %arg1 : i32, i32
  }
  func.func @transform_3(%arg0: i32, %arg1: i32, %arg2: i32) -> (i32, i32) {
    %c0_i32 = arith.constant 0 : i32
    %c0_i32_0 = arith.constant 0 : i32
    return %c0_i32, %arg1 : i32, i32
  }
  func.func @transform_4(%arg0: i32, %arg1: i32, %arg2: i32) -> (i32, i32) {
    %c0_i32 = arith.constant 0 : i32
    return %arg0, %arg1 : i32, i32
  }
  func.func @transform_5(%arg0: i32, %arg1: i32, %arg2: i32) -> (i32, i32) {
    %c0_i32 = arith.constant 0 : i32
    return %arg0, %arg1 : i32, i32
  }
}

module attributes {stable_mosaic.version = 11 : i64} {
  func.func @_mm_bn_kernel(%arg0: i32, %arg1: i32, %arg2: i32, %arg3: memref<16x1152xbf16, #tpu.memory_space<vmem>>, %arg4: memref<1152x128xbf16, #tpu.memory_space<vmem>>, %arg5: memref<1x128xf32, #tpu.memory_space<vmem>>, %arg6: memref<1x128xf32, #tpu.memory_space<vmem>>, %arg7: memref<16x128xbf16, #tpu.memory_space<vmem>>, %arg8: memref<16x128xf32, #tpu.memory_space<vmem>>) attributes {dimension_semantics = [#tpu.dimension_semantics<parallel>, #tpu.dimension_semantics<parallel>, #tpu.dimension_semantics<arbitrary>], iteration_bounds = array<i64: 1, 1, 1>, scalar_prefetch = 0 : i64, scratch_operands = 1 : i64, tpu.core_type = #tpu.core_type<tc>, window_params = [{transform_indices = @transform_0, window_bounds = array<i64: 16, 1152>}, {transform_indices = @transform_1, window_bounds = array<i64: 1152, 128>}, {transform_indices = @transform_2, window_bounds = array<i64: 1, 128>}, {transform_indices = @transform_3, window_bounds = array<i64: 1, 128>}, {transform_indices = @transform_4, window_bounds = array<i64: 16, 128>}]} {
    %c0_i32 = arith.constant 0 : i32
    %0 = arith.cmpi eq, %arg2, %c0_i32 : i32
    %1 = arith.extui %0 : i1 to i32
    %c0_i32_0 = arith.constant 0 : i32
    %2 = arith.cmpi ne, %1, %c0_i32_0 : i32
    scf.if %2 {
      %cst_10 = arith.constant 0.000000e+00 : f32
      %12 = vector.broadcast %cst_10 : f32 to vector<16x128xf32>
      %c0_11 = arith.constant 0 : index
      %c0_12 = arith.constant 0 : index
      %13 = vector.load %arg8[%c0_11, %c0_12] : memref<16x128xf32, #tpu.memory_space<vmem>>, vector<16x128xf32>
      tpu.vector_store %arg8[%c0_11, %c0_12], %12 {strides = array<i32>} : memref<16x128xf32, #tpu.memory_space<vmem>>, vector<16x128xf32>,
    } else {
    }
    %c0 = arith.constant 0 : index
    %c0_1 = arith.constant 0 : index
    %3 = vector.load %arg8[%c0, %c0_1] : memref<16x128xf32, #tpu.memory_space<vmem>>, vector<16x128xf32>
    %c0_2 = arith.constant 0 : index
    %c0_3 = arith.constant 0 : index
    %4 = vector.load %arg3[%c0_2, %c0_3] : memref<16x1152xbf16, #tpu.memory_space<vmem>>, vector<16x1152xbf16>
    %c0_4 = arith.constant 0 : index
    %c0_5 = arith.constant 0 : index
    %5 = vector.load %arg4[%c0_4, %c0_5] : memref<1152x128xbf16, #tpu.memory_space<vmem>>, vector<1152x128xbf16>
    %cst = arith.constant dense<0.000000e+00> : vector<16x128xf32>
    %6 = tpu.matmul %4, %5, %cst {dimension_numbers = #tpu.dot_dimension_numbers<[1], [0], [0], [1], [0, 0, 1, 1], [], []>} : vector<16x1152xbf16>, vector<1152x128xbf16>, vector<16x128xf32> -> vector<16x128xf32>
    %7 = arith.addf %3, %6 : vector<16x128xf32>
    %c0_6 = arith.constant 0 : index
    %c0_7 = arith.constant 0 : index
    %8 = vector.load %arg8[%c0_6, %c0_7] : memref<16x128xf32, #tpu.memory_space<vmem>>, vector<16x128xf32>
    tpu.vector_store %arg8[%c0_6, %c0_7], %7 {strides = array<i32>} : memref<16x128xf32, #tpu.memory_space<vmem>>, vector<16x128xf32>,
    %c0_i32_8 = arith.constant 0 : i32
    %9 = arith.cmpi eq, %arg2, %c0_i32_8 : i32
    %10 = arith.extui %9 : i1 to i32
    %c0_i32_9 = arith.constant 0 : i32
    %11 = arith.cmpi ne, %10, %c0_i32_9 : i32
    scf.if %11 {
      %c0_10 = arith.constant 0 : index
      %c0_11 = arith.constant 0 : index
      %12 = vector.load %arg8[%c0_10, %c0_11] : memref<16x128xf32, #tpu.memory_space<vmem>>, vector<16x128xf32>
      %c0_12 = arith.constant 0 : index
      %c0_13 = arith.constant 0 : index
      %13 = vector.load %arg5[%c0_12, %c0_13] : memref<1x128xf32, #tpu.memory_space<vmem>>, vector<1x128xf32>
      %14 = vector.broadcast %13 : vector<1x128xf32> to vector<16x128xf32>
      %15 = arith.mulf %12, %14 : vector<16x128xf32>
      %c0_14 = arith.constant 0 : index
      %c0_15 = arith.constant 0 : index
      %16 = vector.load %arg6[%c0_14, %c0_15] : memref<1x128xf32, #tpu.memory_space<vmem>>, vector<1x128xf32>
      %17 = vector.broadcast %16 : vector<1x128xf32> to vector<16x128xf32>
      %18 = arith.addf %15, %17 : vector<16x128xf32>
      %cst_16 = arith.constant 0.000000e+00 : f32
      %19 = vector.broadcast %cst_16 : f32 to vector<16x128xf32>
      %20 = arith.maximumf %18, %19 : vector<16x128xf32>
      %21 = arith.truncf %20 : vector<16x128xf32> to vector<16x128xbf16>
      %c0_17 = arith.constant 0 : index
      %c0_18 = arith.constant 0 : index
      %22 = vector.load %arg7[%c0_17, %c0_18] : memref<16x128xbf16, #tpu.memory_space<vmem>>, vector<16x128xbf16>
      tpu.vector_store %arg7[%c0_17, %c0_18], %21 {strides = array<i32>} : memref<16x128xbf16, #tpu.memory_space<vmem>>, vector<16x128xbf16>,
    } else {
    }
    return
  }
  func.func @transform_0(%arg0: i32, %arg1: i32, %arg2: i32) -> (i32, i32) {
    %c0_i32 = arith.constant 0 : i32
    return %arg0, %arg2 : i32, i32
  }
  func.func @transform_1(%arg0: i32, %arg1: i32, %arg2: i32) -> (i32, i32) {
    %c0_i32 = arith.constant 0 : i32
    return %arg2, %arg1 : i32, i32
  }
  func.func @transform_2(%arg0: i32, %arg1: i32, %arg2: i32) -> (i32, i32) {
    %c0_i32 = arith.constant 0 : i32
    %c0_i32_0 = arith.constant 0 : i32
    return %c0_i32, %arg1 : i32, i32
  }
  func.func @transform_3(%arg0: i32, %arg1: i32, %arg2: i32) -> (i32, i32) {
    %c0_i32 = arith.constant 0 : i32
    %c0_i32_0 = arith.constant 0 : i32
    return %c0_i32, %arg1 : i32, i32
  }
  func.func @transform_4(%arg0: i32, %arg1: i32, %arg2: i32) -> (i32, i32) {
    %c0_i32 = arith.constant 0 : i32
    return %arg0, %arg1 : i32, i32
  }
}

module attributes {stable_mosaic.version = 11 : i64} {
  func.func @_mm_bn_kernel(%arg0: i32, %arg1: i32, %arg2: i32, %arg3: memref<16x128xbf16, #tpu.memory_space<vmem>>, %arg4: memref<128x128xbf16, #tpu.memory_space<vmem>>, %arg5: memref<1x128xf32, #tpu.memory_space<vmem>>, %arg6: memref<1x128xf32, #tpu.memory_space<vmem>>, %arg7: memref<16x128xbf16, #tpu.memory_space<vmem>>, %arg8: memref<16x128xf32, #tpu.memory_space<vmem>>) attributes {dimension_semantics = [#tpu.dimension_semantics<parallel>, #tpu.dimension_semantics<parallel>, #tpu.dimension_semantics<arbitrary>], iteration_bounds = array<i64: 1, 1, 1>, scalar_prefetch = 0 : i64, scratch_operands = 1 : i64, tpu.core_type = #tpu.core_type<tc>, window_params = [{transform_indices = @transform_0, window_bounds = array<i64: 16, 128>}, {transform_indices = @transform_1, window_bounds = array<i64: 128, 128>}, {transform_indices = @transform_2, window_bounds = array<i64: 1, 128>}, {transform_indices = @transform_3, window_bounds = array<i64: 1, 128>}, {transform_indices = @transform_4, window_bounds = array<i64: 16, 128>}]} {
    %c0_i32 = arith.constant 0 : i32
    %0 = arith.cmpi eq, %arg2, %c0_i32 : i32
    %1 = arith.extui %0 : i1 to i32
    %c0_i32_0 = arith.constant 0 : i32
    %2 = arith.cmpi ne, %1, %c0_i32_0 : i32
    scf.if %2 {
      %cst_10 = arith.constant 0.000000e+00 : f32
      %12 = vector.broadcast %cst_10 : f32 to vector<16x128xf32>
      %c0_11 = arith.constant 0 : index
      %c0_12 = arith.constant 0 : index
      %13 = vector.load %arg8[%c0_11, %c0_12] : memref<16x128xf32, #tpu.memory_space<vmem>>, vector<16x128xf32>
      tpu.vector_store %arg8[%c0_11, %c0_12], %12 {strides = array<i32>} : memref<16x128xf32, #tpu.memory_space<vmem>>, vector<16x128xf32>,
    } else {
    }
    %c0 = arith.constant 0 : index
    %c0_1 = arith.constant 0 : index
    %3 = vector.load %arg8[%c0, %c0_1] : memref<16x128xf32, #tpu.memory_space<vmem>>, vector<16x128xf32>
    %c0_2 = arith.constant 0 : index
    %c0_3 = arith.constant 0 : index
    %4 = vector.load %arg3[%c0_2, %c0_3] : memref<16x128xbf16, #tpu.memory_space<vmem>>, vector<16x128xbf16>
    %c0_4 = arith.constant 0 : index
    %c0_5 = arith.constant 0 : index
    %5 = vector.load %arg4[%c0_4, %c0_5] : memref<128x128xbf16, #tpu.memory_space<vmem>>, vector<128x128xbf16>
    %cst = arith.constant dense<0.000000e+00> : vector<16x128xf32>
    %6 = tpu.matmul %4, %5, %cst {dimension_numbers = #tpu.dot_dimension_numbers<[1], [0], [0], [1], [0, 0, 1, 1], [], []>} : vector<16x128xbf16>, vector<128x128xbf16>, vector<16x128xf32> -> vector<16x128xf32>
    %7 = arith.addf %3, %6 : vector<16x128xf32>
    %c0_6 = arith.constant 0 : index
    %c0_7 = arith.constant 0 : index
    %8 = vector.load %arg8[%c0_6, %c0_7] : memref<16x128xf32, #tpu.memory_space<vmem>>, vector<16x128xf32>
    tpu.vector_store %arg8[%c0_6, %c0_7], %7 {strides = array<i32>} : memref<16x128xf32, #tpu.memory_space<vmem>>, vector<16x128xf32>,
    %c0_i32_8 = arith.constant 0 : i32
    %9 = arith.cmpi eq, %arg2, %c0_i32_8 : i32
    %10 = arith.extui %9 : i1 to i32
    %c0_i32_9 = arith.constant 0 : i32
    %11 = arith.cmpi ne, %10, %c0_i32_9 : i32
    scf.if %11 {
      %c0_10 = arith.constant 0 : index
      %c0_11 = arith.constant 0 : index
      %12 = vector.load %arg8[%c0_10, %c0_11] : memref<16x128xf32, #tpu.memory_space<vmem>>, vector<16x128xf32>
      %c0_12 = arith.constant 0 : index
      %c0_13 = arith.constant 0 : index
      %13 = vector.load %arg5[%c0_12, %c0_13] : memref<1x128xf32, #tpu.memory_space<vmem>>, vector<1x128xf32>
      %14 = vector.broadcast %13 : vector<1x128xf32> to vector<16x128xf32>
      %15 = arith.mulf %12, %14 : vector<16x128xf32>
      %c0_14 = arith.constant 0 : index
      %c0_15 = arith.constant 0 : index
      %16 = vector.load %arg6[%c0_14, %c0_15] : memref<1x128xf32, #tpu.memory_space<vmem>>, vector<1x128xf32>
      %17 = vector.broadcast %16 : vector<1x128xf32> to vector<16x128xf32>
      %18 = arith.addf %15, %17 : vector<16x128xf32>
      %19 = arith.truncf %18 : vector<16x128xf32> to vector<16x128xbf16>
      %c0_16 = arith.constant 0 : index
      %c0_17 = arith.constant 0 : index
      %20 = vector.load %arg7[%c0_16, %c0_17] : memref<16x128xbf16, #tpu.memory_space<vmem>>, vector<16x128xbf16>
      tpu.vector_store %arg7[%c0_16, %c0_17], %19 {strides = array<i32>} : memref<16x128xbf16, #tpu.memory_space<vmem>>, vector<16x128xbf16>,
    } else {
    }
    return
  }
  func.func @transform_0(%arg0: i32, %arg1: i32, %arg2: i32) -> (i32, i32) {
    %c0_i32 = arith.constant 0 : i32
    return %arg0, %arg2 : i32, i32
  }
  func.func @transform_1(%arg0: i32, %arg1: i32, %arg2: i32) -> (i32, i32) {
    %c0_i32 = arith.constant 0 : i32
    return %arg2, %arg1 : i32, i32
  }
  func.func @transform_2(%arg0: i32, %arg1: i32, %arg2: i32) -> (i32, i32) {
    %c0_i32 = arith.constant 0 : i32
    %c0_i32_0 = arith.constant 0 : i32
    return %c0_i32, %arg1 : i32, i32
  }
  func.func @transform_3(%arg0: i32, %arg1: i32, %arg2: i32) -> (i32, i32) {
    %c0_i32 = arith.constant 0 : i32
    %c0_i32_0 = arith.constant 0 : i32
    return %c0_i32, %arg1 : i32, i32
  }
  func.func @transform_4(%arg0: i32, %arg1: i32, %arg2: i32) -> (i32, i32) {
    %c0_i32 = arith.constant 0 : i32
    return %arg0, %arg1 : i32, i32
  }
}

module attributes {stable_mosaic.version = 11 : i64} {
  func.func @_mm_bn_res_kernel(%arg0: i32, %arg1: i32, %arg2: i32, %arg3: memref<16x384xbf16, #tpu.memory_space<vmem>>, %arg4: memref<384x128xbf16, #tpu.memory_space<vmem>>, %arg5: memref<1x128xf32, #tpu.memory_space<vmem>>, %arg6: memref<1x128xf32, #tpu.memory_space<vmem>>, %arg7: memref<16x128xbf16, #tpu.memory_space<vmem>>, %arg8: memref<16x128xbf16, #tpu.memory_space<vmem>>, %arg9: memref<16x128xf32, #tpu.memory_space<vmem>>) attributes {dimension_semantics = [#tpu.dimension_semantics<parallel>, #tpu.dimension_semantics<parallel>, #tpu.dimension_semantics<arbitrary>], iteration_bounds = array<i64: 1, 1, 9>, scalar_prefetch = 0 : i64, scratch_operands = 1 : i64, tpu.core_type = #tpu.core_type<tc>, window_params = [{transform_indices = @transform_0, window_bounds = array<i64: 16, 384>}, {transform_indices = @transform_1, window_bounds = array<i64: 384, 128>}, {transform_indices = @transform_2, window_bounds = array<i64: 1, 128>}, {transform_indices = @transform_3, window_bounds = array<i64: 1, 128>}, {transform_indices = @transform_4, window_bounds = array<i64: 16, 128>}, {transform_indices = @transform_5, window_bounds = array<i64: 16, 128>}]} {
    %c0_i32 = arith.constant 0 : i32
    %0 = arith.cmpi eq, %arg2, %c0_i32 : i32
    %1 = arith.extui %0 : i1 to i32
    %c0_i32_0 = arith.constant 0 : i32
    %2 = arith.cmpi ne, %1, %c0_i32_0 : i32
    scf.if %2 {
      %cst_9 = arith.constant 0.000000e+00 : f32
      %12 = vector.broadcast %cst_9 : f32 to vector<16x128xf32>
      %c0_10 = arith.constant 0 : index
      %c0_11 = arith.constant 0 : index
      %13 = vector.load %arg9[%c0_10, %c0_11] : memref<16x128xf32, #tpu.memory_space<vmem>>, vector<16x128xf32>
      tpu.vector_store %arg9[%c0_10, %c0_11], %12 {strides = array<i32>} : memref<16x128xf32, #tpu.memory_space<vmem>>, vector<16x128xf32>,
    } else {
    }
    %c0 = arith.constant 0 : index
    %c0_1 = arith.constant 0 : index
    %3 = vector.load %arg9[%c0, %c0_1] : memref<16x128xf32, #tpu.memory_space<vmem>>, vector<16x128xf32>
    %c0_2 = arith.constant 0 : index
    %c0_3 = arith.constant 0 : index
    %4 = vector.load %arg3[%c0_2, %c0_3] : memref<16x384xbf16, #tpu.memory_space<vmem>>, vector<16x384xbf16>
    %c0_4 = arith.constant 0 : index
    %c0_5 = arith.constant 0 : index
    %5 = vector.load %arg4[%c0_4, %c0_5] : memref<384x128xbf16, #tpu.memory_space<vmem>>, vector<384x128xbf16>
    %cst = arith.constant dense<0.000000e+00> : vector<16x128xf32>
    %6 = tpu.matmul %4, %5, %cst {dimension_numbers = #tpu.dot_dimension_numbers<[1], [0], [0], [1], [0, 0, 1, 1], [], []>} : vector<16x384xbf16>, vector<384x128xbf16>, vector<16x128xf32> -> vector<16x128xf32>
    %7 = arith.addf %3, %6 : vector<16x128xf32>
    %c0_6 = arith.constant 0 : index
    %c0_7 = arith.constant 0 : index
    %8 = vector.load %arg9[%c0_6, %c0_7] : memref<16x128xf32, #tpu.memory_space<vmem>>, vector<16x128xf32>
    tpu.vector_store %arg9[%c0_6, %c0_7], %7 {strides = array<i32>} : memref<16x128xf32, #tpu.memory_space<vmem>>, vector<16x128xf32>,
    %c8_i32 = arith.constant 8 : i32
    %9 = arith.cmpi eq, %arg2, %c8_i32 : i32
    %10 = arith.extui %9 : i1 to i32
    %c0_i32_8 = arith.constant 0 : i32
    %11 = arith.cmpi ne, %10, %c0_i32_8 : i32
    scf.if %11 {
      %c0_9 = arith.constant 0 : index
      %c0_10 = arith.constant 0 : index
      %12 = vector.load %arg9[%c0_9, %c0_10] : memref<16x128xf32, #tpu.memory_space<vmem>>, vector<16x128xf32>
      %c0_11 = arith.constant 0 : index
      %c0_12 = arith.constant 0 : index
      %13 = vector.load %arg5[%c0_11, %c0_12] : memref<1x128xf32, #tpu.memory_space<vmem>>, vector<1x128xf32>
      %14 = vector.broadcast %13 : vector<1x128xf32> to vector<16x128xf32>
      %15 = arith.mulf %12, %14 : vector<16x128xf32>
      %c0_13 = arith.constant 0 : index
      %c0_14 = arith.constant 0 : index
      %16 = vector.load %arg6[%c0_13, %c0_14] : memref<1x128xf32, #tpu.memory_space<vmem>>, vector<1x128xf32>
      %17 = vector.broadcast %16 : vector<1x128xf32> to vector<16x128xf32>
      %18 = arith.addf %15, %17 : vector<16x128xf32>
      %c0_15 = arith.constant 0 : index
      %c0_16 = arith.constant 0 : index
      %19 = vector.load %arg7[%c0_15, %c0_16] : memref<16x128xbf16, #tpu.memory_space<vmem>>, vector<16x128xbf16>
      %20 = arith.extf %19 : vector<16x128xbf16> to vector<16x128xf32>
      %21 = arith.addf %18, %20 : vector<16x128xf32>
      %cst_17 = arith.constant 0.000000e+00 : f32
      %22 = vector.broadcast %cst_17 : f32 to vector<16x128xf32>
      %23 = arith.maximumf %21, %22 : vector<16x128xf32>
      %24 = arith.truncf %23 : vector<16x128xf32> to vector<16x128xbf16>
      %c0_18 = arith.constant 0 : index
      %c0_19 = arith.constant 0 : index
      %25 = vector.load %arg8[%c0_18, %c0_19] : memref<16x128xbf16, #tpu.memory_space<vmem>>, vector<16x128xbf16>
      tpu.vector_store %arg8[%c0_18, %c0_19], %24 {strides = array<i32>} : memref<16x128xbf16, #tpu.memory_space<vmem>>, vector<16x128xbf16>,
    } else {
    }
    return
  }
  func.func @transform_0(%arg0: i32, %arg1: i32, %arg2: i32) -> (i32, i32) {
    %c0_i32 = arith.constant 0 : i32
    return %arg0, %arg2 : i32, i32
  }
  func.func @transform_1(%arg0: i32, %arg1: i32, %arg2: i32) -> (i32, i32) {
    %c0_i32 = arith.constant 0 : i32
    return %arg2, %arg1 : i32, i32
  }
  func.func @transform_2(%arg0: i32, %arg1: i32, %arg2: i32) -> (i32, i32) {
    %c0_i32 = arith.constant 0 : i32
    %c0_i32_0 = arith.constant 0 : i32
    return %c0_i32, %arg1 : i32, i32
  }
  func.func @transform_3(%arg0: i32, %arg1: i32, %arg2: i32) -> (i32, i32) {
    %c0_i32 = arith.constant 0 : i32
    %c0_i32_0 = arith.constant 0 : i32
    return %c0_i32, %arg1 : i32, i32
  }
  func.func @transform_4(%arg0: i32, %arg1: i32, %arg2: i32) -> (i32, i32) {
    %c0_i32 = arith.constant 0 : i32
    return %arg0, %arg1 : i32, i32
  }
  func.func @transform_5(%arg0: i32, %arg1: i32, %arg2: i32) -> (i32, i32) {
    %c0_i32 = arith.constant 0 : i32
    return %arg0, %arg1 : i32, i32
  }
}

module attributes {stable_mosaic.version = 11 : i64} {
  func.func @_mm_bn_kernel(%arg0: i32, %arg1: i32, %arg2: i32, %arg3: memref<8x1152xbf16, #tpu.memory_space<vmem>>, %arg4: memref<1152x128xbf16, #tpu.memory_space<vmem>>, %arg5: memref<1x128xf32, #tpu.memory_space<vmem>>, %arg6: memref<1x128xf32, #tpu.memory_space<vmem>>, %arg7: memref<8x128xbf16, #tpu.memory_space<vmem>>, %arg8: memref<8x128xf32, #tpu.memory_space<vmem>>) attributes {dimension_semantics = [#tpu.dimension_semantics<parallel>, #tpu.dimension_semantics<parallel>, #tpu.dimension_semantics<arbitrary>], iteration_bounds = array<i64: 1, 1, 1>, scalar_prefetch = 0 : i64, scratch_operands = 1 : i64, tpu.core_type = #tpu.core_type<tc>, window_params = [{transform_indices = @transform_0, window_bounds = array<i64: 8, 1152>}, {transform_indices = @transform_1, window_bounds = array<i64: 1152, 128>}, {transform_indices = @transform_2, window_bounds = array<i64: 1, 128>}, {transform_indices = @transform_3, window_bounds = array<i64: 1, 128>}, {transform_indices = @transform_4, window_bounds = array<i64: 8, 128>}]} {
    %c0_i32 = arith.constant 0 : i32
    %0 = arith.cmpi eq, %arg2, %c0_i32 : i32
    %1 = arith.extui %0 : i1 to i32
    %c0_i32_0 = arith.constant 0 : i32
    %2 = arith.cmpi ne, %1, %c0_i32_0 : i32
    scf.if %2 {
      %cst_10 = arith.constant 0.000000e+00 : f32
      %12 = vector.broadcast %cst_10 : f32 to vector<8x128xf32>
      %c0_11 = arith.constant 0 : index
      %c0_12 = arith.constant 0 : index
      %13 = vector.load %arg8[%c0_11, %c0_12] : memref<8x128xf32, #tpu.memory_space<vmem>>, vector<8x128xf32>
      tpu.vector_store %arg8[%c0_11, %c0_12], %12 {strides = array<i32>} : memref<8x128xf32, #tpu.memory_space<vmem>>, vector<8x128xf32>,
    } else {
    }
    %c0 = arith.constant 0 : index
    %c0_1 = arith.constant 0 : index
    %3 = vector.load %arg8[%c0, %c0_1] : memref<8x128xf32, #tpu.memory_space<vmem>>, vector<8x128xf32>
    %c0_2 = arith.constant 0 : index
    %c0_3 = arith.constant 0 : index
    %4 = vector.load %arg3[%c0_2, %c0_3] : memref<8x1152xbf16, #tpu.memory_space<vmem>>, vector<8x1152xbf16>
    %c0_4 = arith.constant 0 : index
    %c0_5 = arith.constant 0 : index
    %5 = vector.load %arg4[%c0_4, %c0_5] : memref<1152x128xbf16, #tpu.memory_space<vmem>>, vector<1152x128xbf16>
    %cst = arith.constant dense<0.000000e+00> : vector<8x128xf32>
    %6 = tpu.matmul %4, %5, %cst {dimension_numbers = #tpu.dot_dimension_numbers<[1], [0], [0], [1], [0, 0, 1, 1], [], []>} : vector<8x1152xbf16>, vector<1152x128xbf16>, vector<8x128xf32> -> vector<8x128xf32>
    %7 = arith.addf %3, %6 : vector<8x128xf32>
    %c0_6 = arith.constant 0 : index
    %c0_7 = arith.constant 0 : index
    %8 = vector.load %arg8[%c0_6, %c0_7] : memref<8x128xf32, #tpu.memory_space<vmem>>, vector<8x128xf32>
    tpu.vector_store %arg8[%c0_6, %c0_7], %7 {strides = array<i32>} : memref<8x128xf32, #tpu.memory_space<vmem>>, vector<8x128xf32>,
    %c0_i32_8 = arith.constant 0 : i32
    %9 = arith.cmpi eq, %arg2, %c0_i32_8 : i32
    %10 = arith.extui %9 : i1 to i32
    %c0_i32_9 = arith.constant 0 : i32
    %11 = arith.cmpi ne, %10, %c0_i32_9 : i32
    scf.if %11 {
      %c0_10 = arith.constant 0 : index
      %c0_11 = arith.constant 0 : index
      %12 = vector.load %arg8[%c0_10, %c0_11] : memref<8x128xf32, #tpu.memory_space<vmem>>, vector<8x128xf32>
      %c0_12 = arith.constant 0 : index
      %c0_13 = arith.constant 0 : index
      %13 = vector.load %arg5[%c0_12, %c0_13] : memref<1x128xf32, #tpu.memory_space<vmem>>, vector<1x128xf32>
      %14 = vector.broadcast %13 : vector<1x128xf32> to vector<8x128xf32>
      %15 = arith.mulf %12, %14 : vector<8x128xf32>
      %c0_14 = arith.constant 0 : index
      %c0_15 = arith.constant 0 : index
      %16 = vector.load %arg6[%c0_14, %c0_15] : memref<1x128xf32, #tpu.memory_space<vmem>>, vector<1x128xf32>
      %17 = vector.broadcast %16 : vector<1x128xf32> to vector<8x128xf32>
      %18 = arith.addf %15, %17 : vector<8x128xf32>
      %cst_16 = arith.constant 0.000000e+00 : f32
      %19 = vector.broadcast %cst_16 : f32 to vector<8x128xf32>
      %20 = arith.maximumf %18, %19 : vector<8x128xf32>
      %21 = arith.truncf %20 : vector<8x128xf32> to vector<8x128xbf16>
      %c0_17 = arith.constant 0 : index
      %c0_18 = arith.constant 0 : index
      %22 = vector.load %arg7[%c0_17, %c0_18] : memref<8x128xbf16, #tpu.memory_space<vmem>>, vector<8x128xbf16>
      tpu.vector_store %arg7[%c0_17, %c0_18], %21 {strides = array<i32>} : memref<8x128xbf16, #tpu.memory_space<vmem>>, vector<8x128xbf16>,
    } else {
    }
    return
  }
  func.func @transform_0(%arg0: i32, %arg1: i32, %arg2: i32) -> (i32, i32) {
    %c0_i32 = arith.constant 0 : i32
    return %arg0, %arg2 : i32, i32
  }
  func.func @transform_1(%arg0: i32, %arg1: i32, %arg2: i32) -> (i32, i32) {
    %c0_i32 = arith.constant 0 : i32
    return %arg2, %arg1 : i32, i32
  }
  func.func @transform_2(%arg0: i32, %arg1: i32, %arg2: i32) -> (i32, i32) {
    %c0_i32 = arith.constant 0 : i32
    %c0_i32_0 = arith.constant 0 : i32
    return %c0_i32, %arg1 : i32, i32
  }
  func.func @transform_3(%arg0: i32, %arg1: i32, %arg2: i32) -> (i32, i32) {
    %c0_i32 = arith.constant 0 : i32
    %c0_i32_0 = arith.constant 0 : i32
    return %c0_i32, %arg1 : i32, i32
  }
  func.func @transform_4(%arg0: i32, %arg1: i32, %arg2: i32) -> (i32, i32) {
    %c0_i32 = arith.constant 0 : i32
    return %arg0, %arg1 : i32, i32
  }
}

module attributes {stable_mosaic.version = 11 : i64} {
  func.func @_mm_bn_res_kernel(%arg0: i32, %arg1: i32, %arg2: i32, %arg3: memref<8x384xbf16, #tpu.memory_space<vmem>>, %arg4: memref<384x128xbf16, #tpu.memory_space<vmem>>, %arg5: memref<1x128xf32, #tpu.memory_space<vmem>>, %arg6: memref<1x128xf32, #tpu.memory_space<vmem>>, %arg7: memref<8x128xbf16, #tpu.memory_space<vmem>>, %arg8: memref<8x128xbf16, #tpu.memory_space<vmem>>, %arg9: memref<8x128xf32, #tpu.memory_space<vmem>>) attributes {dimension_semantics = [#tpu.dimension_semantics<parallel>, #tpu.dimension_semantics<parallel>, #tpu.dimension_semantics<arbitrary>], iteration_bounds = array<i64: 1, 1, 9>, scalar_prefetch = 0 : i64, scratch_operands = 1 : i64, tpu.core_type = #tpu.core_type<tc>, window_params = [{transform_indices = @transform_0, window_bounds = array<i64: 8, 384>}, {transform_indices = @transform_1, window_bounds = array<i64: 384, 128>}, {transform_indices = @transform_2, window_bounds = array<i64: 1, 128>}, {transform_indices = @transform_3, window_bounds = array<i64: 1, 128>}, {transform_indices = @transform_4, window_bounds = array<i64: 8, 128>}, {transform_indices = @transform_5, window_bounds = array<i64: 8, 128>}]} {
    %c0_i32 = arith.constant 0 : i32
    %0 = arith.cmpi eq, %arg2, %c0_i32 : i32
    %1 = arith.extui %0 : i1 to i32
    %c0_i32_0 = arith.constant 0 : i32
    %2 = arith.cmpi ne, %1, %c0_i32_0 : i32
    scf.if %2 {
      %cst_9 = arith.constant 0.000000e+00 : f32
      %12 = vector.broadcast %cst_9 : f32 to vector<8x128xf32>
      %c0_10 = arith.constant 0 : index
      %c0_11 = arith.constant 0 : index
      %13 = vector.load %arg9[%c0_10, %c0_11] : memref<8x128xf32, #tpu.memory_space<vmem>>, vector<8x128xf32>
      tpu.vector_store %arg9[%c0_10, %c0_11], %12 {strides = array<i32>} : memref<8x128xf32, #tpu.memory_space<vmem>>, vector<8x128xf32>,
    } else {
    }
    %c0 = arith.constant 0 : index
    %c0_1 = arith.constant 0 : index
    %3 = vector.load %arg9[%c0, %c0_1] : memref<8x128xf32, #tpu.memory_space<vmem>>, vector<8x128xf32>
    %c0_2 = arith.constant 0 : index
    %c0_3 = arith.constant 0 : index
    %4 = vector.load %arg3[%c0_2, %c0_3] : memref<8x384xbf16, #tpu.memory_space<vmem>>, vector<8x384xbf16>
    %c0_4 = arith.constant 0 : index
    %c0_5 = arith.constant 0 : index
    %5 = vector.load %arg4[%c0_4, %c0_5] : memref<384x128xbf16, #tpu.memory_space<vmem>>, vector<384x128xbf16>
    %cst = arith.constant dense<0.000000e+00> : vector<8x128xf32>
    %6 = tpu.matmul %4, %5, %cst {dimension_numbers = #tpu.dot_dimension_numbers<[1], [0], [0], [1], [0, 0, 1, 1], [], []>} : vector<8x384xbf16>, vector<384x128xbf16>, vector<8x128xf32> -> vector<8x128xf32>
    %7 = arith.addf %3, %6 : vector<8x128xf32>
    %c0_6 = arith.constant 0 : index
    %c0_7 = arith.constant 0 : index
    %8 = vector.load %arg9[%c0_6, %c0_7] : memref<8x128xf32, #tpu.memory_space<vmem>>, vector<8x128xf32>
    tpu.vector_store %arg9[%c0_6, %c0_7], %7 {strides = array<i32>} : memref<8x128xf32, #tpu.memory_space<vmem>>, vector<8x128xf32>,
    %c8_i32 = arith.constant 8 : i32
    %9 = arith.cmpi eq, %arg2, %c8_i32 : i32
    %10 = arith.extui %9 : i1 to i32
    %c0_i32_8 = arith.constant 0 : i32
    %11 = arith.cmpi ne, %10, %c0_i32_8 : i32
    scf.if %11 {
      %c0_9 = arith.constant 0 : index
      %c0_10 = arith.constant 0 : index
      %12 = vector.load %arg9[%c0_9, %c0_10] : memref<8x128xf32, #tpu.memory_space<vmem>>, vector<8x128xf32>
      %c0_11 = arith.constant 0 : index
      %c0_12 = arith.constant 0 : index
      %13 = vector.load %arg5[%c0_11, %c0_12] : memref<1x128xf32, #tpu.memory_space<vmem>>, vector<1x128xf32>
      %14 = vector.broadcast %13 : vector<1x128xf32> to vector<8x128xf32>
      %15 = arith.mulf %12, %14 : vector<8x128xf32>
      %c0_13 = arith.constant 0 : index
      %c0_14 = arith.constant 0 : index
      %16 = vector.load %arg6[%c0_13, %c0_14] : memref<1x128xf32, #tpu.memory_space<vmem>>, vector<1x128xf32>
      %17 = vector.broadcast %16 : vector<1x128xf32> to vector<8x128xf32>
      %18 = arith.addf %15, %17 : vector<8x128xf32>
      %c0_15 = arith.constant 0 : index
      %c0_16 = arith.constant 0 : index
      %19 = vector.load %arg7[%c0_15, %c0_16] : memref<8x128xbf16, #tpu.memory_space<vmem>>, vector<8x128xbf16>
      %20 = arith.extf %19 : vector<8x128xbf16> to vector<8x128xf32>
      %21 = arith.addf %18, %20 : vector<8x128xf32>
      %cst_17 = arith.constant 0.000000e+00 : f32
      %22 = vector.broadcast %cst_17 : f32 to vector<8x128xf32>
      %23 = arith.maximumf %21, %22 : vector<8x128xf32>
      %24 = arith.truncf %23 : vector<8x128xf32> to vector<8x128xbf16>
      %c0_18 = arith.constant 0 : index
      %c0_19 = arith.constant 0 : index
      %25 = vector.load %arg8[%c0_18, %c0_19] : memref<8x128xbf16, #tpu.memory_space<vmem>>, vector<8x128xbf16>
      tpu.vector_store %arg8[%c0_18, %c0_19], %24 {strides = array<i32>} : memref<8x128xbf16, #tpu.memory_space<vmem>>, vector<8x128xbf16>,
    } else {
    }
    return
  }
  func.func @transform_0(%arg0: i32, %arg1: i32, %arg2: i32) -> (i32, i32) {
    %c0_i32 = arith.constant 0 : i32
    return %arg0, %arg2 : i32, i32
  }
  func.func @transform_1(%arg0: i32, %arg1: i32, %arg2: i32) -> (i32, i32) {
    %c0_i32 = arith.constant 0 : i32
    return %arg2, %arg1 : i32, i32
  }
  func.func @transform_2(%arg0: i32, %arg1: i32, %arg2: i32) -> (i32, i32) {
    %c0_i32 = arith.constant 0 : i32
    %c0_i32_0 = arith.constant 0 : i32
    return %c0_i32, %arg1 : i32, i32
  }
  func.func @transform_3(%arg0: i32, %arg1: i32, %arg2: i32) -> (i32, i32) {
    %c0_i32 = arith.constant 0 : i32
    %c0_i32_0 = arith.constant 0 : i32
    return %c0_i32, %arg1 : i32, i32
  }
  func.func @transform_4(%arg0: i32, %arg1: i32, %arg2: i32) -> (i32, i32) {
    %c0_i32 = arith.constant 0 : i32
    return %arg0, %arg1 : i32, i32
  }
  func.func @transform_5(%arg0: i32, %arg1: i32, %arg2: i32) -> (i32, i32) {
    %c0_i32 = arith.constant 0 : i32
    return %arg0, %arg1 : i32, i32
  }
}

module attributes {stable_mosaic.version = 11 : i64} {
  func.func @_mm_bn_kernel(%arg0: i32, %arg1: i32, %arg2: i32, %arg3: memref<8x128xbf16, #tpu.memory_space<vmem>>, %arg4: memref<128x128xbf16, #tpu.memory_space<vmem>>, %arg5: memref<1x128xf32, #tpu.memory_space<vmem>>, %arg6: memref<1x128xf32, #tpu.memory_space<vmem>>, %arg7: memref<8x128xbf16, #tpu.memory_space<vmem>>, %arg8: memref<8x128xf32, #tpu.memory_space<vmem>>) attributes {dimension_semantics = [#tpu.dimension_semantics<parallel>, #tpu.dimension_semantics<parallel>, #tpu.dimension_semantics<arbitrary>], iteration_bounds = array<i64: 1, 1, 1>, scalar_prefetch = 0 : i64, scratch_operands = 1 : i64, tpu.core_type = #tpu.core_type<tc>, window_params = [{transform_indices = @transform_0, window_bounds = array<i64: 8, 128>}, {transform_indices = @transform_1, window_bounds = array<i64: 128, 128>}, {transform_indices = @transform_2, window_bounds = array<i64: 1, 128>}, {transform_indices = @transform_3, window_bounds = array<i64: 1, 128>}, {transform_indices = @transform_4, window_bounds = array<i64: 8, 128>}]} {
    %c0_i32 = arith.constant 0 : i32
    %0 = arith.cmpi eq, %arg2, %c0_i32 : i32
    %1 = arith.extui %0 : i1 to i32
    %c0_i32_0 = arith.constant 0 : i32
    %2 = arith.cmpi ne, %1, %c0_i32_0 : i32
    scf.if %2 {
      %cst_10 = arith.constant 0.000000e+00 : f32
      %12 = vector.broadcast %cst_10 : f32 to vector<8x128xf32>
      %c0_11 = arith.constant 0 : index
      %c0_12 = arith.constant 0 : index
      %13 = vector.load %arg8[%c0_11, %c0_12] : memref<8x128xf32, #tpu.memory_space<vmem>>, vector<8x128xf32>
      tpu.vector_store %arg8[%c0_11, %c0_12], %12 {strides = array<i32>} : memref<8x128xf32, #tpu.memory_space<vmem>>, vector<8x128xf32>,
    } else {
    }
    %c0 = arith.constant 0 : index
    %c0_1 = arith.constant 0 : index
    %3 = vector.load %arg8[%c0, %c0_1] : memref<8x128xf32, #tpu.memory_space<vmem>>, vector<8x128xf32>
    %c0_2 = arith.constant 0 : index
    %c0_3 = arith.constant 0 : index
    %4 = vector.load %arg3[%c0_2, %c0_3] : memref<8x128xbf16, #tpu.memory_space<vmem>>, vector<8x128xbf16>
    %c0_4 = arith.constant 0 : index
    %c0_5 = arith.constant 0 : index
    %5 = vector.load %arg4[%c0_4, %c0_5] : memref<128x128xbf16, #tpu.memory_space<vmem>>, vector<128x128xbf16>
    %cst = arith.constant dense<0.000000e+00> : vector<8x128xf32>
    %6 = tpu.matmul %4, %5, %cst {dimension_numbers = #tpu.dot_dimension_numbers<[1], [0], [0], [1], [0, 0, 1, 1], [], []>} : vector<8x128xbf16>, vector<128x128xbf16>, vector<8x128xf32> -> vector<8x128xf32>
    %7 = arith.addf %3, %6 : vector<8x128xf32>
    %c0_6 = arith.constant 0 : index
    %c0_7 = arith.constant 0 : index
    %8 = vector.load %arg8[%c0_6, %c0_7] : memref<8x128xf32, #tpu.memory_space<vmem>>, vector<8x128xf32>
    tpu.vector_store %arg8[%c0_6, %c0_7], %7 {strides = array<i32>} : memref<8x128xf32, #tpu.memory_space<vmem>>, vector<8x128xf32>,
    %c0_i32_8 = arith.constant 0 : i32
    %9 = arith.cmpi eq, %arg2, %c0_i32_8 : i32
    %10 = arith.extui %9 : i1 to i32
    %c0_i32_9 = arith.constant 0 : i32
    %11 = arith.cmpi ne, %10, %c0_i32_9 : i32
    scf.if %11 {
      %c0_10 = arith.constant 0 : index
      %c0_11 = arith.constant 0 : index
      %12 = vector.load %arg8[%c0_10, %c0_11] : memref<8x128xf32, #tpu.memory_space<vmem>>, vector<8x128xf32>
      %c0_12 = arith.constant 0 : index
      %c0_13 = arith.constant 0 : index
      %13 = vector.load %arg5[%c0_12, %c0_13] : memref<1x128xf32, #tpu.memory_space<vmem>>, vector<1x128xf32>
      %14 = vector.broadcast %13 : vector<1x128xf32> to vector<8x128xf32>
      %15 = arith.mulf %12, %14 : vector<8x128xf32>
      %c0_14 = arith.constant 0 : index
      %c0_15 = arith.constant 0 : index
      %16 = vector.load %arg6[%c0_14, %c0_15] : memref<1x128xf32, #tpu.memory_space<vmem>>, vector<1x128xf32>
      %17 = vector.broadcast %16 : vector<1x128xf32> to vector<8x128xf32>
      %18 = arith.addf %15, %17 : vector<8x128xf32>
      %19 = arith.truncf %18 : vector<8x128xf32> to vector<8x128xbf16>
      %c0_16 = arith.constant 0 : index
      %c0_17 = arith.constant 0 : index
      %20 = vector.load %arg7[%c0_16, %c0_17] : memref<8x128xbf16, #tpu.memory_space<vmem>>, vector<8x128xbf16>
      tpu.vector_store %arg7[%c0_16, %c0_17], %19 {strides = array<i32>} : memref<8x128xbf16, #tpu.memory_space<vmem>>, vector<8x128xbf16>,
    } else {
    }
    return
  }
  func.func @transform_0(%arg0: i32, %arg1: i32, %arg2: i32) -> (i32, i32) {
    %c0_i32 = arith.constant 0 : i32
    return %arg0, %arg2 : i32, i32
  }
  func.func @transform_1(%arg0: i32, %arg1: i32, %arg2: i32) -> (i32, i32) {
    %c0_i32 = arith.constant 0 : i32
    return %arg2, %arg1 : i32, i32
  }
  func.func @transform_2(%arg0: i32, %arg1: i32, %arg2: i32) -> (i32, i32) {
    %c0_i32 = arith.constant 0 : i32
    %c0_i32_0 = arith.constant 0 : i32
    return %c0_i32, %arg1 : i32, i32
  }
  func.func @transform_3(%arg0: i32, %arg1: i32, %arg2: i32) -> (i32, i32) {
    %c0_i32 = arith.constant 0 : i32
    %c0_i32_0 = arith.constant 0 : i32
    return %c0_i32, %arg1 : i32, i32
  }
  func.func @transform_4(%arg0: i32, %arg1: i32, %arg2: i32) -> (i32, i32) {
    %c0_i32 = arith.constant 0 : i32
    return %arg0, %arg1 : i32, i32
  }
}

module attributes {stable_mosaic.version = 11 : i64} {
  func.func @_avgpool_kernel(%arg0: i32, %arg1: memref<2x1x128xbf16, #tpu.memory_space<vmem>>, %arg2: memref<2x128xf32, #tpu.memory_space<vmem>>) attributes {dimension_semantics = [#tpu.dimension_semantics<arbitrary>], iteration_bounds = array<i64: 1>, scalar_prefetch = 0 : i64, scratch_operands = 0 : i64, tpu.core_type = #tpu.core_type<tc>, window_params = [{pipeline_mode = #tpu.pipeline_mode<synchronous>, transform_indices = @transform_0, window_bounds = array<i64: 2, 1, 128>}, {pipeline_mode = #tpu.pipeline_mode<synchronous>, transform_indices = @transform_1, window_bounds = array<i64: 2, 128>}]} {
    %c0 = arith.constant 0 : index
    %c0_0 = arith.constant 0 : index
    %c0_1 = arith.constant 0 : index
    %0 = vector.load %arg1[%c0, %c0_0, %c0_1] : memref<2x1x128xbf16, #tpu.memory_space<vmem>>, vector<2x1x128xbf16>
    %1 = arith.extf %0 : vector<2x1x128xbf16> to vector<2x1x128xf32>
    %cst = arith.constant dense<0.000000e+00> : vector<2x128xf32>
    %2 = vector.multi_reduction <add>, %1, %cst [1] : vector<2x1x128xf32> to vector<2x128xf32>
    %cst_2 = arith.constant 1.000000e+00 : f32
    %3 = vector.broadcast %cst_2 : f32 to vector<2x128xf32>
    %4 = arith.divf %2, %3 : vector<2x128xf32>
    %c0_3 = arith.constant 0 : index
    %c0_4 = arith.constant 0 : index
    %5 = vector.load %arg2[%c0_3, %c0_4] : memref<2x128xf32, #tpu.memory_space<vmem>>, vector<2x128xf32>
    tpu.vector_store %arg2[%c0_3, %c0_4], %4 {strides = array<i32>} : memref<2x128xf32, #tpu.memory_space<vmem>>, vector<2x128xf32>,
    return
  }
  func.func @transform_0(%arg0: i32) -> (i32, i32, i32) {
    %c0_i32 = arith.constant 0 : i32
    %c0_i32_0 = arith.constant 0 : i32
    %c0_i32_1 = arith.constant 0 : i32
    %c0_i32_2 = arith.constant 0 : i32
    return %c0_i32, %c0_i32_0, %c0_i32_1 : i32, i32, i32
  }
  func.func @transform_1(%arg0: i32) -> (i32, i32) {
    %c0_i32 = arith.constant 0 : i32
    %c0_i32_0 = arith.constant 0 : i32
    %c0_i32_1 = arith.constant 0 : i32
    return %c0_i32, %c0_i32_0 : i32, i32
  }
}

</mosaic_0001>

<llo_original>
// kernel: _lambda_.14
$region0: #{_lambda_.14}
  #allocation0 [shape = 'u32[]', space=smem, size = 0x4, offset = 0x4, fixed_abs, tag = 'smem constant byte address 0x4 - core index']
  #allocation1 [shape = 'u32[144,128]{1,0:T(1,128)}', space=vmem, size = 0x12000, scoped, tag = 'internal scratch']
  #allocation2 [shape = 'f32[128,128]{1,0:T(8,128)}', space=vmem, size = 0x10000, scoped, tag = 'scratch operand']
  %s0 = inlined_call_operand.vmem [shape: bf16[128,1152], index: 0, kind: input, shape index: {}]
  %s1 = inlined_call_operand.vmem [shape: bf16[1152,128], index: 1, kind: input, shape index: {}]
  %s2 = inlined_call_operand.vmem [shape: f32[1,128], index: 2, kind: input, shape index: {}]
  %s3 = inlined_call_operand.vmem [shape: f32[1,128], index: 3, kind: input, shape index: {}]
  %s4 = inlined_call_operand.vmem [shape: bf16[128,128], index: 4, kind: output, shape index: {}]
  %s5 = sld [smem:[#allocation0]]
  $region34: #{_lambda_.14} parent=0
    _
  %s7 = ssub.s32 1, %s5
  %s8 = scalar_select 0, %s7, %s5
  // Predicated region
  $region2: #{_lambda_.14} parent=0 // pred_check
    _
  $region3: #{_lambda_.14} parent=0 // pred_check_branch
    %10 = sbr.rel (0) target = $region5
  $region4: #{_lambda_.14} parent=0 // pred_region
    _
  $region5: #{_lambda_.14} parent=0 // pred_fallthru
    _
  // Predicated region
  $region6: #{_lambda_.14} parent=0 // pred_check
    _
  $region7: #{_lambda_.14} parent=0 // pred_check_branch
    %12 = sbr.rel (0) target = $region9
  $region8: #{_lambda_.14} parent=0 // pred_region
    _
  $region9: #{_lambda_.14} parent=0 // pred_fallthru
    _
  // Predicated region
  $region10: #{_lambda_.14} parent=0 // pred_check
    _
  $region11: #{_lambda_.14} parent=0 // pred_check_branch
    %14 = sbr.rel (0) target = $region13
  $region12: #{_lambda_.14} parent=0 // pred_region
    _
  $region13: #{_lambda_.14} parent=0 // pred_fallthru
    _
  // Predicated region
  $region14: #{_lambda_.14} parent=0 // pred_check
    _
  $region15: #{_lambda_.14} parent=0 // pred_check_branch
    %16 = sbr.rel (0) target = $region17
  $region16: #{_lambda_.14} parent=0 // pred_region
    _
  $region17: #{_lambda_.14} parent=0 // pred_fallthru
    _
  %p18 = scmp.eq.s32.totalorder 0, 0
  // Predicated region
  $region18: #{_lambda_.14} parent=0 // pred_check
    %p19 = pneg %p18
  $region19: #{_lambda_.14} parent=0 // pred_check_branch
    %21 = sbr.rel (%p19) target = $region21
  $region20: #{_lambda_.14} parent=0 // pred_region
    %22 = vst [vmem:[#allocation2] sm:$0xff] 0.0
    %23 = vst [vmem:[#allocation2 + $0x8] sm:$0xff] 0.0
    %24 = vst [vmem:[#allocation2 + $0x10] sm:$0xff] 0.0
    %25 = vst [vmem:[#allocation2 + $0x18] sm:$0xff] 0.0
    %26 = vst [vmem:[#allocation2 + $0x20] sm:$0xff] 0.0
    %27 = vst [vmem:[#allocation2 + $0x28] sm:$0xff] 0.0
    %28 = vst [vmem:[#allocation2 + $0x30] sm:$0xff] 0.0
    %29 = vst [vmem:[#allocation2 + $0x38] sm:$0xff] 0.0
    %30 = vst [vmem:[#allocation2 + $0x40] sm:$0xff] 0.0
    %31 = vst [vmem:[#allocation2 + $0x48] sm:$0xff] 0.0
    %32 = vst [vmem:[#allocation2 + $0x50] sm:$0xff] 0.0
    %33 = vst [vmem:[#allocation2 + $0x58] sm:$0xff] 0.0
    %34 = vst [vmem:[#allocation2 + $0x60] sm:$0xff] 0.0
    %35 = vst [vmem:[#allocation2 + $0x68] sm:$0xff] 0.0
    %36 = vst [vmem:[#allocation2 + $0x70] sm:$0xff] 0.0
    %37 = vst [vmem:[#allocation2 + $0x78] sm:$0xff] 0.0
  $region21: #{_lambda_.14} parent=0 // pred_fallthru
    _
  %v38 = vld [vmem:[#allocation2] sm:$0xff]
  %v39 = vld [vmem:[#allocation2 + $0x8] sm:$0xff]
  %v40 = vld [vmem:[#allocation2 + $0x10] sm:$0xff]
  %v41 = vld [vmem:[#allocation2 + $0x18] sm:$0xff]
  %v42 = vld [vmem:[#allocation2 + $0x20] sm:$0xff]
  %v43 = vld [vmem:[#allocation2 + $0x28] sm:$0xff]
  %v44 = vld [vmem:[#allocation2 + $0x30] sm:$0xff]
  %v45 = vld [vmem:[#allocation2 + $0x38] sm:$0xff]
  %v46 = vld [vmem:[#allocation2 + $0x40] sm:$0xff]
  %v47 = vld [vmem:[#allocation2 + $0x48] sm:$0xff]
  %v48 = vld [vmem:[#allocation2 + $0x50] sm:$0xff]
  %v49 = vld [vmem:[#allocation2 + $0x58] sm:$0xff]
  %v50 = vld [vmem:[#allocation2 + $0x60] sm:$0xff]
  %v51 = vld [vmem:[#allocation2 + $0x68] sm:$0xff]
  %v52 = vld [vmem:[#allocation2 + $0x70] sm:$0xff]
  %v53 = vld [vmem:[#allocation2 + $0x78] sm:$0xff]
  %v54 = vld [vmem:[%s0] sm:$0xff]
  %v55 = vld [vmem:[%s0 + $0x8] sm:$0xff]
  %v56 = vld [vmem:[%s0 + $0x10] sm:$0xff]
  %v57 = vld [vmem:[%s0 + $0x18] sm:$0xff]
  %v58 = vld [vmem:[%s0 + $0x20] sm:$0xf]
  %v59 = vld [vmem:[%s0 + $0x24] sm:$0xff]
  %v60 = vld [vmem:[%s0 + $0x2c] sm:$0xff]
  %v61 = vld [vmem:[%s0 + $0x34] sm:$0xff]
  %v62 = vld [vmem:[%s0 + $0x3c] sm:$0xff]
  %v63 = vld [vmem:[%s0 + $0x44] sm:$0xf]
  %v64 = vld [vmem:[%s0 + $0x48] sm:$0xff]
  %v65 = vld [vmem:[%s0 + $0x50] sm:$0xff]
  %v66 = vld [vmem:[%s0 + $0x58] sm:$0xff]
  %v67 = vld [vmem:[%s0 + $0x60] sm:$0xff]
  %v68 = vld [vmem:[%s0 + $0x68] sm:$0xf]
  %v69 = vld [vmem:[%s0 + $0x6c] sm:$0xff]
  %v70 = vld [vmem:[%s0 + $0x74] sm:$0xff]
  %v71 = vld [vmem:[%s0 + $0x7c] sm:$0xff]
  %v72 = vld [vmem:[%s0 + $0x84] sm:$0xff]
  %v73 = vld [vmem:[%s0 + $0x8c] sm:$0xf]
  %v74 = vld [vmem:[%s0 + $0x90] sm:$0xff]
  %v75 = vld [vmem:[%s0 + $0x98] sm:$0xff]
  %v76 = vld [vmem:[%s0 + $0xa0] sm:$0xff]
  %v77 = vld [vmem:[%s0 + $0xa8] sm:$0xff]
  %v78 = vld [vmem:[%s0 + $0xb0] sm:$0xf]
  %v79 = vld [vmem:[%s0 + $0xb4] sm:$0xff]
  %v80 = vld [vmem:[%s0 + $0xbc] sm:$0xff]
  %v81 = vld [vmem:[%s0 + $0xc4] sm:$0xff]
  %v82 = vld [vmem:[%s0 + $0xcc] sm:$0xff]
  %v83 = vld [vmem:[%s0 + $0xd4] sm:$0xf]
  %v84 = vld [vmem:[%s0 + $0xd8] sm:$0xff]
  %v85 = vld [vmem:[%s0 + $0xe0] sm:$0xff]
  %v86 = vld [vmem:[%s0 + $0xe8] sm:$0xff]
  %v87 = vld [vmem:[%s0 + $0xf0] sm:$0xff]
  %v88 = vld [vmem:[%s0 + $0xf8] sm:$0xf]
  %v89 = vld [vmem:[%s0 + $0xfc] sm:$0xff]
  %v90 = vld [vmem:[%s0 + $0x104] sm:$0xff]
  %v91 = vld [vmem:[%s0 + $0x10c] sm:$0xff]
  %v92 = vld [vmem:[%s0 + $0x114] sm:$0xff]
  %v93 = vld [vmem:[%s0 + $0x11c] sm:$0xf]
  %v94 = vld [vmem:[%s0 + $0x120] sm:$0xff]
  %v95 = vld [vmem:[%s0 + $0x128] sm:$0xff]
  %v96 = vld [vmem:[%s0 + $0x130] sm:$0xff]
  %v97 = vld [vmem:[%s0 + $0x138] sm:$0xff]
  %v98 = vld [vmem:[%s0 + $0x140] sm:$0xf]
  %v99 = vld [vmem:[%s0 + $0x144] sm:$0xff]
  %v100 = vld [vmem:[%s0 + $0x14c] sm:$0xff]
  %v101 = vld [vmem:[%s0 + $0x154] sm:$0xff]
  %v102 = vld [vmem:[%s0 + $0x15c] sm:$0xff]
  %v103 = vld [vmem:[%s0 + $0x164] sm:$0xf]
  %v104 = vld [vmem:[%s0 + $0x168] sm:$0xff]
  %v105 = vld [vmem:[%s0 + $0x170] sm:$0xff]
  %v106 = vld [vmem:[%s0 + $0x178] sm:$0xff]
  %v107 = vld [vmem:[%s0 + $0x180] sm:$0xff]
  %v108 = vld [vmem:[%s0 + $0x188] sm:$0xf]
  %v109 = vld [vmem:[%s0 + $0x18c] sm:$0xff]
  %v110 = vld [vmem:[%s0 + $0x194] sm:$0xff]
  %v111 = vld [vmem:[%s0 + $0x19c] sm:$0xff]
  %v112 = vld [vmem:[%s0 + $0x1a4] sm:$0xff]
  %v113 = vld [vmem:[%s0 + $0x1ac] sm:$0xf]
  %v114 = vld [vmem:[%s0 + $0x1b0] sm:$0xff]
  %v115 = vld [vmem:[%s0 + $0x1b8] sm:$0xff]
  %v116 = vld [vmem:[%s0 + $0x1c0] sm:$0xff]
  %v117 = vld [vmem:[%s0 + $0x1c8] sm:$0xff]
  %v118 = vld [vmem:[%s0 + $0x1d0] sm:$0xf]
  %v119 = vld [vmem:[%s0 + $0x1d4] sm:$0xff]
  %v120 = vld [vmem:[%s0 + $0x1dc] sm:$0xff]
  %v121 = vld [vmem:[%s0 + $0x1e4] sm:$0xff]
  %v122 = vld [vmem:[%s0 + $0x1ec] sm:$0xff]
  %v123 = vld [vmem:[%s0 + $0x1f4] sm:$0xf]
  %v124 = vld [vmem:[%s0 + $0x1f8] sm:$0xff]
  %v125 = vld [vmem:[%s0 + $0x200] sm:$0xff]
  %v126 = vld [vmem:[%s0 + $0x208] sm:$0xff]
  %v127 = vld [vmem:[%s0 + $0x210] sm:$0xff]
  %v128 = vld [vmem:[%s0 + $0x218] sm:$0xf]
  %v129 = vld [vmem:[%s0 + $0x21c] sm:$0xff]
  %v130 = vld [vmem:[%s0 + $0x224] sm:$0xff]
  %v131 = vld [vmem:[%s0 + $0x22c] sm:$0xff]
  %v132 = vld [vmem:[%s0 + $0x234] sm:$0xff]
  %v133 = vld [vmem:[%s0 + $0x23c] sm:$0xf]
  %v134 = vld [vmem:[%s1] sm:$0xf]
  %v135 = vld [vmem:[%s1 + $0x4] sm:$0xf]
  %v136 = vld [vmem:[%s1 + $0x8] sm:$0xf]
  %v137 = vld [vmem:[%s1 + $0xc] sm:$0xf]
  %v138 = vld [vmem:[%s1 + $0x10] sm:$0xf]
  %v139 = vld [vmem:[%s1 + $0x14] sm:$0xf]
  %v140 = vld [vmem:[%s1 + $0x18] sm:$0xf]
  %v141 = vld [vmem:[%s1 + $0x1c] sm:$0xf]
  %v142 = vld [vmem:[%s1 + $0x20] sm:$0xf]
  %v143 = vld [vmem:[%s1 + $0x24] sm:$0xf]
  %v144 = vld [vmem:[%s1 + $0x28] sm:$0xf]
  %v145 = vld [vmem:[%s1 + $0x2c] sm:$0xf]
  %v146 = vld [vmem:[%s1 + $0x30] sm:$0xf]
  %v147 = vld [vmem:[%s1 + $0x34] sm:$0xf]
  %v148 = vld [vmem:[%s1 + $0x38] sm:$0xf]
  %v149 = vld [vmem:[%s1 + $0x3c] sm:$0xf]
  %v150 = vld [vmem:[%s1 + $0x40] sm:$0xf]
  %v151 = vld [vmem:[%s1 + $0x44] sm:$0xf]
  %v152 = vld [vmem:[%s1 + $0x48] sm:$0xf]
  %v153 = vld [vmem:[%s1 + $0x4c] sm:$0xf]
  %v154 = vld [vmem:[%s1 + $0x50] sm:$0xf]
  %v155 = vld [vmem:[%s1 + $0x54] sm:$0xf]
  %v156 = vld [vmem:[%s1 + $0x58] sm:$0xf]
  %v157 = vld [vmem:[%s1 + $0x5c] sm:$0xf]
  %v158 = vld [vmem:[%s1 + $0x60] sm:$0xf]
  %v159 = vld [vmem:[%s1 + $0x64] sm:$0xf]
  %v160 = vld [vmem:[%s1 + $0x68] sm:$0xf]
  %v161 = vld [vmem:[%s1 + $0x6c] sm:$0xf]
  %v162 = vld [vmem:[%s1 + $0x70] sm:$0xf]
  %v163 = vld [vmem:[%s1 + $0x74] sm:$0xf]
  %v164 = vld [vmem:[%s1 + $0x78] sm:$0xf]
  %v165 = vld [vmem:[%s1 + $0x7c] sm:$0xf]
  %v166 = vld [vmem:[%s1 + $0x80] sm:$0xf]
  %v167 = vld [vmem:[%s1 + $0x84] sm:$0xf]
  %v168 = vld [vmem:[%s1 + $0x88] sm:$0xf]
  %v169 = vld [vmem:[%s1 + $0x8c] sm:$0xf]
  %v170 = vld [vmem:[%s1 + $0x90] sm:$0xf]
  %v171 = vld [vmem:[%s1 + $0x94] sm:$0xf]
  %v172 = vld [vmem:[%s1 + $0x98] sm:$0xf]
  %v173 = vld [vmem:[%s1 + $0x9c] sm:$0xf]
  %v174 = vld [vmem:[%s1 + $0xa0] sm:$0xf]
  %v175 = vld [vmem:[%s1 + $0xa4] sm:$0xf]
  %v176 = vld [vmem:[%s1 + $0xa8] sm:$0xf]
  %v177 = vld [vmem:[%s1 + $0xac] sm:$0xf]
  %v178 = vld [vmem:[%s1 + $0xb0] sm:$0xf]
  %v179 = vld [vmem:[%s1 + $0xb4] sm:$0xf]
  %v180 = vld [vmem:[%s1 + $0xb8] sm:$0xf]
  %v181 = vld [vmem:[%s1 + $0xbc] sm:$0xf]
  %v182 = vld [vmem:[%s1 + $0xc0] sm:$0xf]
  %v183 = vld [vmem:[%s1 + $0xc4] sm:$0xf]
  %v184 = vld [vmem:[%s1 + $0xc8] sm:$0xf]
  %v185 = vld [vmem:[%s1 + $0xcc] sm:$0xf]
  %v186 = vld [vmem:[%s1 + $0xd0] sm:$0xf]
  %v187 = vld [vmem:[%s1 + $0xd4] sm:$0xf]
  %v188 = vld [vmem:[%s1 + $0xd8] sm:$0xf]
  %v189 = vld [vmem:[%s1 + $0xdc] sm:$0xf]
  %v190 = vld [vmem:[%s1 + $0xe0] sm:$0xf]
  %v191 = vld [vmem:[%s1 + $0xe4] sm:$0xf]
  %v192 = vld [vmem:[%s1 + $0xe8] sm:$0xf]
  %v193 = vld [vmem:[%s1 + $0xec] sm:$0xf]
  %v194 = vld [vmem:[%s1 + $0xf0] sm:$0xf]
  %v195 = vld [vmem:[%s1 + $0xf4] sm:$0xf]
  %v196 = vld [vmem:[%s1 + $0xf8] sm:$0xf]
  %v197 = vld [vmem:[%s1 + $0xfc] sm:$0xf]
  %v198 = vld [vmem:[%s1 + $0x100] sm:$0xf]
  %v199 = vld [vmem:[%s1 + $0x104] sm:$0xf]
  %v200 = vld [vmem:[%s1 + $0x108] sm:$0xf]
  %v201 = vld [vmem:[%s1 + $0x10c] sm:$0xf]
  %v202 = vld [vmem:[%s1 + $0x110] sm:$0xf]
  %v203 = vld [vmem:[%s1 + $0x114] sm:$0xf]
  %v204 = vld [vmem:[%s1 + $0x118] sm:$0xf]
  %v205 = vld [vmem:[%s1 + $0x11c] sm:$0xf]
  %v206 = vld [vmem:[%s1 + $0x120] sm:$0xf]
  %v207 = vld [vmem:[%s1 + $0x124] sm:$0xf]
  %v208 = vld [vmem:[%s1 + $0x128] sm:$0xf]
  %v209 = vld [vmem:[%s1 + $0x12c] sm:$0xf]
  %v210 = vld [vmem:[%s1 + $0x130] sm:$0xf]
  %v211 = vld [vmem:[%s1 + $0x134] sm:$0xf]
  %v212 = vld [vmem:[%s1 + $0x138] sm:$0xf]
  %v213 = vld [vmem:[%s1 + $0x13c] sm:$0xf]
  %v214 = vld [vmem:[%s1 + $0x140] sm:$0xf]
  %v215 = vld [vmem:[%s1 + $0x144] sm:$0xf]
  %v216 = vld [vmem:[%s1 + $0x148] sm:$0xf]
  %v217 = vld [vmem:[%s1 + $0x14c] sm:$0xf]
  %v218 = vld [vmem:[%s1 + $0x150] sm:$0xf]
  %v219 = vld [vmem:[%s1 + $0x154] sm:$0xf]
  %v220 = vld [vmem:[%s1 + $0x158] sm:$0xf]
  %v221 = vld [vmem:[%s1 + $0x15c] sm:$0xf]
  %v222 = vld [vmem:[%s1 + $0x160] sm:$0xf]
  %v223 = vld [vmem:[%s1 + $0x164] sm:$0xf]
  %v224 = vld [vmem:[%s1 + $0x168] sm:$0xf]
  %v225 = vld [vmem:[%s1 + $0x16c] sm:$0xf]
  %v226 = vld [vmem:[%s1 + $0x170] sm:$0xf]
  %v227 = vld [vmem:[%s1 + $0x174] sm:$0xf]
  %v228 = vld [vmem:[%s1 + $0x178] sm:$0xf]
  %v229 = vld [vmem:[%s1 + $0x17c] sm:$0xf]
  %v230 = vld [vmem:[%s1 + $0x180] sm:$0xf]
  %v231 = vld [vmem:[%s1 + $0x184] sm:$0xf]
  %v232 = vld [vmem:[%s1 + $0x188] sm:$0xf]
  %v233 = vld [vmem:[%s1 + $0x18c] sm:$0xf]
  %v234 = vld [vmem:[%s1 + $0x190] sm:$0xf]
  %v235 = vld [vmem:[%s1 + $0x194] sm:$0xf]
  %v236 = vld [vmem:[%s1 + $0x198] sm:$0xf]
  %v237 = vld [vmem:[%s1 + $0x19c] sm:$0xf]
  %v238 = vld [vmem:[%s1 + $0x1a0] sm:$0xf]
  %v239 = vld [vmem:[%s1 + $0x1a4] sm:$0xf]
  %v240 = vld [vmem:[%s1 + $0x1a8] sm:$0xf]
  %v241 = vld [vmem:[%s1 + $0x1ac] sm:$0xf]
  %v242 = vld [vmem:[%s1 + $0x1b0] sm:$0xf]
  %v243 = vld [vmem:[%s1 + $0x1b4] sm:$0xf]
  %v244 = vld [vmem:[%s1 + $0x1b8] sm:$0xf]
  %v245 = vld [vmem:[%s1 + $0x1bc] sm:$0xf]
  %v246 = vld [vmem:[%s1 + $0x1c0] sm:$0xf]
  %v247 = vld [vmem:[%s1 + $0x1c4] sm:$0xf]
  %v248 = vld [vmem:[%s1 + $0x1c8] sm:$0xf]
  %v249 = vld [vmem:[%s1 + $0x1cc] sm:$0xf]
  %v250 = vld [vmem:[%s1 + $0x1d0] sm:$0xf]
  %v251 = vld [vmem:[%s1 + $0x1d4] sm:$0xf]
  %v252 = vld [vmem:[%s1 + $0x1d8] sm:$0xf]
  %v253 = vld [vmem:[%s1 + $0x1dc] sm:$0xf]
  %v254 = vld [vmem:[%s1 + $0x1e0] sm:$0xf]
  %v255 = vld [vmem:[%s1 + $0x1e4] sm:$0xf]
  %v256 = vld [vmem:[%s1 + $0x1e8] sm:$0xf]
  %v257 = vld [vmem:[%s1 + $0x1ec] sm:$0xf]
  %v258 = vld [vmem:[%s1 + $0x1f0] sm:$0xf]
  %v259 = vld [vmem:[%s1 + $0x1f4] sm:$0xf]
  %v260 = vld [vmem:[%s1 + $0x1f8] sm:$0xf]
  %v261 = vld [vmem:[%s1 + $0x1fc] sm:$0xf]
  %v262 = vld [vmem:[%s1 + $0x200] sm:$0xf]
  %v263 = vld [vmem:[%s1 + $0x204] sm:$0xf]
  %v264 = vld [vmem:[%s1 + $0x208] sm:$0xf]
  %v265 = vld [vmem:[%s1 + $0x20c] sm:$0xf]
  %v266 = vld [vmem:[%s1 + $0x210] sm:$0xf]
  %v267 = vld [vmem:[%s1 + $0x214] sm:$0xf]
  %v268 = vld [vmem:[%s1 + $0x218] sm:$0xf]
  %v269 = vld [vmem:[%s1 + $0x21c] sm:$0xf]
  %v270 = vld [vmem:[%s1 + $0x220] sm:$0xf]
  %v271 = vld [vmem:[%s1 + $0x224] sm:$0xf]
  %v272 = vld [vmem:[%s1 + $0x228] sm:$0xf]
  %v273 = vld [vmem:[%s1 + $0x22c] sm:$0xf]
  %v274 = vld [vmem:[%s1 + $0x230] sm:$0xf]
  %v275 = vld [vmem:[%s1 + $0x234] sm:$0xf]
  %v276 = vld [vmem:[%s1 + $0x238] sm:$0xf]
  %v277 = vld [vmem:[%s1 + $0x23c] sm:$0xf]
  %v358 = vunpack.c.l.b16 %v54
  %v359 = vunpack.c.h.b16 %v54
  %v360 = vunpack.c.l.b16 %v55
  %v361 = vunpack.c.h.b16 %v55
  %v362 = vunpack.c.l.b16 %v56
  %v363 = vunpack.c.h.b16 %v56
  %v364 = vunpack.c.l.b16 %v57
  %v365 = vunpack.c.h.b16 %v57
  %v366 = vunpack.c.l.b16 %v58
  %v367 = vunpack.c.l.b16 %v59
  %v368 = vunpack.c.h.b16 %v59
  %v369 = vunpack.c.l.b16 %v60
  %v370 = vunpack.c.h.b16 %v60
  %v371 = vunpack.c.l.b16 %v61
  %v372 = vunpack.c.h.b16 %v61
  %v373 = vunpack.c.l.b16 %v62
  %v374 = vunpack.c.h.b16 %v62
  %v375 = vunpack.c.l.b16 %v63
  %v376 = vunpack.c.l.b16 %v64
  %v377 = vunpack.c.h.b16 %v64
  %v378 = vunpack.c.l.b16 %v65
  %v379 = vunpack.c.h.b16 %v65
  %v380 = vunpack.c.l.b16 %v66
  %v381 = vunpack.c.h.b16 %v66
  %v382 = vunpack.c.l.b16 %v67
  %v383 = vunpack.c.h.b16 %v67
  %v384 = vunpack.c.l.b16 %v68
  %v385 = vunpack.c.l.b16 %v69
  %v386 = vunpack.c.h.b16 %v69
  %v387 = vunpack.c.l.b16 %v70
  %v388 = vunpack.c.h.b16 %v70
  %v389 = vunpack.c.l.b16 %v71
  %v390 = vunpack.c.h.b16 %v71
  %v391 = vunpack.c.l.b16 %v72
  %v392 = vunpack.c.h.b16 %v72
  %v393 = vunpack.c.l.b16 %v73
  %v394 = vunpack.c.l.b16 %v74
  %v395 = vunpack.c.h.b16 %v74
  %v396 = vunpack.c.l.b16 %v75
  %v397 = vunpack.c.h.b16 %v75
  %v398 = vunpack.c.l.b16 %v76
  %v399 = vunpack.c.h.b16 %v76
  %v400 = vunpack.c.l.b16 %v77
  %v401 = vunpack.c.h.b16 %v77
  %v402 = vunpack.c.l.b16 %v78
  %v403 = vunpack.c.l.b16 %v79
  %v404 = vunpack.c.h.b16 %v79
  %v405 = vunpack.c.l.b16 %v80
  %v406 = vunpack.c.h.b16 %v80
  %v407 = vunpack.c.l.b16 %v81
  %v408 = vunpack.c.h.b16 %v81
  %v409 = vunpack.c.l.b16 %v82
  %v410 = vunpack.c.h.b16 %v82
  %v411 = vunpack.c.l.b16 %v83
  %v412 = vunpack.c.l.b16 %v84
  %v413 = vunpack.c.h.b16 %v84
  %v414 = vunpack.c.l.b16 %v85
  %v415 = vunpack.c.h.b16 %v85
  %v416 = vunpack.c.l.b16 %v86
  %v417 = vunpack.c.h.b16 %v86
  %v418 = vunpack.c.l.b16 %v87
  %v419 = vunpack.c.h.b16 %v87
  %v420 = vunpack.c.l.b16 %v88
  %v421 = vunpack.c.l.b16 %v89
  %v422 = vunpack.c.h.b16 %v89
  %v423 = vunpack.c.l.b16 %v90
  %v424 = vunpack.c.h.b16 %v90
  %v425 = vunpack.c.l.b16 %v91
  %v426 = vunpack.c.h.b16 %v91
  %v427 = vunpack.c.l.b16 %v92
  %v428 = vunpack.c.h.b16 %v92
  %v429 = vunpack.c.l.b16 %v93
  %v430 = vunpack.c.l.b16 %v94
  %v431 = vunpack.c.h.b16 %v94
  %v432 = vunpack.c.l.b16 %v95
  %v433 = vunpack.c.h.b16 %v95
  %v434 = vunpack.c.l.b16 %v96
  %v435 = vunpack.c.h.b16 %v96
  %v436 = vunpack.c.l.b16 %v97
  %v437 = vunpack.c.h.b16 %v97
  %v438 = vunpack.c.l.b16 %v98
  %v439 = vunpack.c.l.b16 %v99
  %v440 = vunpack.c.h.b16 %v99
  %v441 = vunpack.c.l.b16 %v100
  %v442 = vunpack.c.h.b16 %v100
  %v443 = vunpack.c.l.b16 %v101
  %v444 = vunpack.c.h.b16 %v101
  %v445 = vunpack.c.l.b16 %v102
  %v446 = vunpack.c.h.b16 %v102
  %v447 = vunpack.c.l.b16 %v103
  %v448 = vunpack.c.l.b16 %v104
  %v449 = vunpack.c.h.b16 %v104
  %v450 = vunpack.c.l.b16 %v105
  %v451 = vunpack.c.h.b16 %v105
  %v452 = vunpack.c.l.b16 %v106
  %v453 = vunpack.c.h.b16 %v106
  %v454 = vunpack.c.l.b16 %v107
  %v455 = vunpack.c.h.b16 %v107
  %v456 = vunpack.c.l.b16 %v108
  %v457 = vunpack.c.l.b16 %v109
  %v458 = vunpack.c.h.b16 %v109
  %v459 = vunpack.c.l.b16 %v110
  %v460 = vunpack.c.h.b16 %v110
  %v461 = vunpack.c.l.b16 %v111
  %v462 = vunpack.c.h.b16 %v111
  %v463 = vunpack.c.l.b16 %v112
  %v464 = vunpack.c.h.b16 %v112
  %v465 = vunpack.c.l.b16 %v113
  %v466 = vunpack.c.l.b16 %v114
  %v467 = vunpack.c.h.b16 %v114
  %v468 = vunpack.c.l.b16 %v115
  %v469 = vunpack.c.h.b16 %v115
  %v470 = vunpack.c.l.b16 %v116
  %v471 = vunpack.c.h.b16 %v116
  %v472 = vunpack.c.l.b16 %v117
  %v473 = vunpack.c.h.b16 %v117
  %v474 = vunpack.c.l.b16 %v118
  %v475 = vunpack.c.l.b16 %v119
  %v476 = vunpack.c.h.b16 %v119
  %v477 = vunpack.c.l.b16 %v120
  %v478 = vunpack.c.h.b16 %v120
  %v479 = vunpack.c.l.b16 %v121
  %v480 = vunpack.c.h.b16 %v121
  %v481 = vunpack.c.l.b16 %v122
  %v482 = vunpack.c.h.b16 %v122
  %v483 = vunpack.c.l.b16 %v123
  %v484 = vunpack.c.l.b16 %v124
  %v485 = vunpack.c.h.b16 %v124
  %v486 = vunpack.c.l.b16 %v125
  %v487 = vunpack.c.h.b16 %v125
  %v488 = vunpack.c.l.b16 %v126
  %v489 = vunpack.c.h.b16 %v126
  %v490 = vunpack.c.l.b16 %v127
  %v491 = vunpack.c.h.b16 %v127
  %v492 = vunpack.c.l.b16 %v128
  %v493 = vunpack.c.l.b16 %v129
  %v494 = vunpack.c.h.b16 %v129
  %v495 = vunpack.c.l.b16 %v130
  %v496 = vunpack.c.h.b16 %v130
  %v497 = vunpack.c.l.b16 %v131
  %v498 = vunpack.c.h.b16 %v131
  %v499 = vunpack.c.l.b16 %v132
  %v500 = vunpack.c.h.b16 %v132
  %v501 = vunpack.c.l.b16 %v133
  %v502 = vpack.c.b16 %v367, %v358
  %v503 = vpack.c.b16 %v368, %v359
  %v504 = vpack.c.b16 %v369, %v360
  %v505 = vpack.c.b16 %v370, %v361
  %v506 = vpack.c.b16 %v371, %v362
  %v507 = vpack.c.b16 %v372, %v363
  %v508 = vpack.c.b16 %v373, %v364
  %v509 = vpack.c.b16 %v374, %v365
  %v510 = vpack.c.b16 %v375, %v366
  %v511 = vpack.c.b16 %v385, %v376
  %v512 = vpack.c.b16 %v386, %v377
  %v513 = vpack.c.b16 %v387, %v378
  %v514 = vpack.c.b16 %v388, %v379
  %v515 = vpack.c.b16 %v389, %v380
  %v516 = vpack.c.b16 %v390, %v381
  %v517 = vpack.c.b16 %v391, %v382
  %v518 = vpack.c.b16 %v392, %v383
  %v519 = vpack.c.b16 %v393, %v384
  %v520 = vpack.c.b16 %v403, %v394
  %v521 = vpack.c.b16 %v404, %v395
  %v522 = vpack.c.b16 %v405, %v396
  %v523 = vpack.c.b16 %v406, %v397
  %v524 = vpack.c.b16 %v407, %v398
  %v525 = vpack.c.b16 %v408, %v399
  %v526 = vpack.c.b16 %v409, %v400
  %v527 = vpack.c.b16 %v410, %v401
  %v528 = vpack.c.b16 %v411, %v402
  %v529 = vpack.c.b16 %v421, %v412
  %v530 = vpack.c.b16 %v422, %v413
  %v531 = vpack.c.b16 %v423, %v414
  %v532 = vpack.c.b16 %v424, %v415
  %v533 = vpack.c.b16 %v425, %v416
  %v534 = vpack.c.b16 %v426, %v417
  %v535 = vpack.c.b16 %v427, %v418
  %v536 = vpack.c.b16 %v428, %v419
  %v537 = vpack.c.b16 %v429, %v420
  %v538 = vpack.c.b16 %v439, %v430
  %v539 = vpack.c.b16 %v440, %v431
  %v540 = vpack.c.b16 %v441, %v432
  %v541 = vpack.c.b16 %v442, %v433
  %v542 = vpack.c.b16 %v443, %v434
  %v543 = vpack.c.b16 %v444, %v435
  %v544 = vpack.c.b16 %v445, %v436
  %v545 = vpack.c.b16 %v446, %v437
  %v546 = vpack.c.b16 %v447, %v438
  %v547 = vpack.c.b16 %v457, %v448
  %v548 = vpack.c.b16 %v458, %v449
  %v549 = vpack.c.b16 %v459, %v450
  %v550 = vpack.c.b16 %v460, %v451
  %v551 = vpack.c.b16 %v461, %v452
  %v552 = vpack.c.b16 %v462, %v453
  %v553 = vpack.c.b16 %v463, %v454
  %v554 = vpack.c.b16 %v464, %v455
  %v555 = vpack.c.b16 %v465, %v456
  %v556 = vpack.c.b16 %v475, %v466
  %v557 = vpack.c.b16 %v476, %v467
  %v558 = vpack.c.b16 %v477, %v468
  %v559 = vpack.c.b16 %v478, %v469
  %v560 = vpack.c.b16 %v479, %v470
  %v561 = vpack.c.b16 %v480, %v471
  %v562 = vpack.c.b16 %v481, %v472
  %v563 = vpack.c.b16 %v482, %v473
  %v564 = vpack.c.b16 %v483, %v474
  %v565 = vpack.c.b16 %v493, %v484
  %v566 = vpack.c.b16 %v494, %v485
  %v567 = vpack.c.b16 %v495, %v486
  %v568 = vpack.c.b16 %v496, %v487
  %v569 = vpack.c.b16 %v497, %v488
  %v570 = vpack.c.b16 %v498, %v489
  %v571 = vpack.c.b16 %v499, %v490
  %v572 = vpack.c.b16 %v500, %v491
  %v573 = vpack.c.b16 %v501, %v492
  %v790 = vunpack.c.l.b16 %v134
  %v791 = vunpack.c.l.b16 %v135
  %v792 = vunpack.c.l.b16 %v136
  %v793 = vunpack.c.l.b16 %v137
  %v794 = vunpack.c.l.b16 %v138
  %v795 = vunpack.c.l.b16 %v139
  %v796 = vunpack.c.l.b16 %v140
  %v797 = vunpack.c.l.b16 %v141
  %v798 = vunpack.c.l.b16 %v142
  %v799 = vunpack.c.l.b16 %v143
  %v800 = vunpack.c.l.b16 %v144
  %v801 = vunpack.c.l.b16 %v145
  %v802 = vunpack.c.l.b16 %v146
  %v803 = vunpack.c.l.b16 %v147
  %v804 = vunpack.c.l.b16 %v148
  %v805 = vunpack.c.l.b16 %v149
  %v806 = vunpack.c.l.b16 %v150
  %v807 = vunpack.c.l.b16 %v151
  %v808 = vunpack.c.l.b16 %v152
  %v809 = vunpack.c.l.b16 %v153
  %v810 = vunpack.c.l.b16 %v154
  %v811 = vunpack.c.l.b16 %v155
  %v812 = vunpack.c.l.b16 %v156
  %v813 = vunpack.c.l.b16 %v157
  %v814 = vunpack.c.l.b16 %v158
  %v815 = vunpack.c.l.b16 %v159
  %v816 = vunpack.c.l.b16 %v160
  %v817 = vunpack.c.l.b16 %v161
  %v818 = vunpack.c.l.b16 %v162
  %v819 = vunpack.c.l.b16 %v163
  %v820 = vunpack.c.l.b16 %v164
  %v821 = vunpack.c.l.b16 %v165
  %v822 = vunpack.c.l.b16 %v166
  %v823 = vunpack.c.l.b16 %v167
  %v824 = vunpack.c.l.b16 %v168
  %v825 = vunpack.c.l.b16 %v169
  %v826 = vunpack.c.l.b16 %v170
  %v827 = vunpack.c.l.b16 %v171
  %v828 = vunpack.c.l.b16 %v172
  %v829 = vunpack.c.l.b16 %v173
  %v830 = vunpack.c.l.b16 %v174
  %v831 = vunpack.c.l.b16 %v175
  %v832 = vunpack.c.l.b16 %v176
  %v833 = vunpack.c.l.b16 %v177
  %v834 = vunpack.c.l.b16 %v178
  %v835 = vunpack.c.l.b16 %v179
  %v836 = vunpack.c.l.b16 %v180
  %v837 = vunpack.c.l.b16 %v181
  %v838 = vunpack.c.l.b16 %v182
  %v839 = vunpack.c.l.b16 %v183
  %v840 = vunpack.c.l.b16 %v184
  %v841 = vunpack.c.l.b16 %v185
  %v842 = vunpack.c.l.b16 %v186
  %v843 = vunpack.c.l.b16 %v187
  %v844 = vunpack.c.l.b16 %v188
  %v845 = vunpack.c.l.b16 %v189
  %v846 = vunpack.c.l.b16 %v190
  %v847 = vunpack.c.l.b16 %v191
  %v848 = vunpack.c.l.b16 %v192
  %v849 = vunpack.c.l.b16 %v193
  %v850 = vunpack.c.l.b16 %v194
  %v851 = vunpack.c.l.b16 %v195
  %v852 = vunpack.c.l.b16 %v196
  %v853 = vunpack.c.l.b16 %v197
  %v854 = vunpack.c.l.b16 %v198
  %v855 = vunpack.c.l.b16 %v199
  %v856 = vunpack.c.l.b16 %v200
  %v857 = vunpack.c.l.b16 %v201
  %v858 = vunpack.c.l.b16 %v202
  %v859 = vunpack.c.l.b16 %v203
  %v860 = vunpack.c.l.b16 %v204
  %v861 = vunpack.c.l.b16 %v205
  %v862 = vunpack.c.l.b16 %v206
  %v863 = vunpack.c.l.b16 %v207
  %v864 = vunpack.c.l.b16 %v208
  %v865 = vunpack.c.l.b16 %v209
  %v866 = vunpack.c.l.b16 %v210
  %v867 = vunpack.c.l.b16 %v211
  %v868 = vunpack.c.l.b16 %v212
  %v869 = vunpack.c.l.b16 %v213
  %v870 = vunpack.c.l.b16 %v214
  %v871 = vunpack.c.l.b16 %v215
  %v872 = vunpack.c.l.b16 %v216
  %v873 = vunpack.c.l.b16 %v217
  %v874 = vunpack.c.l.b16 %v218
  %v875 = vunpack.c.l.b16 %v219
  %v876 = vunpack.c.l.b16 %v220
  %v877 = vunpack.c.l.b16 %v221
  %v878 = vunpack.c.l.b16 %v222
  %v879 = vunpack.c.l.b16 %v223
  %v880 = vunpack.c.l.b16 %v224
  %v881 = vunpack.c.l.b16 %v225
  %v882 = vunpack.c.l.b16 %v226
  %v883 = vunpack.c.l.b16 %v227
  %v884 = vunpack.c.l.b16 %v228
  %v885 = vunpack.c.l.b16 %v229
  %v886 = vunpack.c.l.b16 %v230
  %v887 = vunpack.c.l.b16 %v231
  %v888 = vunpack.c.l.b16 %v232
  %v889 = vunpack.c.l.b16 %v233
  %v890 = vunpack.c.l.b16 %v234
  %v891 = vunpack.c.l.b16 %v235
  %v892 = vunpack.c.l.b16 %v236
  %v893 = vunpack.c.l.b16 %v237
  %v894 = vunpack.c.l.b16 %v238
  %v895 = vunpack.c.l.b16 %v239
  %v896 = vunpack.c.l.b16 %v240
  %v897 = vunpack.c.l.b16 %v241
  %v898 = vunpack.c.l.b16 %v242
  %v899 = vunpack.c.l.b16 %v243
  %v900 = vunpack.c.l.b16 %v244
  %v901 = vunpack.c.l.b16 %v245
  %v902 = vunpack.c.l.b16 %v246
  %v903 = vunpack.c.l.b16 %v247
  %v904 = vunpack.c.l.b16 %v248
  %v905 = vunpack.c.l.b16 %v249
  %v906 = vunpack.c.l.b16 %v250
  %v907 = vunpack.c.l.b16 %v251
  %v908 = vunpack.c.l.b16 %v252
  %v909 = vunpack.c.l.b16 %v253
  %v910 = vunpack.c.l.b16 %v254
  %v911 = vunpack.c.l.b16 %v255
  %v912 = vunpack.c.l.b16 %v256
  %v913 = vunpack.c.l.b16 %v257
  %v914 = vunpack.c.l.b16 %v258
  %v915 = vunpack.c.l.b16 %v259
  %v916 = vunpack.c.l.b16 %v260
  %v917 = vunpack.c.l.b16 %v261
  %v918 = vunpack.c.l.b16 %v262
  %v919 = vunpack.c.l.b16 %v263
  %v920 = vunpack.c.l.b16 %v264
  %v921 = vunpack.c.l.b16 %v265
  %v922 = vunpack.c.l.b16 %v266
  %v923 = vunpack.c.l.b16 %v267
  %v924 = vunpack.c.l.b16 %v268
  %v925 = vunpack.c.l.b16 %v269
  %v926 = vunpack.c.l.b16 %v270
  %v927 = vunpack.c.l.b16 %v271
  %v928 = vunpack.c.l.b16 %v272
  %v929 = vunpack.c.l.b16 %v273
  %v930 = vunpack.c.l.b16 %v274
  %v931 = vunpack.c.l.b16 %v275
  %v932 = vunpack.c.l.b16 %v276
  %v933 = vunpack.c.l.b16 %v277
  %v934 = vpack.c.b16 %v791, %v790
  %v935 = vpack.c.b16 %v793, %v792
  %v936 = vpack.c.b16 %v795, %v794
  %v937 = vpack.c.b16 %v797, %v796
  %v938 = vpack.c.b16 %v799, %v798
  %v939 = vpack.c.b16 %v801, %v800
  %v940 = vpack.c.b16 %v803, %v802
  %v941 = vpack.c.b16 %v805, %v804
  %v942 = vpack.c.b16 %v807, %v806
  %v943 = vpack.c.b16 %v809, %v808
  %v944 = vpack.c.b16 %v811, %v810
  %v945 = vpack.c.b16 %v813, %v812
  %v946 = vpack.c.b16 %v815, %v814
  %v947 = vpack.c.b16 %v817, %v816
  %v948 = vpack.c.b16 %v819, %v818
  %v949 = vpack.c.b16 %v821, %v820
  %v950 = vpack.c.b16 %v823, %v822
  %v951 = vpack.c.b16 %v825, %v824
  %v952 = vpack.c.b16 %v827, %v826
  %v953 = vpack.c.b16 %v829, %v828
  %v954 = vpack.c.b16 %v831, %v830
  %v955 = vpack.c.b16 %v833, %v832
  %v956 = vpack.c.b16 %v835, %v834
  %v957 = vpack.c.b16 %v837, %v836
  %v958 = vpack.c.b16 %v839, %v838
  %v959 = vpack.c.b16 %v841, %v840
  %v960 = vpack.c.b16 %v843, %v842
  %v961 = vpack.c.b16 %v845, %v844
  %v962 = vpack.c.b16 %v847, %v846
  %v963 = vpack.c.b16 %v849, %v848
  %v964 = vpack.c.b16 %v851, %v850
  %v965 = vpack.c.b16 %v853, %v852
  %v966 = vpack.c.b16 %v855, %v854
  %v967 = vpack.c.b16 %v857, %v856
  %v968 = vpack.c.b16 %v859, %v858
  %v969 = vpack.c.b16 %v861, %v860
  %v970 = vpack.c.b16 %v863, %v862
  %v971 = vpack.c.b16 %v865, %v864
  %v972 = vpack.c.b16 %v867, %v866
  %v973 = vpack.c.b16 %v869, %v868
  %v974 = vpack.c.b16 %v871, %v870
  %v975 = vpack.c.b16 %v873, %v872
  %v976 = vpack.c.b16 %v875, %v874
  %v977 = vpack.c.b16 %v877, %v876
  %v978 = vpack.c.b16 %v879, %v878
  %v979 = vpack.c.b16 %v881, %v880
  %v980 = vpack.c.b16 %v883, %v882
  %v981 = vpack.c.b16 %v885, %v884
  %v982 = vpack.c.b16 %v887, %v886
  %v983 = vpack.c.b16 %v889, %v888
  %v984 = vpack.c.b16 %v891, %v890
  %v985 = vpack.c.b16 %v893, %v892
  %v986 = vpack.c.b16 %v895, %v894
  %v987 = vpack.c.b16 %v897, %v896
  %v988 = vpack.c.b16 %v899, %v898
  %v989 = vpack.c.b16 %v901, %v900
  %v990 = vpack.c.b16 %v903, %v902
  %v991 = vpack.c.b16 %v905, %v904
  %v992 = vpack.c.b16 %v907, %v906
  %v993 = vpack.c.b16 %v909, %v908
  %v994 = vpack.c.b16 %v911, %v910
  %v995 = vpack.c.b16 %v913, %v912
  %v996 = vpack.c.b16 %v915, %v914
  %v997 = vpack.c.b16 %v917, %v916
  %v998 = vpack.c.b16 %v919, %v918
  %v999 = vpack.c.b16 %v921, %v920
  %v1000 = vpack.c.b16 %v923, %v922
  %v1001 = vpack.c.b16 %v925, %v924
  %v1002 = vpack.c.b16 %v927, %v926
  %v1003 = vpack.c.b16 %v929, %v928
  %v1004 = vpack.c.b16 %v931, %v930
  %v1005 = vpack.c.b16 %v933, %v932
  %1078 = vmatprep.subr.bf16.mxu0 0
  %1079 = vmatpush1.bf16.msra.mxu0 %v934
  %1080 = vmatprep.subr.bf16.mxu0 0
  %1081 = vmatpush1.bf16.msra.mxu0 %v935
  %1082 = vmatprep.subr.bf16.mxu0 0
  %1083 = vmatpush1.bf16.msra.mxu0 %v936
  %1084 = vmatprep.subr.bf16.mxu0 0
  %1085 = vmatpush1.bf16.msra.mxu0 %v937
  %1086 = vmatprep.subr.bf16.mxu0 0
  %1087 = vmatpush1.bf16.msra.mxu0 %v938
  %1088 = vmatprep.subr.bf16.mxu0 0
  %1089 = vmatpush1.bf16.msra.mxu0 %v939
  %1090 = vmatprep.subr.bf16.mxu0 0
  %1091 = vmatpush1.bf16.msra.mxu0 %v940
  %1092 = vmatprep.subr.bf16.mxu0 0
  %1093 = vmatpush1.bf16.msra.mxu0 %v941
  %1094 = vmatprep.subr.bf16.mxu0 0
  %1095 = vmatpush1.bf16.msra.mxu0 %v942
  %1096 = vmatprep.subr.bf16.mxu0 0
  %1097 = vmatpush1.bf16.msra.mxu0 %v943
  %1098 = vmatprep.subr.bf16.mxu0 0
  %1099 = vmatpush1.bf16.msra.mxu0 %v944
  %1100 = vmatprep.subr.bf16.mxu0 0
  %1101 = vmatpush1.bf16.msra.mxu0 %v945
  %1102 = vmatprep.subr.bf16.mxu0 0
  %1103 = vmatpush1.bf16.msra.mxu0 %v946
  %1104 = vmatprep.subr.bf16.mxu0 0
  %1105 = vmatpush1.bf16.msra.mxu0 %v947
  %1106 = vmatprep.subr.bf16.mxu0 0
  %1107 = vmatpush1.bf16.msra.mxu0 %v948
  %1108 = vmatprep.subr.bf16.mxu0 0
  %1109 = vmatpush1.bf16.msra.mxu0 %v949
  %1110 = vmatprep.mubr.bf16.mxu0 %v503
  %1111 = vmatmul.mubr.bf16.gmra.mrb[0].mxu0 %v502
  %v1112 = vpop.f32.mrb[0].mxu0
  %v1113 = vadd.f32 0.0, %v1112
  %v1114 = vpop.f32.mrb[0].mxu0
  %v1115 = vpop.f32.mrb[0].mxu0
  %v1116 = vadd.f32 0.0, %v1115
  %v1117 = vpop.f32.mrb[0].mxu0
  %1118 = vmatprep.mubr.bf16.mxu0 %v512
  %1119 = vmatmul.mubr.bf16.gmra.mrb[0].mxu0 %v511
  %v1120 = vpop.f32.mrb[0].mxu0
  %v1121 = vadd.f32 0.0, %v1120
  %v1122 = vpop.f32.mrb[0].mxu0
  %v1123 = vpop.f32.mrb[0].mxu0
  %v1124 = vadd.f32 0.0, %v1123
  %v1125 = vpop.f32.mrb[0].mxu0
  %1126 = vmatprep.mubr.bf16.mxu0 %v521
  %1127 = vmatmul.mubr.bf16.gmra.mrb[0].mxu0 %v520
  %v1128 = vpop.f32.mrb[0].mxu0
  %v1129 = vadd.f32 0.0, %v1128
  %v1130 = vpop.f32.mrb[0].mxu0
  %v1131 = vpop.f32.mrb[0].mxu0
  %v1132 = vadd.f32 0.0, %v1131
  %v1133 = vpop.f32.mrb[0].mxu0
  %1134 = vmatprep.mubr.bf16.mxu0 %v530
  %1135 = vmatmul.mubr.bf16.gmra.mrb[0].mxu0 %v529
  %v1136 = vpop.f32.mrb[0].mxu0
  %v1137 = vadd.f32 0.0, %v1136
  %v1138 = vpop.f32.mrb[0].mxu0
  %v1139 = vpop.f32.mrb[0].mxu0
  %v1140 = vadd.f32 0.0, %v1139
  %v1141 = vpop.f32.mrb[0].mxu0
  %1142 = vmatprep.mubr.bf16.mxu0 %v539
  %1143 = vmatmul.mubr.bf16.gmra.mrb[0].mxu0 %v538
  %v1144 = vpop.f32.mrb[0].mxu0
  %v1145 = vadd.f32 0.0, %v1144
  %v1146 = vpop.f32.mrb[0].mxu0
  %v1147 = vpop.f32.mrb[0].mxu0
  %v1148 = vadd.f32 0.0, %v1147
  %v1149 = vpop.f32.mrb[0].mxu0
  %1150 = vmatprep.mubr.bf16.mxu0 %v548
  %1151 = vmatmul.mubr.bf16.gmra.mrb[0].mxu0 %v547
  %v1152 = vpop.f32.mrb[0].mxu0
  %v1153 = vadd.f32 0.0, %v1152
  %v1154 = vpop.f32.mrb[0].mxu0
  %v1155 = vpop.f32.mrb[0].mxu0
  %v1156 = vadd.f32 0.0, %v1155
  %v1157 = vpop.f32.mrb[0].mxu0
  %1158 = vmatprep.mubr.bf16.mxu0 %v557
  %1159 = vmatmul.mubr.bf16.gmra.mrb[0].mxu0 %v556
  %v1160 = vpop.f32.mrb[0].mxu0
  %v1161 = vadd.f32 0.0, %v1160
  %v1162 = vpop.f32.mrb[0].mxu0
  %v1163 = vpop.f32.mrb[0].mxu0
  %v1164 = vadd.f32 0.0, %v1163
  %v1165 = vpop.f32.mrb[0].mxu0
  %1166 = vmatprep.mubr.bf16.mxu0 %v566
  %1167 = vmatmul.mubr.bf16.gmra.mrb[0].mxu0 %v565
  %v1168 = vpop.f32.mrb[0].mxu0
  %v1169 = vadd.f32 0.0, %v1168
  %v1170 = vpop.f32.mrb[0].mxu0
  %v1171 = vpop.f32.mrb[0].mxu0
  %v1172 = vadd.f32 0.0, %v1171
  %v1173 = vpop.f32.mrb[0].mxu0
  %1174 = vdwg.mxu0
  %1175 = vmatprep.subr.bf16.mxu0 0
  %1176 = vmatpush1.bf16.msra.mxu0 %v950
  %1177 = vmatprep.subr.bf16.mxu0 0
  %1178 = vmatpush1.bf16.msra.mxu0 %v951
  %1179 = vmatprep.subr.bf16.mxu0 0
  %1180 = vmatpush1.bf16.msra.mxu0 %v952
  %1181 = vmatprep.subr.bf16.mxu0 0
  %1182 = vmatpush1.bf16.msra.mxu0 %v953
  %1183 = vmatprep.subr.bf16.mxu0 0
  %1184 = vmatpush1.bf16.msra.mxu0 %v954
  %1185 = vmatprep.subr.bf16.mxu0 0
  %1186 = vmatpush1.bf16.msra.mxu0 %v955
  %1187 = vmatprep.subr.bf16.mxu0 0
  %1188 = vmatpush1.bf16.msra.mxu0 %v956
  %1189 = vmatprep.subr.bf16.mxu0 0
  %1190 = vmatpush1.bf16.msra.mxu0 %v957
  %1191 = vmatprep.subr.bf16.mxu0 0
  %1192 = vmatpush1.bf16.msra.mxu0 %v958
  %1193 = vmatprep.subr.bf16.mxu0 0
  %1194 = vmatpush1.bf16.msra.mxu0 %v959
  %1195 = vmatprep.subr.bf16.mxu0 0
  %1196 = vmatpush1.bf16.msra.mxu0 %v960
  %1197 = vmatprep.subr.bf16.mxu0 0
  %1198 = vmatpush1.bf16.msra.mxu0 %v961
  %1199 = vmatprep.subr.bf16.mxu0 0
  %1200 = vmatpush1.bf16.msra.mxu0 %v962
  %1201 = vmatprep.subr.bf16.mxu0 0
  %1202 = vmatpush1.bf16.msra.mxu0 %v963
  %1203 = vmatprep.subr.bf16.mxu0 0
  %1204 = vmatpush1.bf16.msra.mxu0 %v964
  %1205 = vmatprep.subr.bf16.mxu0 0
  %1206 = vmatpush1.bf16.msra.mxu0 %v965
  %1207 = vmatprep.mubr.bf16.mxu0 %v505
  %1208 = vmatmul.mubr.bf16.gmra.mrb[0].mxu0 %v504
  %v1209 = vpop.f32.mrb[0].mxu0
  %v1210 = vadd.f32 %v1113, %v1209
  %v1211 = vpop.f32.mrb[0].mxu0
  %v1212 = vpop.f32.mrb[0].mxu0
  %v1213 = vadd.f32 %v1116, %v1212
  %v1214 = vpop.f32.mrb[0].mxu0
  %1215 = vmatprep.mubr.bf16.mxu0 %v514
  %1216 = vmatmul.mubr.bf16.gmra.mrb[0].mxu0 %v513
  %v1217 = vpop.f32.mrb[0].mxu0
  %v1218 = vadd.f32 %v1121, %v1217
  %v1219 = vpop.f32.mrb[0].mxu0
  %v1220 = vpop.f32.mrb[0].mxu0
  %v1221 = vadd.f32 %v1124, %v1220
  %v1222 = vpop.f32.mrb[0].mxu0
  %1223 = vmatprep.mubr.bf16.mxu0 %v523
  %1224 = vmatmul.mubr.bf16.gmra.mrb[0].mxu0 %v522
  %v1225 = vpop.f32.mrb[0].mxu0
  %v1226 = vadd.f32 %v1129, %v1225
  %v1227 = vpop.f32.mrb[0].mxu0
  %v1228 = vpop.f32.mrb[0].mxu0
  %v1229 = vadd.f32 %v1132, %v1228
  %v1230 = vpop.f32.mrb[0].mxu0
  %1231 = vmatprep.mubr.bf16.mxu0 %v532
  %1232 = vmatmul.mubr.bf16.gmra.mrb[0].mxu0 %v531
  %v1233 = vpop.f32.mrb[0].mxu0
  %v1234 = vadd.f32 %v1137, %v1233
  %v1235 = vpop.f32.mrb[0].mxu0
  %v1236 = vpop.f32.mrb[0].mxu0
  %v1237 = vadd.f32 %v1140, %v1236
  %v1238 = vpop.f32.mrb[0].mxu0
  %1239 = vmatprep.mubr.bf16.mxu0 %v541
  %1240 = vmatmul.mubr.bf16.gmra.mrb[0].mxu0 %v540
  %v1241 = vpop.f32.mrb[0].mxu0
  %v1242 = vadd.f32 %v1145, %v1241
  %v1243 = vpop.f32.mrb[0].mxu0
  %v1244 = vpop.f32.mrb[0].mxu0
  %v1245 = vadd.f32 %v1148, %v1244
  %v1246 = vpop.f32.mrb[0].mxu0
  %1247 = vmatprep.mubr.bf16.mxu0 %v550
  %1248 = vmatmul.mubr.bf16.gmra.mrb[0].mxu0 %v549
  %v1249 = vpop.f32.mrb[0].mxu0
  %v1250 = vadd.f32 %v1153, %v1249
  %v1251 = vpop.f32.mrb[0].mxu0
  %v1252 = vpop.f32.mrb[0].mxu0
  %v1253 = vadd.f32 %v1156, %v1252
  %v1254 = vpop.f32.mrb[0].mxu0
  %1255 = vmatprep.mubr.bf16.mxu0 %v559
  %1256 = vmatmul.mubr.bf16.gmra.mrb[0].mxu0 %v558
  %v1257 = vpop.f32.mrb[0].mxu0
  %v1258 = vadd.f32 %v1161, %v1257
  %v1259 = vpop.f32.mrb[0].mxu0
  %v1260 = vpop.f32.mrb[0].mxu0
  %v1261 = vadd.f32 %v1164, %v1260
  %v1262 = vpop.f32.mrb[0].mxu0
  %1263 = vmatprep.mubr.bf16.mxu0 %v568
  %1264 = vmatmul.mubr.bf16.gmra.mrb[0].mxu0 %v567
  %v1265 = vpop.f32.mrb[0].mxu0
  %v1266 = vadd.f32 %v1169, %v1265
  %v1267 = vpop.f32.mrb[0].mxu0
  %v1268 = vpop.f32.mrb[0].mxu0
  %v1269 = vadd.f32 %v1172, %v1268
  %v1270 = vpop.f32.mrb[0].mxu0
  %1271 = vdwg.mxu0
  %1272 = vmatprep.subr.bf16.mxu0 0
  %1273 = vmatpush1.bf16.msra.mxu0 %v966
  %1274 = vmatprep.subr.bf16.mxu0 0
  %1275 = vmatpush1.bf16.msra.mxu0 %v967
  %1276 = vmatprep.subr.bf16.mxu0 0
  %1277 = vmatpush1.bf16.msra.mxu0 %v968
  %1278 = vmatprep.subr.bf16.mxu0 0
  %1279 = vmatpush1.bf16.msra.mxu0 %v969
  %1280 = vmatprep.subr.bf16.mxu0 0
  %1281 = vmatpush1.bf16.msra.mxu0 %v970
  %1282 = vmatprep.subr.bf16.mxu0 0
  %1283 = vmatpush1.bf16.msra.mxu0 %v971
  %1284 = vmatprep.subr.bf16.mxu0 0
  %1285 = vmatpush1.bf16.msra.mxu0 %v972
  %1286 = vmatprep.subr.bf16.mxu0 0
  %1287 = vmatpush1.bf16.msra.mxu0 %v973
  %1288 = vmatprep.subr.bf16.mxu0 0
  %1289 = vmatpush1.bf16.msra.mxu0 %v974
  %1290 = vmatprep.subr.bf16.mxu0 0
  %1291 = vmatpush1.bf16.msra.mxu0 %v975
  %1292 = vmatprep.subr.bf16.mxu0 0
  %1293 = vmatpush1.bf16.msra.mxu0 %v976
  %1294 = vmatprep.subr.bf16.mxu0 0
  %1295 = vmatpush1.bf16.msra.mxu0 %v977
  %1296 = vmatprep.subr.bf16.mxu0 0
  %1297 = vmatpush1.bf16.msra.mxu0 %v978
  %1298 = vmatprep.subr.bf16.mxu0 0
  %1299 = vmatpush1.bf16.msra.mxu0 %v979
  %1300 = vmatprep.subr.bf16.mxu0 0
  %1301 = vmatpush1.bf16.msra.mxu0 %v980
  %1302 = vmatprep.subr.bf16.mxu0 0
  %1303 = vmatpush1.bf16.msra.mxu0 %v981
  %1304 = vmatprep.mubr.bf16.mxu0 %v507
  %1305 = vmatmul.mubr.bf16.gmra.mrb[0].mxu0 %v506
  %v1306 = vpop.f32.mrb[0].mxu0
  %v1307 = vadd.f32 %v1210, %v1306
  %v1308 = vpop.f32.mrb[0].mxu0
  %v1309 = vpop.f32.mrb[0].mxu0
  %v1310 = vadd.f32 %v1213, %v1309
  %v1311 = vpop.f32.mrb[0].mxu0
  %1312 = vmatprep.mubr.bf16.mxu0 %v516
  %1313 = vmatmul.mubr.bf16.gmra.mrb[0].mxu0 %v515
  %v1314 = vpop.f32.mrb[0].mxu0
  %v1315 = vadd.f32 %v1218, %v1314
  %v1316 = vpop.f32.mrb[0].mxu0
  %v1317 = vpop.f32.mrb[0].mxu0
  %v1318 = vadd.f32 %v1221, %v1317
  %v1319 = vpop.f32.mrb[0].mxu0
  %1320 = vmatprep.mubr.bf16.mxu0 %v525
  %1321 = vmatmul.mubr.bf16.gmra.mrb[0].mxu0 %v524
  %v1322 = vpop.f32.mrb[0].mxu0
  %v1323 = vadd.f32 %v1226, %v1322
  %v1324 = vpop.f32.mrb[0].mxu0
  %v1325 = vpop.f32.mrb[0].mxu0
  %v1326 = vadd.f32 %v1229, %v1325
  %v1327 = vpop.f32.mrb[0].mxu0
  %1328 = vmatprep.mubr.bf16.mxu0 %v534
  %1329 = vmatmul.mubr.bf16.gmra.mrb[0].mxu0 %v533
  %v1330 = vpop.f32.mrb[0].mxu0
  %v1331 = vadd.f32 %v1234, %v1330
  %v1332 = vpop.f32.mrb[0].mxu0
  %v1333 = vpop.f32.mrb[0].mxu0
  %v1334 = vadd.f32 %v1237, %v1333
  %v1335 = vpop.f32.mrb[0].mxu0
  %1336 = vmatprep.mubr.bf16.mxu0 %v543
  %1337 = vmatmul.mubr.bf16.gmra.mrb[0].mxu0 %v542
  %v1338 = vpop.f32.mrb[0].mxu0
  %v1339 = vadd.f32 %v1242, %v1338
  %v1340 = vpop.f32.mrb[0].mxu0
  %v1341 = vpop.f32.mrb[0].mxu0
  %v1342 = vadd.f32 %v1245, %v1341
  %v1343 = vpop.f32.mrb[0].mxu0
  %1344 = vmatprep.mubr.bf16.mxu0 %v552
  %1345 = vmatmul.mubr.bf16.gmra.mrb[0].mxu0 %v551
  %v1346 = vpop.f32.mrb[0].mxu0
  %v1347 = vadd.f32 %v1250, %v1346
  %v1348 = vpop.f32.mrb[0].mxu0
  %v1349 = vpop.f32.mrb[0].mxu0
  %v1350 = vadd.f32 %v1253, %v1349
  %v1351 = vpop.f32.mrb[0].mxu0
  %1352 = vmatprep.mubr.bf16.mxu0 %v561
  %1353 = vmatmul.mubr.bf16.gmra.mrb[0].mxu0 %v560
  %v1354 = vpop.f32.mrb[0].mxu0
  %v1355 = vadd.f32 %v1258, %v1354
  %v1356 = vpop.f32.mrb[0].mxu0
  %v1357 = vpop.f32.mrb[0].mxu0
  %v1358 = vadd.f32 %v1261, %v1357
  %v1359 = vpop.f32.mrb[0].mxu0
  %1360 = vmatprep.mubr.bf16.mxu0 %v570
  %1361 = vmatmul.mubr.bf16.gmra.mrb[0].mxu0 %v569
  %v1362 = vpop.f32.mrb[0].mxu0
  %v1363 = vadd.f32 %v1266, %v1362
  %v1364 = vpop.f32.mrb[0].mxu0
  %v1365 = vpop.f32.mrb[0].mxu0
  %v1366 = vadd.f32 %v1269, %v1365
  %v1367 = vpop.f32.mrb[0].mxu0
  %1368 = vdwg.mxu0
  %1369 = vmatprep.subr.bf16.mxu0 0
  %1370 = vmatpush1.bf16.msra.mxu0 %v982
  %1371 = vmatprep.subr.bf16.mxu0 0
  %1372 = vmatpush1.bf16.msra.mxu0 %v983
  %1373 = vmatprep.subr.bf16.mxu0 0
  %1374 = vmatpush1.bf16.msra.mxu0 %v984
  %1375 = vmatprep.subr.bf16.mxu0 0
  %1376 = vmatpush1.bf16.msra.mxu0 %v985
  %1377 = vmatprep.subr.bf16.mxu0 0
  %1378 = vmatpush1.bf16.msra.mxu0 %v986
  %1379 = vmatprep.subr.bf16.mxu0 0
  %1380 = vmatpush1.bf16.msra.mxu0 %v987
  %1381 = vmatprep.subr.bf16.mxu0 0
  %1382 = vmatpush1.bf16.msra.mxu0 %v988
  %1383 = vmatprep.subr.bf16.mxu0 0
  %1384 = vmatpush1.bf16.msra.mxu0 %v989
  %1385 = vmatprep.subr.bf16.mxu0 0
  %1386 = vmatpush1.bf16.msra.mxu0 %v990
  %1387 = vmatprep.subr.bf16.mxu0 0
  %1388 = vmatpush1.bf16.msra.mxu0 %v991
  %1389 = vmatprep.subr.bf16.mxu0 0
  %1390 = vmatpush1.bf16.msra.mxu0 %v992
  %1391 = vmatprep.subr.bf16.mxu0 0
  %1392 = vmatpush1.bf16.msra.mxu0 %v993
  %1393 = vmatprep.subr.bf16.mxu0 0
  %1394 = vmatpush1.bf16.msra.mxu0 %v994
  %1395 = vmatprep.subr.bf16.mxu0 0
  %1396 = vmatpush1.bf16.msra.mxu0 %v995
  %1397 = vmatprep.subr.bf16.mxu0 0
  %1398 = vmatpush1.bf16.msra.mxu0 %v996
  %1399 = vmatprep.subr.bf16.mxu0 0
  %1400 = vmatpush1.bf16.msra.mxu0 %v997
  %1401 = vmatprep.mubr.bf16.mxu0 %v509
  %1402 = vmatmul.mubr.bf16.gmra.mrb[0].mxu0 %v508
  %v1403 = vpop.f32.mrb[0].mxu0
  %v1404 = vadd.f32 %v1307, %v1403
  %v1405 = vpop.f32.mrb[0].mxu0
  %v1406 = vpop.f32.mrb[0].mxu0
  %v1407 = vadd.f32 %v1310, %v1406
  %v1408 = vpop.f32.mrb[0].mxu0
  %1409 = vmatprep.mubr.bf16.mxu0 %v518
  %1410 = vmatmul.mubr.bf16.gmra.mrb[0].mxu0 %v517
  %v1411 = vpop.f32.mrb[0].mxu0
  %v1412 = vadd.f32 %v1315, %v1411
  %v1413 = vpop.f32.mrb[0].mxu0
  %v1414 = vpop.f32.mrb[0].mxu0
  %v1415 = vadd.f32 %v1318, %v1414
  %v1416 = vpop.f32.mrb[0].mxu0
  %1417 = vmatprep.mubr.bf16.mxu0 %v527
  %1418 = vmatmul.mubr.bf16.gmra.mrb[0].mxu0 %v526
  %v1419 = vpop.f32.mrb[0].mxu0
  %v1420 = vadd.f32 %v1323, %v1419
  %v1421 = vpop.f32.mrb[0].mxu0
  %v1422 = vpop.f32.mrb[0].mxu0
  %v1423 = vadd.f32 %v1326, %v1422
  %v1424 = vpop.f32.mrb[0].mxu0
  %1425 = vmatprep.mubr.bf16.mxu0 %v536
  %1426 = vmatmul.mubr.bf16.gmra.mrb[0].mxu0 %v535
  %v1427 = vpop.f32.mrb[0].mxu0
  %v1428 = vadd.f32 %v1331, %v1427
  %v1429 = vpop.f32.mrb[0].mxu0
  %v1430 = vpop.f32.mrb[0].mxu0
  %v1431 = vadd.f32 %v1334, %v1430
  %v1432 = vpop.f32.mrb[0].mxu0
  %1433 = vmatprep.mubr.bf16.mxu0 %v545
  %1434 = vmatmul.mubr.bf16.gmra.mrb[0].mxu0 %v544
  %v1435 = vpop.f32.mrb[0].mxu0
  %v1436 = vadd.f32 %v1339, %v1435
  %v1437 = vpop.f32.mrb[0].mxu0
  %v1438 = vpop.f32.mrb[0].mxu0
  %v1439 = vadd.f32 %v1342, %v1438
  %v1440 = vpop.f32.mrb[0].mxu0
  %1441 = vmatprep.mubr.bf16.mxu0 %v554
  %1442 = vmatmul.mubr.bf16.gmra.mrb[0].mxu0 %v553
  %v1443 = vpop.f32.mrb[0].mxu0
  %v1444 = vadd.f32 %v1347, %v1443
  %v1445 = vpop.f32.mrb[0].mxu0
  %v1446 = vpop.f32.mrb[0].mxu0
  %v1447 = vadd.f32 %v1350, %v1446
  %v1448 = vpop.f32.mrb[0].mxu0
  %1449 = vmatprep.mubr.bf16.mxu0 %v563
  %1450 = vmatmul.mubr.bf16.gmra.mrb[0].mxu0 %v562
  %v1451 = vpop.f32.mrb[0].mxu0
  %v1452 = vadd.f32 %v1355, %v1451
  %v1453 = vpop.f32.mrb[0].mxu0
  %v1454 = vpop.f32.mrb[0].mxu0
  %v1455 = vadd.f32 %v1358, %v1454
  %v1456 = vpop.f32.mrb[0].mxu0
  %1457 = vmatprep.mubr.bf16.mxu0 %v572
  %1458 = vmatmul.mubr.bf16.gmra.mrb[0].mxu0 %v571
  %v1459 = vpop.f32.mrb[0].mxu0
  %v1460 = vadd.f32 %v1363, %v1459
  %v1461 = vpop.f32.mrb[0].mxu0
  %v1462 = vpop.f32.mrb[0].mxu0
  %v1463 = vadd.f32 %v1366, %v1462
  %v1464 = vpop.f32.mrb[0].mxu0
  %1465 = vdwg.mxu0
  %1466 = vmatprep.subr.bf16.mxu0 0
  %1467 = vmatpush1.bf16.msra.mxu0 %v998
  %1468 = vmatprep.subr.bf16.mxu0 0
  %1469 = vmatpush1.bf16.msra.mxu0 %v999
  %1470 = vmatprep.subr.bf16.mxu0 0
  %1471 = vmatpush1.bf16.msra.mxu0 %v1000
  %1472 = vmatprep.subr.bf16.mxu0 0
  %1473 = vmatpush1.bf16.msra.mxu0 %v1001
  %1474 = vmatprep.subr.bf16.mxu0 0
  %1475 = vmatpush1.bf16.msra.mxu0 %v1002
  %1476 = vmatprep.subr.bf16.mxu0 0
  %1477 = vmatpush1.bf16.msra.mxu0 %v1003
  %1478 = vmatprep.subr.bf16.mxu0 0
  %1479 = vmatpush1.bf16.msra.mxu0 %v1004
  %1480 = vmatprep.subr.bf16.mxu0 0
  %1481 = vmatpush1.bf16.msra.mxu0 %v1005
  %1482 = vmatprep.subr.bf16.mxu0 0
  %1483 = vmatpush1.bf16.msra.mxu0 0
  %1484 = vmatprep.subr.bf16.mxu0 0
  %1485 = vmatpush1.bf16.msra.mxu0 0
  %1486 = vmatprep.subr.bf16.mxu0 0
  %1487 = vmatpush1.bf16.msra.mxu0 0
  %1488 = vmatprep.subr.bf16.mxu0 0
  %1489 = vmatpush1.bf16.msra.mxu0 0
  %1490 = vmatprep.subr.bf16.mxu0 0
  %1491 = vmatpush1.bf16.msra.mxu0 0
  %1492 = vmatprep.subr.bf16.mxu0 0
  %1493 = vmatpush1.bf16.msra.mxu0 0
  %1494 = vmatprep.subr.bf16.mxu0 0
  %1495 = vmatpush1.bf16.msra.mxu0 0
  %1496 = vmatprep.subr.bf16.mxu0 0
  %1497 = vmatpush1.bf16.msra.mxu0 0
  %1498 = vmatprep.mubr.bf16.mxu0 0
  %1499 = vmatmul.mubr.bf16.gmra.mrb[0].mxu0 %v510
  %v1500 = vpop.f32.mrb[0].mxu0
  %v1501 = vadd.f32 %v1404, %v1500
  %v1502 = vpop.f32.mrb[0].mxu0
  %v1503 = vpop.f32.mrb[0].mxu0
  %v1504 = vadd.f32 %v1407, %v1503
  %v1505 = vpop.f32.mrb[0].mxu0
  %1506 = vmatprep.mubr.bf16.mxu0 0
  %1507 = vmatmul.mubr.bf16.gmra.mrb[0].mxu0 %v519
  %v1508 = vpop.f32.mrb[0].mxu0
  %v1509 = vadd.f32 %v1412, %v1508
  %v1510 = vpop.f32.mrb[0].mxu0
  %v1511 = vpop.f32.mrb[0].mxu0
  %v1512 = vadd.f32 %v1415, %v1511
  %v1513 = vpop.f32.mrb[0].mxu0
  %1514 = vmatprep.mubr.bf16.mxu0 0
  %1515 = vmatmul.mubr.bf16.gmra.mrb[0].mxu0 %v528
  %v1516 = vpop.f32.mrb[0].mxu0
  %v1517 = vadd.f32 %v1420, %v1516
  %v1518 = vpop.f32.mrb[0].mxu0
  %v1519 = vpop.f32.mrb[0].mxu0
  %v1520 = vadd.f32 %v1423, %v1519
  %v1521 = vpop.f32.mrb[0].mxu0
  %1522 = vmatprep.mubr.bf16.mxu0 0
  %1523 = vmatmul.mubr.bf16.gmra.mrb[0].mxu0 %v537
  %v1524 = vpop.f32.mrb[0].mxu0
  %v1525 = vadd.f32 %v1428, %v1524
  %v1526 = vpop.f32.mrb[0].mxu0
  %v1527 = vpop.f32.mrb[0].mxu0
  %v1528 = vadd.f32 %v1431, %v1527
  %v1529 = vpop.f32.mrb[0].mxu0
  %1530 = vmatprep.mubr.bf16.mxu0 0
  %1531 = vmatmul.mubr.bf16.gmra.mrb[0].mxu0 %v546
  %v1532 = vpop.f32.mrb[0].mxu0
  %v1533 = vadd.f32 %v1436, %v1532
  %v1534 = vpop.f32.mrb[0].mxu0
  %v1535 = vpop.f32.mrb[0].mxu0
  %v1536 = vadd.f32 %v1439, %v1535
  %v1537 = vpop.f32.mrb[0].mxu0
  %1538 = vmatprep.mubr.bf16.mxu0 0
  %1539 = vmatmul.mubr.bf16.gmra.mrb[0].mxu0 %v555
  %v1540 = vpop.f32.mrb[0].mxu0
  %v1541 = vadd.f32 %v1444, %v1540
  %v1542 = vpop.f32.mrb[0].mxu0
  %v1543 = vpop.f32.mrb[0].mxu0
  %v1544 = vadd.f32 %v1447, %v1543
  %v1545 = vpop.f32.mrb[0].mxu0
  %1546 = vmatprep.mubr.bf16.mxu0 0
  %1547 = vmatmul.mubr.bf16.gmra.mrb[0].mxu0 %v564
  %v1548 = vpop.f32.mrb[0].mxu0
  %v1549 = vadd.f32 %v1452, %v1548
  %v1550 = vpop.f32.mrb[0].mxu0
  %v1551 = vpop.f32.mrb[0].mxu0
  %v1552 = vadd.f32 %v1455, %v1551
  %v1553 = vpop.f32.mrb[0].mxu0
  %1554 = vmatprep.mubr.bf16.mxu0 0
  %1555 = vmatmul.mubr.bf16.gmra.mrb[0].mxu0 %v573
  %v1556 = vpop.f32.mrb[0].mxu0
  %v1557 = vadd.f32 %v1460, %v1556
  %v1558 = vpop.f32.mrb[0].mxu0
  %v1559 = vpop.f32.mrb[0].mxu0
  %v1560 = vadd.f32 %v1463, %v1559
  %v1561 = vpop.f32.mrb[0].mxu0
  %1562 = vdwg.mxu0
  %v1563 = vadd.f32 %v38, %v1501
  %v1564 = vadd.f32 %v39, %v1504
  %v1565 = vadd.f32 %v40, %v1509
  %v1566 = vadd.f32 %v41, %v1512
  %v1567 = vadd.f32 %v42, %v1517
  %v1568 = vadd.f32 %v43, %v1520
  %v1569 = vadd.f32 %v44, %v1525
  %v1570 = vadd.f32 %v45, %v1528
  %v1571 = vadd.f32 %v46, %v1533
  %v1572 = vadd.f32 %v47, %v1536
  %v1573 = vadd.f32 %v48, %v1541
  %v1574 = vadd.f32 %v49, %v1544
  %v1575 = vadd.f32 %v50, %v1549
  %v1576 = vadd.f32 %v51, %v1552
  %v1577 = vadd.f32 %v52, %v1557
  %v1578 = vadd.f32 %v53, %v1560
  %1579 = vst [vmem:[#allocation2] sm:$0xff] %v1563
  %1580 = vst [vmem:[#allocation2 + $0x8] sm:$0xff] %v1564
  %1581 = vst [vmem:[#allocation2 + $0x10] sm:$0xff] %v1565
  %1582 = vst [vmem:[#allocation2 + $0x18] sm:$0xff] %v1566
  %1583 = vst [vmem:[#allocation2 + $0x20] sm:$0xff] %v1567
  %1584 = vst [vmem:[#allocation2 + $0x28] sm:$0xff] %v1568
  %1585 = vst [vmem:[#allocation2 + $0x30] sm:$0xff] %v1569
  %1586 = vst [vmem:[#allocation2 + $0x38] sm:$0xff] %v1570
  %1587 = vst [vmem:[#allocation2 + $0x40] sm:$0xff] %v1571
  %1588 = vst [vmem:[#allocation2 + $0x48] sm:$0xff] %v1572
  %1589 = vst [vmem:[#allocation2 + $0x50] sm:$0xff] %v1573
  %1590 = vst [vmem:[#allocation2 + $0x58] sm:$0xff] %v1574
  %1591 = vst [vmem:[#allocation2 + $0x60] sm:$0xff] %v1575
  %1592 = vst [vmem:[#allocation2 + $0x68] sm:$0xff] %v1576
  %1593 = vst [vmem:[#allocation2 + $0x70] sm:$0xff] %v1577
  %1594 = vst [vmem:[#allocation2 + $0x78] sm:$0xff] %v1578
  // Predicated region
  $region22: #{_lambda_.14} parent=0 // pred_check
    %p1595 = pneg %p18
  $region23: #{_lambda_.14} parent=0 // pred_check_branch
    %1597 = sbr.rel (%p1595) target = $region25
  $region24: #{_lambda_.14} parent=0 // pred_region
    %v1598 = vld [vmem:[#allocation2] sm:$0xff]
    %v1599 = vld [vmem:[#allocation2 + $0x8] sm:$0xff]
    %v1600 = vld [vmem:[#allocation2 + $0x10] sm:$0xff]
    %v1601 = vld [vmem:[#allocation2 + $0x18] sm:$0xff]
    %v1602 = vld [vmem:[#allocation2 + $0x20] sm:$0xff]
    %v1603 = vld [vmem:[#allocation2 + $0x28] sm:$0xff]
    %v1604 = vld [vmem:[#allocation2 + $0x30] sm:$0xff]
    %v1605 = vld [vmem:[#allocation2 + $0x38] sm:$0xff]
    %v1606 = vld [vmem:[#allocation2 + $0x40] sm:$0xff]
    %v1607 = vld [vmem:[#allocation2 + $0x48] sm:$0xff]
    %v1608 = vld [vmem:[#allocation2 + $0x50] sm:$0xff]
    %v1609 = vld [vmem:[#allocation2 + $0x58] sm:$0xff]
    %v1610 = vld [vmem:[#allocation2 + $0x60] sm:$0xff]
    %v1611 = vld [vmem:[#allocation2 + $0x68] sm:$0xff]
    %v1612 = vld [vmem:[#allocation2 + $0x70] sm:$0xff]
    %v1613 = vld [vmem:[#allocation2 + $0x78] sm:$0xff]
    %v1614 = vld [vmem:[%s2] sm:$0x1]
    %v1616 = vlaneseq
    %v1617 = vshrl.u32 %v1616, 7
    %v1618 = vsub.s32 0, %v1617
    %v1619 = vrot.slane %v1614, %v1618
    %v1621 = vmul.f32 %v1598, %v1619
    %v1622 = vmul.f32 %v1599, %v1619
    %v1623 = vmul.f32 %v1600, %v1619
    %v1624 = vmul.f32 %v1601, %v1619
    %v1625 = vmul.f32 %v1602, %v1619
    %v1626 = vmul.f32 %v1603, %v1619
    %v1627 = vmul.f32 %v1604, %v1619
    %v1628 = vmul.f32 %v1605, %v1619
    %v1629 = vmul.f32 %v1606, %v1619
    %v1630 = vmul.f32 %v1607, %v1619
    %v1631 = vmul.f32 %v1608, %v1619
    %v1632 = vmul.f32 %v1609, %v1619
    %v1633 = vmul.f32 %v1610, %v1619
    %v1634 = vmul.f32 %v1611, %v1619
    %v1635 = vmul.f32 %v1612, %v1619
    %v1636 = vmul.f32 %v1613, %v1619
    %v1637 = vld [vmem:[%s3] sm:$0x1]
    %v1639 = vlaneseq
    %v1640 = vshrl.u32 %v1639, 7
    %v1641 = vsub.s32 0, %v1640
    %v1642 = vrot.slane %v1637, %v1641
    %v1644 = vadd.f32 %v1621, %v1642
    %v1645 = vadd.f32 %v1622, %v1642
    %v1646 = vadd.f32 %v1623, %v1642
    %v1647 = vadd.f32 %v1624, %v1642
    %v1648 = vadd.f32 %v1625, %v1642
    %v1649 = vadd.f32 %v1626, %v1642
    %v1650 = vadd.f32 %v1627, %v1642
    %v1651 = vadd.f32 %v1628, %v1642
    %v1652 = vadd.f32 %v1629, %v1642
    %v1653 = vadd.f32 %v1630, %v1642
    %v1654 = vadd.f32 %v1631, %v1642
    %v1655 = vadd.f32 %v1632, %v1642
    %v1656 = vadd.f32 %v1633, %v1642
    %v1657 = vadd.f32 %v1634, %v1642
    %v1658 = vadd.f32 %v1635, %v1642
    %v1659 = vadd.f32 %v1636, %v1642
    %v1660 = vmax.f32 %v1644, 0.0
    %v1661 = vmax.f32 %v1645, 0.0
    %v1662 = vmax.f32 %v1646, 0.0
    %v1663 = vmax.f32 %v1647, 0.0
    %v1664 = vmax.f32 %v1648, 0.0
    %v1665 = vmax.f32 %v1649, 0.0
    %v1666 = vmax.f32 %v1650, 0.0
    %v1667 = vmax.f32 %v1651, 0.0
    %v1668 = vmax.f32 %v1652, 0.0
    %v1669 = vmax.f32 %v1653, 0.0
    %v1670 = vmax.f32 %v1654, 0.0
    %v1671 = vmax.f32 %v1655, 0.0
    %v1672 = vmax.f32 %v1656, 0.0
    %v1673 = vmax.f32 %v1657, 0.0
    %v1674 = vmax.f32 %v1658, 0.0
    %v1675 = vmax.f32 %v1659, 0.0
    %v1676 = vpack.c.bf16 %v1661, %v1660
    %v1677 = vpack.c.bf16 %v1663, %v1662
    %v1678 = vpack.c.bf16 %v1665, %v1664
    %v1679 = vpack.c.bf16 %v1667, %v1666
    %v1680 = vpack.c.bf16 %v1669, %v1668
    %v1681 = vpack.c.bf16 %v1671, %v1670
    %v1682 = vpack.c.bf16 %v1673, %v1672
    %v1683 = vpack.c.bf16 %v1675, %v1674
    %v1692 = vunpack.c.l.b16 %v1676
    %v1693 = vunpack.c.h.b16 %v1676
    %v1694 = vunpack.c.l.b16 %v1677
    %v1695 = vunpack.c.h.b16 %v1677
    %v1696 = vunpack.c.l.b16 %v1678
    %v1697 = vunpack.c.h.b16 %v1678
    %v1698 = vunpack.c.l.b16 %v1679
    %v1699 = vunpack.c.h.b16 %v1679
    %v1700 = vunpack.c.l.b16 %v1680
    %v1701 = vunpack.c.h.b16 %v1680
    %v1702 = vunpack.c.l.b16 %v1681
    %v1703 = vunpack.c.h.b16 %v1681
    %v1704 = vunpack.c.l.b16 %v1682
    %v1705 = vunpack.c.h.b16 %v1682
    %v1706 = vunpack.c.l.b16 %v1683
    %v1707 = vunpack.c.h.b16 %v1683
    %v1708 = vpack.c.b16 %v1692, %v1692
    %v1709 = vpack.c.b16 %v1693, %v1693
    %v1710 = vpack.c.b16 %v1694, %v1694
    %v1711 = vpack.c.b16 %v1695, %v1695
    %v1712 = vpack.c.b16 %v1696, %v1696
    %v1713 = vpack.c.b16 %v1697, %v1697
    %v1714 = vpack.c.b16 %v1698, %v1698
    %v1715 = vpack.c.b16 %v1699, %v1699
    %v1716 = vpack.c.b16 %v1700, %v1700
    %v1717 = vpack.c.b16 %v1701, %v1701
    %v1718 = vpack.c.b16 %v1702, %v1702
    %v1719 = vpack.c.b16 %v1703, %v1703
    %v1720 = vpack.c.b16 %v1704, %v1704
    %v1721 = vpack.c.b16 %v1705, %v1705
    %v1722 = vpack.c.b16 %v1706, %v1706
    %v1723 = vpack.c.b16 %v1707, %v1707
    %1740 = vst [vmem:[%s4] sm:$0xf] %v1708
    %1741 = vst [vmem:[%s4 + $0x4] sm:$0xf] %v1709
    %1742 = vst [vmem:[%s4 + $0x8] sm:$0xf] %v1710
    %1743 = vst [vmem:[%s4 + $0xc] sm:$0xf] %v1711
    %1744 = vst [vmem:[%s4 + $0x10] sm:$0xf] %v1712
    %1745 = vst [vmem:[%s4 + $0x14] sm:$0xf] %v1713
    %1746 = vst [vmem:[%s4 + $0x18] sm:$0xf] %v1714
    %1747 = vst [vmem:[%s4 + $0x1c] sm:$0xf] %v1715
    %1748 = vst [vmem:[%s4 + $0x20] sm:$0xf] %v1716
    %1749 = vst [vmem:[%s4 + $0x24] sm:$0xf] %v1717
    %1750 = vst [vmem:[%s4 + $0x28] sm:$0xf] %v1718
    %1751 = vst [vmem:[%s4 + $0x2c] sm:$0xf] %v1719
    %1752 = vst [vmem:[%s4 + $0x30] sm:$0xf] %v1720
    %1753 = vst [vmem:[%s4 + $0x34] sm:$0xf] %v1721
    %1754 = vst [vmem:[%s4 + $0x38] sm:$0xf] %v1722
    %1755 = vst [vmem:[%s4 + $0x3c] sm:$0xf] %v1723
  $region25: #{_lambda_.14} parent=0 // pred_fallthru
    _
  // Predicated region
  $region26: #{_lambda_.14} parent=0 // pred_check
    _
  $region27: #{_lambda_.14} parent=0 // pred_check_branch
    %1757 = sbr.rel (0) target = $region29
  $region28: #{_lambda_.14} parent=0 // pred_region
    _
  $region29: #{_lambda_.14} parent=0 // pred_fallthru
    _
  // Predicated region
  $region30: #{_lambda_.14} parent=0 // pred_check
    _
  $region31: #{_lambda_.14} parent=0 // pred_check_branch
    %1759 = sbr.rel (0) target = $region33
  $region32: #{_lambda_.14} parent=0 // pred_region
    _
  $region33: #{_lambda_.14} parent=0 // pred_fallthru
    _

// kernel: _lambda_.15
$region0: #{_lambda_.15}
  #allocation0 [shape = 'u32[]', space=smem, size = 0x4, offset = 0x4, fixed_abs, tag = 'smem constant byte address 0x4 - core index']
  #allocation1 [shape = 'u32[144,128]{1,0:T(1,128)}', space=vmem, size = 0x12000, scoped, tag = 'internal scratch']
  #allocation2 [shape = 'f32[128,128]{1,0:T(8,128)}', space=vmem, size = 0x10000, scoped, tag = 'scratch operand']
  %s0 = inlined_call_operand.vmem [shape: bf16[128,3456], index: 0, kind: input, shape index: {}]
  %s1 = inlined_call_operand.vmem [shape: bf16[3456,128], index: 1, kind: input, shape index: {}]
  %s2 = inlined_call_operand.vmem [shape: f32[1,128], index: 2, kind: input, shape index: {}]
  %s3 = inlined_call_operand.vmem [shape: f32[1,128], index: 3, kind: input, shape index: {}]
  %s4 = inlined_call_operand.vmem [shape: bf16[128,128], index: 4, kind: input, shape index: {}]
  %s5 = inlined_call_operand.vmem [shape: bf16[128,128], index: 5, kind: output, shape index: {}]
  %s6 = sld [smem:[#allocation0]]
  $region87: #{_lambda_.15} parent=0
    _
  %s8 = ssub.s32 1, %s6
  %s9 = scalar_select 0, %s8, %s6
  $region1: #{_lambda_.15} parent=0
    #allocation3 [shape = 'u8[196608]{0}', space=vmem, size = 0x30000, scoped, tag = 'input window, operand 0']
    loop: start=0, step=1, limit=11
    $region2: #{_lambda_.15} parent=1 // loop_pre_header
      _
    $region3: #{_lambda_.15} parent=1 // loop_header
      %s11 = sphi 0, %s15
      %p12 = scmp.ge.s32.totalorder %s11, 11
      %s18 = sphi 0, %s37
      %s19 = sphi 0, %s33
      %s20 = sphi 0, %s29
      %s21 = sphi 0, %s18
      %s22 = sphi 0, %s19
      %s23 = sphi 0, %s20
      %s24 = sphi 0, %s21
      %s25 = sphi 0, %s22
      %s26 = sphi 0, %s23
      %s42 = sphi 0, %s44
      %s45 = sphi 0, %s42
      %s46 = sphi 0, %s45
      %s62 = sphi 0, %s46
      %s70 = sphi 0, %s72
      %s73 = sphi 0, %s70
      %s74 = sphi 0, %s73
      %s90 = sphi 0, %s74
      %s96 = sphi 0, %s98
      %s99 = sphi 0, %s96
      %s100 = sphi 0, %s99
      %s116 = sphi 0, %s100
      %s122 = sphi 0, %s124
      %s125 = sphi 0, %s122
      %s126 = sphi 0, %s125
      %s142 = sphi 0, %s126
      %s150 = sphi 0, %s152
      %s153 = sphi 0, %s150
      %s154 = sphi 0, %s153
      %s170 = sphi 0, %s154
      %s178 = sphi 0, %s180
      %s181 = sphi 0, %s178
      %s182 = sphi 0, %s181
      %s198 = sphi 0, %s182
    $region4: #{_lambda_.15} parent=1 // loop_header_branch
      %14 = sbr.rel (%p12) target = $region8
    $region5: #{_lambda_.15} parent=1 // loop_body
      %s16 = ssub.s32 %s11, 1
      %s17 = ssub.s32 %s11, 2
      %s27 = sadd.s32 1, %s20
      %p28 = scmp.ge.s32.totalorder %s27, 9
      %s29 = scalar_select %p28, 0, %s27
      %s30 = sadd.s32 1, %s19
      %s31 = scalar_select %p28, %s30, %s19
      %p32 = scmp.ge.s32.totalorder %s31, 1
      %s33 = scalar_select %p32, 0, %s31
      %s34 = sadd.s32 1, %s18
      %s35 = scalar_select %p32, %s34, %s18
      %p36 = scmp.ge.s32.totalorder %s35, 1
      %s37 = scalar_select %p36, 0, %s35
      %s38 = ssub.s32 %s18, %s37
      %s39 = ssub.s32 %s20, %s29
      %s40 = sor.u32 %s38, %s39
      %p41 = scmp.eq.s32.totalorder %s40, 0
      %s43 = sadd.s32 %s42, 1
      %s44 = scalar_select %p41, %s42, %s43
      %p47 = pneg %p41
      %p48 = scmp.eq.s32.totalorder %s11, 8
      %p49 = por %p47, %p48
      %p50 = scmp.ne.s32.totalorder %s42, %s45
      %p51 = scmp.eq.s32.totalorder %s11, 0
      %p52 = por %p50, %p51
      %p53 = scmp.ne.s32.totalorder %s42, %s45
      %p54 = scmp.eq.s32.totalorder %s16, 8
      %p55 = por %p53, %p54
      %p56 = scmp.ne.s32.totalorder %s45, %s46
      %p57 = scmp.eq.s32.totalorder %s16, 0
      %p58 = por %p56, %p57
      %p59 = scmp.ne.s32.totalorder %s45, %s46
      %p60 = scmp.eq.s32.totalorder %s17, 8
      %p61 = por %p59, %p60
      %p63 = scmp.ne.s32.totalorder %s46, %s62
      %p64 = scmp.eq.s32.totalorder %s17, 0
      %p65 = por %p63, %p64
      %s66 = ssub.s32 %s20, %s29
      %s67 = ssub.s32 %s19, %s33
      %s68 = sor.u32 %s66, %s67
      %p69 = scmp.eq.s32.totalorder %s68, 0
      %s71 = sadd.s32 %s70, 1
      %s72 = scalar_select %p69, %s70, %s71
      %p75 = pneg %p69
      %p76 = scmp.eq.s32.totalorder %s11, 8
      %p77 = por %p75, %p76
      %p78 = scmp.ne.s32.totalorder %s70, %s73
      %p79 = scmp.eq.s32.totalorder %s11, 0
      %p80 = por %p78, %p79
      %p81 = scmp.ne.s32.totalorder %s70, %s73
      %p82 = scmp.eq.s32.totalorder %s16, 8
      %p83 = por %p81, %p82
      %p84 = scmp.ne.s32.totalorder %s73, %s74
      %p85 = scmp.eq.s32.totalorder %s16, 0
      %p86 = por %p84, %p85
      %p87 = scmp.ne.s32.totalorder %s73, %s74
      %p88 = scmp.eq.s32.totalorder %s17, 8
      %p89 = por %p87, %p88
      %p91 = scmp.ne.s32.totalorder %s74, %s90
      %p92 = scmp.eq.s32.totalorder %s17, 0
      %p93 = por %p91, %p92
      %s94 = ssub.s32 %s19, %s33
      %p95 = scmp.eq.s32.totalorder %s94, 0
      %s97 = sadd.s32 %s96, 1
      %s98 = scalar_select %p95, %s96, %s97
      %p101 = pneg %p95
      %p102 = scmp.eq.s32.totalorder %s11, 8
      %p103 = por %p101, %p102
      %p104 = scmp.ne.s32.totalorder %s96, %s99
      %p105 = scmp.eq.s32.totalorder %s11, 0
      %p106 = por %p104, %p105
      %p107 = scmp.ne.s32.totalorder %s96, %s99
      %p108 = scmp.eq.s32.totalorder %s16, 8
      %p109 = por %p107, %p108
      %p110 = scmp.ne.s32.totalorder %s99, %s100
      %p111 = scmp.eq.s32.totalorder %s16, 0
      %p112 = por %p110, %p111
      %p113 = scmp.ne.s32.totalorder %s99, %s100
      %p114 = scmp.eq.s32.totalorder %s17, 8
      %p115 = por %p113, %p114
      %p117 = scmp.ne.s32.totalorder %s100, %s116
      %p118 = scmp.eq.s32.totalorder %s17, 0
      %p119 = por %p117, %p118
      %s120 = ssub.s32 %s19, %s33
      %p121 = scmp.eq.s32.totalorder %s120, 0
      %s123 = sadd.s32 %s122, 1
      %s124 = scalar_select %p121, %s122, %s123
      %p127 = pneg %p121
      %p128 = scmp.eq.s32.totalorder %s11, 8
      %p129 = por %p127, %p128
      %p130 = scmp.ne.s32.totalorder %s122, %s125
      %p131 = scmp.eq.s32.totalorder %s11, 0
      %p132 = por %p130, %p131
      %p133 = scmp.ne.s32.totalorder %s122, %s125
      %p134 = scmp.eq.s32.totalorder %s16, 8
      %p135 = por %p133, %p134
      %p136 = scmp.ne.s32.totalorder %s125, %s126
      %p137 = scmp.eq.s32.totalorder %s16, 0
      %p138 = por %p136, %p137
      %p139 = scmp.ne.s32.totalorder %s125, %s126
      %p140 = scmp.eq.s32.totalorder %s17, 8
      %p141 = por %p139, %p140
      %p143 = scmp.ne.s32.totalorder %s126, %s142
      %p144 = scmp.eq.s32.totalorder %s17, 0
      %p145 = por %p143, %p144
      %s146 = ssub.s32 %s18, %s37
      %s147 = ssub.s32 %s19, %s33
      %s148 = sor.u32 %s146, %s147
      %p149 = scmp.eq.s32.totalorder %s148, 0
      %s151 = sadd.s32 %s150, 1
      %s152 = scalar_select %p149, %s150, %s151
      %p155 = pneg %p149
      %p156 = scmp.eq.s32.totalorder %s11, 8
      %p157 = por %p155, %p156
      %p158 = scmp.ne.s32.totalorder %s150, %s153
      %p159 = scmp.eq.s32.totalorder %s11, 0
      %p160 = por %p158, %p159
      %p161 = scmp.ne.s32.totalorder %s150, %s153
      %p162 = scmp.eq.s32.totalorder %s16, 8
      %p163 = por %p161, %p162
      %p164 = scmp.ne.s32.totalorder %s153, %s154
      %p165 = scmp.eq.s32.totalorder %s16, 0
      %p166 = por %p164, %p165
      %p167 = scmp.ne.s32.totalorder %s153, %s154
      %p168 = scmp.eq.s32.totalorder %s17, 8
      %p169 = por %p167, %p168
      %p171 = scmp.ne.s32.totalorder %s154, %s170
      %p172 = scmp.eq.s32.totalorder %s17, 0
      %p173 = por %p171, %p172
      %s174 = ssub.s32 %s18, %s37
      %s175 = ssub.s32 %s19, %s33
      %s176 = sor.u32 %s174, %s175
      %p177 = scmp.eq.s32.totalorder %s176, 0
      %s179 = sadd.s32 %s178, 1
      %s180 = scalar_select %p177, %s178, %s179
      %p183 = pneg %p177
      %p184 = scmp.eq.s32.totalorder %s11, 8
      %p185 = por %p183, %p184
      %p186 = scmp.ne.s32.totalorder %s178, %s181
      %p187 = scmp.eq.s32.totalorder %s11, 0
      %p188 = por %p186, %p187
      %p189 = scmp.ne.s32.totalorder %s178, %s181
      %p190 = scmp.eq.s32.totalorder %s16, 8
      %p191 = por %p189, %p190
      %p192 = scmp.ne.s32.totalorder %s181, %s182
      %p193 = scmp.eq.s32.totalorder %s16, 0
      %p194 = por %p192, %p193
      %p195 = scmp.ne.s32.totalorder %s181, %s182
      %p196 = scmp.eq.s32.totalorder %s17, 8
      %p197 = por %p195, %p196
      %p199 = scmp.ne.s32.totalorder %s182, %s198
      %p200 = scmp.eq.s32.totalorder %s17, 0
      %p201 = por %p199, %p200
      %p202 = scmp.le.s32.totalorder 1, %s11
      %p203 = scmp.lt.s32.totalorder %s11, 10
      %p204 = pnand %p202, %p203
      %p205 = pneg %p204
      // Predicated region
      $region9: #{_lambda_.15} parent=5 // pred_check
        _
      $region10: #{_lambda_.15} parent=5 // pred_check_branch
        %207 = sbr.rel (%p204) target = $region12
      $region11: #{_lambda_.15} parent=5 // pred_region
        %s208 = ssub.s32 %s11, 1
        // Predicated region
        $region13: #{_lambda_.15} parent=11 // pred_check
          %p209 = pneg %p112
        $region14: #{_lambda_.15} parent=11 // pred_check_branch
          %211 = sbr.rel (%p209) target = $region16
        $region15: #{_lambda_.15} parent=11 // pred_region
          %p212 = scmp.lt.s32.totalorder %s22, 0
          %s213 = scalar_select %p212, %s22, 0
          %s214 = scalar_lea.vmem %s2, %s213
        $region16: #{_lambda_.15} parent=11 // pred_fallthru
          _
        // Predicated region
        $region17: #{_lambda_.15} parent=11 // pred_check
          %p215 = pneg %p138
        $region18: #{_lambda_.15} parent=11 // pred_check_branch
          %217 = sbr.rel (%p215) target = $region20
        $region19: #{_lambda_.15} parent=11 // pred_region
          %p218 = scmp.lt.s32.totalorder %s22, 0
          %s219 = scalar_select %p218, %s22, 0
          %s220 = scalar_lea.vmem %s3, %s219
        $region20: #{_lambda_.15} parent=11 // pred_fallthru
          _
        // Predicated region
        $region21: #{_lambda_.15} parent=11 // pred_check
          %p221 = pneg %p166
        $region22: #{_lambda_.15} parent=11 // pred_check_branch
          %223 = sbr.rel (%p221) target = $region24
        $region23: #{_lambda_.15} parent=11 // pred_region
          %s224 = smul.u32 16, %s21
          %p225 = scmp.lt.s32.totalorder %s224, 15
          %s226 = scalar_select %p225, %s224, 15
          %p227 = scmp.lt.s32.totalorder %s22, 0
          %s228 = scalar_select %p227, %s22, 0
          %s229 = sadd.s32 %s228, %s226
          %s230 = smul.addr %s229, 4
          %s231 = scalar_lea.vmem %s4, %s230
          %s232 = smul.u32 16, %s21
        $region24: #{_lambda_.15} parent=11 // pred_fallthru
          _
      $region12: #{_lambda_.15} parent=5 // pred_fallthru
        _
      %p233 = scmp.lt.s32.totalorder %s11, 9
      // Predicated region
      $region25: #{_lambda_.15} parent=5 // pred_check
        %p234 = pneg %p233
      $region26: #{_lambda_.15} parent=5 // pred_check_branch
        %236 = sbr.rel (%p234) target = $region28
      $region27: #{_lambda_.15} parent=5 // pred_region
        // Predicated region
        $region29: #{_lambda_.15} parent=27 // pred_check
          %p237 = pneg %p52
        $region30: #{_lambda_.15} parent=27 // pred_check_branch
          %239 = sbr.rel (%p237) target = $region32
        $region31: #{_lambda_.15} parent=27 // pred_region
          %s240 = sand.u32 %s42, 1
          %s241 = sand.u32 %s42, 1
          %s242 = smul.addr %s241, 192
          %s243 = scalar_lea.vmem [#allocation3], %s242
          %s244 = smul.u32 16, %s18
          %s245 = smul.u32 3, %s20
          %s246 = smul.addr %s244, 27
          %s247 = sadd.s32 %s245, %s246
          %s248 = smul.addr %s247, 4
          %s249 = scalar_lea.vmem %s0, %s248
          // Predicated region
          $region33: #{_lambda_.15} parent=31 // pred_check
            _
          $region34: #{_lambda_.15} parent=31 // pred_check_branch
            %251 = sbr.rel (0) target = $region36
          $region35: #{_lambda_.15} parent=31 // pred_region
            // Predicated region
            $region37: #{_lambda_.15} parent=35 // pred_check
              _
            $region38: #{_lambda_.15} parent=35 // pred_check_branch
              %253 = sbr.rel (0) target = $region40
            $region39: #{_lambda_.15} parent=35 // pred_region
              %s254 = scalar_lea.vmem %s249, 8
              %s255 = scalar_lea.vmem %s243, 8 [#allocation3]
              loop: start=0, step=1, limit=1
              $region41: #{_lambda_.15} parent=39 // loop_pre_header
                _
              $region42: #{_lambda_.15} parent=39 // loop_header
                %s257 = sphi 0, %s261
                %p258 = scmp.ge.s32.totalorder %s257, 1
                %s262 = sphi %s249, %s249
                %s263 = sphi %s243, %s243
              $region43: #{_lambda_.15} parent=39 // loop_header_branch
                %260 = sbr.rel (%p258) target = $region47
              $region44: #{_lambda_.15} parent=39 // loop_body
                %v264 = vld [vmem:[%s262] sm:$0xff]
                %265 = vst [vmem:[%s263] sm:$0xff] %v264
                %v266 = vld [vmem:[%s262 + $0x6c] sm:$0xff]
                %267 = vst [vmem:[%s263 + $0xc] sm:$0xff] %v266
                %v268 = vld [vmem:[%s262 + $0xd8] sm:$0xff]
                %269 = vst [vmem:[%s263 + $0x18] sm:$0xff] %v268
                %v270 = vld [vmem:[%s262 + $0x144] sm:$0xff]
                %271 = vst [vmem:[%s263 + $0x24] sm:$0xff] %v270
                %v272 = vld [vmem:[%s262 + $0x1b0] sm:$0xff]
                %273 = vst [vmem:[%s263 + $0x30] sm:$0xff] %v272
                %v274 = vld [vmem:[%s262 + $0x21c] sm:$0xff]
                %275 = vst [vmem:[%s263 + $0x3c] sm:$0xff] %v274
                %v276 = vld [vmem:[%s262 + $0x288] sm:$0xff]
                %277 = vst [vmem:[%s263 + $0x48] sm:$0xff] %v276
                %v278 = vld [vmem:[%s262 + $0x2f4] sm:$0xff]
                %279 = vst [vmem:[%s263 + $0x54] sm:$0xff] %v278
                %v280 = vld [vmem:[%s262 + $0x360] sm:$0xff]
                %281 = vst [vmem:[%s263 + $0x60] sm:$0xff] %v280
                %v282 = vld [vmem:[%s262 + $0x3cc] sm:$0xff]
                %283 = vst [vmem:[%s263 + $0x6c] sm:$0xff] %v282
                %v284 = vld [vmem:[%s262 + $0x438] sm:$0xff]
                %285 = vst [vmem:[%s263 + $0x78] sm:$0xff] %v284
                %v286 = vld [vmem:[%s262 + $0x4a4] sm:$0xff]
                %287 = vst [vmem:[%s263 + $0x84] sm:$0xff] %v286
                %v288 = vld [vmem:[%s262 + $0x510] sm:$0xff]
                %289 = vst [vmem:[%s263 + $0x90] sm:$0xff] %v288
                %v290 = vld [vmem:[%s262 + $0x57c] sm:$0xff]
                %291 = vst [vmem:[%s263 + $0x9c] sm:$0xff] %v290
                %v292 = vld [vmem:[%s262 + $0x5e8] sm:$0xff]
                %293 = vst [vmem:[%s263 + $0xa8] sm:$0xff] %v292
                %v294 = vld [vmem:[%s262 + $0x654] sm:$0xff]
                %295 = vst [vmem:[%s263 + $0xb4] sm:$0xff] %v294
              $region45: #{_lambda_.15} parent=39 // loop_footer
                %s261 = sadd.s32 1, %s257
              $region46: #{_lambda_.15} parent=39 // loop_footer_branch
                %256 = sbr.rel target = $region42
              $region47: #{_lambda_.15} parent=39 // loop_exit
                _
              loop: start=0, step=1, limit=1
              $region48: #{_lambda_.15} parent=39 // loop_pre_header
                _
              $region49: #{_lambda_.15} parent=39 // loop_header
                %s298 = sphi 0, %s302
                %p299 = scmp.ge.s32.totalorder %s298, 1
                %s303 = sphi %s254, %s254
                %s304 = sphi %s255, %s255
              $region50: #{_lambda_.15} parent=39 // loop_header_branch
                %301 = sbr.rel (%p299) target = $region54
              $region51: #{_lambda_.15} parent=39 // loop_body
                %v305 = vld [vmem:[%s303] sm:$0xf]
                %306 = vst [vmem:[%s304] sm:$0xf] %v305
                %v307 = vld [vmem:[%s303 + $0x6c] sm:$0xf]
                %308 = vst [vmem:[%s304 + $0xc] sm:$0xf] %v307
                %v309 = vld [vmem:[%s303 + $0xd8] sm:$0xf]
                %310 = vst [vmem:[%s304 + $0x18] sm:$0xf] %v309
                %v311 = vld [vmem:[%s303 + $0x144] sm:$0xf]
                %312 = vst [vmem:[%s304 + $0x24] sm:$0xf] %v311
                %v313 = vld [vmem:[%s303 + $0x1b0] sm:$0xf]
                %314 = vst [vmem:[%s304 + $0x30] sm:$0xf] %v313
                %v315 = vld [vmem:[%s303 + $0x21c] sm:$0xf]
                %316 = vst [vmem:[%s304 + $0x3c] sm:$0xf] %v315
                %v317 = vld [vmem:[%s303 + $0x288] sm:$0xf]
                %318 = vst [vmem:[%s304 + $0x48] sm:$0xf] %v317
                %v319 = vld [vmem:[%s303 + $0x2f4] sm:$0xf]
                %320 = vst [vmem:[%s304 + $0x54] sm:$0xf] %v319
                %v321 = vld [vmem:[%s303 + $0x360] sm:$0xf]
                %322 = vst [vmem:[%s304 + $0x60] sm:$0xf] %v321
                %v323 = vld [vmem:[%s303 + $0x3cc] sm:$0xf]
                %324 = vst [vmem:[%s304 + $0x6c] sm:$0xf] %v323
                %v325 = vld [vmem:[%s303 + $0x438] sm:$0xf]
                %326 = vst [vmem:[%s304 + $0x78] sm:$0xf] %v325
                %v327 = vld [vmem:[%s303 + $0x4a4] sm:$0xf]
                %328 = vst [vmem:[%s304 + $0x84] sm:$0xf] %v327
                %v329 = vld [vmem:[%s303 + $0x510] sm:$0xf]
                %330 = vst [vmem:[%s304 + $0x90] sm:$0xf] %v329
                %v331 = vld [vmem:[%s303 + $0x57c] sm:$0xf]
                %332 = vst [vmem:[%s304 + $0x9c] sm:$0xf] %v331
                %v333 = vld [vmem:[%s303 + $0x5e8] sm:$0xf]
                %334 = vst [vmem:[%s304 + $0xa8] sm:$0xf] %v333
                %v335 = vld [vmem:[%s303 + $0x654] sm:$0xf]
                %336 = vst [vmem:[%s304 + $0xb4] sm:$0xf] %v335
              $region52: #{_lambda_.15} parent=39 // loop_footer
                %s302 = sadd.s32 1, %s298
              $region53: #{_lambda_.15} parent=39 // loop_footer_branch
                %297 = sbr.rel target = $region49
              $region54: #{_lambda_.15} parent=39 // loop_exit
                _
            $region40: #{_lambda_.15} parent=35 // pred_fallthru
              _
          $region36: #{_lambda_.15} parent=31 // pred_fallthru
            _
          %337 = vnop
        $region32: #{_lambda_.15} parent=27 // pred_fallthru
          _
        // Predicated region
        $region55: #{_lambda_.15} parent=27 // pred_check
          %p338 = pneg %p80
        $region56: #{_lambda_.15} parent=27 // pred_check_branch
          %340 = sbr.rel (%p338) target = $region58
        $region57: #{_lambda_.15} parent=27 // pred_region
          %s341 = smul.u32 48, %s20
          %p342 = scmp.lt.s32.totalorder %s341, 431
          %s343 = scalar_select %p342, %s341, 431
          %p344 = scmp.lt.s32.totalorder %s19, 0
          %s345 = scalar_select %p344, %s19, 0
          %s346 = sadd.s32 %s345, %s343
          %s347 = smul.addr %s346, 4
          %s348 = scalar_lea.vmem %s1, %s347
          %s349 = smul.u32 48, %s20
        $region58: #{_lambda_.15} parent=27 // pred_fallthru
          _
      $region28: #{_lambda_.15} parent=5 // pred_fallthru
        _
      %p350 = scmp.le.s32.totalorder 1, %s11
      %p351 = scmp.lt.s32.totalorder %s11, 10
      %p352 = pnand %p350, %p351
      %p353 = pneg %p352
      // Predicated region
      $region59: #{_lambda_.15} parent=5 // pred_check
        _
      $region60: #{_lambda_.15} parent=5 // pred_check_branch
        %355 = sbr.rel (%p352) target = $region62
      $region61: #{_lambda_.15} parent=5 // pred_region
        %s356 = ssub.s32 %s11, 1
        %s357 = sand.u32 %s45, 1
        %s358 = sand.u32 %s45, 1
        %s359 = smul.addr %s358, 192
        %s360 = scalar_lea.vmem [#allocation3], %s359
        // Predicated region
        $region63: #{_lambda_.15} parent=61 // pred_check
          %p361 = pneg %p58
        $region64: #{_lambda_.15} parent=61 // pred_check_branch
          %363 = sbr.rel (%p361) target = $region66
        $region65: #{_lambda_.15} parent=61 // pred_region
          _
        $region66: #{_lambda_.15} parent=61 // pred_fallthru
          _
        %s364 = sand.u32 %s45, 1
        %s365 = sand.u32 %s45, 1
        %s366 = smul.addr %s365, 192
        %s367 = scalar_lea.vmem [#allocation3], %s366
        %p368 = pneg %p58
        %p369 = pneg %p55
        %s370 = smul.u32 48, %s23
        %p371 = scmp.lt.s32.totalorder %s370, 431
        %s372 = scalar_select %p371, %s370, 431
        %p373 = scmp.lt.s32.totalorder %s22, 0
        %s374 = scalar_select %p373, %s22, 0
        %s375 = sadd.s32 %s374, %s372
        %s376 = smul.addr %s375, 4
        %s377 = scalar_lea.vmem %s1, %s376
        %p378 = pneg %p86
        %p379 = pneg %p83
        %p380 = scmp.lt.s32.totalorder %s22, 0
        %s381 = scalar_select %p380, %s22, 0
        %s382 = scalar_lea.vmem %s2, %s381
        %p383 = pneg %p112
        %p384 = pneg %p109
        %p385 = scmp.lt.s32.totalorder %s22, 0
        %s386 = scalar_select %p385, %s22, 0
        %s387 = scalar_lea.vmem %s3, %s386
        %p388 = pneg %p138
        %p389 = pneg %p135
        %s390 = smul.u32 16, %s21
        %p391 = scmp.lt.s32.totalorder %s390, 15
        %s392 = scalar_select %p391, %s390, 15
        %p393 = scmp.lt.s32.totalorder %s22, 0
        %s394 = scalar_select %p393, %s22, 0
        %s395 = sadd.s32 %s394, %s392
        %s396 = smul.addr %s395, 4
        %s397 = scalar_lea.vmem %s4, %s396
        %p398 = pneg %p166
        %p399 = pneg %p163
        %p400 = pneg %p194
        %p401 = pneg %p191
        %s402 = smul.u32 16, %s21
        %p403 = scmp.lt.s32.totalorder %s402, 15
        %s404 = scalar_select %p403, %s402, 15
        %p405 = scmp.lt.s32.totalorder %s22, 0
        %s406 = scalar_select %p405, %s22, 0
        %s407 = sadd.s32 %s406, %s404
        %s408 = smul.addr %s407, 4
        %s409 = scalar_lea.vmem %s5, %s408
        %s410 = smul.u32 16, %s21
        %s411 = smul.u32 3, %s23
        %s412 = smul.u32 48, %s23
        %p413 = scmp.lt.s32.totalorder %s412, 431
        %s414 = scalar_select %p413, %s412, 431
        %p415 = scmp.lt.s32.totalorder %s22, 0
        %s416 = scalar_select %p415, %s22, 0
        %s417 = sadd.s32 %s416, %s414
        %s418 = smul.addr %s417, 4
        %s419 = scalar_lea.vmem %s1, %s418
        %s420 = smul.u32 48, %s23
        %p421 = scmp.lt.s32.totalorder %s22, 0
        %s422 = scalar_select %p421, %s22, 0
        %s423 = scalar_lea.vmem %s2, %s422
        %p424 = scmp.lt.s32.totalorder %s22, 0
        %s425 = scalar_select %p424, %s22, 0
        %s426 = scalar_lea.vmem %s3, %s425
        %s427 = smul.u32 16, %s21
        %p428 = scmp.lt.s32.totalorder %s427, 15
        %s429 = scalar_select %p428, %s427, 15
        %p430 = scmp.lt.s32.totalorder %s22, 0
        %s431 = scalar_select %p430, %s22, 0
        %s432 = sadd.s32 %s431, %s429
        %s433 = smul.addr %s432, 4
        %s434 = scalar_lea.vmem %s4, %s433
        %s435 = smul.u32 16, %s21
        %s436 = smul.u32 16, %s21
        %p437 = scmp.lt.s32.totalorder %s436, 15
        %s438 = scalar_select %p437, %s436, 15
        %p439 = scmp.lt.s32.totalorder %s22, 0
        %s440 = scalar_select %p439, %s22, 0
        %s441 = sadd.s32 %s440, %s438
        %s442 = smul.addr %s441, 4
        %s443 = scalar_lea.vmem %s5, %s442
        %s444 = smul.u32 16, %s21
        %p446 = scmp.eq.s32.totalorder %s23, 0
        // Predicated region
        $region67: #{_lambda_.15} parent=61 // pred_check
          %p447 = pneg %p446
        $region68: #{_lambda_.15} parent=61 // pred_check_branch
          %449 = sbr.rel (%p447) target = $region70
        $region69: #{_lambda_.15} parent=61 // pred_region
          %450 = vst [vmem:[#allocation2] sm:$0xff] 0.0
          %451 = vst [vmem:[#allocation2 + $0x8] sm:$0xff] 0.0
          %452 = vst [vmem:[#allocation2 + $0x10] sm:$0xff] 0.0
          %453 = vst [vmem:[#allocation2 + $0x18] sm:$0xff] 0.0
          %454 = vst [vmem:[#allocation2 + $0x20] sm:$0xff] 0.0
          %455 = vst [vmem:[#allocation2 + $0x28] sm:$0xff] 0.0
          %456 = vst [vmem:[#allocation2 + $0x30] sm:$0xff] 0.0
          %457 = vst [vmem:[#allocation2 + $0x38] sm:$0xff] 0.0
          %458 = vst [vmem:[#allocation2 + $0x40] sm:$0xff] 0.0
          %459 = vst [vmem:[#allocation2 + $0x48] sm:$0xff] 0.0
          %460 = vst [vmem:[#allocation2 + $0x50] sm:$0xff] 0.0
          %461 = vst [vmem:[#allocation2 + $0x58] sm:$0xff] 0.0
          %462 = vst [vmem:[#allocation2 + $0x60] sm:$0xff] 0.0
          %463 = vst [vmem:[#allocation2 + $0x68] sm:$0xff] 0.0
          %464 = vst [vmem:[#allocation2 + $0x70] sm:$0xff] 0.0
          %465 = vst [vmem:[#allocation2 + $0x78] sm:$0xff] 0.0
        $region70: #{_lambda_.15} parent=61 // pred_fallthru
          _
        %v466 = vld [vmem:[#allocation2] sm:$0xff]
        %v467 = vld [vmem:[#allocation2 + $0x8] sm:$0xff]
        %v468 = vld [vmem:[#allocation2 + $0x10] sm:$0xff]
        %v469 = vld [vmem:[#allocation2 + $0x18] sm:$0xff]
        %v470 = vld [vmem:[#allocation2 + $0x20] sm:$0xff]
        %v471 = vld [vmem:[#allocation2 + $0x28] sm:$0xff]
        %v472 = vld [vmem:[#allocation2 + $0x30] sm:$0xff]
        %v473 = vld [vmem:[#allocation2 + $0x38] sm:$0xff]
        %v474 = vld [vmem:[#allocation2 + $0x40] sm:$0xff]
        %v475 = vld [vmem:[#allocation2 + $0x48] sm:$0xff]
        %v476 = vld [vmem:[#allocation2 + $0x50] sm:$0xff]
        %v477 = vld [vmem:[#allocation2 + $0x58] sm:$0xff]
        %v478 = vld [vmem:[#allocation2 + $0x60] sm:$0xff]
        %v479 = vld [vmem:[#allocation2 + $0x68] sm:$0xff]
        %v480 = vld [vmem:[#allocation2 + $0x70] sm:$0xff]
        %v481 = vld [vmem:[#allocation2 + $0x78] sm:$0xff]
        %v482 = vld [vmem:[%s360] sm:$0xff]
        %v483 = vld [vmem:[%s360 + $0x8] sm:$0xf]
        %v484 = vld [vmem:[%s360 + $0xc] sm:$0xff]
        %v485 = vld [vmem:[%s360 + $0x14] sm:$0xf]
        %v486 = vld [vmem:[%s360 + $0x18] sm:$0xff]
        %v487 = vld [vmem:[%s360 + $0x20] sm:$0xf]
        %v488 = vld [vmem:[%s360 + $0x24] sm:$0xff]
        %v489 = vld [vmem:[%s360 + $0x2c] sm:$0xf]
        %v490 = vld [vmem:[%s360 + $0x30] sm:$0xff]
        %v491 = vld [vmem:[%s360 + $0x38] sm:$0xf]
        %v492 = vld [vmem:[%s360 + $0x3c] sm:$0xff]
        %v493 = vld [vmem:[%s360 + $0x44] sm:$0xf]
        %v494 = vld [vmem:[%s360 + $0x48] sm:$0xff]
        %v495 = vld [vmem:[%s360 + $0x50] sm:$0xf]
        %v496 = vld [vmem:[%s360 + $0x54] sm:$0xff]
        %v497 = vld [vmem:[%s360 + $0x5c] sm:$0xf]
        %v498 = vld [vmem:[%s360 + $0x60] sm:$0xff]
        %v499 = vld [vmem:[%s360 + $0x68] sm:$0xf]
        %v500 = vld [vmem:[%s360 + $0x6c] sm:$0xff]
        %v501 = vld [vmem:[%s360 + $0x74] sm:$0xf]
        %v502 = vld [vmem:[%s360 + $0x78] sm:$0xff]
        %v503 = vld [vmem:[%s360 + $0x80] sm:$0xf]
        %v504 = vld [vmem:[%s360 + $0x84] sm:$0xff]
        %v505 = vld [vmem:[%s360 + $0x8c] sm:$0xf]
        %v506 = vld [vmem:[%s360 + $0x90] sm:$0xff]
        %v507 = vld [vmem:[%s360 + $0x98] sm:$0xf]
        %v508 = vld [vmem:[%s360 + $0x9c] sm:$0xff]
        %v509 = vld [vmem:[%s360 + $0xa4] sm:$0xf]
        %v510 = vld [vmem:[%s360 + $0xa8] sm:$0xff]
        %v511 = vld [vmem:[%s360 + $0xb0] sm:$0xf]
        %v512 = vld [vmem:[%s360 + $0xb4] sm:$0xff]
        %v513 = vld [vmem:[%s360 + $0xbc] sm:$0xf]
        %v514 = vld [vmem:[%s419] sm:$0xf]
        %v515 = vld [vmem:[%s419 + $0x4] sm:$0xf]
        %v516 = vld [vmem:[%s419 + $0x8] sm:$0xf]
        %v517 = vld [vmem:[%s419 + $0xc] sm:$0xf]
        %v518 = vld [vmem:[%s419 + $0x10] sm:$0xf]
        %v519 = vld [vmem:[%s419 + $0x14] sm:$0xf]
        %v520 = vld [vmem:[%s419 + $0x18] sm:$0xf]
        %v521 = vld [vmem:[%s419 + $0x1c] sm:$0xf]
        %v522 = vld [vmem:[%s419 + $0x20] sm:$0xf]
        %v523 = vld [vmem:[%s419 + $0x24] sm:$0xf]
        %v524 = vld [vmem:[%s419 + $0x28] sm:$0xf]
        %v525 = vld [vmem:[%s419 + $0x2c] sm:$0xf]
        %v526 = vld [vmem:[%s419 + $0x30] sm:$0xf]
        %v527 = vld [vmem:[%s419 + $0x34] sm:$0xf]
        %v528 = vld [vmem:[%s419 + $0x38] sm:$0xf]
        %v529 = vld [vmem:[%s419 + $0x3c] sm:$0xf]
        %v530 = vld [vmem:[%s419 + $0x40] sm:$0xf]
        %v531 = vld [vmem:[%s419 + $0x44] sm:$0xf]
        %v532 = vld [vmem:[%s419 + $0x48] sm:$0xf]
        %v533 = vld [vmem:[%s419 + $0x4c] sm:$0xf]
        %v534 = vld [vmem:[%s419 + $0x50] sm:$0xf]
        %v535 = vld [vmem:[%s419 + $0x54] sm:$0xf]
        %v536 = vld [vmem:[%s419 + $0x58] sm:$0xf]
        %v537 = vld [vmem:[%s419 + $0x5c] sm:$0xf]
        %v538 = vld [vmem:[%s419 + $0x60] sm:$0xf]
        %v539 = vld [vmem:[%s419 + $0x64] sm:$0xf]
        %v540 = vld [vmem:[%s419 + $0x68] sm:$0xf]
        %v541 = vld [vmem:[%s419 + $0x6c] sm:$0xf]
        %v542 = vld [vmem:[%s419 + $0x70] sm:$0xf]
        %v543 = vld [vmem:[%s419 + $0x74] sm:$0xf]
        %v544 = vld [vmem:[%s419 + $0x78] sm:$0xf]
        %v545 = vld [vmem:[%s419 + $0x7c] sm:$0xf]
        %v546 = vld [vmem:[%s419 + $0x80] sm:$0xf]
        %v547 = vld [vmem:[%s419 + $0x84] sm:$0xf]
        %v548 = vld [vmem:[%s419 + $0x88] sm:$0xf]
        %v549 = vld [vmem:[%s419 + $0x8c] sm:$0xf]
        %v550 = vld [vmem:[%s419 + $0x90] sm:$0xf]
        %v551 = vld [vmem:[%s419 + $0x94] sm:$0xf]
        %v552 = vld [vmem:[%s419 + $0x98] sm:$0xf]
        %v553 = vld [vmem:[%s419 + $0x9c] sm:$0xf]
        %v554 = vld [vmem:[%s419 + $0xa0] sm:$0xf]
        %v555 = vld [vmem:[%s419 + $0xa4] sm:$0xf]
        %v556 = vld [vmem:[%s419 + $0xa8] sm:$0xf]
        %v557 = vld [vmem:[%s419 + $0xac] sm:$0xf]
        %v558 = vld [vmem:[%s419 + $0xb0] sm:$0xf]
        %v559 = vld [vmem:[%s419 + $0xb4] sm:$0xf]
        %v560 = vld [vmem:[%s419 + $0xb8] sm:$0xf]
        %v561 = vld [vmem:[%s419 + $0xbc] sm:$0xf]
        %v594 = vunpack.c.l.b16 %v482
        %v595 = vunpack.c.h.b16 %v482
        %v596 = vunpack.c.l.b16 %v483
        %v597 = vunpack.c.l.b16 %v484
        %v598 = vunpack.c.h.b16 %v484
        %v599 = vunpack.c.l.b16 %v485
        %v600 = vunpack.c.l.b16 %v486
        %v601 = vunpack.c.h.b16 %v486
        %v602 = vunpack.c.l.b16 %v487
        %v603 = vunpack.c.l.b16 %v488
        %v604 = vunpack.c.h.b16 %v488
        %v605 = vunpack.c.l.b16 %v489
        %v606 = vunpack.c.l.b16 %v490
        %v607 = vunpack.c.h.b16 %v490
        %v608 = vunpack.c.l.b16 %v491
        %v609 = vunpack.c.l.b16 %v492
        %v610 = vunpack.c.h.b16 %v492
        %v611 = vunpack.c.l.b16 %v493
        %v612 = vunpack.c.l.b16 %v494
        %v613 = vunpack.c.h.b16 %v494
        %v614 = vunpack.c.l.b16 %v495
        %v615 = vunpack.c.l.b16 %v496
        %v616 = vunpack.c.h.b16 %v496
        %v617 = vunpack.c.l.b16 %v497
        %v618 = vunpack.c.l.b16 %v498
        %v619 = vunpack.c.h.b16 %v498
        %v620 = vunpack.c.l.b16 %v499
        %v621 = vunpack.c.l.b16 %v500
        %v622 = vunpack.c.h.b16 %v500
        %v623 = vunpack.c.l.b16 %v501
        %v624 = vunpack.c.l.b16 %v502
        %v625 = vunpack.c.h.b16 %v502
        %v626 = vunpack.c.l.b16 %v503
        %v627 = vunpack.c.l.b16 %v504
        %v628 = vunpack.c.h.b16 %v504
        %v629 = vunpack.c.l.b16 %v505
        %v630 = vunpack.c.l.b16 %v506
        %v631 = vunpack.c.h.b16 %v506
        %v632 = vunpack.c.l.b16 %v507
        %v633 = vunpack.c.l.b16 %v508
        %v634 = vunpack.c.h.b16 %v508
        %v635 = vunpack.c.l.b16 %v509
        %v636 = vunpack.c.l.b16 %v510
        %v637 = vunpack.c.h.b16 %v510
        %v638 = vunpack.c.l.b16 %v511
        %v639 = vunpack.c.l.b16 %v512
        %v640 = vunpack.c.h.b16 %v512
        %v641 = vunpack.c.l.b16 %v513
        %v642 = vpack.c.b16 %v597, %v594
        %v643 = vpack.c.b16 %v598, %v595
        %v644 = vpack.c.b16 %v599, %v596
        %v645 = vpack.c.b16 %v603, %v600
        %v646 = vpack.c.b16 %v604, %v601
        %v647 = vpack.c.b16 %v605, %v602
        %v648 = vpack.c.b16 %v609, %v606
        %v649 = vpack.c.b16 %v610, %v607
        %v650 = vpack.c.b16 %v611, %v608
        %v651 = vpack.c.b16 %v615, %v612
        %v652 = vpack.c.b16 %v616, %v613
        %v653 = vpack.c.b16 %v617, %v614
        %v654 = vpack.c.b16 %v621, %v618
        %v655 = vpack.c.b16 %v622, %v619
        %v656 = vpack.c.b16 %v623, %v620
        %v657 = vpack.c.b16 %v627, %v624
        %v658 = vpack.c.b16 %v628, %v625
        %v659 = vpack.c.b16 %v629, %v626
        %v660 = vpack.c.b16 %v633, %v630
        %v661 = vpack.c.b16 %v634, %v631
        %v662 = vpack.c.b16 %v635, %v632
        %v663 = vpack.c.b16 %v639, %v636
        %v664 = vpack.c.b16 %v640, %v637
        %v665 = vpack.c.b16 %v641, %v638
        %v738 = vunpack.c.l.b16 %v514
        %v739 = vunpack.c.l.b16 %v515
        %v740 = vunpack.c.l.b16 %v516
        %v741 = vunpack.c.l.b16 %v517
        %v742 = vunpack.c.l.b16 %v518
        %v743 = vunpack.c.l.b16 %v519
        %v744 = vunpack.c.l.b16 %v520
        %v745 = vunpack.c.l.b16 %v521
        %v746 = vunpack.c.l.b16 %v522
        %v747 = vunpack.c.l.b16 %v523
        %v748 = vunpack.c.l.b16 %v524
        %v749 = vunpack.c.l.b16 %v525
        %v750 = vunpack.c.l.b16 %v526
        %v751 = vunpack.c.l.b16 %v527
        %v752 = vunpack.c.l.b16 %v528
        %v753 = vunpack.c.l.b16 %v529
        %v754 = vunpack.c.l.b16 %v530
        %v755 = vunpack.c.l.b16 %v531
        %v756 = vunpack.c.l.b16 %v532
        %v757 = vunpack.c.l.b16 %v533
        %v758 = vunpack.c.l.b16 %v534
        %v759 = vunpack.c.l.b16 %v535
        %v760 = vunpack.c.l.b16 %v536
        %v761 = vunpack.c.l.b16 %v537
        %v762 = vunpack.c.l.b16 %v538
        %v763 = vunpack.c.l.b16 %v539
        %v764 = vunpack.c.l.b16 %v540
        %v765 = vunpack.c.l.b16 %v541
        %v766 = vunpack.c.l.b16 %v542
        %v767 = vunpack.c.l.b16 %v543
        %v768 = vunpack.c.l.b16 %v544
        %v769 = vunpack.c.l.b16 %v545
        %v770 = vunpack.c.l.b16 %v546
        %v771 = vunpack.c.l.b16 %v547
        %v772 = vunpack.c.l.b16 %v548
        %v773 = vunpack.c.l.b16 %v549
        %v774 = vunpack.c.l.b16 %v550
        %v775 = vunpack.c.l.b16 %v551
        %v776 = vunpack.c.l.b16 %v552
        %v777 = vunpack.c.l.b16 %v553
        %v778 = vunpack.c.l.b16 %v554
        %v779 = vunpack.c.l.b16 %v555
        %v780 = vunpack.c.l.b16 %v556
        %v781 = vunpack.c.l.b16 %v557
        %v782 = vunpack.c.l.b16 %v558
        %v783 = vunpack.c.l.b16 %v559
        %v784 = vunpack.c.l.b16 %v560
        %v785 = vunpack.c.l.b16 %v561
        %v786 = vpack.c.b16 %v739, %v738
        %v787 = vpack.c.b16 %v741, %v740
        %v788 = vpack.c.b16 %v743, %v742
        %v789 = vpack.c.b16 %v745, %v744
        %v790 = vpack.c.b16 %v747, %v746
        %v791 = vpack.c.b16 %v749, %v748
        %v792 = vpack.c.b16 %v751, %v750
        %v793 = vpack.c.b16 %v753, %v752
        %v794 = vpack.c.b16 %v755, %v754
        %v795 = vpack.c.b16 %v757, %v756
        %v796 = vpack.c.b16 %v759, %v758
        %v797 = vpack.c.b16 %v761, %v760
        %v798 = vpack.c.b16 %v763, %v762
        %v799 = vpack.c.b16 %v765, %v764
        %v800 = vpack.c.b16 %v767, %v766
        %v801 = vpack.c.b16 %v769, %v768
        %v802 = vpack.c.b16 %v771, %v770
        %v803 = vpack.c.b16 %v773, %v772
        %v804 = vpack.c.b16 %v775, %v774
        %v805 = vpack.c.b16 %v777, %v776
        %v806 = vpack.c.b16 %v779, %v778
        %v807 = vpack.c.b16 %v781, %v780
        %v808 = vpack.c.b16 %v783, %v782
        %v809 = vpack.c.b16 %v785, %v784
        %834 = vmatprep.subr.bf16.mxu0 0
        %835 = vmatpush1.bf16.msra.mxu0 %v786
        %836 = vmatprep.subr.bf16.mxu0 0
        %837 = vmatpush1.bf16.msra.mxu0 %v787
        %838 = vmatprep.subr.bf16.mxu0 0
        %839 = vmatpush1.bf16.msra.mxu0 %v788
        %840 = vmatprep.subr.bf16.mxu0 0
        %841 = vmatpush1.bf16.msra.mxu0 %v789
        %842 = vmatprep.subr.bf16.mxu0 0
        %843 = vmatpush1.bf16.msra.mxu0 %v790
        %844 = vmatprep.subr.bf16.mxu0 0
        %845 = vmatpush1.bf16.msra.mxu0 %v791
        %846 = vmatprep.subr.bf16.mxu0 0
        %847 = vmatpush1.bf16.msra.mxu0 %v792
        %848 = vmatprep.subr.bf16.mxu0 0
        %849 = vmatpush1.bf16.msra.mxu0 %v793
        %850 = vmatprep.subr.bf16.mxu0 0
        %851 = vmatpush1.bf16.msra.mxu0 %v794
        %852 = vmatprep.subr.bf16.mxu0 0
        %853 = vmatpush1.bf16.msra.mxu0 %v795
        %854 = vmatprep.subr.bf16.mxu0 0
        %855 = vmatpush1.bf16.msra.mxu0 %v796
        %856 = vmatprep.subr.bf16.mxu0 0
        %857 = vmatpush1.bf16.msra.mxu0 %v797
        %858 = vmatprep.subr.bf16.mxu0 0
        %859 = vmatpush1.bf16.msra.mxu0 %v798
        %860 = vmatprep.subr.bf16.mxu0 0
        %861 = vmatpush1.bf16.msra.mxu0 %v799
        %862 = vmatprep.subr.bf16.mxu0 0
        %863 = vmatpush1.bf16.msra.mxu0 %v800
        %864 = vmatprep.subr.bf16.mxu0 0
        %865 = vmatpush1.bf16.msra.mxu0 %v801
        %866 = vmatprep.mubr.bf16.mxu0 %v643
        %867 = vmatmul.mubr.bf16.gmra.mrb[0].mxu0 %v642
        %v868 = vpop.f32.mrb[0].mxu0
        %v869 = vadd.f32 0.0, %v868
        %v870 = vpop.f32.mrb[0].mxu0
        %v871 = vpop.f32.mrb[0].mxu0
        %v872 = vadd.f32 0.0, %v871
        %v873 = vpop.f32.mrb[0].mxu0
        %874 = vmatprep.mubr.bf16.mxu0 %v646
        %875 = vmatmul.mubr.bf16.gmra.mrb[0].mxu0 %v645
        %v876 = vpop.f32.mrb[0].mxu0
        %v877 = vadd.f32 0.0, %v876
        %v878 = vpop.f32.mrb[0].mxu0
        %v879 = vpop.f32.mrb[0].mxu0
        %v880 = vadd.f32 0.0, %v879
        %v881 = vpop.f32.mrb[0].mxu0
        %882 = vmatprep.mubr.bf16.mxu0 %v649
        %883 = vmatmul.mubr.bf16.gmra.mrb[0].mxu0 %v648
        %v884 = vpop.f32.mrb[0].mxu0
        %v885 = vadd.f32 0.0, %v884
        %v886 = vpop.f32.mrb[0].mxu0
        %v887 = vpop.f32.mrb[0].mxu0
        %v888 = vadd.f32 0.0, %v887
        %v889 = vpop.f32.mrb[0].mxu0
        %890 = vmatprep.mubr.bf16.mxu0 %v652
        %891 = vmatmul.mubr.bf16.gmra.mrb[0].mxu0 %v651
        %v892 = vpop.f32.mrb[0].mxu0
        %v893 = vadd.f32 0.0, %v892
        %v894 = vpop.f32.mrb[0].mxu0
        %v895 = vpop.f32.mrb[0].mxu0
        %v896 = vadd.f32 0.0, %v895
        %v897 = vpop.f32.mrb[0].mxu0
        %898 = vmatprep.mubr.bf16.mxu0 %v655
        %899 = vmatmul.mubr.bf16.gmra.mrb[0].mxu0 %v654
        %v900 = vpop.f32.mrb[0].mxu0
        %v901 = vadd.f32 0.0, %v900
        %v902 = vpop.f32.mrb[0].mxu0
        %v903 = vpop.f32.mrb[0].mxu0
        %v904 = vadd.f32 0.0, %v903
        %v905 = vpop.f32.mrb[0].mxu0
        %906 = vmatprep.mubr.bf16.mxu0 %v658
        %907 = vmatmul.mubr.bf16.gmra.mrb[0].mxu0 %v657
        %v908 = vpop.f32.mrb[0].mxu0
        %v909 = vadd.f32 0.0, %v908
        %v910 = vpop.f32.mrb[0].mxu0
        %v911 = vpop.f32.mrb[0].mxu0
        %v912 = vadd.f32 0.0, %v911
        %v913 = vpop.f32.mrb[0].mxu0
        %914 = vmatprep.mubr.bf16.mxu0 %v661
        %915 = vmatmul.mubr.bf16.gmra.mrb[0].mxu0 %v660
        %v916 = vpop.f32.mrb[0].mxu0
        %v917 = vadd.f32 0.0, %v916
        %v918 = vpop.f32.mrb[0].mxu0
        %v919 = vpop.f32.mrb[0].mxu0
        %v920 = vadd.f32 0.0, %v919
        %v921 = vpop.f32.mrb[0].mxu0
        %922 = vmatprep.mubr.bf16.mxu0 %v664
        %923 = vmatmul.mubr.bf16.gmra.mrb[0].mxu0 %v663
        %v924 = vpop.f32.mrb[0].mxu0
        %v925 = vadd.f32 0.0, %v924
        %v926 = vpop.f32.mrb[0].mxu0
        %v927 = vpop.f32.mrb[0].mxu0
        %v928 = vadd.f32 0.0, %v927
        %v929 = vpop.f32.mrb[0].mxu0
        %930 = vdwg.mxu0
        %931 = vmatprep.subr.bf16.mxu0 0
        %932 = vmatpush1.bf16.msra.mxu0 %v802
        %933 = vmatprep.subr.bf16.mxu0 0
        %934 = vmatpush1.bf16.msra.mxu0 %v803
        %935 = vmatprep.subr.bf16.mxu0 0
        %936 = vmatpush1.bf16.msra.mxu0 %v804
        %937 = vmatprep.subr.bf16.mxu0 0
        %938 = vmatpush1.bf16.msra.mxu0 %v805
        %939 = vmatprep.subr.bf16.mxu0 0
        %940 = vmatpush1.bf16.msra.mxu0 %v806
        %941 = vmatprep.subr.bf16.mxu0 0
        %942 = vmatpush1.bf16.msra.mxu0 %v807
        %943 = vmatprep.subr.bf16.mxu0 0
        %944 = vmatpush1.bf16.msra.mxu0 %v808
        %945 = vmatprep.subr.bf16.mxu0 0
        %946 = vmatpush1.bf16.msra.mxu0 %v809
        %947 = vmatprep.subr.bf16.mxu0 0
        %948 = vmatpush1.bf16.msra.mxu0 0
        %949 = vmatprep.subr.bf16.mxu0 0
        %950 = vmatpush1.bf16.msra.mxu0 0
        %951 = vmatprep.subr.bf16.mxu0 0
        %952 = vmatpush1.bf16.msra.mxu0 0
        %953 = vmatprep.subr.bf16.mxu0 0
        %954 = vmatpush1.bf16.msra.mxu0 0
        %955 = vmatprep.subr.bf16.mxu0 0
        %956 = vmatpush1.bf16.msra.mxu0 0
        %957 = vmatprep.subr.bf16.mxu0 0
        %958 = vmatpush1.bf16.msra.mxu0 0
        %959 = vmatprep.subr.bf16.mxu0 0
        %960 = vmatpush1.bf16.msra.mxu0 0
        %961 = vmatprep.subr.bf16.mxu0 0
        %962 = vmatpush1.bf16.msra.mxu0 0
        %963 = vmatprep.mubr.bf16.mxu0 0
        %964 = vmatmul.mubr.bf16.gmra.mrb[0].mxu0 %v644
        %v965 = vpop.f32.mrb[0].mxu0
        %v966 = vadd.f32 %v869, %v965
        %v967 = vpop.f32.mrb[0].mxu0
        %v968 = vpop.f32.mrb[0].mxu0
        %v969 = vadd.f32 %v872, %v968
        %v970 = vpop.f32.mrb[0].mxu0
        %971 = vmatprep.mubr.bf16.mxu0 0
        %972 = vmatmul.mubr.bf16.gmra.mrb[0].mxu0 %v647
        %v973 = vpop.f32.mrb[0].mxu0
        %v974 = vadd.f32 %v877, %v973
        %v975 = vpop.f32.mrb[0].mxu0
        %v976 = vpop.f32.mrb[0].mxu0
        %v977 = vadd.f32 %v880, %v976
        %v978 = vpop.f32.mrb[0].mxu0
        %979 = vmatprep.mubr.bf16.mxu0 0
        %980 = vmatmul.mubr.bf16.gmra.mrb[0].mxu0 %v650
        %v981 = vpop.f32.mrb[0].mxu0
        %v982 = vadd.f32 %v885, %v981
        %v983 = vpop.f32.mrb[0].mxu0
        %v984 = vpop.f32.mrb[0].mxu0
        %v985 = vadd.f32 %v888, %v984
        %v986 = vpop.f32.mrb[0].mxu0
        %987 = vmatprep.mubr.bf16.mxu0 0
        %988 = vmatmul.mubr.bf16.gmra.mrb[0].mxu0 %v653
        %v989 = vpop.f32.mrb[0].mxu0
        %v990 = vadd.f32 %v893, %v989
        %v991 = vpop.f32.mrb[0].mxu0
        %v992 = vpop.f32.mrb[0].mxu0
        %v993 = vadd.f32 %v896, %v992
        %v994 = vpop.f32.mrb[0].mxu0
        %995 = vmatprep.mubr.bf16.mxu0 0
        %996 = vmatmul.mubr.bf16.gmra.mrb[0].mxu0 %v656
        %v997 = vpop.f32.mrb[0].mxu0
        %v998 = vadd.f32 %v901, %v997
        %v999 = vpop.f32.mrb[0].mxu0
        %v1000 = vpop.f32.mrb[0].mxu0
        %v1001 = vadd.f32 %v904, %v1000
        %v1002 = vpop.f32.mrb[0].mxu0
        %1003 = vmatprep.mubr.bf16.mxu0 0
        %1004 = vmatmul.mubr.bf16.gmra.mrb[0].mxu0 %v659
        %v1005 = vpop.f32.mrb[0].mxu0
        %v1006 = vadd.f32 %v909, %v1005
        %v1007 = vpop.f32.mrb[0].mxu0
        %v1008 = vpop.f32.mrb[0].mxu0
        %v1009 = vadd.f32 %v912, %v1008
        %v1010 = vpop.f32.mrb[0].mxu0
        %1011 = vmatprep.mubr.bf16.mxu0 0
        %1012 = vmatmul.mubr.bf16.gmra.mrb[0].mxu0 %v662
        %v1013 = vpop.f32.mrb[0].mxu0
        %v1014 = vadd.f32 %v917, %v1013
        %v1015 = vpop.f32.mrb[0].mxu0
        %v1016 = vpop.f32.mrb[0].mxu0
        %v1017 = vadd.f32 %v920, %v1016
        %v1018 = vpop.f32.mrb[0].mxu0
        %1019 = vmatprep.mubr.bf16.mxu0 0
        %1020 = vmatmul.mubr.bf16.gmra.mrb[0].mxu0 %v665
        %v1021 = vpop.f32.mrb[0].mxu0
        %v1022 = vadd.f32 %v925, %v1021
        %v1023 = vpop.f32.mrb[0].mxu0
        %v1024 = vpop.f32.mrb[0].mxu0
        %v1025 = vadd.f32 %v928, %v1024
        %v1026 = vpop.f32.mrb[0].mxu0
        %1027 = vdwg.mxu0
        %v1028 = vadd.f32 %v466, %v966
        %v1029 = vadd.f32 %v467, %v969
        %v1030 = vadd.f32 %v468, %v974
        %v1031 = vadd.f32 %v469, %v977
        %v1032 = vadd.f32 %v470, %v982
        %v1033 = vadd.f32 %v471, %v985
        %v1034 = vadd.f32 %v472, %v990
        %v1035 = vadd.f32 %v473, %v993
        %v1036 = vadd.f32 %v474, %v998
        %v1037 = vadd.f32 %v475, %v1001
        %v1038 = vadd.f32 %v476, %v1006
        %v1039 = vadd.f32 %v477, %v1009
        %v1040 = vadd.f32 %v478, %v1014
        %v1041 = vadd.f32 %v479, %v1017
        %v1042 = vadd.f32 %v480, %v1022
        %v1043 = vadd.f32 %v481, %v1025
        %1044 = vst [vmem:[#allocation2] sm:$0xff] %v1028
        %1045 = vst [vmem:[#allocation2 + $0x8] sm:$0xff] %v1029
        %1046 = vst [vmem:[#allocation2 + $0x10] sm:$0xff] %v1030
        %1047 = vst [vmem:[#allocation2 + $0x18] sm:$0xff] %v1031
        %1048 = vst [vmem:[#allocation2 + $0x20] sm:$0xff] %v1032
        %1049 = vst [vmem:[#allocation2 + $0x28] sm:$0xff] %v1033
        %1050 = vst [vmem:[#allocation2 + $0x30] sm:$0xff] %v1034
        %1051 = vst [vmem:[#allocation2 + $0x38] sm:$0xff] %v1035
        %1052 = vst [vmem:[#allocation2 + $0x40] sm:$0xff] %v1036
        %1053 = vst [vmem:[#allocation2 + $0x48] sm:$0xff] %v1037
        %1054 = vst [vmem:[#allocation2 + $0x50] sm:$0xff] %v1038
        %1055 = vst [vmem:[#allocation2 + $0x58] sm:$0xff] %v1039
        %1056 = vst [vmem:[#allocation2 + $0x60] sm:$0xff] %v1040
        %1057 = vst [vmem:[#allocation2 + $0x68] sm:$0xff] %v1041
        %1058 = vst [vmem:[#allocation2 + $0x70] sm:$0xff] %v1042
        %1059 = vst [vmem:[#allocation2 + $0x78] sm:$0xff] %v1043
        %p1060 = scmp.eq.s32.totalorder %s23, 8
        // Predicated region
        $region71: #{_lambda_.15} parent=61 // pred_check
          %p1061 = pneg %p1060
        $region72: #{_lambda_.15} parent=61 // pred_check_branch
          %1063 = sbr.rel (%p1061) target = $region74
        $region73: #{_lambda_.15} parent=61 // pred_region
          %v1064 = vld [vmem:[#allocation2] sm:$0xff]
          %v1065 = vld [vmem:[#allocation2 + $0x8] sm:$0xff]
          %v1066 = vld [vmem:[#allocation2 + $0x10] sm:$0xff]
          %v1067 = vld [vmem:[#allocation2 + $0x18] sm:$0xff]
          %v1068 = vld [vmem:[#allocation2 + $0x20] sm:$0xff]
          %v1069 = vld [vmem:[#allocation2 + $0x28] sm:$0xff]
          %v1070 = vld [vmem:[#allocation2 + $0x30] sm:$0xff]
          %v1071 = vld [vmem:[#allocation2 + $0x38] sm:$0xff]
          %v1072 = vld [vmem:[#allocation2 + $0x40] sm:$0xff]
          %v1073 = vld [vmem:[#allocation2 + $0x48] sm:$0xff]
          %v1074 = vld [vmem:[#allocation2 + $0x50] sm:$0xff]
          %v1075 = vld [vmem:[#allocation2 + $0x58] sm:$0xff]
          %v1076 = vld [vmem:[#allocation2 + $0x60] sm:$0xff]
          %v1077 = vld [vmem:[#allocation2 + $0x68] sm:$0xff]
          %v1078 = vld [vmem:[#allocation2 + $0x70] sm:$0xff]
          %v1079 = vld [vmem:[#allocation2 + $0x78] sm:$0xff]
          %v1080 = vld [vmem:[%s423] sm:$0x1]
          %v1082 = vlaneseq
          %v1083 = vshrl.u32 %v1082, 7
          %v1084 = vsub.s32 0, %v1083
          %v1085 = vrot.slane %v1080, %v1084
          %v1087 = vmul.f32 %v1064, %v1085
          %v1088 = vmul.f32 %v1065, %v1085
          %v1089 = vmul.f32 %v1066, %v1085
          %v1090 = vmul.f32 %v1067, %v1085
          %v1091 = vmul.f32 %v1068, %v1085
          %v1092 = vmul.f32 %v1069, %v1085
          %v1093 = vmul.f32 %v1070, %v1085
          %v1094 = vmul.f32 %v1071, %v1085
          %v1095 = vmul.f32 %v1072, %v1085
          %v1096 = vmul.f32 %v1073, %v1085
          %v1097 = vmul.f32 %v1074, %v1085
          %v1098 = vmul.f32 %v1075, %v1085
          %v1099 = vmul.f32 %v1076, %v1085
          %v1100 = vmul.f32 %v1077, %v1085
          %v1101 = vmul.f32 %v1078, %v1085
          %v1102 = vmul.f32 %v1079, %v1085
          %v1103 = vld [vmem:[%s426] sm:$0x1]
          %v1105 = vlaneseq
          %v1106 = vshrl.u32 %v1105, 7
          %v1107 = vsub.s32 0, %v1106
          %v1108 = vrot.slane %v1103, %v1107
          %v1110 = vadd.f32 %v1087, %v1108
          %v1111 = vadd.f32 %v1088, %v1108
          %v1112 = vadd.f32 %v1089, %v1108
          %v1113 = vadd.f32 %v1090, %v1108
          %v1114 = vadd.f32 %v1091, %v1108
          %v1115 = vadd.f32 %v1092, %v1108
          %v1116 = vadd.f32 %v1093, %v1108
          %v1117 = vadd.f32 %v1094, %v1108
          %v1118 = vadd.f32 %v1095, %v1108
          %v1119 = vadd.f32 %v1096, %v1108
          %v1120 = vadd.f32 %v1097, %v1108
          %v1121 = vadd.f32 %v1098, %v1108
          %v1122 = vadd.f32 %v1099, %v1108
          %v1123 = vadd.f32 %v1100, %v1108
          %v1124 = vadd.f32 %v1101, %v1108
          %v1125 = vadd.f32 %v1102, %v1108
          %v1126 = vld [vmem:[%s434] sm:$0xf]
          %v1127 = vld [vmem:[%s434 + $0x4] sm:$0xf]
          %v1128 = vld [vmem:[%s434 + $0x8] sm:$0xf]
          %v1129 = vld [vmem:[%s434 + $0xc] sm:$0xf]
          %v1130 = vld [vmem:[%s434 + $0x10] sm:$0xf]
          %v1131 = vld [vmem:[%s434 + $0x14] sm:$0xf]
          %v1132 = vld [vmem:[%s434 + $0x18] sm:$0xf]
          %v1133 = vld [vmem:[%s434 + $0x1c] sm:$0xf]
          %v1134 = vld [vmem:[%s434 + $0x20] sm:$0xf]
          %v1135 = vld [vmem:[%s434 + $0x24] sm:$0xf]
          %v1136 = vld [vmem:[%s434 + $0x28] sm:$0xf]
          %v1137 = vld [vmem:[%s434 + $0x2c] sm:$0xf]
          %v1138 = vld [vmem:[%s434 + $0x30] sm:$0xf]
          %v1139 = vld [vmem:[%s434 + $0x34] sm:$0xf]
          %v1140 = vld [vmem:[%s434 + $0x38] sm:$0xf]
          %v1141 = vld [vmem:[%s434 + $0x3c] sm:$0xf]
          %v1142 = vunpack.c.l.bf16 %v1126
          %v1143 = vunpack.c.l.bf16 %v1127
          %v1144 = vunpack.c.l.bf16 %v1128
          %v1145 = vunpack.c.l.bf16 %v1129
          %v1146 = vunpack.c.l.bf16 %v1130
          %v1147 = vunpack.c.l.bf16 %v1131
          %v1148 = vunpack.c.l.bf16 %v1132
          %v1149 = vunpack.c.l.bf16 %v1133
          %v1150 = vunpack.c.l.bf16 %v1134
          %v1151 = vunpack.c.l.bf16 %v1135
          %v1152 = vunpack.c.l.bf16 %v1136
          %v1153 = vunpack.c.l.bf16 %v1137
          %v1154 = vunpack.c.l.bf16 %v1138
          %v1155 = vunpack.c.l.bf16 %v1139
          %v1156 = vunpack.c.l.bf16 %v1140
          %v1157 = vunpack.c.l.bf16 %v1141
          %v1158 = vadd.f32 %v1110, %v1142
          %v1159 = vadd.f32 %v1111, %v1143
          %v1160 = vadd.f32 %v1112, %v1144
          %v1161 = vadd.f32 %v1113, %v1145
          %v1162 = vadd.f32 %v1114, %v1146
          %v1163 = vadd.f32 %v1115, %v1147
          %v1164 = vadd.f32 %v1116, %v1148
          %v1165 = vadd.f32 %v1117, %v1149
          %v1166 = vadd.f32 %v1118, %v1150
          %v1167 = vadd.f32 %v1119, %v1151
          %v1168 = vadd.f32 %v1120, %v1152
          %v1169 = vadd.f32 %v1121, %v1153
          %v1170 = vadd.f32 %v1122, %v1154
          %v1171 = vadd.f32 %v1123, %v1155
          %v1172 = vadd.f32 %v1124, %v1156
          %v1173 = vadd.f32 %v1125, %v1157
          %v1174 = vmax.f32 %v1158, 0.0
          %v1175 = vmax.f32 %v1159, 0.0
          %v1176 = vmax.f32 %v1160, 0.0
          %v1177 = vmax.f32 %v1161, 0.0
          %v1178 = vmax.f32 %v1162, 0.0
          %v1179 = vmax.f32 %v1163, 0.0
          %v1180 = vmax.f32 %v1164, 0.0
          %v1181 = vmax.f32 %v1165, 0.0
          %v1182 = vmax.f32 %v1166, 0.0
          %v1183 = vmax.f32 %v1167, 0.0
          %v1184 = vmax.f32 %v1168, 0.0
          %v1185 = vmax.f32 %v1169, 0.0
          %v1186 = vmax.f32 %v1170, 0.0
          %v1187 = vmax.f32 %v1171, 0.0
          %v1188 = vmax.f32 %v1172, 0.0
          %v1189 = vmax.f32 %v1173, 0.0
          %v1190 = vpack.c.bf16 %v1175, %v1174
          %v1191 = vpack.c.bf16 %v1177, %v1176
          %v1192 = vpack.c.bf16 %v1179, %v1178
          %v1193 = vpack.c.bf16 %v1181, %v1180
          %v1194 = vpack.c.bf16 %v1183, %v1182
          %v1195 = vpack.c.bf16 %v1185, %v1184
          %v1196 = vpack.c.bf16 %v1187, %v1186
          %v1197 = vpack.c.bf16 %v1189, %v1188
          %v1206 = vunpack.c.l.b16 %v1190
          %v1207 = vunpack.c.h.b16 %v1190
          %v1208 = vunpack.c.l.b16 %v1191
          %v1209 = vunpack.c.h.b16 %v1191
          %v1210 = vunpack.c.l.b16 %v1192
          %v1211 = vunpack.c.h.b16 %v1192
          %v1212 = vunpack.c.l.b16 %v1193
          %v1213 = vunpack.c.h.b16 %v1193
          %v1214 = vunpack.c.l.b16 %v1194
          %v1215 = vunpack.c.h.b16 %v1194
          %v1216 = vunpack.c.l.b16 %v1195
          %v1217 = vunpack.c.h.b16 %v1195
          %v1218 = vunpack.c.l.b16 %v1196
          %v1219 = vunpack.c.h.b16 %v1196
          %v1220 = vunpack.c.l.b16 %v1197
          %v1221 = vunpack.c.h.b16 %v1197
          %v1222 = vpack.c.b16 %v1206, %v1206
          %v1223 = vpack.c.b16 %v1207, %v1207
          %v1224 = vpack.c.b16 %v1208, %v1208
          %v1225 = vpack.c.b16 %v1209, %v1209
          %v1226 = vpack.c.b16 %v1210, %v1210
          %v1227 = vpack.c.b16 %v1211, %v1211
          %v1228 = vpack.c.b16 %v1212, %v1212
          %v1229 = vpack.c.b16 %v1213, %v1213
          %v1230 = vpack.c.b16 %v1214, %v1214
          %v1231 = vpack.c.b16 %v1215, %v1215
          %v1232 = vpack.c.b16 %v1216, %v1216
          %v1233 = vpack.c.b16 %v1217, %v1217
          %v1234 = vpack.c.b16 %v1218, %v1218
          %v1235 = vpack.c.b16 %v1219, %v1219
          %v1236 = vpack.c.b16 %v1220, %v1220
          %v1237 = vpack.c.b16 %v1221, %v1221
          %1254 = vst [vmem:[%s443] sm:$0xf] %v1222
          %1255 = vst [vmem:[%s443 + $0x4] sm:$0xf] %v1223
          %1256 = vst [vmem:[%s443 + $0x8] sm:$0xf] %v1224
          %1257 = vst [vmem:[%s443 + $0xc] sm:$0xf] %v1225
          %1258 = vst [vmem:[%s443 + $0x10] sm:$0xf] %v1226
          %1259 = vst [vmem:[%s443 + $0x14] sm:$0xf] %v1227
          %1260 = vst [vmem:[%s443 + $0x18] sm:$0xf] %v1228
          %1261 = vst [vmem:[%s443 + $0x1c] sm:$0xf] %v1229
          %1262 = vst [vmem:[%s443 + $0x20] sm:$0xf] %v1230
          %1263 = vst [vmem:[%s443 + $0x24] sm:$0xf] %v1231
          %1264 = vst [vmem:[%s443 + $0x28] sm:$0xf] %v1232
          %1265 = vst [vmem:[%s443 + $0x2c] sm:$0xf] %v1233
          %1266 = vst [vmem:[%s443 + $0x30] sm:$0xf] %v1234
          %1267 = vst [vmem:[%s443 + $0x34] sm:$0xf] %v1235
          %1268 = vst [vmem:[%s443 + $0x38] sm:$0xf] %v1236
          %1269 = vst [vmem:[%s443 + $0x3c] sm:$0xf] %v1237
        $region74: #{_lambda_.15} parent=61 // pred_fallthru
          _
        %s1270 = smul.u32 16, %s21
        %p1271 = scmp.lt.s32.totalorder %s1270, 15
        %s1272 = scalar_select %p1271, %s1270, 15
        %p1273 = scmp.lt.s32.totalorder %s22, 0
        %s1274 = scalar_select %p1273, %s22, 0
        %s1275 = sadd.s32 %s1274, %s1272
        %s1276 = smul.addr %s1275, 4
        %s1277 = scalar_lea.vmem %s5, %s1276
        // Predicated region
        $region75: #{_lambda_.15} parent=61 // pred_check
          %p1278 = pneg %p191
        $region76: #{_lambda_.15} parent=61 // pred_check_branch
          %1280 = sbr.rel (%p1278) target = $region78
        $region77: #{_lambda_.15} parent=61 // pred_region
          %s1281 = smul.u32 16, %s21
        $region78: #{_lambda_.15} parent=61 // pred_fallthru
          _
        // Predicated region
        $region79: #{_lambda_.15} parent=61 // pred_check
          %p1282 = pneg %p191
        $region80: #{_lambda_.15} parent=61 // pred_check_branch
          %1284 = sbr.rel (%p1282) target = $region82
        $region81: #{_lambda_.15} parent=61 // pred_region
          %s1285 = smul.u32 16, %s21
          %p1286 = scmp.lt.s32.totalorder %s1285, 15
          %s1287 = scalar_select %p1286, %s1285, 15
          %p1288 = scmp.lt.s32.totalorder %s22, 0
          %s1289 = scalar_select %p1288, %s22, 0
          %s1290 = sadd.s32 %s1289, %s1287
          %s1291 = smul.addr %s1290, 4
          %s1292 = scalar_lea.vmem %s5, %s1291
        $region82: #{_lambda_.15} parent=61 // pred_fallthru
          _
      $region62: #{_lambda_.15} parent=5 // pred_fallthru
        _
      %p1293 = scmp.le.s32.totalorder 2, %s11
      // Predicated region
      $region83: #{_lambda_.15} parent=5 // pred_check
        %p1294 = pneg %p1293
      $region84: #{_lambda_.15} parent=5 // pred_check_branch
        %1296 = sbr.rel (%p1294) target = $region86
      $region85: #{_lambda_.15} parent=5 // pred_region
        %s1297 = ssub.s32 %s11, 2
      $region86: #{_lambda_.15} parent=5 // pred_fallthru
        _
    $region6: #{_lambda_.15} parent=1 // loop_footer
      %s15 = sadd.s32 1, %s11
    $region7: #{_lambda_.15} parent=1 // loop_footer_branch
      %10 = sbr.rel target = $region3
    $region8: #{_lambda_.15} parent=1 // loop_exit
      _

// kernel: _lambda_.13
$region0: #{_lambda_.13}
  #allocation0 [shape = 'u32[]', space=smem, size = 0x4, offset = 0x4, fixed_abs, tag = 'smem constant byte address 0x4 - core index']
  #allocation1 [shape = 'u32[144,128]{1,0:T(1,128)}', space=vmem, size = 0x12000, scoped, tag = 'internal scratch']
  #allocation2 [shape = 'f32[512,128]{1,0:T(8,128)}', space=vmem, size = 0x40000, scoped, tag = 'scratch operand']
  %s0 = inlined_call_operand.vmem [shape: bf16[1024,1152], index: 0, kind: input, shape index: {}]
  %s1 = inlined_call_operand.vmem [shape: bf16[1152,128], index: 1, kind: input, shape index: {}]
  %s2 = inlined_call_operand.vmem [shape: f32[1,128], index: 2, kind: input, shape index: {}]
  %s3 = inlined_call_operand.vmem [shape: f32[1,128], index: 3, kind: input, shape index: {}]
  %s4 = inlined_call_operand.vmem [shape: bf16[1024,128], index: 4, kind: output, shape index: {}]
  %s5 = sld [smem:[#allocation0]]
  $region57: #{_lambda_.13} parent=0
    _
  %s7 = ssub.s32 1, %s5
  %s8 = scalar_select 0, %s7, %s5
  loop: start=0, step=1, limit=4
  $region2: #{_lambda_.13} parent=0 // loop_pre_header
    _
  $region3: #{_lambda_.13} parent=0 // loop_header
    %s10 = sphi 0, %s14
    %p11 = scmp.ge.s32.totalorder %s10, 4
    %s17 = sphi 0, %s36
    %s18 = sphi 0, %s32
    %s19 = sphi 0, %s28
    %s20 = sphi 0, %s17
    %s21 = sphi 0, %s18
    %s22 = sphi 0, %s19
    %s23 = sphi 0, %s20
    %s24 = sphi 0, %s21
    %s25 = sphi 0, %s22
    %s41 = sphi 0, %s43
    %s44 = sphi 0, %s41
    %s45 = sphi 0, %s44
    %s61 = sphi 0, %s45
    %s69 = sphi 0, %s71
    %s72 = sphi 0, %s69
    %s73 = sphi 0, %s72
    %s89 = sphi 0, %s73
    %s95 = sphi 0, %s97
    %s98 = sphi 0, %s95
    %s99 = sphi 0, %s98
    %s115 = sphi 0, %s99
    %s121 = sphi 0, %s123
    %s124 = sphi 0, %s121
    %s125 = sphi 0, %s124
    %s141 = sphi 0, %s125
    %s149 = sphi 0, %s151
    %s152 = sphi 0, %s149
    %s153 = sphi 0, %s152
    %s169 = sphi 0, %s153
  $region4: #{_lambda_.13} parent=0 // loop_header_branch
    %13 = sbr.rel (%p11) target = $region8
  $region5: #{_lambda_.13} parent=0 // loop_body
    %s15 = ssub.s32 %s10, 1
    %s16 = ssub.s32 %s10, 2
    %s26 = sadd.s32 1, %s19
    %p27 = scmp.ge.s32.totalorder %s26, 1
    %s28 = scalar_select %p27, 0, %s26
    %s29 = sadd.s32 1, %s18
    %s30 = scalar_select %p27, %s29, %s18
    %p31 = scmp.ge.s32.totalorder %s30, 1
    %s32 = scalar_select %p31, 0, %s30
    %s33 = sadd.s32 1, %s17
    %s34 = scalar_select %p31, %s33, %s17
    %p35 = scmp.ge.s32.totalorder %s34, 2
    %s36 = scalar_select %p35, 0, %s34
    %s37 = ssub.s32 %s17, %s36
    %s38 = ssub.s32 %s19, %s28
    %s39 = sor.u32 %s37, %s38
    %p40 = scmp.eq.s32.totalorder %s39, 0
    %s42 = sadd.s32 %s41, 1
    %s43 = scalar_select %p40, %s41, %s42
    %p46 = pneg %p40
    %p47 = scmp.eq.s32.totalorder %s10, 1
    %p48 = por %p46, %p47
    %p49 = scmp.ne.s32.totalorder %s41, %s44
    %p50 = scmp.eq.s32.totalorder %s10, 0
    %p51 = por %p49, %p50
    %p52 = scmp.ne.s32.totalorder %s41, %s44
    %p53 = scmp.eq.s32.totalorder %s15, 1
    %p54 = por %p52, %p53
    %p55 = scmp.ne.s32.totalorder %s44, %s45
    %p56 = scmp.eq.s32.totalorder %s15, 0
    %p57 = por %p55, %p56
    %p58 = scmp.ne.s32.totalorder %s44, %s45
    %p59 = scmp.eq.s32.totalorder %s16, 1
    %p60 = por %p58, %p59
    %p62 = scmp.ne.s32.totalorder %s45, %s61
    %p63 = scmp.eq.s32.totalorder %s16, 0
    %p64 = por %p62, %p63
    %s65 = ssub.s32 %s19, %s28
    %s66 = ssub.s32 %s18, %s32
    %s67 = sor.u32 %s65, %s66
    %p68 = scmp.eq.s32.totalorder %s67, 0
    %s70 = sadd.s32 %s69, 1
    %s71 = scalar_select %p68, %s69, %s70
    %p74 = pneg %p68
    %p75 = scmp.eq.s32.totalorder %s10, 1
    %p76 = por %p74, %p75
    %p77 = scmp.ne.s32.totalorder %s69, %s72
    %p78 = scmp.eq.s32.totalorder %s10, 0
    %p79 = por %p77, %p78
    %p80 = scmp.ne.s32.totalorder %s69, %s72
    %p81 = scmp.eq.s32.totalorder %s15, 1
    %p82 = por %p80, %p81
    %p83 = scmp.ne.s32.totalorder %s72, %s73
    %p84 = scmp.eq.s32.totalorder %s15, 0
    %p85 = por %p83, %p84
    %p86 = scmp.ne.s32.totalorder %s72, %s73
    %p87 = scmp.eq.s32.totalorder %s16, 1
    %p88 = por %p86, %p87
    %p90 = scmp.ne.s32.totalorder %s73, %s89
    %p91 = scmp.eq.s32.totalorder %s16, 0
    %p92 = por %p90, %p91
    %s93 = ssub.s32 %s18, %s32
    %p94 = scmp.eq.s32.totalorder %s93, 0
    %s96 = sadd.s32 %s95, 1
    %s97 = scalar_select %p94, %s95, %s96
    %p100 = pneg %p94
    %p101 = scmp.eq.s32.totalorder %s10, 1
    %p102 = por %p100, %p101
    %p103 = scmp.ne.s32.totalorder %s95, %s98
    %p104 = scmp.eq.s32.totalorder %s10, 0
    %p105 = por %p103, %p104
    %p106 = scmp.ne.s32.totalorder %s95, %s98
    %p107 = scmp.eq.s32.totalorder %s15, 1
    %p108 = por %p106, %p107
    %p109 = scmp.ne.s32.totalorder %s98, %s99
    %p110 = scmp.eq.s32.totalorder %s15, 0
    %p111 = por %p109, %p110
    %p112 = scmp.ne.s32.totalorder %s98, %s99
    %p113 = scmp.eq.s32.totalorder %s16, 1
    %p114 = por %p112, %p113
    %p116 = scmp.ne.s32.totalorder %s99, %s115
    %p117 = scmp.eq.s32.totalorder %s16, 0
    %p118 = por %p116, %p117
    %s119 = ssub.s32 %s18, %s32
    %p120 = scmp.eq.s32.totalorder %s119, 0
    %s122 = sadd.s32 %s121, 1
    %s123 = scalar_select %p120, %s121, %s122
    %p126 = pneg %p120
    %p127 = scmp.eq.s32.totalorder %s10, 1
    %p128 = por %p126, %p127
    %p129 = scmp.ne.s32.totalorder %s121, %s124
    %p130 = scmp.eq.s32.totalorder %s10, 0
    %p131 = por %p129, %p130
    %p132 = scmp.ne.s32.totalorder %s121, %s124
    %p133 = scmp.eq.s32.totalorder %s15, 1
    %p134 = por %p132, %p133
    %p135 = scmp.ne.s32.totalorder %s124, %s125
    %p136 = scmp.eq.s32.totalorder %s15, 0
    %p137 = por %p135, %p136
    %p138 = scmp.ne.s32.totalorder %s124, %s125
    %p139 = scmp.eq.s32.totalorder %s16, 1
    %p140 = por %p138, %p139
    %p142 = scmp.ne.s32.totalorder %s125, %s141
    %p143 = scmp.eq.s32.totalorder %s16, 0
    %p144 = por %p142, %p143
    %s145 = ssub.s32 %s17, %s36
    %s146 = ssub.s32 %s18, %s32
    %s147 = sor.u32 %s145, %s146
    %p148 = scmp.eq.s32.totalorder %s147, 0
    %s150 = sadd.s32 %s149, 1
    %s151 = scalar_select %p148, %s149, %s150
    %p154 = pneg %p148
    %p155 = scmp.eq.s32.totalorder %s10, 1
    %p156 = por %p154, %p155
    %p157 = scmp.ne.s32.totalorder %s149, %s152
    %p158 = scmp.eq.s32.totalorder %s10, 0
    %p159 = por %p157, %p158
    %p160 = scmp.ne.s32.totalorder %s149, %s152
    %p161 = scmp.eq.s32.totalorder %s15, 1
    %p162 = por %p160, %p161
    %p163 = scmp.ne.s32.totalorder %s152, %s153
    %p164 = scmp.eq.s32.totalorder %s15, 0
    %p165 = por %p163, %p164
    %p166 = scmp.ne.s32.totalorder %s152, %s153
    %p167 = scmp.eq.s32.totalorder %s16, 1
    %p168 = por %p166, %p167
    %p170 = scmp.ne.s32.totalorder %s153, %s169
    %p171 = scmp.eq.s32.totalorder %s16, 0
    %p172 = por %p170, %p171
    %p173 = scmp.le.s32.totalorder 1, %s10
    %p174 = scmp.lt.s32.totalorder %s10, 3
    %p175 = pnand %p173, %p174
    %p176 = pneg %p175
    // Predicated region
    $region9: #{_lambda_.13} parent=5 // pred_check
      _
    $region10: #{_lambda_.13} parent=5 // pred_check_branch
      %178 = sbr.rel (%p175) target = $region12
    $region11: #{_lambda_.13} parent=5 // pred_region
      %s179 = ssub.s32 %s10, 1
      // Predicated region
      $region13: #{_lambda_.13} parent=11 // pred_check
        %p180 = pneg %p85
      $region14: #{_lambda_.13} parent=11 // pred_check_branch
        %182 = sbr.rel (%p180) target = $region16
      $region15: #{_lambda_.13} parent=11 // pred_region
        %s183 = smul.u32 144, %s22
        %p184 = scmp.lt.s32.totalorder %s183, 143
        %s185 = scalar_select %p184, %s183, 143
        %p186 = scmp.lt.s32.totalorder %s21, 0
        %s187 = scalar_select %p186, %s21, 0
        %s188 = sadd.s32 %s187, %s185
        %s189 = smul.addr %s188, 4
        %s190 = scalar_lea.vmem %s1, %s189
        %s191 = smul.u32 144, %s22
      $region16: #{_lambda_.13} parent=11 // pred_fallthru
        _
      // Predicated region
      $region17: #{_lambda_.13} parent=11 // pred_check
        %p192 = pneg %p111
      $region18: #{_lambda_.13} parent=11 // pred_check_branch
        %194 = sbr.rel (%p192) target = $region20
      $region19: #{_lambda_.13} parent=11 // pred_region
        %p195 = scmp.lt.s32.totalorder %s21, 0
        %s196 = scalar_select %p195, %s21, 0
        %s197 = scalar_lea.vmem %s2, %s196
      $region20: #{_lambda_.13} parent=11 // pred_fallthru
        _
      // Predicated region
      $region21: #{_lambda_.13} parent=11 // pred_check
        %p198 = pneg %p137
      $region22: #{_lambda_.13} parent=11 // pred_check_branch
        %200 = sbr.rel (%p198) target = $region24
      $region23: #{_lambda_.13} parent=11 // pred_region
        %p201 = scmp.lt.s32.totalorder %s21, 0
        %s202 = scalar_select %p201, %s21, 0
        %s203 = scalar_lea.vmem %s3, %s202
      $region24: #{_lambda_.13} parent=11 // pred_fallthru
        _
    $region12: #{_lambda_.13} parent=5 // pred_fallthru
      _
    %p204 = scmp.lt.s32.totalorder %s10, 2
    // Predicated region
    $region25: #{_lambda_.13} parent=5 // pred_check
      %p205 = pneg %p204
    $region26: #{_lambda_.13} parent=5 // pred_check_branch
      %207 = sbr.rel (%p205) target = $region28
    $region27: #{_lambda_.13} parent=5 // pred_region
      // Predicated region
      $region29: #{_lambda_.13} parent=27 // pred_check
        %p208 = pneg %p51
      $region30: #{_lambda_.13} parent=27 // pred_check_branch
        %210 = sbr.rel (%p208) target = $region32
      $region31: #{_lambda_.13} parent=27 // pred_region
        %s211 = smul.u32 64, %s17
        %s212 = smul.u32 9, %s19
        %p213 = scmp.lt.s32.totalorder %s211, 127
        %s214 = scalar_select %p213, %s211, 127
        %p215 = scmp.lt.s32.totalorder %s212, 8
        %s216 = scalar_select %p215, %s212, 8
        %s217 = smul.addr %s214, 9
        %s218 = sadd.s32 %s216, %s217
        %s219 = smul.addr %s218, 4
        %s220 = scalar_lea.vmem %s0, %s219
        %s221 = smul.u32 64, %s17
        %s222 = smul.u32 9, %s19
      $region32: #{_lambda_.13} parent=27 // pred_fallthru
        _
    $region28: #{_lambda_.13} parent=5 // pred_fallthru
      _
    %p223 = scmp.le.s32.totalorder 1, %s10
    %p224 = scmp.lt.s32.totalorder %s10, 3
    %p225 = pnand %p223, %p224
    %p226 = pneg %p225
    // Predicated region
    $region33: #{_lambda_.13} parent=5 // pred_check
      _
    $region34: #{_lambda_.13} parent=5 // pred_check_branch
      %228 = sbr.rel (%p225) target = $region36
    $region35: #{_lambda_.13} parent=5 // pred_region
      %s229 = ssub.s32 %s10, 1
      %s230 = smul.u32 64, %s20
      %s231 = smul.u32 9, %s22
      %p232 = scmp.lt.s32.totalorder %s230, 127
      %s233 = scalar_select %p232, %s230, 127
      %p234 = scmp.lt.s32.totalorder %s231, 8
      %s235 = scalar_select %p234, %s231, 8
      %s236 = smul.addr %s233, 9
      %s237 = sadd.s32 %s235, %s236
      %s238 = smul.addr %s237, 4
      %s239 = scalar_lea.vmem %s0, %s238
      %p240 = pneg %p57
      %p241 = pneg %p54
      %s242 = smul.u32 144, %s22
      %p243 = scmp.lt.s32.totalorder %s242, 143
      %s244 = scalar_select %p243, %s242, 143
      %p245 = scmp.lt.s32.totalorder %s21, 0
      %s246 = scalar_select %p245, %s21, 0
      %s247 = sadd.s32 %s246, %s244
      %s248 = smul.addr %s247, 4
      %s249 = scalar_lea.vmem %s1, %s248
      %p250 = pneg %p85
      %p251 = pneg %p82
      %p252 = scmp.lt.s32.totalorder %s21, 0
      %s253 = scalar_select %p252, %s21, 0
      %s254 = scalar_lea.vmem %s2, %s253
      %p255 = pneg %p111
      %p256 = pneg %p108
      %p257 = scmp.lt.s32.totalorder %s21, 0
      %s258 = scalar_select %p257, %s21, 0
      %s259 = scalar_lea.vmem %s3, %s258
      %p260 = pneg %p137
      %p261 = pneg %p134
      %p262 = pneg %p165
      %p263 = pneg %p162
      %s264 = smul.u32 64, %s20
      %p265 = scmp.lt.s32.totalorder %s264, 127
      %s266 = scalar_select %p265, %s264, 127
      %p267 = scmp.lt.s32.totalorder %s21, 0
      %s268 = scalar_select %p267, %s21, 0
      %s269 = sadd.s32 %s268, %s266
      %s270 = smul.addr %s269, 4
      %s271 = scalar_lea.vmem %s4, %s270
      %s272 = smul.u32 64, %s20
      %s273 = smul.u32 9, %s22
      %p274 = scmp.lt.s32.totalorder %s272, 127
      %s275 = scalar_select %p274, %s272, 127
      %p276 = scmp.lt.s32.totalorder %s273, 8
      %s277 = scalar_select %p276, %s273, 8
      %s278 = smul.addr %s275, 9
      %s279 = sadd.s32 %s277, %s278
      %s280 = smul.addr %s279, 4
      %s281 = scalar_lea.vmem %s0, %s280
      %s282 = smul.u32 64, %s20
      %s283 = smul.u32 9, %s22
      %s284 = smul.u32 144, %s22
      %p285 = scmp.lt.s32.totalorder %s284, 143
      %s286 = scalar_select %p285, %s284, 143
      %p287 = scmp.lt.s32.totalorder %s21, 0
      %s288 = scalar_select %p287, %s21, 0
      %s289 = sadd.s32 %s288, %s286
      %s290 = smul.addr %s289, 4
      %s291 = scalar_lea.vmem %s1, %s290
      %s292 = smul.u32 144, %s22
      %p293 = scmp.lt.s32.totalorder %s21, 0
      %s294 = scalar_select %p293, %s21, 0
      %s295 = scalar_lea.vmem %s2, %s294
      %p296 = scmp.lt.s32.totalorder %s21, 0
      %s297 = scalar_select %p296, %s21, 0
      %s298 = scalar_lea.vmem %s3, %s297
      %s299 = smul.u32 64, %s20
      %p300 = scmp.lt.s32.totalorder %s299, 127
      %s301 = scalar_select %p300, %s299, 127
      %p302 = scmp.lt.s32.totalorder %s21, 0
      %s303 = scalar_select %p302, %s21, 0
      %s304 = sadd.s32 %s303, %s301
      %s305 = smul.addr %s304, 4
      %s306 = scalar_lea.vmem %s4, %s305
      %s307 = smul.u32 64, %s20
      %p309 = scmp.eq.s32.totalorder %s22, 0
      // Predicated region
      $region37: #{_lambda_.13} parent=35 // pred_check
        %p310 = pneg %p309
      $region38: #{_lambda_.13} parent=35 // pred_check_branch
        %312 = sbr.rel (%p310) target = $region40
      $region39: #{_lambda_.13} parent=35 // pred_region
        %313 = vst [vmem:[#allocation2] sm:$0xff] 0.0
        %314 = vst [vmem:[#allocation2 + $0x8] sm:$0xff] 0.0
        %315 = vst [vmem:[#allocation2 + $0x10] sm:$0xff] 0.0
        %316 = vst [vmem:[#allocation2 + $0x18] sm:$0xff] 0.0
        %317 = vst [vmem:[#allocation2 + $0x20] sm:$0xff] 0.0
        %318 = vst [vmem:[#allocation2 + $0x28] sm:$0xff] 0.0
        %319 = vst [vmem:[#allocation2 + $0x30] sm:$0xff] 0.0
        %320 = vst [vmem:[#allocation2 + $0x38] sm:$0xff] 0.0
        %321 = vst [vmem:[#allocation2 + $0x40] sm:$0xff] 0.0
        %322 = vst [vmem:[#allocation2 + $0x48] sm:$0xff] 0.0
        %323 = vst [vmem:[#allocation2 + $0x50] sm:$0xff] 0.0
        %324 = vst [vmem:[#allocation2 + $0x58] sm:$0xff] 0.0
        %325 = vst [vmem:[#allocation2 + $0x60] sm:$0xff] 0.0
        %326 = vst [vmem:[#allocation2 + $0x68] sm:$0xff] 0.0
        %327 = vst [vmem:[#allocation2 + $0x70] sm:$0xff] 0.0
        %328 = vst [vmem:[#allocation2 + $0x78] sm:$0xff] 0.0
        %329 = vst [vmem:[#allocation2 + $0x80] sm:$0xff] 0.0
        %330 = vst [vmem:[#allocation2 + $0x88] sm:$0xff] 0.0
        %331 = vst [vmem:[#allocation2 + $0x90] sm:$0xff] 0.0
        %332 = vst [vmem:[#allocation2 + $0x98] sm:$0xff] 0.0
        %333 = vst [vmem:[#allocation2 + $0xa0] sm:$0xff] 0.0
        %334 = vst [vmem:[#allocation2 + $0xa8] sm:$0xff] 0.0
        %335 = vst [vmem:[#allocation2 + $0xb0] sm:$0xff] 0.0
        %336 = vst [vmem:[#allocation2 + $0xb8] sm:$0xff] 0.0
        %337 = vst [vmem:[#allocation2 + $0xc0] sm:$0xff] 0.0
        %338 = vst [vmem:[#allocation2 + $0xc8] sm:$0xff] 0.0
        %339 = vst [vmem:[#allocation2 + $0xd0] sm:$0xff] 0.0
        %340 = vst [vmem:[#allocation2 + $0xd8] sm:$0xff] 0.0
        %341 = vst [vmem:[#allocation2 + $0xe0] sm:$0xff] 0.0
        %342 = vst [vmem:[#allocation2 + $0xe8] sm:$0xff] 0.0
        %343 = vst [vmem:[#allocation2 + $0xf0] sm:$0xff] 0.0
        %344 = vst [vmem:[#allocation2 + $0xf8] sm:$0xff] 0.0
        %345 = vst [vmem:[#allocation2 + $0x100] sm:$0xff] 0.0
        %346 = vst [vmem:[#allocation2 + $0x108] sm:$0xff] 0.0
        %347 = vst [vmem:[#allocation2 + $0x110] sm:$0xff] 0.0
        %348 = vst [vmem:[#allocation2 + $0x118] sm:$0xff] 0.0
        %349 = vst [vmem:[#allocation2 + $0x120] sm:$0xff] 0.0
        %350 = vst [vmem:[#allocation2 + $0x128] sm:$0xff] 0.0
        %351 = vst [vmem:[#allocation2 + $0x130] sm:$0xff] 0.0
        %352 = vst [vmem:[#allocation2 + $0x138] sm:$0xff] 0.0
        %353 = vst [vmem:[#allocation2 + $0x140] sm:$0xff] 0.0
        %354 = vst [vmem:[#allocation2 + $0x148] sm:$0xff] 0.0
        %355 = vst [vmem:[#allocation2 + $0x150] sm:$0xff] 0.0
        %356 = vst [vmem:[#allocation2 + $0x158] sm:$0xff] 0.0
        %357 = vst [vmem:[#allocation2 + $0x160] sm:$0xff] 0.0
        %358 = vst [vmem:[#allocation2 + $0x168] sm:$0xff] 0.0
        %359 = vst [vmem:[#allocation2 + $0x170] sm:$0xff] 0.0
        %360 = vst [vmem:[#allocation2 + $0x178] sm:$0xff] 0.0
        %361 = vst [vmem:[#allocation2 + $0x180] sm:$0xff] 0.0
        %362 = vst [vmem:[#allocation2 + $0x188] sm:$0xff] 0.0
        %363 = vst [vmem:[#allocation2 + $0x190] sm:$0xff] 0.0
        %364 = vst [vmem:[#allocation2 + $0x198] sm:$0xff] 0.0
        %365 = vst [vmem:[#allocation2 + $0x1a0] sm:$0xff] 0.0
        %366 = vst [vmem:[#allocation2 + $0x1a8] sm:$0xff] 0.0
        %367 = vst [vmem:[#allocation2 + $0x1b0] sm:$0xff] 0.0
        %368 = vst [vmem:[#allocation2 + $0x1b8] sm:$0xff] 0.0
        %369 = vst [vmem:[#allocation2 + $0x1c0] sm:$0xff] 0.0
        %370 = vst [vmem:[#allocation2 + $0x1c8] sm:$0xff] 0.0
        %371 = vst [vmem:[#allocation2 + $0x1d0] sm:$0xff] 0.0
        %372 = vst [vmem:[#allocation2 + $0x1d8] sm:$0xff] 0.0
        %373 = vst [vmem:[#allocation2 + $0x1e0] sm:$0xff] 0.0
        %374 = vst [vmem:[#allocation2 + $0x1e8] sm:$0xff] 0.0
        %375 = vst [vmem:[#allocation2 + $0x1f0] sm:$0xff] 0.0
        %376 = vst [vmem:[#allocation2 + $0x1f8] sm:$0xff] 0.0
      $region40: #{_lambda_.13} parent=35 // pred_fallthru
        _
      %v377 = vld [vmem:[#allocation2] sm:$0xff]
      %v378 = vld [vmem:[#allocation2 + $0x8] sm:$0xff]
      %v379 = vld [vmem:[#allocation2 + $0x10] sm:$0xff]
      %v380 = vld [vmem:[#allocation2 + $0x18] sm:$0xff]
      %v381 = vld [vmem:[#allocation2 + $0x20] sm:$0xff]
      %v382 = vld [vmem:[#allocation2 + $0x28] sm:$0xff]
      %v383 = vld [vmem:[#allocation2 + $0x30] sm:$0xff]
      %v384 = vld [vmem:[#allocation2 + $0x38] sm:$0xff]
      %v385 = vld [vmem:[#allocation2 + $0x40] sm:$0xff]
      %v386 = vld [vmem:[#allocation2 + $0x48] sm:$0xff]
      %v387 = vld [vmem:[#allocation2 + $0x50] sm:$0xff]
      %v388 = vld [vmem:[#allocation2 + $0x58] sm:$0xff]
      %v389 = vld [vmem:[#allocation2 + $0x60] sm:$0xff]
      %v390 = vld [vmem:[#allocation2 + $0x68] sm:$0xff]
      %v391 = vld [vmem:[#allocation2 + $0x70] sm:$0xff]
      %v392 = vld [vmem:[#allocation2 + $0x78] sm:$0xff]
      %v393 = vld [vmem:[#allocation2 + $0x80] sm:$0xff]
      %v394 = vld [vmem:[#allocation2 + $0x88] sm:$0xff]
      %v395 = vld [vmem:[#allocation2 + $0x90] sm:$0xff]
      %v396 = vld [vmem:[#allocation2 + $0x98] sm:$0xff]
      %v397 = vld [vmem:[#allocation2 + $0xa0] sm:$0xff]
      %v398 = vld [vmem:[#allocation2 + $0xa8] sm:$0xff]
      %v399 = vld [vmem:[#allocation2 + $0xb0] sm:$0xff]
      %v400 = vld [vmem:[#allocation2 + $0xb8] sm:$0xff]
      %v401 = vld [vmem:[#allocation2 + $0xc0] sm:$0xff]
      %v402 = vld [vmem:[#allocation2 + $0xc8] sm:$0xff]
      %v403 = vld [vmem:[#allocation2 + $0xd0] sm:$0xff]
      %v404 = vld [vmem:[#allocation2 + $0xd8] sm:$0xff]
      %v405 = vld [vmem:[#allocation2 + $0xe0] sm:$0xff]
      %v406 = vld [vmem:[#allocation2 + $0xe8] sm:$0xff]
      %v407 = vld [vmem:[#allocation2 + $0xf0] sm:$0xff]
      %v408 = vld [vmem:[#allocation2 + $0xf8] sm:$0xff]
      %v409 = vld [vmem:[#allocation2 + $0x100] sm:$0xff]
      %v410 = vld [vmem:[#allocation2 + $0x108] sm:$0xff]
      %v411 = vld [vmem:[#allocation2 + $0x110] sm:$0xff]
      %v412 = vld [vmem:[#allocation2 + $0x118] sm:$0xff]
      %v413 = vld [vmem:[#allocation2 + $0x120] sm:$0xff]
      %v414 = vld [vmem:[#allocation2 + $0x128] sm:$0xff]
      %v415 = vld [vmem:[#allocation2 + $0x130] sm:$0xff]
      %v416 = vld [vmem:[#allocation2 + $0x138] sm:$0xff]
      %v417 = vld [vmem:[#allocation2 + $0x140] sm:$0xff]
      %v418 = vld [vmem:[#allocation2 + $0x148] sm:$0xff]
      %v419 = vld [vmem:[#allocation2 + $0x150] sm:$0xff]
      %v420 = vld [vmem:[#allocation2 + $0x158] sm:$0xff]
      %v421 = vld [vmem:[#allocation2 + $0x160] sm:$0xff]
      %v422 = vld [vmem:[#allocation2 + $0x168] sm:$0xff]
      %v423 = vld [vmem:[#allocation2 + $0x170] sm:$0xff]
      %v424 = vld [vmem:[#allocation2 + $0x178] sm:$0xff]
      %v425 = vld [vmem:[#allocation2 + $0x180] sm:$0xff]
      %v426 = vld [vmem:[#allocation2 + $0x188] sm:$0xff]
      %v427 = vld [vmem:[#allocation2 + $0x190] sm:$0xff]
      %v428 = vld [vmem:[#allocation2 + $0x198] sm:$0xff]
      %v429 = vld [vmem:[#allocation2 + $0x1a0] sm:$0xff]
      %v430 = vld [vmem:[#allocation2 + $0x1a8] sm:$0xff]
      %v431 = vld [vmem:[#allocation2 + $0x1b0] sm:$0xff]
      %v432 = vld [vmem:[#allocation2 + $0x1b8] sm:$0xff]
      %v433 = vld [vmem:[#allocation2 + $0x1c0] sm:$0xff]
      %v434 = vld [vmem:[#allocation2 + $0x1c8] sm:$0xff]
      %v435 = vld [vmem:[#allocation2 + $0x1d0] sm:$0xff]
      %v436 = vld [vmem:[#allocation2 + $0x1d8] sm:$0xff]
      %v437 = vld [vmem:[#allocation2 + $0x1e0] sm:$0xff]
      %v438 = vld [vmem:[#allocation2 + $0x1e8] sm:$0xff]
      %v439 = vld [vmem:[#allocation2 + $0x1f0] sm:$0xff]
      %v440 = vld [vmem:[#allocation2 + $0x1f8] sm:$0xff]
      %v441 = vld [vmem:[%s281] sm:$0xff]
      %v442 = vld [vmem:[%s281 + $0x8] sm:$0xff]
      %v443 = vld [vmem:[%s281 + $0x10] sm:$0xff]
      %v444 = vld [vmem:[%s281 + $0x18] sm:$0xff]
      %v445 = vld [vmem:[%s281 + $0x20] sm:$0xf]
      %v446 = vld [vmem:[%s281 + $0x24] sm:$0xff]
      %v447 = vld [vmem:[%s281 + $0x2c] sm:$0xff]
      %v448 = vld [vmem:[%s281 + $0x34] sm:$0xff]
      %v449 = vld [vmem:[%s281 + $0x3c] sm:$0xff]
      %v450 = vld [vmem:[%s281 + $0x44] sm:$0xf]
      %v451 = vld [vmem:[%s281 + $0x48] sm:$0xff]
      %v452 = vld [vmem:[%s281 + $0x50] sm:$0xff]
      %v453 = vld [vmem:[%s281 + $0x58] sm:$0xff]
      %v454 = vld [vmem:[%s281 + $0x60] sm:$0xff]
      %v455 = vld [vmem:[%s281 + $0x68] sm:$0xf]
      %v456 = vld [vmem:[%s281 + $0x6c] sm:$0xff]
      %v457 = vld [vmem:[%s281 + $0x74] sm:$0xff]
      %v458 = vld [vmem:[%s281 + $0x7c] sm:$0xff]
      %v459 = vld [vmem:[%s281 + $0x84] sm:$0xff]
      %v460 = vld [vmem:[%s281 + $0x8c] sm:$0xf]
      %v461 = vld [vmem:[%s281 + $0x90] sm:$0xff]
      %v462 = vld [vmem:[%s281 + $0x98] sm:$0xff]
      %v463 = vld [vmem:[%s281 + $0xa0] sm:$0xff]
      %v464 = vld [vmem:[%s281 + $0xa8] sm:$0xff]
      %v465 = vld [vmem:[%s281 + $0xb0] sm:$0xf]
      %v466 = vld [vmem:[%s281 + $0xb4] sm:$0xff]
      %v467 = vld [vmem:[%s281 + $0xbc] sm:$0xff]
      %v468 = vld [vmem:[%s281 + $0xc4] sm:$0xff]
      %v469 = vld [vmem:[%s281 + $0xcc] sm:$0xff]
      %v470 = vld [vmem:[%s281 + $0xd4] sm:$0xf]
      %v471 = vld [vmem:[%s281 + $0xd8] sm:$0xff]
      %v472 = vld [vmem:[%s281 + $0xe0] sm:$0xff]
      %v473 = vld [vmem:[%s281 + $0xe8] sm:$0xff]
      %v474 = vld [vmem:[%s281 + $0xf0] sm:$0xff]
      %v475 = vld [vmem:[%s281 + $0xf8] sm:$0xf]
      %v476 = vld [vmem:[%s281 + $0xfc] sm:$0xff]
      %v477 = vld [vmem:[%s281 + $0x104] sm:$0xff]
      %v478 = vld [vmem:[%s281 + $0x10c] sm:$0xff]
      %v479 = vld [vmem:[%s281 + $0x114] sm:$0xff]
      %v480 = vld [vmem:[%s281 + $0x11c] sm:$0xf]
      %v481 = vld [vmem:[%s281 + $0x120] sm:$0xff]
      %v482 = vld [vmem:[%s281 + $0x128] sm:$0xff]
      %v483 = vld [vmem:[%s281 + $0x130] sm:$0xff]
      %v484 = vld [vmem:[%s281 + $0x138] sm:$0xff]
      %v485 = vld [vmem:[%s281 + $0x140] sm:$0xf]
      %v486 = vld [vmem:[%s281 + $0x144] sm:$0xff]
      %v487 = vld [vmem:[%s281 + $0x14c] sm:$0xff]
      %v488 = vld [vmem:[%s281 + $0x154] sm:$0xff]
      %v489 = vld [vmem:[%s281 + $0x15c] sm:$0xff]
      %v490 = vld [vmem:[%s281 + $0x164] sm:$0xf]
      %v491 = vld [vmem:[%s281 + $0x168] sm:$0xff]
      %v492 = vld [vmem:[%s281 + $0x170] sm:$0xff]
      %v493 = vld [vmem:[%s281 + $0x178] sm:$0xff]
      %v494 = vld [vmem:[%s281 + $0x180] sm:$0xff]
      %v495 = vld [vmem:[%s281 + $0x188] sm:$0xf]
      %v496 = vld [vmem:[%s281 + $0x18c] sm:$0xff]
      %v497 = vld [vmem:[%s281 + $0x194] sm:$0xff]
      %v498 = vld [vmem:[%s281 + $0x19c] sm:$0xff]
      %v499 = vld [vmem:[%s281 + $0x1a4] sm:$0xff]
      %v500 = vld [vmem:[%s281 + $0x1ac] sm:$0xf]
      %v501 = vld [vmem:[%s281 + $0x1b0] sm:$0xff]
      %v502 = vld [vmem:[%s281 + $0x1b8] sm:$0xff]
      %v503 = vld [vmem:[%s281 + $0x1c0] sm:$0xff]
      %v504 = vld [vmem:[%s281 + $0x1c8] sm:$0xff]
      %v505 = vld [vmem:[%s281 + $0x1d0] sm:$0xf]
      %v506 = vld [vmem:[%s281 + $0x1d4] sm:$0xff]
      %v507 = vld [vmem:[%s281 + $0x1dc] sm:$0xff]
      %v508 = vld [vmem:[%s281 + $0x1e4] sm:$0xff]
      %v509 = vld [vmem:[%s281 + $0x1ec] sm:$0xff]
      %v510 = vld [vmem:[%s281 + $0x1f4] sm:$0xf]
      %v511 = vld [vmem:[%s281 + $0x1f8] sm:$0xff]
      %v512 = vld [vmem:[%s281 + $0x200] sm:$0xff]
      %v513 = vld [vmem:[%s281 + $0x208] sm:$0xff]
      %v514 = vld [vmem:[%s281 + $0x210] sm:$0xff]
      %v515 = vld [vmem:[%s281 + $0x218] sm:$0xf]
      %v516 = vld [vmem:[%s281 + $0x21c] sm:$0xff]
      %v517 = vld [vmem:[%s281 + $0x224] sm:$0xff]
      %v518 = vld [vmem:[%s281 + $0x22c] sm:$0xff]
      %v519 = vld [vmem:[%s281 + $0x234] sm:$0xff]
      %v520 = vld [vmem:[%s281 + $0x23c] sm:$0xf]
      %v521 = vld [vmem:[%s281 + $0x240] sm:$0xff]
      %v522 = vld [vmem:[%s281 + $0x248] sm:$0xff]
      %v523 = vld [vmem:[%s281 + $0x250] sm:$0xff]
      %v524 = vld [vmem:[%s281 + $0x258] sm:$0xff]
      %v525 = vld [vmem:[%s281 + $0x260] sm:$0xf]
      %v526 = vld [vmem:[%s281 + $0x264] sm:$0xff]
      %v527 = vld [vmem:[%s281 + $0x26c] sm:$0xff]
      %v528 = vld [vmem:[%s281 + $0x274] sm:$0xff]
      %v529 = vld [vmem:[%s281 + $0x27c] sm:$0xff]
      %v530 = vld [vmem:[%s281 + $0x284] sm:$0xf]
      %v531 = vld [vmem:[%s281 + $0x288] sm:$0xff]
      %v532 = vld [vmem:[%s281 + $0x290] sm:$0xff]
      %v533 = vld [vmem:[%s281 + $0x298] sm:$0xff]
      %v534 = vld [vmem:[%s281 + $0x2a0] sm:$0xff]
      %v535 = vld [vmem:[%s281 + $0x2a8] sm:$0xf]
      %v536 = vld [vmem:[%s281 + $0x2ac] sm:$0xff]
      %v537 = vld [vmem:[%s281 + $0x2b4] sm:$0xff]
      %v538 = vld [vmem:[%s281 + $0x2bc] sm:$0xff]
      %v539 = vld [vmem:[%s281 + $0x2c4] sm:$0xff]
      %v540 = vld [vmem:[%s281 + $0x2cc] sm:$0xf]
      %v541 = vld [vmem:[%s281 + $0x2d0] sm:$0xff]
      %v542 = vld [vmem:[%s281 + $0x2d8] sm:$0xff]
      %v543 = vld [vmem:[%s281 + $0x2e0] sm:$0xff]
      %v544 = vld [vmem:[%s281 + $0x2e8] sm:$0xff]
      %v545 = vld [vmem:[%s281 + $0x2f0] sm:$0xf]
      %v546 = vld [vmem:[%s281 + $0x2f4] sm:$0xff]
      %v547 = vld [vmem:[%s281 + $0x2fc] sm:$0xff]
      %v548 = vld [vmem:[%s281 + $0x304] sm:$0xff]
      %v549 = vld [vmem:[%s281 + $0x30c] sm:$0xff]
      %v550 = vld [vmem:[%s281 + $0x314] sm:$0xf]
      %v551 = vld [vmem:[%s281 + $0x318] sm:$0xff]
      %v552 = vld [vmem:[%s281 + $0x320] sm:$0xff]
      %v553 = vld [vmem:[%s281 + $0x328] sm:$0xff]
      %v554 = vld [vmem:[%s281 + $0x330] sm:$0xff]
      %v555 = vld [vmem:[%s281 + $0x338] sm:$0xf]
      %v556 = vld [vmem:[%s281 + $0x33c] sm:$0xff]
      %v557 = vld [vmem:[%s281 + $0x344] sm:$0xff]
      %v558 = vld [vmem:[%s281 + $0x34c] sm:$0xff]
      %v559 = vld [vmem:[%s281 + $0x354] sm:$0xff]
      %v560 = vld [vmem:[%s281 + $0x35c] sm:$0xf]
      %v561 = vld [vmem:[%s281 + $0x360] sm:$0xff]
      %v562 = vld [vmem:[%s281 + $0x368] sm:$0xff]
      %v563 = vld [vmem:[%s281 + $0x370] sm:$0xff]
      %v564 = vld [vmem:[%s281 + $0x378] sm:$0xff]
      %v565 = vld [vmem:[%s281 + $0x380] sm:$0xf]
      %v566 = vld [vmem:[%s281 + $0x384] sm:$0xff]
      %v567 = vld [vmem:[%s281 + $0x38c] sm:$0xff]
      %v568 = vld [vmem:[%s281 + $0x394] sm:$0xff]
      %v569 = vld [vmem:[%s281 + $0x39c] sm:$0xff]
      %v570 = vld [vmem:[%s281 + $0x3a4] sm:$0xf]
      %v571 = vld [vmem:[%s281 + $0x3a8] sm:$0xff]
      %v572 = vld [vmem:[%s281 + $0x3b0] sm:$0xff]
      %v573 = vld [vmem:[%s281 + $0x3b8] sm:$0xff]
      %v574 = vld [vmem:[%s281 + $0x3c0] sm:$0xff]
      %v575 = vld [vmem:[%s281 + $0x3c8] sm:$0xf]
      %v576 = vld [vmem:[%s281 + $0x3cc] sm:$0xff]
      %v577 = vld [vmem:[%s281 + $0x3d4] sm:$0xff]
      %v578 = vld [vmem:[%s281 + $0x3dc] sm:$0xff]
      %v579 = vld [vmem:[%s281 + $0x3e4] sm:$0xff]
      %v580 = vld [vmem:[%s281 + $0x3ec] sm:$0xf]
      %v581 = vld [vmem:[%s281 + $0x3f0] sm:$0xff]
      %v582 = vld [vmem:[%s281 + $0x3f8] sm:$0xff]
      %v583 = vld [vmem:[%s281 + $0x400] sm:$0xff]
      %v584 = vld [vmem:[%s281 + $0x408] sm:$0xff]
      %v585 = vld [vmem:[%s281 + $0x410] sm:$0xf]
      %v586 = vld [vmem:[%s281 + $0x414] sm:$0xff]
      %v587 = vld [vmem:[%s281 + $0x41c] sm:$0xff]
      %v588 = vld [vmem:[%s281 + $0x424] sm:$0xff]
      %v589 = vld [vmem:[%s281 + $0x42c] sm:$0xff]
      %v590 = vld [vmem:[%s281 + $0x434] sm:$0xf]
      %v591 = vld [vmem:[%s281 + $0x438] sm:$0xff]
      %v592 = vld [vmem:[%s281 + $0x440] sm:$0xff]
      %v593 = vld [vmem:[%s281 + $0x448] sm:$0xff]
      %v594 = vld [vmem:[%s281 + $0x450] sm:$0xff]
      %v595 = vld [vmem:[%s281 + $0x458] sm:$0xf]
      %v596 = vld [vmem:[%s281 + $0x45c] sm:$0xff]
      %v597 = vld [vmem:[%s281 + $0x464] sm:$0xff]
      %v598 = vld [vmem:[%s281 + $0x46c] sm:$0xff]
      %v599 = vld [vmem:[%s281 + $0x474] sm:$0xff]
      %v600 = vld [vmem:[%s281 + $0x47c] sm:$0xf]
      %v601 = vld [vmem:[%s281 + $0x480] sm:$0xff]
      %v602 = vld [vmem:[%s281 + $0x488] sm:$0xff]
      %v603 = vld [vmem:[%s281 + $0x490] sm:$0xff]
      %v604 = vld [vmem:[%s281 + $0x498] sm:$0xff]
      %v605 = vld [vmem:[%s281 + $0x4a0] sm:$0xf]
      %v606 = vld [vmem:[%s281 + $0x4a4] sm:$0xff]
      %v607 = vld [vmem:[%s281 + $0x4ac] sm:$0xff]
      %v608 = vld [vmem:[%s281 + $0x4b4] sm:$0xff]
      %v609 = vld [vmem:[%s281 + $0x4bc] sm:$0xff]
      %v610 = vld [vmem:[%s281 + $0x4c4] sm:$0xf]
      %v611 = vld [vmem:[%s281 + $0x4c8] sm:$0xff]
      %v612 = vld [vmem:[%s281 + $0x4d0] sm:$0xff]
      %v613 = vld [vmem:[%s281 + $0x4d8] sm:$0xff]
      %v614 = vld [vmem:[%s281 + $0x4e0] sm:$0xff]
      %v615 = vld [vmem:[%s281 + $0x4e8] sm:$0xf]
      %v616 = vld [vmem:[%s281 + $0x4ec] sm:$0xff]
      %v617 = vld [vmem:[%s281 + $0x4f4] sm:$0xff]
      %v618 = vld [vmem:[%s281 + $0x4fc] sm:$0xff]
      %v619 = vld [vmem:[%s281 + $0x504] sm:$0xff]
      %v620 = vld [vmem:[%s281 + $0x50c] sm:$0xf]
      %v621 = vld [vmem:[%s281 + $0x510] sm:$0xff]
      %v622 = vld [vmem:[%s281 + $0x518] sm:$0xff]
      %v623 = vld [vmem:[%s281 + $0x520] sm:$0xff]
      %v624 = vld [vmem:[%s281 + $0x528] sm:$0xff]
      %v625 = vld [vmem:[%s281 + $0x530] sm:$0xf]
      %v626 = vld [vmem:[%s281 + $0x534] sm:$0xff]
      %v627 = vld [vmem:[%s281 + $0x53c] sm:$0xff]
      %v628 = vld [vmem:[%s281 + $0x544] sm:$0xff]
      %v629 = vld [vmem:[%s281 + $0x54c] sm:$0xff]
      %v630 = vld [vmem:[%s281 + $0x554] sm:$0xf]
      %v631 = vld [vmem:[%s281 + $0x558] sm:$0xff]
      %v632 = vld [vmem:[%s281 + $0x560] sm:$0xff]
      %v633 = vld [vmem:[%s281 + $0x568] sm:$0xff]
      %v634 = vld [vmem:[%s281 + $0x570] sm:$0xff]
      %v635 = vld [vmem:[%s281 + $0x578] sm:$0xf]
      %v636 = vld [vmem:[%s281 + $0x57c] sm:$0xff]
      %v637 = vld [vmem:[%s281 + $0x584] sm:$0xff]
      %v638 = vld [vmem:[%s281 + $0x58c] sm:$0xff]
      %v639 = vld [vmem:[%s281 + $0x594] sm:$0xff]
      %v640 = vld [vmem:[%s281 + $0x59c] sm:$0xf]
      %v641 = vld [vmem:[%s281 + $0x5a0] sm:$0xff]
      %v642 = vld [vmem:[%s281 + $0x5a8] sm:$0xff]
      %v643 = vld [vmem:[%s281 + $0x5b0] sm:$0xff]
      %v644 = vld [vmem:[%s281 + $0x5b8] sm:$0xff]
      %v645 = vld [vmem:[%s281 + $0x5c0] sm:$0xf]
      %v646 = vld [vmem:[%s281 + $0x5c4] sm:$0xff]
      %v647 = vld [vmem:[%s281 + $0x5cc] sm:$0xff]
      %v648 = vld [vmem:[%s281 + $0x5d4] sm:$0xff]
      %v649 = vld [vmem:[%s281 + $0x5dc] sm:$0xff]
      %v650 = vld [vmem:[%s281 + $0x5e4] sm:$0xf]
      %v651 = vld [vmem:[%s281 + $0x5e8] sm:$0xff]
      %v652 = vld [vmem:[%s281 + $0x5f0] sm:$0xff]
      %v653 = vld [vmem:[%s281 + $0x5f8] sm:$0xff]
      %v654 = vld [vmem:[%s281 + $0x600] sm:$0xff]
      %v655 = vld [vmem:[%s281 + $0x608] sm:$0xf]
      %v656 = vld [vmem:[%s281 + $0x60c] sm:$0xff]
      %v657 = vld [vmem:[%s281 + $0x614] sm:$0xff]
      %v658 = vld [vmem:[%s281 + $0x61c] sm:$0xff]
      %v659 = vld [vmem:[%s281 + $0x624] sm:$0xff]
      %v660 = vld [vmem:[%s281 + $0x62c] sm:$0xf]
      %v661 = vld [vmem:[%s281 + $0x630] sm:$0xff]
      %v662 = vld [vmem:[%s281 + $0x638] sm:$0xff]
      %v663 = vld [vmem:[%s281 + $0x640] sm:$0xff]
      %v664 = vld [vmem:[%s281 + $0x648] sm:$0xff]
      %v665 = vld [vmem:[%s281 + $0x650] sm:$0xf]
      %v666 = vld [vmem:[%s281 + $0x654] sm:$0xff]
      %v667 = vld [vmem:[%s281 + $0x65c] sm:$0xff]
      %v668 = vld [vmem:[%s281 + $0x664] sm:$0xff]
      %v669 = vld [vmem:[%s281 + $0x66c] sm:$0xff]
      %v670 = vld [vmem:[%s281 + $0x674] sm:$0xf]
      %v671 = vld [vmem:[%s281 + $0x678] sm:$0xff]
      %v672 = vld [vmem:[%s281 + $0x680] sm:$0xff]
      %v673 = vld [vmem:[%s281 + $0x688] sm:$0xff]
      %v674 = vld [vmem:[%s281 + $0x690] sm:$0xff]
      %v675 = vld [vmem:[%s281 + $0x698] sm:$0xf]
      %v676 = vld [vmem:[%s281 + $0x69c] sm:$0xff]
      %v677 = vld [vmem:[%s281 + $0x6a4] sm:$0xff]
      %v678 = vld [vmem:[%s281 + $0x6ac] sm:$0xff]
      %v679 = vld [vmem:[%s281 + $0x6b4] sm:$0xff]
      %v680 = vld [vmem:[%s281 + $0x6bc] sm:$0xf]
      %v681 = vld [vmem:[%s281 + $0x6c0] sm:$0xff]
      %v682 = vld [vmem:[%s281 + $0x6c8] sm:$0xff]
      %v683 = vld [vmem:[%s281 + $0x6d0] sm:$0xff]
      %v684 = vld [vmem:[%s281 + $0x6d8] sm:$0xff]
      %v685 = vld [vmem:[%s281 + $0x6e0] sm:$0xf]
      %v686 = vld [vmem:[%s281 + $0x6e4] sm:$0xff]
      %v687 = vld [vmem:[%s281 + $0x6ec] sm:$0xff]
      %v688 = vld [vmem:[%s281 + $0x6f4] sm:$0xff]
      %v689 = vld [vmem:[%s281 + $0x6fc] sm:$0xff]
      %v690 = vld [vmem:[%s281 + $0x704] sm:$0xf]
      %v691 = vld [vmem:[%s281 + $0x708] sm:$0xff]
      %v692 = vld [vmem:[%s281 + $0x710] sm:$0xff]
      %v693 = vld [vmem:[%s281 + $0x718] sm:$0xff]
      %v694 = vld [vmem:[%s281 + $0x720] sm:$0xff]
      %v695 = vld [vmem:[%s281 + $0x728] sm:$0xf]
      %v696 = vld [vmem:[%s281 + $0x72c] sm:$0xff]
      %v697 = vld [vmem:[%s281 + $0x734] sm:$0xff]
      %v698 = vld [vmem:[%s281 + $0x73c] sm:$0xff]
      %v699 = vld [vmem:[%s281 + $0x744] sm:$0xff]
      %v700 = vld [vmem:[%s281 + $0x74c] sm:$0xf]
      %v701 = vld [vmem:[%s281 + $0x750] sm:$0xff]
      %v702 = vld [vmem:[%s281 + $0x758] sm:$0xff]
      %v703 = vld [vmem:[%s281 + $0x760] sm:$0xff]
      %v704 = vld [vmem:[%s281 + $0x768] sm:$0xff]
      %v705 = vld [vmem:[%s281 + $0x770] sm:$0xf]
      %v706 = vld [vmem:[%s281 + $0x774] sm:$0xff]
      %v707 = vld [vmem:[%s281 + $0x77c] sm:$0xff]
      %v708 = vld [vmem:[%s281 + $0x784] sm:$0xff]
      %v709 = vld [vmem:[%s281 + $0x78c] sm:$0xff]
      %v710 = vld [vmem:[%s281 + $0x794] sm:$0xf]
      %v711 = vld [vmem:[%s281 + $0x798] sm:$0xff]
      %v712 = vld [vmem:[%s281 + $0x7a0] sm:$0xff]
      %v713 = vld [vmem:[%s281 + $0x7a8] sm:$0xff]
      %v714 = vld [vmem:[%s281 + $0x7b0] sm:$0xff]
      %v715 = vld [vmem:[%s281 + $0x7b8] sm:$0xf]
      %v716 = vld [vmem:[%s281 + $0x7bc] sm:$0xff]
      %v717 = vld [vmem:[%s281 + $0x7c4] sm:$0xff]
      %v718 = vld [vmem:[%s281 + $0x7cc] sm:$0xff]
      %v719 = vld [vmem:[%s281 + $0x7d4] sm:$0xff]
      %v720 = vld [vmem:[%s281 + $0x7dc] sm:$0xf]
      %v721 = vld [vmem:[%s281 + $0x7e0] sm:$0xff]
      %v722 = vld [vmem:[%s281 + $0x7e8] sm:$0xff]
      %v723 = vld [vmem:[%s281 + $0x7f0] sm:$0xff]
      %v724 = vld [vmem:[%s281 + $0x7f8] sm:$0xff]
      %v725 = vld [vmem:[%s281 + $0x800] sm:$0xf]
      %v726 = vld [vmem:[%s281 + $0x804] sm:$0xff]
      %v727 = vld [vmem:[%s281 + $0x80c] sm:$0xff]
      %v728 = vld [vmem:[%s281 + $0x814] sm:$0xff]
      %v729 = vld [vmem:[%s281 + $0x81c] sm:$0xff]
      %v730 = vld [vmem:[%s281 + $0x824] sm:$0xf]
      %v731 = vld [vmem:[%s281 + $0x828] sm:$0xff]
      %v732 = vld [vmem:[%s281 + $0x830] sm:$0xff]
      %v733 = vld [vmem:[%s281 + $0x838] sm:$0xff]
      %v734 = vld [vmem:[%s281 + $0x840] sm:$0xff]
      %v735 = vld [vmem:[%s281 + $0x848] sm:$0xf]
      %v736 = vld [vmem:[%s281 + $0x84c] sm:$0xff]
      %v737 = vld [vmem:[%s281 + $0x854] sm:$0xff]
      %v738 = vld [vmem:[%s281 + $0x85c] sm:$0xff]
      %v739 = vld [vmem:[%s281 + $0x864] sm:$0xff]
      %v740 = vld [vmem:[%s281 + $0x86c] sm:$0xf]
      %v741 = vld [vmem:[%s281 + $0x870] sm:$0xff]
      %v742 = vld [vmem:[%s281 + $0x878] sm:$0xff]
      %v743 = vld [vmem:[%s281 + $0x880] sm:$0xff]
      %v744 = vld [vmem:[%s281 + $0x888] sm:$0xff]
      %v745 = vld [vmem:[%s281 + $0x890] sm:$0xf]
      %v746 = vld [vmem:[%s281 + $0x894] sm:$0xff]
      %v747 = vld [vmem:[%s281 + $0x89c] sm:$0xff]
      %v748 = vld [vmem:[%s281 + $0x8a4] sm:$0xff]
      %v749 = vld [vmem:[%s281 + $0x8ac] sm:$0xff]
      %v750 = vld [vmem:[%s281 + $0x8b4] sm:$0xf]
      %v751 = vld [vmem:[%s281 + $0x8b8] sm:$0xff]
      %v752 = vld [vmem:[%s281 + $0x8c0] sm:$0xff]
      %v753 = vld [vmem:[%s281 + $0x8c8] sm:$0xff]
      %v754 = vld [vmem:[%s281 + $0x8d0] sm:$0xff]
      %v755 = vld [vmem:[%s281 + $0x8d8] sm:$0xf]
      %v756 = vld [vmem:[%s281 + $0x8dc] sm:$0xff]
      %v757 = vld [vmem:[%s281 + $0x8e4] sm:$0xff]
      %v758 = vld [vmem:[%s281 + $0x8ec] sm:$0xff]
      %v759 = vld [vmem:[%s281 + $0x8f4] sm:$0xff]
      %v760 = vld [vmem:[%s281 + $0x8fc] sm:$0xf]
      %v761 = vld [vmem:[%s291] sm:$0xf]
      %v762 = vld [vmem:[%s291 + $0x4] sm:$0xf]
      %v763 = vld [vmem:[%s291 + $0x8] sm:$0xf]
      %v764 = vld [vmem:[%s291 + $0xc] sm:$0xf]
      %v765 = vld [vmem:[%s291 + $0x10] sm:$0xf]
      %v766 = vld [vmem:[%s291 + $0x14] sm:$0xf]
      %v767 = vld [vmem:[%s291 + $0x18] sm:$0xf]
      %v768 = vld [vmem:[%s291 + $0x1c] sm:$0xf]
      %v769 = vld [vmem:[%s291 + $0x20] sm:$0xf]
      %v770 = vld [vmem:[%s291 + $0x24] sm:$0xf]
      %v771 = vld [vmem:[%s291 + $0x28] sm:$0xf]
      %v772 = vld [vmem:[%s291 + $0x2c] sm:$0xf]
      %v773 = vld [vmem:[%s291 + $0x30] sm:$0xf]
      %v774 = vld [vmem:[%s291 + $0x34] sm:$0xf]
      %v775 = vld [vmem:[%s291 + $0x38] sm:$0xf]
      %v776 = vld [vmem:[%s291 + $0x3c] sm:$0xf]
      %v777 = vld [vmem:[%s291 + $0x40] sm:$0xf]
      %v778 = vld [vmem:[%s291 + $0x44] sm:$0xf]
      %v779 = vld [vmem:[%s291 + $0x48] sm:$0xf]
      %v780 = vld [vmem:[%s291 + $0x4c] sm:$0xf]
      %v781 = vld [vmem:[%s291 + $0x50] sm:$0xf]
      %v782 = vld [vmem:[%s291 + $0x54] sm:$0xf]
      %v783 = vld [vmem:[%s291 + $0x58] sm:$0xf]
      %v784 = vld [vmem:[%s291 + $0x5c] sm:$0xf]
      %v785 = vld [vmem:[%s291 + $0x60] sm:$0xf]
      %v786 = vld [vmem:[%s291 + $0x64] sm:$0xf]
      %v787 = vld [vmem:[%s291 + $0x68] sm:$0xf]
      %v788 = vld [vmem:[%s291 + $0x6c] sm:$0xf]
      %v789 = vld [vmem:[%s291 + $0x70] sm:$0xf]
      %v790 = vld [vmem:[%s291 + $0x74] sm:$0xf]
      %v791 = vld [vmem:[%s291 + $0x78] sm:$0xf]
      %v792 = vld [vmem:[%s291 + $0x7c] sm:$0xf]
      %v793 = vld [vmem:[%s291 + $0x80] sm:$0xf]
      %v794 = vld [vmem:[%s291 + $0x84] sm:$0xf]
      %v795 = vld [vmem:[%s291 + $0x88] sm:$0xf]
      %v796 = vld [vmem:[%s291 + $0x8c] sm:$0xf]
      %v797 = vld [vmem:[%s291 + $0x90] sm:$0xf]
      %v798 = vld [vmem:[%s291 + $0x94] sm:$0xf]
      %v799 = vld [vmem:[%s291 + $0x98] sm:$0xf]
      %v800 = vld [vmem:[%s291 + $0x9c] sm:$0xf]
      %v801 = vld [vmem:[%s291 + $0xa0] sm:$0xf]
      %v802 = vld [vmem:[%s291 + $0xa4] sm:$0xf]
      %v803 = vld [vmem:[%s291 + $0xa8] sm:$0xf]
      %v804 = vld [vmem:[%s291 + $0xac] sm:$0xf]
      %v805 = vld [vmem:[%s291 + $0xb0] sm:$0xf]
      %v806 = vld [vmem:[%s291 + $0xb4] sm:$0xf]
      %v807 = vld [vmem:[%s291 + $0xb8] sm:$0xf]
      %v808 = vld [vmem:[%s291 + $0xbc] sm:$0xf]
      %v809 = vld [vmem:[%s291 + $0xc0] sm:$0xf]
      %v810 = vld [vmem:[%s291 + $0xc4] sm:$0xf]
      %v811 = vld [vmem:[%s291 + $0xc8] sm:$0xf]
      %v812 = vld [vmem:[%s291 + $0xcc] sm:$0xf]
      %v813 = vld [vmem:[%s291 + $0xd0] sm:$0xf]
      %v814 = vld [vmem:[%s291 + $0xd4] sm:$0xf]
      %v815 = vld [vmem:[%s291 + $0xd8] sm:$0xf]
      %v816 = vld [vmem:[%s291 + $0xdc] sm:$0xf]
      %v817 = vld [vmem:[%s291 + $0xe0] sm:$0xf]
      %v818 = vld [vmem:[%s291 + $0xe4] sm:$0xf]
      %v819 = vld [vmem:[%s291 + $0xe8] sm:$0xf]
      %v820 = vld [vmem:[%s291 + $0xec] sm:$0xf]
      %v821 = vld [vmem:[%s291 + $0xf0] sm:$0xf]
      %v822 = vld [vmem:[%s291 + $0xf4] sm:$0xf]
      %v823 = vld [vmem:[%s291 + $0xf8] sm:$0xf]
      %v824 = vld [vmem:[%s291 + $0xfc] sm:$0xf]
      %v825 = vld [vmem:[%s291 + $0x100] sm:$0xf]
      %v826 = vld [vmem:[%s291 + $0x104] sm:$0xf]
      %v827 = vld [vmem:[%s291 + $0x108] sm:$0xf]
      %v828 = vld [vmem:[%s291 + $0x10c] sm:$0xf]
      %v829 = vld [vmem:[%s291 + $0x110] sm:$0xf]
      %v830 = vld [vmem:[%s291 + $0x114] sm:$0xf]
      %v831 = vld [vmem:[%s291 + $0x118] sm:$0xf]
      %v832 = vld [vmem:[%s291 + $0x11c] sm:$0xf]
      %v833 = vld [vmem:[%s291 + $0x120] sm:$0xf]
      %v834 = vld [vmem:[%s291 + $0x124] sm:$0xf]
      %v835 = vld [vmem:[%s291 + $0x128] sm:$0xf]
      %v836 = vld [vmem:[%s291 + $0x12c] sm:$0xf]
      %v837 = vld [vmem:[%s291 + $0x130] sm:$0xf]
      %v838 = vld [vmem:[%s291 + $0x134] sm:$0xf]
      %v839 = vld [vmem:[%s291 + $0x138] sm:$0xf]
      %v840 = vld [vmem:[%s291 + $0x13c] sm:$0xf]
      %v841 = vld [vmem:[%s291 + $0x140] sm:$0xf]
      %v842 = vld [vmem:[%s291 + $0x144] sm:$0xf]
      %v843 = vld [vmem:[%s291 + $0x148] sm:$0xf]
      %v844 = vld [vmem:[%s291 + $0x14c] sm:$0xf]
      %v845 = vld [vmem:[%s291 + $0x150] sm:$0xf]
      %v846 = vld [vmem:[%s291 + $0x154] sm:$0xf]
      %v847 = vld [vmem:[%s291 + $0x158] sm:$0xf]
      %v848 = vld [vmem:[%s291 + $0x15c] sm:$0xf]
      %v849 = vld [vmem:[%s291 + $0x160] sm:$0xf]
      %v850 = vld [vmem:[%s291 + $0x164] sm:$0xf]
      %v851 = vld [vmem:[%s291 + $0x168] sm:$0xf]
      %v852 = vld [vmem:[%s291 + $0x16c] sm:$0xf]
      %v853 = vld [vmem:[%s291 + $0x170] sm:$0xf]
      %v854 = vld [vmem:[%s291 + $0x174] sm:$0xf]
      %v855 = vld [vmem:[%s291 + $0x178] sm:$0xf]
      %v856 = vld [vmem:[%s291 + $0x17c] sm:$0xf]
      %v857 = vld [vmem:[%s291 + $0x180] sm:$0xf]
      %v858 = vld [vmem:[%s291 + $0x184] sm:$0xf]
      %v859 = vld [vmem:[%s291 + $0x188] sm:$0xf]
      %v860 = vld [vmem:[%s291 + $0x18c] sm:$0xf]
      %v861 = vld [vmem:[%s291 + $0x190] sm:$0xf]
      %v862 = vld [vmem:[%s291 + $0x194] sm:$0xf]
      %v863 = vld [vmem:[%s291 + $0x198] sm:$0xf]
      %v864 = vld [vmem:[%s291 + $0x19c] sm:$0xf]
      %v865 = vld [vmem:[%s291 + $0x1a0] sm:$0xf]
      %v866 = vld [vmem:[%s291 + $0x1a4] sm:$0xf]
      %v867 = vld [vmem:[%s291 + $0x1a8] sm:$0xf]
      %v868 = vld [vmem:[%s291 + $0x1ac] sm:$0xf]
      %v869 = vld [vmem:[%s291 + $0x1b0] sm:$0xf]
      %v870 = vld [vmem:[%s291 + $0x1b4] sm:$0xf]
      %v871 = vld [vmem:[%s291 + $0x1b8] sm:$0xf]
      %v872 = vld [vmem:[%s291 + $0x1bc] sm:$0xf]
      %v873 = vld [vmem:[%s291 + $0x1c0] sm:$0xf]
      %v874 = vld [vmem:[%s291 + $0x1c4] sm:$0xf]
      %v875 = vld [vmem:[%s291 + $0x1c8] sm:$0xf]
      %v876 = vld [vmem:[%s291 + $0x1cc] sm:$0xf]
      %v877 = vld [vmem:[%s291 + $0x1d0] sm:$0xf]
      %v878 = vld [vmem:[%s291 + $0x1d4] sm:$0xf]
      %v879 = vld [vmem:[%s291 + $0x1d8] sm:$0xf]
      %v880 = vld [vmem:[%s291 + $0x1dc] sm:$0xf]
      %v881 = vld [vmem:[%s291 + $0x1e0] sm:$0xf]
      %v882 = vld [vmem:[%s291 + $0x1e4] sm:$0xf]
      %v883 = vld [vmem:[%s291 + $0x1e8] sm:$0xf]
      %v884 = vld [vmem:[%s291 + $0x1ec] sm:$0xf]
      %v885 = vld [vmem:[%s291 + $0x1f0] sm:$0xf]
      %v886 = vld [vmem:[%s291 + $0x1f4] sm:$0xf]
      %v887 = vld [vmem:[%s291 + $0x1f8] sm:$0xf]
      %v888 = vld [vmem:[%s291 + $0x1fc] sm:$0xf]
      %v889 = vld [vmem:[%s291 + $0x200] sm:$0xf]
      %v890 = vld [vmem:[%s291 + $0x204] sm:$0xf]
      %v891 = vld [vmem:[%s291 + $0x208] sm:$0xf]
      %v892 = vld [vmem:[%s291 + $0x20c] sm:$0xf]
      %v893 = vld [vmem:[%s291 + $0x210] sm:$0xf]
      %v894 = vld [vmem:[%s291 + $0x214] sm:$0xf]
      %v895 = vld [vmem:[%s291 + $0x218] sm:$0xf]
      %v896 = vld [vmem:[%s291 + $0x21c] sm:$0xf]
      %v897 = vld [vmem:[%s291 + $0x220] sm:$0xf]
      %v898 = vld [vmem:[%s291 + $0x224] sm:$0xf]
      %v899 = vld [vmem:[%s291 + $0x228] sm:$0xf]
      %v900 = vld [vmem:[%s291 + $0x22c] sm:$0xf]
      %v901 = vld [vmem:[%s291 + $0x230] sm:$0xf]
      %v902 = vld [vmem:[%s291 + $0x234] sm:$0xf]
      %v903 = vld [vmem:[%s291 + $0x238] sm:$0xf]
      %v904 = vld [vmem:[%s291 + $0x23c] sm:$0xf]
      %v1225 = vunpack.c.l.b16 %v441
      %v1226 = vunpack.c.h.b16 %v441
      %v1227 = vunpack.c.l.b16 %v442
      %v1228 = vunpack.c.h.b16 %v442
      %v1229 = vunpack.c.l.b16 %v443
      %v1230 = vunpack.c.h.b16 %v443
      %v1231 = vunpack.c.l.b16 %v444
      %v1232 = vunpack.c.h.b16 %v444
      %v1233 = vunpack.c.l.b16 %v445
      %v1234 = vunpack.c.l.b16 %v446
      %v1235 = vunpack.c.h.b16 %v446
      %v1236 = vunpack.c.l.b16 %v447
      %v1237 = vunpack.c.h.b16 %v447
      %v1238 = vunpack.c.l.b16 %v448
      %v1239 = vunpack.c.h.b16 %v448
      %v1240 = vunpack.c.l.b16 %v449
      %v1241 = vunpack.c.h.b16 %v449
      %v1242 = vunpack.c.l.b16 %v450
      %v1243 = vunpack.c.l.b16 %v451
      %v1244 = vunpack.c.h.b16 %v451
      %v1245 = vunpack.c.l.b16 %v452
      %v1246 = vunpack.c.h.b16 %v452
      %v1247 = vunpack.c.l.b16 %v453
      %v1248 = vunpack.c.h.b16 %v453
      %v1249 = vunpack.c.l.b16 %v454
      %v1250 = vunpack.c.h.b16 %v454
      %v1251 = vunpack.c.l.b16 %v455
      %v1252 = vunpack.c.l.b16 %v456
      %v1253 = vunpack.c.h.b16 %v456
      %v1254 = vunpack.c.l.b16 %v457
      %v1255 = vunpack.c.h.b16 %v457
      %v1256 = vunpack.c.l.b16 %v458
      %v1257 = vunpack.c.h.b16 %v458
      %v1258 = vunpack.c.l.b16 %v459
      %v1259 = vunpack.c.h.b16 %v459
      %v1260 = vunpack.c.l.b16 %v460
      %v1261 = vunpack.c.l.b16 %v461
      %v1262 = vunpack.c.h.b16 %v461
      %v1263 = vunpack.c.l.b16 %v462
      %v1264 = vunpack.c.h.b16 %v462
      %v1265 = vunpack.c.l.b16 %v463
      %v1266 = vunpack.c.h.b16 %v463
      %v1267 = vunpack.c.l.b16 %v464
      %v1268 = vunpack.c.h.b16 %v464
      %v1269 = vunpack.c.l.b16 %v465
      %v1270 = vunpack.c.l.b16 %v466
      %v1271 = vunpack.c.h.b16 %v466
      %v1272 = vunpack.c.l.b16 %v467
      %v1273 = vunpack.c.h.b16 %v467
      %v1274 = vunpack.c.l.b16 %v468
      %v1275 = vunpack.c.h.b16 %v468
      %v1276 = vunpack.c.l.b16 %v469
      %v1277 = vunpack.c.h.b16 %v469
      %v1278 = vunpack.c.l.b16 %v470
      %v1279 = vunpack.c.l.b16 %v471
      %v1280 = vunpack.c.h.b16 %v471
      %v1281 = vunpack.c.l.b16 %v472
      %v1282 = vunpack.c.h.b16 %v472
      %v1283 = vunpack.c.l.b16 %v473
      %v1284 = vunpack.c.h.b16 %v473
      %v1285 = vunpack.c.l.b16 %v474
      %v1286 = vunpack.c.h.b16 %v474
      %v1287 = vunpack.c.l.b16 %v475
      %v1288 = vunpack.c.l.b16 %v476
      %v1289 = vunpack.c.h.b16 %v476
      %v1290 = vunpack.c.l.b16 %v477
      %v1291 = vunpack.c.h.b16 %v477
      %v1292 = vunpack.c.l.b16 %v478
      %v1293 = vunpack.c.h.b16 %v478
      %v1294 = vunpack.c.l.b16 %v479
      %v1295 = vunpack.c.h.b16 %v479
      %v1296 = vunpack.c.l.b16 %v480
      %v1297 = vunpack.c.l.b16 %v481
      %v1298 = vunpack.c.h.b16 %v481
      %v1299 = vunpack.c.l.b16 %v482
      %v1300 = vunpack.c.h.b16 %v482
      %v1301 = vunpack.c.l.b16 %v483
      %v1302 = vunpack.c.h.b16 %v483
      %v1303 = vunpack.c.l.b16 %v484
      %v1304 = vunpack.c.h.b16 %v484
      %v1305 = vunpack.c.l.b16 %v485
      %v1306 = vunpack.c.l.b16 %v486
      %v1307 = vunpack.c.h.b16 %v486
      %v1308 = vunpack.c.l.b16 %v487
      %v1309 = vunpack.c.h.b16 %v487
      %v1310 = vunpack.c.l.b16 %v488
      %v1311 = vunpack.c.h.b16 %v488
      %v1312 = vunpack.c.l.b16 %v489
      %v1313 = vunpack.c.h.b16 %v489
      %v1314 = vunpack.c.l.b16 %v490
      %v1315 = vunpack.c.l.b16 %v491
      %v1316 = vunpack.c.h.b16 %v491
      %v1317 = vunpack.c.l.b16 %v492
      %v1318 = vunpack.c.h.b16 %v492
      %v1319 = vunpack.c.l.b16 %v493
      %v1320 = vunpack.c.h.b16 %v493
      %v1321 = vunpack.c.l.b16 %v494
      %v1322 = vunpack.c.h.b16 %v494
      %v1323 = vunpack.c.l.b16 %v495
      %v1324 = vunpack.c.l.b16 %v496
      %v1325 = vunpack.c.h.b16 %v496
      %v1326 = vunpack.c.l.b16 %v497
      %v1327 = vunpack.c.h.b16 %v497
      %v1328 = vunpack.c.l.b16 %v498
      %v1329 = vunpack.c.h.b16 %v498
      %v1330 = vunpack.c.l.b16 %v499
      %v1331 = vunpack.c.h.b16 %v499
      %v1332 = vunpack.c.l.b16 %v500
      %v1333 = vunpack.c.l.b16 %v501
      %v1334 = vunpack.c.h.b16 %v501
      %v1335 = vunpack.c.l.b16 %v502
      %v1336 = vunpack.c.h.b16 %v502
      %v1337 = vunpack.c.l.b16 %v503
      %v1338 = vunpack.c.h.b16 %v503
      %v1339 = vunpack.c.l.b16 %v504
      %v1340 = vunpack.c.h.b16 %v504
      %v1341 = vunpack.c.l.b16 %v505
      %v1342 = vunpack.c.l.b16 %v506
      %v1343 = vunpack.c.h.b16 %v506
      %v1344 = vunpack.c.l.b16 %v507
      %v1345 = vunpack.c.h.b16 %v507
      %v1346 = vunpack.c.l.b16 %v508
      %v1347 = vunpack.c.h.b16 %v508
      %v1348 = vunpack.c.l.b16 %v509
      %v1349 = vunpack.c.h.b16 %v509
      %v1350 = vunpack.c.l.b16 %v510
      %v1351 = vunpack.c.l.b16 %v511
      %v1352 = vunpack.c.h.b16 %v511
      %v1353 = vunpack.c.l.b16 %v512
      %v1354 = vunpack.c.h.b16 %v512
      %v1355 = vunpack.c.l.b16 %v513
      %v1356 = vunpack.c.h.b16 %v513
      %v1357 = vunpack.c.l.b16 %v514
      %v1358 = vunpack.c.h.b16 %v514
      %v1359 = vunpack.c.l.b16 %v515
      %v1360 = vunpack.c.l.b16 %v516
      %v1361 = vunpack.c.h.b16 %v516
      %v1362 = vunpack.c.l.b16 %v517
      %v1363 = vunpack.c.h.b16 %v517
      %v1364 = vunpack.c.l.b16 %v518
      %v1365 = vunpack.c.h.b16 %v518
      %v1366 = vunpack.c.l.b16 %v519
      %v1367 = vunpack.c.h.b16 %v519
      %v1368 = vunpack.c.l.b16 %v520
      %v1369 = vunpack.c.l.b16 %v521
      %v1370 = vunpack.c.h.b16 %v521
      %v1371 = vunpack.c.l.b16 %v522
      %v1372 = vunpack.c.h.b16 %v522
      %v1373 = vunpack.c.l.b16 %v523
      %v1374 = vunpack.c.h.b16 %v523
      %v1375 = vunpack.c.l.b16 %v524
      %v1376 = vunpack.c.h.b16 %v524
      %v1377 = vunpack.c.l.b16 %v525
      %v1378 = vunpack.c.l.b16 %v526
      %v1379 = vunpack.c.h.b16 %v526
      %v1380 = vunpack.c.l.b16 %v527
      %v1381 = vunpack.c.h.b16 %v527
      %v1382 = vunpack.c.l.b16 %v528
      %v1383 = vunpack.c.h.b16 %v528
      %v1384 = vunpack.c.l.b16 %v529
      %v1385 = vunpack.c.h.b16 %v529
      %v1386 = vunpack.c.l.b16 %v530
      %v1387 = vunpack.c.l.b16 %v531
      %v1388 = vunpack.c.h.b16 %v531
      %v1389 = vunpack.c.l.b16 %v532
      %v1390 = vunpack.c.h.b16 %v532
      %v1391 = vunpack.c.l.b16 %v533
      %v1392 = vunpack.c.h.b16 %v533
      %v1393 = vunpack.c.l.b16 %v534
      %v1394 = vunpack.c.h.b16 %v534
      %v1395 = vunpack.c.l.b16 %v535
      %v1396 = vunpack.c.l.b16 %v536
      %v1397 = vunpack.c.h.b16 %v536
      %v1398 = vunpack.c.l.b16 %v537
      %v1399 = vunpack.c.h.b16 %v537
      %v1400 = vunpack.c.l.b16 %v538
      %v1401 = vunpack.c.h.b16 %v538
      %v1402 = vunpack.c.l.b16 %v539
      %v1403 = vunpack.c.h.b16 %v539
      %v1404 = vunpack.c.l.b16 %v540
      %v1405 = vunpack.c.l.b16 %v541
      %v1406 = vunpack.c.h.b16 %v541
      %v1407 = vunpack.c.l.b16 %v542
      %v1408 = vunpack.c.h.b16 %v542
      %v1409 = vunpack.c.l.b16 %v543
      %v1410 = vunpack.c.h.b16 %v543
      %v1411 = vunpack.c.l.b16 %v544
      %v1412 = vunpack.c.h.b16 %v544
      %v1413 = vunpack.c.l.b16 %v545
      %v1414 = vunpack.c.l.b16 %v546
      %v1415 = vunpack.c.h.b16 %v546
      %v1416 = vunpack.c.l.b16 %v547
      %v1417 = vunpack.c.h.b16 %v547
      %v1418 = vunpack.c.l.b16 %v548
      %v1419 = vunpack.c.h.b16 %v548
      %v1420 = vunpack.c.l.b16 %v549
      %v1421 = vunpack.c.h.b16 %v549
      %v1422 = vunpack.c.l.b16 %v550
      %v1423 = vunpack.c.l.b16 %v551
      %v1424 = vunpack.c.h.b16 %v551
      %v1425 = vunpack.c.l.b16 %v552
      %v1426 = vunpack.c.h.b16 %v552
      %v1427 = vunpack.c.l.b16 %v553
      %v1428 = vunpack.c.h.b16 %v553
      %v1429 = vunpack.c.l.b16 %v554
      %v1430 = vunpack.c.h.b16 %v554
      %v1431 = vunpack.c.l.b16 %v555
      %v1432 = vunpack.c.l.b16 %v556
      %v1433 = vunpack.c.h.b16 %v556
      %v1434 = vunpack.c.l.b16 %v557
      %v1435 = vunpack.c.h.b16 %v557
      %v1436 = vunpack.c.l.b16 %v558
      %v1437 = vunpack.c.h.b16 %v558
      %v1438 = vunpack.c.l.b16 %v559
      %v1439 = vunpack.c.h.b16 %v559
      %v1440 = vunpack.c.l.b16 %v560
      %v1441 = vunpack.c.l.b16 %v561
      %v1442 = vunpack.c.h.b16 %v561
      %v1443 = vunpack.c.l.b16 %v562
      %v1444 = vunpack.c.h.b16 %v562
      %v1445 = vunpack.c.l.b16 %v563
      %v1446 = vunpack.c.h.b16 %v563
      %v1447 = vunpack.c.l.b16 %v564
      %v1448 = vunpack.c.h.b16 %v564
      %v1449 = vunpack.c.l.b16 %v565
      %v1450 = vunpack.c.l.b16 %v566
      %v1451 = vunpack.c.h.b16 %v566
      %v1452 = vunpack.c.l.b16 %v567
      %v1453 = vunpack.c.h.b16 %v567
      %v1454 = vunpack.c.l.b16 %v568
      %v1455 = vunpack.c.h.b16 %v568
      %v1456 = vunpack.c.l.b16 %v569
      %v1457 = vunpack.c.h.b16 %v569
      %v1458 = vunpack.c.l.b16 %v570
      %v1459 = vunpack.c.l.b16 %v571
      %v1460 = vunpack.c.h.b16 %v571
      %v1461 = vunpack.c.l.b16 %v572
      %v1462 = vunpack.c.h.b16 %v572
      %v1463 = vunpack.c.l.b16 %v573
      %v1464 = vunpack.c.h.b16 %v573
      %v1465 = vunpack.c.l.b16 %v574
      %v1466 = vunpack.c.h.b16 %v574
      %v1467 = vunpack.c.l.b16 %v575
      %v1468 = vunpack.c.l.b16 %v576
      %v1469 = vunpack.c.h.b16 %v576
      %v1470 = vunpack.c.l.b16 %v577
      %v1471 = vunpack.c.h.b16 %v577
      %v1472 = vunpack.c.l.b16 %v578
      %v1473 = vunpack.c.h.b16 %v578
      %v1474 = vunpack.c.l.b16 %v579
      %v1475 = vunpack.c.h.b16 %v579
      %v1476 = vunpack.c.l.b16 %v580
      %v1477 = vunpack.c.l.b16 %v581
      %v1478 = vunpack.c.h.b16 %v581
      %v1479 = vunpack.c.l.b16 %v582
      %v1480 = vunpack.c.h.b16 %v582
      %v1481 = vunpack.c.l.b16 %v583
      %v1482 = vunpack.c.h.b16 %v583
      %v1483 = vunpack.c.l.b16 %v584
      %v1484 = vunpack.c.h.b16 %v584
      %v1485 = vunpack.c.l.b16 %v585
      %v1486 = vunpack.c.l.b16 %v586
      %v1487 = vunpack.c.h.b16 %v586
      %v1488 = vunpack.c.l.b16 %v587
      %v1489 = vunpack.c.h.b16 %v587
      %v1490 = vunpack.c.l.b16 %v588
      %v1491 = vunpack.c.h.b16 %v588
      %v1492 = vunpack.c.l.b16 %v589
      %v1493 = vunpack.c.h.b16 %v589
      %v1494 = vunpack.c.l.b16 %v590
      %v1495 = vunpack.c.l.b16 %v591
      %v1496 = vunpack.c.h.b16 %v591
      %v1497 = vunpack.c.l.b16 %v592
      %v1498 = vunpack.c.h.b16 %v592
      %v1499 = vunpack.c.l.b16 %v593
      %v1500 = vunpack.c.h.b16 %v593
      %v1501 = vunpack.c.l.b16 %v594
      %v1502 = vunpack.c.h.b16 %v594
      %v1503 = vunpack.c.l.b16 %v595
      %v1504 = vunpack.c.l.b16 %v596
      %v1505 = vunpack.c.h.b16 %v596
      %v1506 = vunpack.c.l.b16 %v597
      %v1507 = vunpack.c.h.b16 %v597
      %v1508 = vunpack.c.l.b16 %v598
      %v1509 = vunpack.c.h.b16 %v598
      %v1510 = vunpack.c.l.b16 %v599
      %v1511 = vunpack.c.h.b16 %v599
      %v1512 = vunpack.c.l.b16 %v600
      %v1513 = vunpack.c.l.b16 %v601
      %v1514 = vunpack.c.h.b16 %v601
      %v1515 = vunpack.c.l.b16 %v602
      %v1516 = vunpack.c.h.b16 %v602
      %v1517 = vunpack.c.l.b16 %v603
      %v1518 = vunpack.c.h.b16 %v603
      %v1519 = vunpack.c.l.b16 %v604
      %v1520 = vunpack.c.h.b16 %v604
      %v1521 = vunpack.c.l.b16 %v605
      %v1522 = vunpack.c.l.b16 %v606
      %v1523 = vunpack.c.h.b16 %v606
      %v1524 = vunpack.c.l.b16 %v607
      %v1525 = vunpack.c.h.b16 %v607
      %v1526 = vunpack.c.l.b16 %v608
      %v1527 = vunpack.c.h.b16 %v608
      %v1528 = vunpack.c.l.b16 %v609
      %v1529 = vunpack.c.h.b16 %v609
      %v1530 = vunpack.c.l.b16 %v610
      %v1531 = vunpack.c.l.b16 %v611
      %v1532 = vunpack.c.h.b16 %v611
      %v1533 = vunpack.c.l.b16 %v612
      %v1534 = vunpack.c.h.b16 %v612
      %v1535 = vunpack.c.l.b16 %v613
      %v1536 = vunpack.c.h.b16 %v613
      %v1537 = vunpack.c.l.b16 %v614
      %v1538 = vunpack.c.h.b16 %v614
      %v1539 = vunpack.c.l.b16 %v615
      %v1540 = vunpack.c.l.b16 %v616
      %v1541 = vunpack.c.h.b16 %v616
      %v1542 = vunpack.c.l.b16 %v617
      %v1543 = vunpack.c.h.b16 %v617
      %v1544 = vunpack.c.l.b16 %v618
      %v1545 = vunpack.c.h.b16 %v618
      %v1546 = vunpack.c.l.b16 %v619
      %v1547 = vunpack.c.h.b16 %v619
      %v1548 = vunpack.c.l.b16 %v620
      %v1549 = vunpack.c.l.b16 %v621
      %v1550 = vunpack.c.h.b16 %v621
      %v1551 = vunpack.c.l.b16 %v622
      %v1552 = vunpack.c.h.b16 %v622
      %v1553 = vunpack.c.l.b16 %v623
      %v1554 = vunpack.c.h.b16 %v623
      %v1555 = vunpack.c.l.b16 %v624
      %v1556 = vunpack.c.h.b16 %v624
      %v1557 = vunpack.c.l.b16 %v625
      %v1558 = vunpack.c.l.b16 %v626
      %v1559 = vunpack.c.h.b16 %v626
      %v1560 = vunpack.c.l.b16 %v627
      %v1561 = vunpack.c.h.b16 %v627
      %v1562 = vunpack.c.l.b16 %v628
      %v1563 = vunpack.c.h.b16 %v628
      %v1564 = vunpack.c.l.b16 %v629
      %v1565 = vunpack.c.h.b16 %v629
      %v1566 = vunpack.c.l.b16 %v630
      %v1567 = vunpack.c.l.b16 %v631
      %v1568 = vunpack.c.h.b16 %v631
      %v1569 = vunpack.c.l.b16 %v632
      %v1570 = vunpack.c.h.b16 %v632
      %v1571 = vunpack.c.l.b16 %v633
      %v1572 = vunpack.c.h.b16 %v633
      %v1573 = vunpack.c.l.b16 %v634
      %v1574 = vunpack.c.h.b16 %v634
      %v1575 = vunpack.c.l.b16 %v635
      %v1576 = vunpack.c.l.b16 %v636
      %v1577 = vunpack.c.h.b16 %v636
      %v1578 = vunpack.c.l.b16 %v637
      %v1579 = vunpack.c.h.b16 %v637
      %v1580 = vunpack.c.l.b16 %v638
      %v1581 = vunpack.c.h.b16 %v638
      %v1582 = vunpack.c.l.b16 %v639
      %v1583 = vunpack.c.h.b16 %v639
      %v1584 = vunpack.c.l.b16 %v640
      %v1585 = vunpack.c.l.b16 %v641
      %v1586 = vunpack.c.h.b16 %v641
      %v1587 = vunpack.c.l.b16 %v642
      %v1588 = vunpack.c.h.b16 %v642
      %v1589 = vunpack.c.l.b16 %v643
      %v1590 = vunpack.c.h.b16 %v643
      %v1591 = vunpack.c.l.b16 %v644
      %v1592 = vunpack.c.h.b16 %v644
      %v1593 = vunpack.c.l.b16 %v645
      %v1594 = vunpack.c.l.b16 %v646
      %v1595 = vunpack.c.h.b16 %v646
      %v1596 = vunpack.c.l.b16 %v647
      %v1597 = vunpack.c.h.b16 %v647
      %v1598 = vunpack.c.l.b16 %v648
      %v1599 = vunpack.c.h.b16 %v648
      %v1600 = vunpack.c.l.b16 %v649
      %v1601 = vunpack.c.h.b16 %v649
      %v1602 = vunpack.c.l.b16 %v650
      %v1603 = vunpack.c.l.b16 %v651
      %v1604 = vunpack.c.h.b16 %v651
      %v1605 = vunpack.c.l.b16 %v652
      %v1606 = vunpack.c.h.b16 %v652
      %v1607 = vunpack.c.l.b16 %v653
      %v1608 = vunpack.c.h.b16 %v653
      %v1609 = vunpack.c.l.b16 %v654
      %v1610 = vunpack.c.h.b16 %v654
      %v1611 = vunpack.c.l.b16 %v655
      %v1612 = vunpack.c.l.b16 %v656
      %v1613 = vunpack.c.h.b16 %v656
      %v1614 = vunpack.c.l.b16 %v657
      %v1615 = vunpack.c.h.b16 %v657
      %v1616 = vunpack.c.l.b16 %v658
      %v1617 = vunpack.c.h.b16 %v658
      %v1618 = vunpack.c.l.b16 %v659
      %v1619 = vunpack.c.h.b16 %v659
      %v1620 = vunpack.c.l.b16 %v660
      %v1621 = vunpack.c.l.b16 %v661
      %v1622 = vunpack.c.h.b16 %v661
      %v1623 = vunpack.c.l.b16 %v662
      %v1624 = vunpack.c.h.b16 %v662
      %v1625 = vunpack.c.l.b16 %v663
      %v1626 = vunpack.c.h.b16 %v663
      %v1627 = vunpack.c.l.b16 %v664
      %v1628 = vunpack.c.h.b16 %v664
      %v1629 = vunpack.c.l.b16 %v665
      %v1630 = vunpack.c.l.b16 %v666
      %v1631 = vunpack.c.h.b16 %v666
      %v1632 = vunpack.c.l.b16 %v667
      %v1633 = vunpack.c.h.b16 %v667
      %v1634 = vunpack.c.l.b16 %v668
      %v1635 = vunpack.c.h.b16 %v668
      %v1636 = vunpack.c.l.b16 %v669
      %v1637 = vunpack.c.h.b16 %v669
      %v1638 = vunpack.c.l.b16 %v670
      %v1639 = vunpack.c.l.b16 %v671
      %v1640 = vunpack.c.h.b16 %v671
      %v1641 = vunpack.c.l.b16 %v672
      %v1642 = vunpack.c.h.b16 %v672
      %v1643 = vunpack.c.l.b16 %v673
      %v1644 = vunpack.c.h.b16 %v673
      %v1645 = vunpack.c.l.b16 %v674
      %v1646 = vunpack.c.h.b16 %v674
      %v1647 = vunpack.c.l.b16 %v675
      %v1648 = vunpack.c.l.b16 %v676
      %v1649 = vunpack.c.h.b16 %v676
      %v1650 = vunpack.c.l.b16 %v677
      %v1651 = vunpack.c.h.b16 %v677
      %v1652 = vunpack.c.l.b16 %v678
      %v1653 = vunpack.c.h.b16 %v678
      %v1654 = vunpack.c.l.b16 %v679
      %v1655 = vunpack.c.h.b16 %v679
      %v1656 = vunpack.c.l.b16 %v680
      %v1657 = vunpack.c.l.b16 %v681
      %v1658 = vunpack.c.h.b16 %v681
      %v1659 = vunpack.c.l.b16 %v682
      %v1660 = vunpack.c.h.b16 %v682
      %v1661 = vunpack.c.l.b16 %v683
      %v1662 = vunpack.c.h.b16 %v683
      %v1663 = vunpack.c.l.b16 %v684
      %v1664 = vunpack.c.h.b16 %v684
      %v1665 = vunpack.c.l.b16 %v685
      %v1666 = vunpack.c.l.b16 %v686
      %v1667 = vunpack.c.h.b16 %v686
      %v1668 = vunpack.c.l.b16 %v687
      %v1669 = vunpack.c.h.b16 %v687
      %v1670 = vunpack.c.l.b16 %v688
      %v1671 = vunpack.c.h.b16 %v688
      %v1672 = vunpack.c.l.b16 %v689
      %v1673 = vunpack.c.h.b16 %v689
      %v1674 = vunpack.c.l.b16 %v690
      %v1675 = vunpack.c.l.b16 %v691
      %v1676 = vunpack.c.h.b16 %v691
      %v1677 = vunpack.c.l.b16 %v692
      %v1678 = vunpack.c.h.b16 %v692
      %v1679 = vunpack.c.l.b16 %v693
      %v1680 = vunpack.c.h.b16 %v693
      %v1681 = vunpack.c.l.b16 %v694
      %v1682 = vunpack.c.h.b16 %v694
      %v1683 = vunpack.c.l.b16 %v695
      %v1684 = vunpack.c.l.b16 %v696
      %v1685 = vunpack.c.h.b16 %v696
      %v1686 = vunpack.c.l.b16 %v697
      %v1687 = vunpack.c.h.b16 %v697
      %v1688 = vunpack.c.l.b16 %v698
      %v1689 = vunpack.c.h.b16 %v698
      %v1690 = vunpack.c.l.b16 %v699
      %v1691 = vunpack.c.h.b16 %v699
      %v1692 = vunpack.c.l.b16 %v700
      %v1693 = vunpack.c.l.b16 %v701
      %v1694 = vunpack.c.h.b16 %v701
      %v1695 = vunpack.c.l.b16 %v702
      %v1696 = vunpack.c.h.b16 %v702
      %v1697 = vunpack.c.l.b16 %v703
      %v1698 = vunpack.c.h.b16 %v703
      %v1699 = vunpack.c.l.b16 %v704
      %v1700 = vunpack.c.h.b16 %v704
      %v1701 = vunpack.c.l.b16 %v705
      %v1702 = vunpack.c.l.b16 %v706
      %v1703 = vunpack.c.h.b16 %v706
      %v1704 = vunpack.c.l.b16 %v707
      %v1705 = vunpack.c.h.b16 %v707
      %v1706 = vunpack.c.l.b16 %v708
      %v1707 = vunpack.c.h.b16 %v708
      %v1708 = vunpack.c.l.b16 %v709
      %v1709 = vunpack.c.h.b16 %v709
      %v1710 = vunpack.c.l.b16 %v710
      %v1711 = vunpack.c.l.b16 %v711
      %v1712 = vunpack.c.h.b16 %v711
      %v1713 = vunpack.c.l.b16 %v712
      %v1714 = vunpack.c.h.b16 %v712
      %v1715 = vunpack.c.l.b16 %v713
      %v1716 = vunpack.c.h.b16 %v713
      %v1717 = vunpack.c.l.b16 %v714
      %v1718 = vunpack.c.h.b16 %v714
      %v1719 = vunpack.c.l.b16 %v715
      %v1720 = vunpack.c.l.b16 %v716
      %v1721 = vunpack.c.h.b16 %v716
      %v1722 = vunpack.c.l.b16 %v717
      %v1723 = vunpack.c.h.b16 %v717
      %v1724 = vunpack.c.l.b16 %v718
      %v1725 = vunpack.c.h.b16 %v718
      %v1726 = vunpack.c.l.b16 %v719
      %v1727 = vunpack.c.h.b16 %v719
      %v1728 = vunpack.c.l.b16 %v720
      %v1729 = vunpack.c.l.b16 %v721
      %v1730 = vunpack.c.h.b16 %v721
      %v1731 = vunpack.c.l.b16 %v722
      %v1732 = vunpack.c.h.b16 %v722
      %v1733 = vunpack.c.l.b16 %v723
      %v1734 = vunpack.c.h.b16 %v723
      %v1735 = vunpack.c.l.b16 %v724
      %v1736 = vunpack.c.h.b16 %v724
      %v1737 = vunpack.c.l.b16 %v725
      %v1738 = vunpack.c.l.b16 %v726
      %v1739 = vunpack.c.h.b16 %v726
      %v1740 = vunpack.c.l.b16 %v727
      %v1741 = vunpack.c.h.b16 %v727
      %v1742 = vunpack.c.l.b16 %v728
      %v1743 = vunpack.c.h.b16 %v728
      %v1744 = vunpack.c.l.b16 %v729
      %v1745 = vunpack.c.h.b16 %v729
      %v1746 = vunpack.c.l.b16 %v730
      %v1747 = vunpack.c.l.b16 %v731
      %v1748 = vunpack.c.h.b16 %v731
      %v1749 = vunpack.c.l.b16 %v732
      %v1750 = vunpack.c.h.b16 %v732
      %v1751 = vunpack.c.l.b16 %v733
      %v1752 = vunpack.c.h.b16 %v733
      %v1753 = vunpack.c.l.b16 %v734
      %v1754 = vunpack.c.h.b16 %v734
      %v1755 = vunpack.c.l.b16 %v735
      %v1756 = vunpack.c.l.b16 %v736
      %v1757 = vunpack.c.h.b16 %v736
      %v1758 = vunpack.c.l.b16 %v737
      %v1759 = vunpack.c.h.b16 %v737
      %v1760 = vunpack.c.l.b16 %v738
      %v1761 = vunpack.c.h.b16 %v738
      %v1762 = vunpack.c.l.b16 %v739
      %v1763 = vunpack.c.h.b16 %v739
      %v1764 = vunpack.c.l.b16 %v740
      %v1765 = vunpack.c.l.b16 %v741
      %v1766 = vunpack.c.h.b16 %v741
      %v1767 = vunpack.c.l.b16 %v742
      %v1768 = vunpack.c.h.b16 %v742
      %v1769 = vunpack.c.l.b16 %v743
      %v1770 = vunpack.c.h.b16 %v743
      %v1771 = vunpack.c.l.b16 %v744
      %v1772 = vunpack.c.h.b16 %v744
      %v1773 = vunpack.c.l.b16 %v745
      %v1774 = vunpack.c.l.b16 %v746
      %v1775 = vunpack.c.h.b16 %v746
      %v1776 = vunpack.c.l.b16 %v747
      %v1777 = vunpack.c.h.b16 %v747
      %v1778 = vunpack.c.l.b16 %v748
      %v1779 = vunpack.c.h.b16 %v748
      %v1780 = vunpack.c.l.b16 %v749
      %v1781 = vunpack.c.h.b16 %v749
      %v1782 = vunpack.c.l.b16 %v750
      %v1783 = vunpack.c.l.b16 %v751
      %v1784 = vunpack.c.h.b16 %v751
      %v1785 = vunpack.c.l.b16 %v752
      %v1786 = vunpack.c.h.b16 %v752
      %v1787 = vunpack.c.l.b16 %v753
      %v1788 = vunpack.c.h.b16 %v753
      %v1789 = vunpack.c.l.b16 %v754
      %v1790 = vunpack.c.h.b16 %v754
      %v1791 = vunpack.c.l.b16 %v755
      %v1792 = vunpack.c.l.b16 %v756
      %v1793 = vunpack.c.h.b16 %v756
      %v1794 = vunpack.c.l.b16 %v757
      %v1795 = vunpack.c.h.b16 %v757
      %v1796 = vunpack.c.l.b16 %v758
      %v1797 = vunpack.c.h.b16 %v758
      %v1798 = vunpack.c.l.b16 %v759
      %v1799 = vunpack.c.h.b16 %v759
      %v1800 = vunpack.c.l.b16 %v760
      %v1801 = vpack.c.b16 %v1234, %v1225
      %v1802 = vpack.c.b16 %v1235, %v1226
      %v1803 = vpack.c.b16 %v1236, %v1227
      %v1804 = vpack.c.b16 %v1237, %v1228
      %v1805 = vpack.c.b16 %v1238, %v1229
      %v1806 = vpack.c.b16 %v1239, %v1230
      %v1807 = vpack.c.b16 %v1240, %v1231
      %v1808 = vpack.c.b16 %v1241, %v1232
      %v1809 = vpack.c.b16 %v1242, %v1233
      %v1810 = vpack.c.b16 %v1252, %v1243
      %v1811 = vpack.c.b16 %v1253, %v1244
      %v1812 = vpack.c.b16 %v1254, %v1245
      %v1813 = vpack.c.b16 %v1255, %v1246
      %v1814 = vpack.c.b16 %v1256, %v1247
      %v1815 = vpack.c.b16 %v1257, %v1248
      %v1816 = vpack.c.b16 %v1258, %v1249
      %v1817 = vpack.c.b16 %v1259, %v1250
      %v1818 = vpack.c.b16 %v1260, %v1251
      %v1819 = vpack.c.b16 %v1270, %v1261
      %v1820 = vpack.c.b16 %v1271, %v1262
      %v1821 = vpack.c.b16 %v1272, %v1263
      %v1822 = vpack.c.b16 %v1273, %v1264
      %v1823 = vpack.c.b16 %v1274, %v1265
      %v1824 = vpack.c.b16 %v1275, %v1266
      %v1825 = vpack.c.b16 %v1276, %v1267
      %v1826 = vpack.c.b16 %v1277, %v1268
      %v1827 = vpack.c.b16 %v1278, %v1269
      %v1828 = vpack.c.b16 %v1288, %v1279
      %v1829 = vpack.c.b16 %v1289, %v1280
      %v1830 = vpack.c.b16 %v1290, %v1281
      %v1831 = vpack.c.b16 %v1291, %v1282
      %v1832 = vpack.c.b16 %v1292, %v1283
      %v1833 = vpack.c.b16 %v1293, %v1284
      %v1834 = vpack.c.b16 %v1294, %v1285
      %v1835 = vpack.c.b16 %v1295, %v1286
      %v1836 = vpack.c.b16 %v1296, %v1287
      %v1837 = vpack.c.b16 %v1306, %v1297
      %v1838 = vpack.c.b16 %v1307, %v1298
      %v1839 = vpack.c.b16 %v1308, %v1299
      %v1840 = vpack.c.b16 %v1309, %v1300
      %v1841 = vpack.c.b16 %v1310, %v1301
      %v1842 = vpack.c.b16 %v1311, %v1302
      %v1843 = vpack.c.b16 %v1312, %v1303
      %v1844 = vpack.c.b16 %v1313, %v1304
      %v1845 = vpack.c.b16 %v1314, %v1305
      %v1846 = vpack.c.b16 %v1324, %v1315
      %v1847 = vpack.c.b16 %v1325, %v1316
      %v1848 = vpack.c.b16 %v1326, %v1317
      %v1849 = vpack.c.b16 %v1327, %v1318
      %v1850 = vpack.c.b16 %v1328, %v1319
      %v1851 = vpack.c.b16 %v1329, %v1320
      %v1852 = vpack.c.b16 %v1330, %v1321
      %v1853 = vpack.c.b16 %v1331, %v1322
      %v1854 = vpack.c.b16 %v1332, %v1323
      %v1855 = vpack.c.b16 %v1342, %v1333
      %v1856 = vpack.c.b16 %v1343, %v1334
      %v1857 = vpack.c.b16 %v1344, %v1335
      %v1858 = vpack.c.b16 %v1345, %v1336
      %v1859 = vpack.c.b16 %v1346, %v1337
      %v1860 = vpack.c.b16 %v1347, %v1338
      %v1861 = vpack.c.b16 %v1348, %v1339
      %v1862 = vpack.c.b16 %v1349, %v1340
      %v1863 = vpack.c.b16 %v1350, %v1341
      %v1864 = vpack.c.b16 %v1360, %v1351
      %v1865 = vpack.c.b16 %v1361, %v1352
      %v1866 = vpack.c.b16 %v1362, %v1353
      %v1867 = vpack.c.b16 %v1363, %v1354
      %v1868 = vpack.c.b16 %v1364, %v1355
      %v1869 = vpack.c.b16 %v1365, %v1356
      %v1870 = vpack.c.b16 %v1366, %v1357
      %v1871 = vpack.c.b16 %v1367, %v1358
      %v1872 = vpack.c.b16 %v1368, %v1359
      %v1873 = vpack.c.b16 %v1378, %v1369
      %v1874 = vpack.c.b16 %v1379, %v1370
      %v1875 = vpack.c.b16 %v1380, %v1371
      %v1876 = vpack.c.b16 %v1381, %v1372
      %v1877 = vpack.c.b16 %v1382, %v1373
      %v1878 = vpack.c.b16 %v1383, %v1374
      %v1879 = vpack.c.b16 %v1384, %v1375
      %v1880 = vpack.c.b16 %v1385, %v1376
      %v1881 = vpack.c.b16 %v1386, %v1377
      %v1882 = vpack.c.b16 %v1396, %v1387
      %v1883 = vpack.c.b16 %v1397, %v1388
      %v1884 = vpack.c.b16 %v1398, %v1389
      %v1885 = vpack.c.b16 %v1399, %v1390
      %v1886 = vpack.c.b16 %v1400, %v1391
      %v1887 = vpack.c.b16 %v1401, %v1392
      %v1888 = vpack.c.b16 %v1402, %v1393
      %v1889 = vpack.c.b16 %v1403, %v1394
      %v1890 = vpack.c.b16 %v1404, %v1395
      %v1891 = vpack.c.b16 %v1414, %v1405
      %v1892 = vpack.c.b16 %v1415, %v1406
      %v1893 = vpack.c.b16 %v1416, %v1407
      %v1894 = vpack.c.b16 %v1417, %v1408
      %v1895 = vpack.c.b16 %v1418, %v1409
      %v1896 = vpack.c.b16 %v1419, %v1410
      %v1897 = vpack.c.b16 %v1420, %v1411
      %v1898 = vpack.c.b16 %v1421, %v1412
      %v1899 = vpack.c.b16 %v1422, %v1413
      %v1900 = vpack.c.b16 %v1432, %v1423
      %v1901 = vpack.c.b16 %v1433, %v1424
      %v1902 = vpack.c.b16 %v1434, %v1425
      %v1903 = vpack.c.b16 %v1435, %v1426
      %v1904 = vpack.c.b16 %v1436, %v1427
      %v1905 = vpack.c.b16 %v1437, %v1428
      %v1906 = vpack.c.b16 %v1438, %v1429
      %v1907 = vpack.c.b16 %v1439, %v1430
      %v1908 = vpack.c.b16 %v1440, %v1431
      %v1909 = vpack.c.b16 %v1450, %v1441
      %v1910 = vpack.c.b16 %v1451, %v1442
      %v1911 = vpack.c.b16 %v1452, %v1443
      %v1912 = vpack.c.b16 %v1453, %v1444
      %v1913 = vpack.c.b16 %v1454, %v1445
      %v1914 = vpack.c.b16 %v1455, %v1446
      %v1915 = vpack.c.b16 %v1456, %v1447
      %v1916 = vpack.c.b16 %v1457, %v1448
      %v1917 = vpack.c.b16 %v1458, %v1449
      %v1918 = vpack.c.b16 %v1468, %v1459
      %v1919 = vpack.c.b16 %v1469, %v1460
      %v1920 = vpack.c.b16 %v1470, %v1461
      %v1921 = vpack.c.b16 %v1471, %v1462
      %v1922 = vpack.c.b16 %v1472, %v1463
      %v1923 = vpack.c.b16 %v1473, %v1464
      %v1924 = vpack.c.b16 %v1474, %v1465
      %v1925 = vpack.c.b16 %v1475, %v1466
      %v1926 = vpack.c.b16 %v1476, %v1467
      %v1927 = vpack.c.b16 %v1486, %v1477
      %v1928 = vpack.c.b16 %v1487, %v1478
      %v1929 = vpack.c.b16 %v1488, %v1479
      %v1930 = vpack.c.b16 %v1489, %v1480
      %v1931 = vpack.c.b16 %v1490, %v1481
      %v1932 = vpack.c.b16 %v1491, %v1482
      %v1933 = vpack.c.b16 %v1492, %v1483
      %v1934 = vpack.c.b16 %v1493, %v1484
      %v1935 = vpack.c.b16 %v1494, %v1485
      %v1936 = vpack.c.b16 %v1504, %v1495
      %v1937 = vpack.c.b16 %v1505, %v1496
      %v1938 = vpack.c.b16 %v1506, %v1497
      %v1939 = vpack.c.b16 %v1507, %v1498
      %v1940 = vpack.c.b16 %v1508, %v1499
      %v1941 = vpack.c.b16 %v1509, %v1500
      %v1942 = vpack.c.b16 %v1510, %v1501
      %v1943 = vpack.c.b16 %v1511, %v1502
      %v1944 = vpack.c.b16 %v1512, %v1503
      %v1945 = vpack.c.b16 %v1522, %v1513
      %v1946 = vpack.c.b16 %v1523, %v1514
      %v1947 = vpack.c.b16 %v1524, %v1515
      %v1948 = vpack.c.b16 %v1525, %v1516
      %v1949 = vpack.c.b16 %v1526, %v1517
      %v1950 = vpack.c.b16 %v1527, %v1518
      %v1951 = vpack.c.b16 %v1528, %v1519
      %v1952 = vpack.c.b16 %v1529, %v1520
      %v1953 = vpack.c.b16 %v1530, %v1521
      %v1954 = vpack.c.b16 %v1540, %v1531
      %v1955 = vpack.c.b16 %v1541, %v1532
      %v1956 = vpack.c.b16 %v1542, %v1533
      %v1957 = vpack.c.b16 %v1543, %v1534
      %v1958 = vpack.c.b16 %v1544, %v1535
      %v1959 = vpack.c.b16 %v1545, %v1536
      %v1960 = vpack.c.b16 %v1546, %v1537
      %v1961 = vpack.c.b16 %v1547, %v1538
      %v1962 = vpack.c.b16 %v1548, %v1539
      %v1963 = vpack.c.b16 %v1558, %v1549
      %v1964 = vpack.c.b16 %v1559, %v1550
      %v1965 = vpack.c.b16 %v1560, %v1551
      %v1966 = vpack.c.b16 %v1561, %v1552
      %v1967 = vpack.c.b16 %v1562, %v1553
      %v1968 = vpack.c.b16 %v1563, %v1554
      %v1969 = vpack.c.b16 %v1564, %v1555
      %v1970 = vpack.c.b16 %v1565, %v1556
      %v1971 = vpack.c.b16 %v1566, %v1557
      %v1972 = vpack.c.b16 %v1576, %v1567
      %v1973 = vpack.c.b16 %v1577, %v1568
      %v1974 = vpack.c.b16 %v1578, %v1569
      %v1975 = vpack.c.b16 %v1579, %v1570
      %v1976 = vpack.c.b16 %v1580, %v1571
      %v1977 = vpack.c.b16 %v1581, %v1572
      %v1978 = vpack.c.b16 %v1582, %v1573
      %v1979 = vpack.c.b16 %v1583, %v1574
      %v1980 = vpack.c.b16 %v1584, %v1575
      %v1981 = vpack.c.b16 %v1594, %v1585
      %v1982 = vpack.c.b16 %v1595, %v1586
      %v1983 = vpack.c.b16 %v1596, %v1587
      %v1984 = vpack.c.b16 %v1597, %v1588
      %v1985 = vpack.c.b16 %v1598, %v1589
      %v1986 = vpack.c.b16 %v1599, %v1590
      %v1987 = vpack.c.b16 %v1600, %v1591
      %v1988 = vpack.c.b16 %v1601, %v1592
      %v1989 = vpack.c.b16 %v1602, %v1593
      %v1990 = vpack.c.b16 %v1612, %v1603
      %v1991 = vpack.c.b16 %v1613, %v1604
      %v1992 = vpack.c.b16 %v1614, %v1605
      %v1993 = vpack.c.b16 %v1615, %v1606
      %v1994 = vpack.c.b16 %v1616, %v1607
      %v1995 = vpack.c.b16 %v1617, %v1608
      %v1996 = vpack.c.b16 %v1618, %v1609
      %v1997 = vpack.c.b16 %v1619, %v1610
      %v1998 = vpack.c.b16 %v1620, %v1611
      %v1999 = vpack.c.b16 %v1630, %v1621
      %v2000 = vpack.c.b16 %v1631, %v1622
      %v2001 = vpack.c.b16 %v1632, %v1623
      %v2002 = vpack.c.b16 %v1633, %v1624
      %v2003 = vpack.c.b16 %v1634, %v1625
      %v2004 = vpack.c.b16 %v1635, %v1626
      %v2005 = vpack.c.b16 %v1636, %v1627
      %v2006 = vpack.c.b16 %v1637, %v1628
      %v2007 = vpack.c.b16 %v1638, %v1629
      %v2008 = vpack.c.b16 %v1648, %v1639
      %v2009 = vpack.c.b16 %v1649, %v1640
      %v2010 = vpack.c.b16 %v1650, %v1641
      %v2011 = vpack.c.b16 %v1651, %v1642
      %v2012 = vpack.c.b16 %v1652, %v1643
      %v2013 = vpack.c.b16 %v1653, %v1644
      %v2014 = vpack.c.b16 %v1654, %v1645
      %v2015 = vpack.c.b16 %v1655, %v1646
      %v2016 = vpack.c.b16 %v1656, %v1647
      %v2017 = vpack.c.b16 %v1666, %v1657
      %v2018 = vpack.c.b16 %v1667, %v1658
      %v2019 = vpack.c.b16 %v1668, %v1659
      %v2020 = vpack.c.b16 %v1669, %v1660
      %v2021 = vpack.c.b16 %v1670, %v1661
      %v2022 = vpack.c.b16 %v1671, %v1662
      %v2023 = vpack.c.b16 %v1672, %v1663
      %v2024 = vpack.c.b16 %v1673, %v1664
      %v2025 = vpack.c.b16 %v1674, %v1665
      %v2026 = vpack.c.b16 %v1684, %v1675
      %v2027 = vpack.c.b16 %v1685, %v1676
      %v2028 = vpack.c.b16 %v1686, %v1677
      %v2029 = vpack.c.b16 %v1687, %v1678
      %v2030 = vpack.c.b16 %v1688, %v1679
      %v2031 = vpack.c.b16 %v1689, %v1680
      %v2032 = vpack.c.b16 %v1690, %v1681
      %v2033 = vpack.c.b16 %v1691, %v1682
      %v2034 = vpack.c.b16 %v1692, %v1683
      %v2035 = vpack.c.b16 %v1702, %v1693
      %v2036 = vpack.c.b16 %v1703, %v1694
      %v2037 = vpack.c.b16 %v1704, %v1695
      %v2038 = vpack.c.b16 %v1705, %v1696
      %v2039 = vpack.c.b16 %v1706, %v1697
      %v2040 = vpack.c.b16 %v1707, %v1698
      %v2041 = vpack.c.b16 %v1708, %v1699
      %v2042 = vpack.c.b16 %v1709, %v1700
      %v2043 = vpack.c.b16 %v1710, %v1701
      %v2044 = vpack.c.b16 %v1720, %v1711
      %v2045 = vpack.c.b16 %v1721, %v1712
      %v2046 = vpack.c.b16 %v1722, %v1713
      %v2047 = vpack.c.b16 %v1723, %v1714
      %v2048 = vpack.c.b16 %v1724, %v1715
      %v2049 = vpack.c.b16 %v1725, %v1716
      %v2050 = vpack.c.b16 %v1726, %v1717
      %v2051 = vpack.c.b16 %v1727, %v1718
      %v2052 = vpack.c.b16 %v1728, %v1719
      %v2053 = vpack.c.b16 %v1738, %v1729
      %v2054 = vpack.c.b16 %v1739, %v1730
      %v2055 = vpack.c.b16 %v1740, %v1731
      %v2056 = vpack.c.b16 %v1741, %v1732
      %v2057 = vpack.c.b16 %v1742, %v1733
      %v2058 = vpack.c.b16 %v1743, %v1734
      %v2059 = vpack.c.b16 %v1744, %v1735
      %v2060 = vpack.c.b16 %v1745, %v1736
      %v2061 = vpack.c.b16 %v1746, %v1737
      %v2062 = vpack.c.b16 %v1756, %v1747
      %v2063 = vpack.c.b16 %v1757, %v1748
      %v2064 = vpack.c.b16 %v1758, %v1749
      %v2065 = vpack.c.b16 %v1759, %v1750
      %v2066 = vpack.c.b16 %v1760, %v1751
      %v2067 = vpack.c.b16 %v1761, %v1752
      %v2068 = vpack.c.b16 %v1762, %v1753
      %v2069 = vpack.c.b16 %v1763, %v1754
      %v2070 = vpack.c.b16 %v1764, %v1755
      %v2071 = vpack.c.b16 %v1774, %v1765
      %v2072 = vpack.c.b16 %v1775, %v1766
      %v2073 = vpack.c.b16 %v1776, %v1767
      %v2074 = vpack.c.b16 %v1777, %v1768
      %v2075 = vpack.c.b16 %v1778, %v1769
      %v2076 = vpack.c.b16 %v1779, %v1770
      %v2077 = vpack.c.b16 %v1780, %v1771
      %v2078 = vpack.c.b16 %v1781, %v1772
      %v2079 = vpack.c.b16 %v1782, %v1773
      %v2080 = vpack.c.b16 %v1792, %v1783
      %v2081 = vpack.c.b16 %v1793, %v1784
      %v2082 = vpack.c.b16 %v1794, %v1785
      %v2083 = vpack.c.b16 %v1795, %v1786
      %v2084 = vpack.c.b16 %v1796, %v1787
      %v2085 = vpack.c.b16 %v1797, %v1788
      %v2086 = vpack.c.b16 %v1798, %v1789
      %v2087 = vpack.c.b16 %v1799, %v1790
      %v2088 = vpack.c.b16 %v1800, %v1791
      %v2521 = vunpack.c.l.b16 %v761
      %v2522 = vunpack.c.l.b16 %v762
      %v2523 = vunpack.c.l.b16 %v763
      %v2524 = vunpack.c.l.b16 %v764
      %v2525 = vunpack.c.l.b16 %v765
      %v2526 = vunpack.c.l.b16 %v766
      %v2527 = vunpack.c.l.b16 %v767
      %v2528 = vunpack.c.l.b16 %v768
      %v2529 = vunpack.c.l.b16 %v769
      %v2530 = vunpack.c.l.b16 %v770
      %v2531 = vunpack.c.l.b16 %v771
      %v2532 = vunpack.c.l.b16 %v772
      %v2533 = vunpack.c.l.b16 %v773
      %v2534 = vunpack.c.l.b16 %v774
      %v2535 = vunpack.c.l.b16 %v775
      %v2536 = vunpack.c.l.b16 %v776
      %v2537 = vunpack.c.l.b16 %v777
      %v2538 = vunpack.c.l.b16 %v778
      %v2539 = vunpack.c.l.b16 %v779
      %v2540 = vunpack.c.l.b16 %v780
      %v2541 = vunpack.c.l.b16 %v781
      %v2542 = vunpack.c.l.b16 %v782
      %v2543 = vunpack.c.l.b16 %v783
      %v2544 = vunpack.c.l.b16 %v784
      %v2545 = vunpack.c.l.b16 %v785
      %v2546 = vunpack.c.l.b16 %v786
      %v2547 = vunpack.c.l.b16 %v787
      %v2548 = vunpack.c.l.b16 %v788
      %v2549 = vunpack.c.l.b16 %v789
      %v2550 = vunpack.c.l.b16 %v790
      %v2551 = vunpack.c.l.b16 %v791
      %v2552 = vunpack.c.l.b16 %v792
      %v2553 = vunpack.c.l.b16 %v793
      %v2554 = vunpack.c.l.b16 %v794
      %v2555 = vunpack.c.l.b16 %v795
      %v2556 = vunpack.c.l.b16 %v796
      %v2557 = vunpack.c.l.b16 %v797
      %v2558 = vunpack.c.l.b16 %v798
      %v2559 = vunpack.c.l.b16 %v799
      %v2560 = vunpack.c.l.b16 %v800
      %v2561 = vunpack.c.l.b16 %v801
      %v2562 = vunpack.c.l.b16 %v802
      %v2563 = vunpack.c.l.b16 %v803
      %v2564 = vunpack.c.l.b16 %v804
      %v2565 = vunpack.c.l.b16 %v805
      %v2566 = vunpack.c.l.b16 %v806
      %v2567 = vunpack.c.l.b16 %v807
      %v2568 = vunpack.c.l.b16 %v808
      %v2569 = vunpack.c.l.b16 %v809
      %v2570 = vunpack.c.l.b16 %v810
      %v2571 = vunpack.c.l.b16 %v811
      %v2572 = vunpack.c.l.b16 %v812
      %v2573 = vunpack.c.l.b16 %v813
      %v2574 = vunpack.c.l.b16 %v814
      %v2575 = vunpack.c.l.b16 %v815
      %v2576 = vunpack.c.l.b16 %v816
      %v2577 = vunpack.c.l.b16 %v817
      %v2578 = vunpack.c.l.b16 %v818
      %v2579 = vunpack.c.l.b16 %v819
      %v2580 = vunpack.c.l.b16 %v820
      %v2581 = vunpack.c.l.b16 %v821
      %v2582 = vunpack.c.l.b16 %v822
      %v2583 = vunpack.c.l.b16 %v823
      %v2584 = vunpack.c.l.b16 %v824
      %v2585 = vunpack.c.l.b16 %v825
      %v2586 = vunpack.c.l.b16 %v826
      %v2587 = vunpack.c.l.b16 %v827
      %v2588 = vunpack.c.l.b16 %v828
      %v2589 = vunpack.c.l.b16 %v829
      %v2590 = vunpack.c.l.b16 %v830
      %v2591 = vunpack.c.l.b16 %v831
      %v2592 = vunpack.c.l.b16 %v832
      %v2593 = vunpack.c.l.b16 %v833
      %v2594 = vunpack.c.l.b16 %v834
      %v2595 = vunpack.c.l.b16 %v835
      %v2596 = vunpack.c.l.b16 %v836
      %v2597 = vunpack.c.l.b16 %v837
      %v2598 = vunpack.c.l.b16 %v838
      %v2599 = vunpack.c.l.b16 %v839
      %v2600 = vunpack.c.l.b16 %v840
      %v2601 = vunpack.c.l.b16 %v841
      %v2602 = vunpack.c.l.b16 %v842
      %v2603 = vunpack.c.l.b16 %v843
      %v2604 = vunpack.c.l.b16 %v844
      %v2605 = vunpack.c.l.b16 %v845
      %v2606 = vunpack.c.l.b16 %v846
      %v2607 = vunpack.c.l.b16 %v847
      %v2608 = vunpack.c.l.b16 %v848
      %v2609 = vunpack.c.l.b16 %v849
      %v2610 = vunpack.c.l.b16 %v850
      %v2611 = vunpack.c.l.b16 %v851
      %v2612 = vunpack.c.l.b16 %v852
      %v2613 = vunpack.c.l.b16 %v853
      %v2614 = vunpack.c.l.b16 %v854
      %v2615 = vunpack.c.l.b16 %v855
      %v2616 = vunpack.c.l.b16 %v856
      %v2617 = vunpack.c.l.b16 %v857
      %v2618 = vunpack.c.l.b16 %v858
      %v2619 = vunpack.c.l.b16 %v859
      %v2620 = vunpack.c.l.b16 %v860
      %v2621 = vunpack.c.l.b16 %v861
      %v2622 = vunpack.c.l.b16 %v862
      %v2623 = vunpack.c.l.b16 %v863
      %v2624 = vunpack.c.l.b16 %v864
      %v2625 = vunpack.c.l.b16 %v865
      %v2626 = vunpack.c.l.b16 %v866
      %v2627 = vunpack.c.l.b16 %v867
      %v2628 = vunpack.c.l.b16 %v868
      %v2629 = vunpack.c.l.b16 %v869
      %v2630 = vunpack.c.l.b16 %v870
      %v2631 = vunpack.c.l.b16 %v871
      %v2632 = vunpack.c.l.b16 %v872
      %v2633 = vunpack.c.l.b16 %v873
      %v2634 = vunpack.c.l.b16 %v874
      %v2635 = vunpack.c.l.b16 %v875
      %v2636 = vunpack.c.l.b16 %v876
      %v2637 = vunpack.c.l.b16 %v877
      %v2638 = vunpack.c.l.b16 %v878
      %v2639 = vunpack.c.l.b16 %v879
      %v2640 = vunpack.c.l.b16 %v880
      %v2641 = vunpack.c.l.b16 %v881
      %v2642 = vunpack.c.l.b16 %v882
      %v2643 = vunpack.c.l.b16 %v883
      %v2644 = vunpack.c.l.b16 %v884
      %v2645 = vunpack.c.l.b16 %v885
      %v2646 = vunpack.c.l.b16 %v886
      %v2647 = vunpack.c.l.b16 %v887
      %v2648 = vunpack.c.l.b16 %v888
      %v2649 = vunpack.c.l.b16 %v889
      %v2650 = vunpack.c.l.b16 %v890
      %v2651 = vunpack.c.l.b16 %v891
      %v2652 = vunpack.c.l.b16 %v892
      %v2653 = vunpack.c.l.b16 %v893
      %v2654 = vunpack.c.l.b16 %v894
      %v2655 = vunpack.c.l.b16 %v895
      %v2656 = vunpack.c.l.b16 %v896
      %v2657 = vunpack.c.l.b16 %v897
      %v2658 = vunpack.c.l.b16 %v898
      %v2659 = vunpack.c.l.b16 %v899
      %v2660 = vunpack.c.l.b16 %v900
      %v2661 = vunpack.c.l.b16 %v901
      %v2662 = vunpack.c.l.b16 %v902
      %v2663 = vunpack.c.l.b16 %v903
      %v2664 = vunpack.c.l.b16 %v904
      %v2665 = vpack.c.b16 %v2522, %v2521
      %v2666 = vpack.c.b16 %v2524, %v2523
      %v2667 = vpack.c.b16 %v2526, %v2525
      %v2668 = vpack.c.b16 %v2528, %v2527
      %v2669 = vpack.c.b16 %v2530, %v2529
      %v2670 = vpack.c.b16 %v2532, %v2531
      %v2671 = vpack.c.b16 %v2534, %v2533
      %v2672 = vpack.c.b16 %v2536, %v2535
      %v2673 = vpack.c.b16 %v2538, %v2537
      %v2674 = vpack.c.b16 %v2540, %v2539
      %v2675 = vpack.c.b16 %v2542, %v2541
      %v2676 = vpack.c.b16 %v2544, %v2543
      %v2677 = vpack.c.b16 %v2546, %v2545
      %v2678 = vpack.c.b16 %v2548, %v2547
      %v2679 = vpack.c.b16 %v2550, %v2549
      %v2680 = vpack.c.b16 %v2552, %v2551
      %v2681 = vpack.c.b16 %v2554, %v2553
      %v2682 = vpack.c.b16 %v2556, %v2555
      %v2683 = vpack.c.b16 %v2558, %v2557
      %v2684 = vpack.c.b16 %v2560, %v2559
      %v2685 = vpack.c.b16 %v2562, %v2561
      %v2686 = vpack.c.b16 %v2564, %v2563
      %v2687 = vpack.c.b16 %v2566, %v2565
      %v2688 = vpack.c.b16 %v2568, %v2567
      %v2689 = vpack.c.b16 %v2570, %v2569
      %v2690 = vpack.c.b16 %v2572, %v2571
      %v2691 = vpack.c.b16 %v2574, %v2573
      %v2692 = vpack.c.b16 %v2576, %v2575
      %v2693 = vpack.c.b16 %v2578, %v2577
      %v2694 = vpack.c.b16 %v2580, %v2579
      %v2695 = vpack.c.b16 %v2582, %v2581
      %v2696 = vpack.c.b16 %v2584, %v2583
      %v2697 = vpack.c.b16 %v2586, %v2585
      %v2698 = vpack.c.b16 %v2588, %v2587
      %v2699 = vpack.c.b16 %v2590, %v2589
      %v2700 = vpack.c.b16 %v2592, %v2591
      %v2701 = vpack.c.b16 %v2594, %v2593
      %v2702 = vpack.c.b16 %v2596, %v2595
      %v2703 = vpack.c.b16 %v2598, %v2597
      %v2704 = vpack.c.b16 %v2600, %v2599
      %v2705 = vpack.c.b16 %v2602, %v2601
      %v2706 = vpack.c.b16 %v2604, %v2603
      %v2707 = vpack.c.b16 %v2606, %v2605
      %v2708 = vpack.c.b16 %v2608, %v2607
      %v2709 = vpack.c.b16 %v2610, %v2609
      %v2710 = vpack.c.b16 %v2612, %v2611
      %v2711 = vpack.c.b16 %v2614, %v2613
      %v2712 = vpack.c.b16 %v2616, %v2615
      %v2713 = vpack.c.b16 %v2618, %v2617
      %v2714 = vpack.c.b16 %v2620, %v2619
      %v2715 = vpack.c.b16 %v2622, %v2621
      %v2716 = vpack.c.b16 %v2624, %v2623
      %v2717 = vpack.c.b16 %v2626, %v2625
      %v2718 = vpack.c.b16 %v2628, %v2627
      %v2719 = vpack.c.b16 %v2630, %v2629
      %v2720 = vpack.c.b16 %v2632, %v2631
      %v2721 = vpack.c.b16 %v2634, %v2633
      %v2722 = vpack.c.b16 %v2636, %v2635
      %v2723 = vpack.c.b16 %v2638, %v2637
      %v2724 = vpack.c.b16 %v2640, %v2639
      %v2725 = vpack.c.b16 %v2642, %v2641
      %v2726 = vpack.c.b16 %v2644, %v2643
      %v2727 = vpack.c.b16 %v2646, %v2645
      %v2728 = vpack.c.b16 %v2648, %v2647
      %v2729 = vpack.c.b16 %v2650, %v2649
      %v2730 = vpack.c.b16 %v2652, %v2651
      %v2731 = vpack.c.b16 %v2654, %v2653
      %v2732 = vpack.c.b16 %v2656, %v2655
      %v2733 = vpack.c.b16 %v2658, %v2657
      %v2734 = vpack.c.b16 %v2660, %v2659
      %v2735 = vpack.c.b16 %v2662, %v2661
      %v2736 = vpack.c.b16 %v2664, %v2663
      %2809 = vmatprep.subr.bf16.mxu0 0
      %2810 = vmatpush1.bf16.msra.mxu0 %v2665
      %2811 = vmatprep.subr.bf16.mxu0 0
      %2812 = vmatpush1.bf16.msra.mxu0 %v2666
      %2813 = vmatprep.subr.bf16.mxu0 0
      %2814 = vmatpush1.bf16.msra.mxu0 %v2667
      %2815 = vmatprep.subr.bf16.mxu0 0
      %2816 = vmatpush1.bf16.msra.mxu0 %v2668
      %2817 = vmatprep.subr.bf16.mxu0 0
      %2818 = vmatpush1.bf16.msra.mxu0 %v2669
      %2819 = vmatprep.subr.bf16.mxu0 0
      %2820 = vmatpush1.bf16.msra.mxu0 %v2670
      %2821 = vmatprep.subr.bf16.mxu0 0
      %2822 = vmatpush1.bf16.msra.mxu0 %v2671
      %2823 = vmatprep.subr.bf16.mxu0 0
      %2824 = vmatpush1.bf16.msra.mxu0 %v2672
      %2825 = vmatprep.subr.bf16.mxu0 0
      %2826 = vmatpush1.bf16.msra.mxu0 %v2673
      %2827 = vmatprep.subr.bf16.mxu0 0
      %2828 = vmatpush1.bf16.msra.mxu0 %v2674
      %2829 = vmatprep.subr.bf16.mxu0 0
      %2830 = vmatpush1.bf16.msra.mxu0 %v2675
      %2831 = vmatprep.subr.bf16.mxu0 0
      %2832 = vmatpush1.bf16.msra.mxu0 %v2676
      %2833 = vmatprep.subr.bf16.mxu0 0
      %2834 = vmatpush1.bf16.msra.mxu0 %v2677
      %2835 = vmatprep.subr.bf16.mxu0 0
      %2836 = vmatpush1.bf16.msra.mxu0 %v2678
      %2837 = vmatprep.subr.bf16.mxu0 0
      %2838 = vmatpush1.bf16.msra.mxu0 %v2679
      %2839 = vmatprep.subr.bf16.mxu0 0
      %2840 = vmatpush1.bf16.msra.mxu0 %v2680
      %2841 = vmatprep.mubr.bf16.mxu0 %v1802
      %2842 = vmatmul.mubr.bf16.gmra.mrb[0].mxu0 %v1801
      %v2843 = vpop.f32.mrb[0].mxu0
      %v2844 = vadd.f32 0.0, %v2843
      %v2845 = vpop.f32.mrb[0].mxu0
      %v2846 = vpop.f32.mrb[0].mxu0
      %v2847 = vadd.f32 0.0, %v2846
      %v2848 = vpop.f32.mrb[0].mxu0
      %2849 = vmatprep.mubr.bf16.mxu0 %v1811
      %2850 = vmatmul.mubr.bf16.gmra.mrb[0].mxu0 %v1810
      %v2851 = vpop.f32.mrb[0].mxu0
      %v2852 = vadd.f32 0.0, %v2851
      %v2853 = vpop.f32.mrb[0].mxu0
      %v2854 = vpop.f32.mrb[0].mxu0
      %v2855 = vadd.f32 0.0, %v2854
      %v2856 = vpop.f32.mrb[0].mxu0
      %2857 = vmatprep.mubr.bf16.mxu0 %v1820
      %2858 = vmatmul.mubr.bf16.gmra.mrb[0].mxu0 %v1819
      %v2859 = vpop.f32.mrb[0].mxu0
      %v2860 = vadd.f32 0.0, %v2859
      %v2861 = vpop.f32.mrb[0].mxu0
      %v2862 = vpop.f32.mrb[0].mxu0
      %v2863 = vadd.f32 0.0, %v2862
      %v2864 = vpop.f32.mrb[0].mxu0
      %2865 = vmatprep.mubr.bf16.mxu0 %v1829
      %2866 = vmatmul.mubr.bf16.gmra.mrb[0].mxu0 %v1828
      %v2867 = vpop.f32.mrb[0].mxu0
      %v2868 = vadd.f32 0.0, %v2867
      %v2869 = vpop.f32.mrb[0].mxu0
      %v2870 = vpop.f32.mrb[0].mxu0
      %v2871 = vadd.f32 0.0, %v2870
      %v2872 = vpop.f32.mrb[0].mxu0
      %2873 = vmatprep.mubr.bf16.mxu0 %v1838
      %2874 = vmatmul.mubr.bf16.gmra.mrb[0].mxu0 %v1837
      %v2875 = vpop.f32.mrb[0].mxu0
      %v2876 = vadd.f32 0.0, %v2875
      %v2877 = vpop.f32.mrb[0].mxu0
      %v2878 = vpop.f32.mrb[0].mxu0
      %v2879 = vadd.f32 0.0, %v2878
      %v2880 = vpop.f32.mrb[0].mxu0
      %2881 = vmatprep.mubr.bf16.mxu0 %v1847
      %2882 = vmatmul.mubr.bf16.gmra.mrb[0].mxu0 %v1846
      %v2883 = vpop.f32.mrb[0].mxu0
      %v2884 = vadd.f32 0.0, %v2883
      %v2885 = vpop.f32.mrb[0].mxu0
      %v2886 = vpop.f32.mrb[0].mxu0
      %v2887 = vadd.f32 0.0, %v2886
      %v2888 = vpop.f32.mrb[0].mxu0
      %2889 = vmatprep.mubr.bf16.mxu0 %v1856
      %2890 = vmatmul.mubr.bf16.gmra.mrb[0].mxu0 %v1855
      %v2891 = vpop.f32.mrb[0].mxu0
      %v2892 = vadd.f32 0.0, %v2891
      %v2893 = vpop.f32.mrb[0].mxu0
      %v2894 = vpop.f32.mrb[0].mxu0
      %v2895 = vadd.f32 0.0, %v2894
      %v2896 = vpop.f32.mrb[0].mxu0
      %2897 = vmatprep.mubr.bf16.mxu0 %v1865
      %2898 = vmatmul.mubr.bf16.gmra.mrb[0].mxu0 %v1864
      %v2899 = vpop.f32.mrb[0].mxu0
      %v2900 = vadd.f32 0.0, %v2899
      %v2901 = vpop.f32.mrb[0].mxu0
      %v2902 = vpop.f32.mrb[0].mxu0
      %v2903 = vadd.f32 0.0, %v2902
      %v2904 = vpop.f32.mrb[0].mxu0
      %2905 = vmatprep.mubr.bf16.mxu0 %v1874
      %2906 = vmatmul.mubr.bf16.gmra.mrb[0].mxu0 %v1873
      %v2907 = vpop.f32.mrb[0].mxu0
      %v2908 = vadd.f32 0.0, %v2907
      %v2909 = vpop.f32.mrb[0].mxu0
      %v2910 = vpop.f32.mrb[0].mxu0
      %v2911 = vadd.f32 0.0, %v2910
      %v2912 = vpop.f32.mrb[0].mxu0
      %2913 = vmatprep.mubr.bf16.mxu0 %v1883
      %2914 = vmatmul.mubr.bf16.gmra.mrb[0].mxu0 %v1882
      %v2915 = vpop.f32.mrb[0].mxu0
      %v2916 = vadd.f32 0.0, %v2915
      %v2917 = vpop.f32.mrb[0].mxu0
      %v2918 = vpop.f32.mrb[0].mxu0
      %v2919 = vadd.f32 0.0, %v2918
      %v2920 = vpop.f32.mrb[0].mxu0
      %2921 = vmatprep.mubr.bf16.mxu0 %v1892
      %2922 = vmatmul.mubr.bf16.gmra.mrb[0].mxu0 %v1891
      %v2923 = vpop.f32.mrb[0].mxu0
      %v2924 = vadd.f32 0.0, %v2923
      %v2925 = vpop.f32.mrb[0].mxu0
      %v2926 = vpop.f32.mrb[0].mxu0
      %v2927 = vadd.f32 0.0, %v2926
      %v2928 = vpop.f32.mrb[0].mxu0
      %2929 = vmatprep.mubr.bf16.mxu0 %v1901
      %2930 = vmatmul.mubr.bf16.gmra.mrb[0].mxu0 %v1900
      %v2931 = vpop.f32.mrb[0].mxu0
      %v2932 = vadd.f32 0.0, %v2931
      %v2933 = vpop.f32.mrb[0].mxu0
      %v2934 = vpop.f32.mrb[0].mxu0
      %v2935 = vadd.f32 0.0, %v2934
      %v2936 = vpop.f32.mrb[0].mxu0
      %2937 = vmatprep.mubr.bf16.mxu0 %v1910
      %2938 = vmatmul.mubr.bf16.gmra.mrb[0].mxu0 %v1909
      %v2939 = vpop.f32.mrb[0].mxu0
      %v2940 = vadd.f32 0.0, %v2939
      %v2941 = vpop.f32.mrb[0].mxu0
      %v2942 = vpop.f32.mrb[0].mxu0
      %v2943 = vadd.f32 0.0, %v2942
      %v2944 = vpop.f32.mrb[0].mxu0
      %2945 = vmatprep.mubr.bf16.mxu0 %v1919
      %2946 = vmatmul.mubr.bf16.gmra.mrb[0].mxu0 %v1918
      %v2947 = vpop.f32.mrb[0].mxu0
      %v2948 = vadd.f32 0.0, %v2947
      %v2949 = vpop.f32.mrb[0].mxu0
      %v2950 = vpop.f32.mrb[0].mxu0
      %v2951 = vadd.f32 0.0, %v2950
      %v2952 = vpop.f32.mrb[0].mxu0
      %2953 = vmatprep.mubr.bf16.mxu0 %v1928
      %2954 = vmatmul.mubr.bf16.gmra.mrb[0].mxu0 %v1927
      %v2955 = vpop.f32.mrb[0].mxu0
      %v2956 = vadd.f32 0.0, %v2955
      %v2957 = vpop.f32.mrb[0].mxu0
      %v2958 = vpop.f32.mrb[0].mxu0
      %v2959 = vadd.f32 0.0, %v2958
      %v2960 = vpop.f32.mrb[0].mxu0
      %2961 = vmatprep.mubr.bf16.mxu0 %v1937
      %2962 = vmatmul.mubr.bf16.gmra.mrb[0].mxu0 %v1936
      %v2963 = vpop.f32.mrb[0].mxu0
      %v2964 = vadd.f32 0.0, %v2963
      %v2965 = vpop.f32.mrb[0].mxu0
      %v2966 = vpop.f32.mrb[0].mxu0
      %v2967 = vadd.f32 0.0, %v2966
      %v2968 = vpop.f32.mrb[0].mxu0
      %2969 = vmatprep.mubr.bf16.mxu0 %v1946
      %2970 = vmatmul.mubr.bf16.gmra.mrb[0].mxu0 %v1945
      %v2971 = vpop.f32.mrb[0].mxu0
      %v2972 = vadd.f32 0.0, %v2971
      %v2973 = vpop.f32.mrb[0].mxu0
      %v2974 = vpop.f32.mrb[0].mxu0
      %v2975 = vadd.f32 0.0, %v2974
      %v2976 = vpop.f32.mrb[0].mxu0
      %2977 = vmatprep.mubr.bf16.mxu0 %v1955
      %2978 = vmatmul.mubr.bf16.gmra.mrb[0].mxu0 %v1954
      %v2979 = vpop.f32.mrb[0].mxu0
      %v2980 = vadd.f32 0.0, %v2979
      %v2981 = vpop.f32.mrb[0].mxu0
      %v2982 = vpop.f32.mrb[0].mxu0
      %v2983 = vadd.f32 0.0, %v2982
      %v2984 = vpop.f32.mrb[0].mxu0
      %2985 = vmatprep.mubr.bf16.mxu0 %v1964
      %2986 = vmatmul.mubr.bf16.gmra.mrb[0].mxu0 %v1963
      %v2987 = vpop.f32.mrb[0].mxu0
      %v2988 = vadd.f32 0.0, %v2987
      %v2989 = vpop.f32.mrb[0].mxu0
      %v2990 = vpop.f32.mrb[0].mxu0
      %v2991 = vadd.f32 0.0, %v2990
      %v2992 = vpop.f32.mrb[0].mxu0
      %2993 = vmatprep.mubr.bf16.mxu0 %v1973
      %2994 = vmatmul.mubr.bf16.gmra.mrb[0].mxu0 %v1972
      %v2995 = vpop.f32.mrb[0].mxu0
      %v2996 = vadd.f32 0.0, %v2995
      %v2997 = vpop.f32.mrb[0].mxu0
      %v2998 = vpop.f32.mrb[0].mxu0
      %v2999 = vadd.f32 0.0, %v2998
      %v3000 = vpop.f32.mrb[0].mxu0
      %3001 = vmatprep.mubr.bf16.mxu0 %v1982
      %3002 = vmatmul.mubr.bf16.gmra.mrb[0].mxu0 %v1981
      %v3003 = vpop.f32.mrb[0].mxu0
      %v3004 = vadd.f32 0.0, %v3003
      %v3005 = vpop.f32.mrb[0].mxu0
      %v3006 = vpop.f32.mrb[0].mxu0
      %v3007 = vadd.f32 0.0, %v3006
      %v3008 = vpop.f32.mrb[0].mxu0
      %3009 = vmatprep.mubr.bf16.mxu0 %v1991
      %3010 = vmatmul.mubr.bf16.gmra.mrb[0].mxu0 %v1990
      %v3011 = vpop.f32.mrb[0].mxu0
      %v3012 = vadd.f32 0.0, %v3011
      %v3013 = vpop.f32.mrb[0].mxu0
      %v3014 = vpop.f32.mrb[0].mxu0
      %v3015 = vadd.f32 0.0, %v3014
      %v3016 = vpop.f32.mrb[0].mxu0
      %3017 = vmatprep.mubr.bf16.mxu0 %v2000
      %3018 = vmatmul.mubr.bf16.gmra.mrb[0].mxu0 %v1999
      %v3019 = vpop.f32.mrb[0].mxu0
      %v3020 = vadd.f32 0.0, %v3019
      %v3021 = vpop.f32.mrb[0].mxu0
      %v3022 = vpop.f32.mrb[0].mxu0
      %v3023 = vadd.f32 0.0, %v3022
      %v3024 = vpop.f32.mrb[0].mxu0
      %3025 = vmatprep.mubr.bf16.mxu0 %v2009
      %3026 = vmatmul.mubr.bf16.gmra.mrb[0].mxu0 %v2008
      %v3027 = vpop.f32.mrb[0].mxu0
      %v3028 = vadd.f32 0.0, %v3027
      %v3029 = vpop.f32.mrb[0].mxu0
      %v3030 = vpop.f32.mrb[0].mxu0
      %v3031 = vadd.f32 0.0, %v3030
      %v3032 = vpop.f32.mrb[0].mxu0
      %3033 = vmatprep.mubr.bf16.mxu0 %v2018
      %3034 = vmatmul.mubr.bf16.gmra.mrb[0].mxu0 %v2017
      %v3035 = vpop.f32.mrb[0].mxu0
      %v3036 = vadd.f32 0.0, %v3035
      %v3037 = vpop.f32.mrb[0].mxu0
      %v3038 = vpop.f32.mrb[0].mxu0
      %v3039 = vadd.f32 0.0, %v3038
      %v3040 = vpop.f32.mrb[0].mxu0
      %3041 = vmatprep.mubr.bf16.mxu0 %v2027
      %3042 = vmatmul.mubr.bf16.gmra.mrb[0].mxu0 %v2026
      %v3043 = vpop.f32.mrb[0].mxu0
      %v3044 = vadd.f32 0.0, %v3043
      %v3045 = vpop.f32.mrb[0].mxu0
      %v3046 = vpop.f32.mrb[0].mxu0
      %v3047 = vadd.f32 0.0, %v3046
      %v3048 = vpop.f32.mrb[0].mxu0
      %3049 = vmatprep.mubr.bf16.mxu0 %v2036
      %3050 = vmatmul.mubr.bf16.gmra.mrb[0].mxu0 %v2035
      %v3051 = vpop.f32.mrb[0].mxu0
      %v3052 = vadd.f32 0.0, %v3051
      %v3053 = vpop.f32.mrb[0].mxu0
      %v3054 = vpop.f32.mrb[0].mxu0
      %v3055 = vadd.f32 0.0, %v3054
      %v3056 = vpop.f32.mrb[0].mxu0
      %3057 = vmatprep.mubr.bf16.mxu0 %v2045
      %3058 = vmatmul.mubr.bf16.gmra.mrb[0].mxu0 %v2044
      %v3059 = vpop.f32.mrb[0].mxu0
      %v3060 = vadd.f32 0.0, %v3059
      %v3061 = vpop.f32.mrb[0].mxu0
      %v3062 = vpop.f32.mrb[0].mxu0
      %v3063 = vadd.f32 0.0, %v3062
      %v3064 = vpop.f32.mrb[0].mxu0
      %3065 = vmatprep.mubr.bf16.mxu0 %v2054
      %3066 = vmatmul.mubr.bf16.gmra.mrb[0].mxu0 %v2053
      %v3067 = vpop.f32.mrb[0].mxu0
      %v3068 = vadd.f32 0.0, %v3067
      %v3069 = vpop.f32.mrb[0].mxu0
      %v3070 = vpop.f32.mrb[0].mxu0
      %v3071 = vadd.f32 0.0, %v3070
      %v3072 = vpop.f32.mrb[0].mxu0
      %3073 = vmatprep.mubr.bf16.mxu0 %v2063
      %3074 = vmatmul.mubr.bf16.gmra.mrb[0].mxu0 %v2062
      %v3075 = vpop.f32.mrb[0].mxu0
      %v3076 = vadd.f32 0.0, %v3075
      %v3077 = vpop.f32.mrb[0].mxu0
      %v3078 = vpop.f32.mrb[0].mxu0
      %v3079 = vadd.f32 0.0, %v3078
      %v3080 = vpop.f32.mrb[0].mxu0
      %3081 = vmatprep.mubr.bf16.mxu0 %v2072
      %3082 = vmatmul.mubr.bf16.gmra.mrb[0].mxu0 %v2071
      %v3083 = vpop.f32.mrb[0].mxu0
      %v3084 = vadd.f32 0.0, %v3083
      %v3085 = vpop.f32.mrb[0].mxu0
      %v3086 = vpop.f32.mrb[0].mxu0
      %v3087 = vadd.f32 0.0, %v3086
      %v3088 = vpop.f32.mrb[0].mxu0
      %3089 = vmatprep.mubr.bf16.mxu0 %v2081
      %3090 = vmatmul.mubr.bf16.gmra.mrb[0].mxu0 %v2080
      %v3091 = vpop.f32.mrb[0].mxu0
      %v3092 = vadd.f32 0.0, %v3091
      %v3093 = vpop.f32.mrb[0].mxu0
      %v3094 = vpop.f32.mrb[0].mxu0
      %v3095 = vadd.f32 0.0, %v3094
      %v3096 = vpop.f32.mrb[0].mxu0
      %3097 = vdwg.mxu0
      %3098 = vmatprep.subr.bf16.mxu0 0
      %3099 = vmatpush1.bf16.msra.mxu0 %v2681
      %3100 = vmatprep.subr.bf16.mxu0 0
      %3101 = vmatpush1.bf16.msra.mxu0 %v2682
      %3102 = vmatprep.subr.bf16.mxu0 0
      %3103 = vmatpush1.bf16.msra.mxu0 %v2683
      %3104 = vmatprep.subr.bf16.mxu0 0
      %3105 = vmatpush1.bf16.msra.mxu0 %v2684
      %3106 = vmatprep.subr.bf16.mxu0 0
      %3107 = vmatpush1.bf16.msra.mxu0 %v2685
      %3108 = vmatprep.subr.bf16.mxu0 0
      %3109 = vmatpush1.bf16.msra.mxu0 %v2686
      %3110 = vmatprep.subr.bf16.mxu0 0
      %3111 = vmatpush1.bf16.msra.mxu0 %v2687
      %3112 = vmatprep.subr.bf16.mxu0 0
      %3113 = vmatpush1.bf16.msra.mxu0 %v2688
      %3114 = vmatprep.subr.bf16.mxu0 0
      %3115 = vmatpush1.bf16.msra.mxu0 %v2689
      %3116 = vmatprep.subr.bf16.mxu0 0
      %3117 = vmatpush1.bf16.msra.mxu0 %v2690
      %3118 = vmatprep.subr.bf16.mxu0 0
      %3119 = vmatpush1.bf16.msra.mxu0 %v2691
      %3120 = vmatprep.subr.bf16.mxu0 0
      %3121 = vmatpush1.bf16.msra.mxu0 %v2692
      %3122 = vmatprep.subr.bf16.mxu0 0
      %3123 = vmatpush1.bf16.msra.mxu0 %v2693
      %3124 = vmatprep.subr.bf16.mxu0 0
      %3125 = vmatpush1.bf16.msra.mxu0 %v2694
      %3126 = vmatprep.subr.bf16.mxu0 0
      %3127 = vmatpush1.bf16.msra.mxu0 %v2695
      %3128 = vmatprep.subr.bf16.mxu0 0
      %3129 = vmatpush1.bf16.msra.mxu0 %v2696
      %3130 = vmatprep.mubr.bf16.mxu0 %v1804
      %3131 = vmatmul.mubr.bf16.gmra.mrb[0].mxu0 %v1803
      %v3132 = vpop.f32.mrb[0].mxu0
      %v3133 = vadd.f32 %v2844, %v3132
      %v3134 = vpop.f32.mrb[0].mxu0
      %v3135 = vpop.f32.mrb[0].mxu0
      %v3136 = vadd.f32 %v2847, %v3135
      %v3137 = vpop.f32.mrb[0].mxu0
      %3138 = vmatprep.mubr.bf16.mxu0 %v1813
      %3139 = vmatmul.mubr.bf16.gmra.mrb[0].mxu0 %v1812
      %v3140 = vpop.f32.mrb[0].mxu0
      %v3141 = vadd.f32 %v2852, %v3140
      %v3142 = vpop.f32.mrb[0].mxu0
      %v3143 = vpop.f32.mrb[0].mxu0
      %v3144 = vadd.f32 %v2855, %v3143
      %v3145 = vpop.f32.mrb[0].mxu0
      %3146 = vmatprep.mubr.bf16.mxu0 %v1822
      %3147 = vmatmul.mubr.bf16.gmra.mrb[0].mxu0 %v1821
      %v3148 = vpop.f32.mrb[0].mxu0
      %v3149 = vadd.f32 %v2860, %v3148
      %v3150 = vpop.f32.mrb[0].mxu0
      %v3151 = vpop.f32.mrb[0].mxu0
      %v3152 = vadd.f32 %v2863, %v3151
      %v3153 = vpop.f32.mrb[0].mxu0
      %3154 = vmatprep.mubr.bf16.mxu0 %v1831
      %3155 = vmatmul.mubr.bf16.gmra.mrb[0].mxu0 %v1830
      %v3156 = vpop.f32.mrb[0].mxu0
      %v3157 = vadd.f32 %v2868, %v3156
      %v3158 = vpop.f32.mrb[0].mxu0
      %v3159 = vpop.f32.mrb[0].mxu0
      %v3160 = vadd.f32 %v2871, %v3159
      %v3161 = vpop.f32.mrb[0].mxu0
      %3162 = vmatprep.mubr.bf16.mxu0 %v1840
      %3163 = vmatmul.mubr.bf16.gmra.mrb[0].mxu0 %v1839
      %v3164 = vpop.f32.mrb[0].mxu0
      %v3165 = vadd.f32 %v2876, %v3164
      %v3166 = vpop.f32.mrb[0].mxu0
      %v3167 = vpop.f32.mrb[0].mxu0
      %v3168 = vadd.f32 %v2879, %v3167
      %v3169 = vpop.f32.mrb[0].mxu0
      %3170 = vmatprep.mubr.bf16.mxu0 %v1849
      %3171 = vmatmul.mubr.bf16.gmra.mrb[0].mxu0 %v1848
      %v3172 = vpop.f32.mrb[0].mxu0
      %v3173 = vadd.f32 %v2884, %v3172
      %v3174 = vpop.f32.mrb[0].mxu0
      %v3175 = vpop.f32.mrb[0].mxu0
      %v3176 = vadd.f32 %v2887, %v3175
      %v3177 = vpop.f32.mrb[0].mxu0
      %3178 = vmatprep.mubr.bf16.mxu0 %v1858
      %3179 = vmatmul.mubr.bf16.gmra.mrb[0].mxu0 %v1857
      %v3180 = vpop.f32.mrb[0].mxu0
      %v3181 = vadd.f32 %v2892, %v3180
      %v3182 = vpop.f32.mrb[0].mxu0
      %v3183 = vpop.f32.mrb[0].mxu0
      %v3184 = vadd.f32 %v2895, %v3183
      %v3185 = vpop.f32.mrb[0].mxu0
      %3186 = vmatprep.mubr.bf16.mxu0 %v1867
      %3187 = vmatmul.mubr.bf16.gmra.mrb[0].mxu0 %v1866
      %v3188 = vpop.f32.mrb[0].mxu0
      %v3189 = vadd.f32 %v2900, %v3188
      %v3190 = vpop.f32.mrb[0].mxu0
      %v3191 = vpop.f32.mrb[0].mxu0
      %v3192 = vadd.f32 %v2903, %v3191
      %v3193 = vpop.f32.mrb[0].mxu0
      %3194 = vmatprep.mubr.bf16.mxu0 %v1876
      %3195 = vmatmul.mubr.bf16.gmra.mrb[0].mxu0 %v1875
      %v3196 = vpop.f32.mrb[0].mxu0
      %v3197 = vadd.f32 %v2908, %v3196
      %v3198 = vpop.f32.mrb[0].mxu0
      %v3199 = vpop.f32.mrb[0].mxu0
      %v3200 = vadd.f32 %v2911, %v3199
      %v3201 = vpop.f32.mrb[0].mxu0
      %3202 = vmatprep.mubr.bf16.mxu0 %v1885
      %3203 = vmatmul.mubr.bf16.gmra.mrb[0].mxu0 %v1884
      %v3204 = vpop.f32.mrb[0].mxu0
      %v3205 = vadd.f32 %v2916, %v3204
      %v3206 = vpop.f32.mrb[0].mxu0
      %v3207 = vpop.f32.mrb[0].mxu0
      %v3208 = vadd.f32 %v2919, %v3207
      %v3209 = vpop.f32.mrb[0].mxu0
      %3210 = vmatprep.mubr.bf16.mxu0 %v1894
      %3211 = vmatmul.mubr.bf16.gmra.mrb[0].mxu0 %v1893
      %v3212 = vpop.f32.mrb[0].mxu0
      %v3213 = vadd.f32 %v2924, %v3212
      %v3214 = vpop.f32.mrb[0].mxu0
      %v3215 = vpop.f32.mrb[0].mxu0
      %v3216 = vadd.f32 %v2927, %v3215
      %v3217 = vpop.f32.mrb[0].mxu0
      %3218 = vmatprep.mubr.bf16.mxu0 %v1903
      %3219 = vmatmul.mubr.bf16.gmra.mrb[0].mxu0 %v1902
      %v3220 = vpop.f32.mrb[0].mxu0
      %v3221 = vadd.f32 %v2932, %v3220
      %v3222 = vpop.f32.mrb[0].mxu0
      %v3223 = vpop.f32.mrb[0].mxu0
      %v3224 = vadd.f32 %v2935, %v3223
      %v3225 = vpop.f32.mrb[0].mxu0
      %3226 = vmatprep.mubr.bf16.mxu0 %v1912
      %3227 = vmatmul.mubr.bf16.gmra.mrb[0].mxu0 %v1911
      %v3228 = vpop.f32.mrb[0].mxu0
      %v3229 = vadd.f32 %v2940, %v3228
      %v3230 = vpop.f32.mrb[0].mxu0
      %v3231 = vpop.f32.mrb[0].mxu0
      %v3232 = vadd.f32 %v2943, %v3231
      %v3233 = vpop.f32.mrb[0].mxu0
      %3234 = vmatprep.mubr.bf16.mxu0 %v1921
      %3235 = vmatmul.mubr.bf16.gmra.mrb[0].mxu0 %v1920
      %v3236 = vpop.f32.mrb[0].mxu0
      %v3237 = vadd.f32 %v2948, %v3236
      %v3238 = vpop.f32.mrb[0].mxu0
      %v3239 = vpop.f32.mrb[0].mxu0
      %v3240 = vadd.f32 %v2951, %v3239
      %v3241 = vpop.f32.mrb[0].mxu0
      %3242 = vmatprep.mubr.bf16.mxu0 %v1930
      %3243 = vmatmul.mubr.bf16.gmra.mrb[0].mxu0 %v1929
      %v3244 = vpop.f32.mrb[0].mxu0
      %v3245 = vadd.f32 %v2956, %v3244
      %v3246 = vpop.f32.mrb[0].mxu0
      %v3247 = vpop.f32.mrb[0].mxu0
      %v3248 = vadd.f32 %v2959, %v3247
      %v3249 = vpop.f32.mrb[0].mxu0
      %3250 = vmatprep.mubr.bf16.mxu0 %v1939
      %3251 = vmatmul.mubr.bf16.gmra.mrb[0].mxu0 %v1938
      %v3252 = vpop.f32.mrb[0].mxu0
      %v3253 = vadd.f32 %v2964, %v3252
      %v3254 = vpop.f32.mrb[0].mxu0
      %v3255 = vpop.f32.mrb[0].mxu0
      %v3256 = vadd.f32 %v2967, %v3255
      %v3257 = vpop.f32.mrb[0].mxu0
      %3258 = vmatprep.mubr.bf16.mxu0 %v1948
      %3259 = vmatmul.mubr.bf16.gmra.mrb[0].mxu0 %v1947
      %v3260 = vpop.f32.mrb[0].mxu0
      %v3261 = vadd.f32 %v2972, %v3260
      %v3262 = vpop.f32.mrb[0].mxu0
      %v3263 = vpop.f32.mrb[0].mxu0
      %v3264 = vadd.f32 %v2975, %v3263
      %v3265 = vpop.f32.mrb[0].mxu0
      %3266 = vmatprep.mubr.bf16.mxu0 %v1957
      %3267 = vmatmul.mubr.bf16.gmra.mrb[0].mxu0 %v1956
      %v3268 = vpop.f32.mrb[0].mxu0
      %v3269 = vadd.f32 %v2980, %v3268
      %v3270 = vpop.f32.mrb[0].mxu0
      %v3271 = vpop.f32.mrb[0].mxu0
      %v3272 = vadd.f32 %v2983, %v3271
      %v3273 = vpop.f32.mrb[0].mxu0
      %3274 = vmatprep.mubr.bf16.mxu0 %v1966
      %3275 = vmatmul.mubr.bf16.gmra.mrb[0].mxu0 %v1965
      %v3276 = vpop.f32.mrb[0].mxu0
      %v3277 = vadd.f32 %v2988, %v3276
      %v3278 = vpop.f32.mrb[0].mxu0
      %v3279 = vpop.f32.mrb[0].mxu0
      %v3280 = vadd.f32 %v2991, %v3279
      %v3281 = vpop.f32.mrb[0].mxu0
      %3282 = vmatprep.mubr.bf16.mxu0 %v1975
      %3283 = vmatmul.mubr.bf16.gmra.mrb[0].mxu0 %v1974
      %v3284 = vpop.f32.mrb[0].mxu0
      %v3285 = vadd.f32 %v2996, %v3284
      %v3286 = vpop.f32.mrb[0].mxu0
      %v3287 = vpop.f32.mrb[0].mxu0
      %v3288 = vadd.f32 %v2999, %v3287
      %v3289 = vpop.f32.mrb[0].mxu0
      %3290 = vmatprep.mubr.bf16.mxu0 %v1984
      %3291 = vmatmul.mubr.bf16.gmra.mrb[0].mxu0 %v1983
      %v3292 = vpop.f32.mrb[0].mxu0
      %v3293 = vadd.f32 %v3004, %v3292
      %v3294 = vpop.f32.mrb[0].mxu0
      %v3295 = vpop.f32.mrb[0].mxu0
      %v3296 = vadd.f32 %v3007, %v3295
      %v3297 = vpop.f32.mrb[0].mxu0
      %3298 = vmatprep.mubr.bf16.mxu0 %v1993
      %3299 = vmatmul.mubr.bf16.gmra.mrb[0].mxu0 %v1992
      %v3300 = vpop.f32.mrb[0].mxu0
      %v3301 = vadd.f32 %v3012, %v3300
      %v3302 = vpop.f32.mrb[0].mxu0
      %v3303 = vpop.f32.mrb[0].mxu0
      %v3304 = vadd.f32 %v3015, %v3303
      %v3305 = vpop.f32.mrb[0].mxu0
      %3306 = vmatprep.mubr.bf16.mxu0 %v2002
      %3307 = vmatmul.mubr.bf16.gmra.mrb[0].mxu0 %v2001
      %v3308 = vpop.f32.mrb[0].mxu0
      %v3309 = vadd.f32 %v3020, %v3308
      %v3310 = vpop.f32.mrb[0].mxu0
      %v3311 = vpop.f32.mrb[0].mxu0
      %v3312 = vadd.f32 %v3023, %v3311
      %v3313 = vpop.f32.mrb[0].mxu0
      %3314 = vmatprep.mubr.bf16.mxu0 %v2011
      %3315 = vmatmul.mubr.bf16.gmra.mrb[0].mxu0 %v2010
      %v3316 = vpop.f32.mrb[0].mxu0
      %v3317 = vadd.f32 %v3028, %v3316
      %v3318 = vpop.f32.mrb[0].mxu0
      %v3319 = vpop.f32.mrb[0].mxu0
      %v3320 = vadd.f32 %v3031, %v3319
      %v3321 = vpop.f32.mrb[0].mxu0
      %3322 = vmatprep.mubr.bf16.mxu0 %v2020
      %3323 = vmatmul.mubr.bf16.gmra.mrb[0].mxu0 %v2019
      %v3324 = vpop.f32.mrb[0].mxu0
      %v3325 = vadd.f32 %v3036, %v3324
      %v3326 = vpop.f32.mrb[0].mxu0
      %v3327 = vpop.f32.mrb[0].mxu0
      %v3328 = vadd.f32 %v3039, %v3327
      %v3329 = vpop.f32.mrb[0].mxu0
      %3330 = vmatprep.mubr.bf16.mxu0 %v2029
      %3331 = vmatmul.mubr.bf16.gmra.mrb[0].mxu0 %v2028
      %v3332 = vpop.f32.mrb[0].mxu0
      %v3333 = vadd.f32 %v3044, %v3332
      %v3334 = vpop.f32.mrb[0].mxu0
      %v3335 = vpop.f32.mrb[0].mxu0
      %v3336 = vadd.f32 %v3047, %v3335
      %v3337 = vpop.f32.mrb[0].mxu0
      %3338 = vmatprep.mubr.bf16.mxu0 %v2038
      %3339 = vmatmul.mubr.bf16.gmra.mrb[0].mxu0 %v2037
      %v3340 = vpop.f32.mrb[0].mxu0
      %v3341 = vadd.f32 %v3052, %v3340
      %v3342 = vpop.f32.mrb[0].mxu0
      %v3343 = vpop.f32.mrb[0].mxu0
      %v3344 = vadd.f32 %v3055, %v3343
      %v3345 = vpop.f32.mrb[0].mxu0
      %3346 = vmatprep.mubr.bf16.mxu0 %v2047
      %3347 = vmatmul.mubr.bf16.gmra.mrb[0].mxu0 %v2046
      %v3348 = vpop.f32.mrb[0].mxu0
      %v3349 = vadd.f32 %v3060, %v3348
      %v3350 = vpop.f32.mrb[0].mxu0
      %v3351 = vpop.f32.mrb[0].mxu0
      %v3352 = vadd.f32 %v3063, %v3351
      %v3353 = vpop.f32.mrb[0].mxu0
      %3354 = vmatprep.mubr.bf16.mxu0 %v2056
      %3355 = vmatmul.mubr.bf16.gmra.mrb[0].mxu0 %v2055
      %v3356 = vpop.f32.mrb[0].mxu0
      %v3357 = vadd.f32 %v3068, %v3356
      %v3358 = vpop.f32.mrb[0].mxu0
      %v3359 = vpop.f32.mrb[0].mxu0
      %v3360 = vadd.f32 %v3071, %v3359
      %v3361 = vpop.f32.mrb[0].mxu0
      %3362 = vmatprep.mubr.bf16.mxu0 %v2065
      %3363 = vmatmul.mubr.bf16.gmra.mrb[0].mxu0 %v2064
      %v3364 = vpop.f32.mrb[0].mxu0
      %v3365 = vadd.f32 %v3076, %v3364
      %v3366 = vpop.f32.mrb[0].mxu0
      %v3367 = vpop.f32.mrb[0].mxu0
      %v3368 = vadd.f32 %v3079, %v3367
      %v3369 = vpop.f32.mrb[0].mxu0
      %3370 = vmatprep.mubr.bf16.mxu0 %v2074
      %3371 = vmatmul.mubr.bf16.gmra.mrb[0].mxu0 %v2073
      %v3372 = vpop.f32.mrb[0].mxu0
      %v3373 = vadd.f32 %v3084, %v3372
      %v3374 = vpop.f32.mrb[0].mxu0
      %v3375 = vpop.f32.mrb[0].mxu0
      %v3376 = vadd.f32 %v3087, %v3375
      %v3377 = vpop.f32.mrb[0].mxu0
      %3378 = vmatprep.mubr.bf16.mxu0 %v2083
      %3379 = vmatmul.mubr.bf16.gmra.mrb[0].mxu0 %v2082
      %v3380 = vpop.f32.mrb[0].mxu0
      %v3381 = vadd.f32 %v3092, %v3380
      %v3382 = vpop.f32.mrb[0].mxu0
      %v3383 = vpop.f32.mrb[0].mxu0
      %v3384 = vadd.f32 %v3095, %v3383
      %v3385 = vpop.f32.mrb[0].mxu0
      %3386 = vdwg.mxu0
      %3387 = vmatprep.subr.bf16.mxu0 0
      %3388 = vmatpush1.bf16.msra.mxu0 %v2697
      %3389 = vmatprep.subr.bf16.mxu0 0
      %3390 = vmatpush1.bf16.msra.mxu0 %v2698
      %3391 = vmatprep.subr.bf16.mxu0 0
      %3392 = vmatpush1.bf16.msra.mxu0 %v2699
      %3393 = vmatprep.subr.bf16.mxu0 0
      %3394 = vmatpush1.bf16.msra.mxu0 %v2700
      %3395 = vmatprep.subr.bf16.mxu0 0
      %3396 = vmatpush1.bf16.msra.mxu0 %v2701
      %3397 = vmatprep.subr.bf16.mxu0 0
      %3398 = vmatpush1.bf16.msra.mxu0 %v2702
      %3399 = vmatprep.subr.bf16.mxu0 0
      %3400 = vmatpush1.bf16.msra.mxu0 %v2703
      %3401 = vmatprep.subr.bf16.mxu0 0
      %3402 = vmatpush1.bf16.msra.mxu0 %v2704
      %3403 = vmatprep.subr.bf16.mxu0 0
      %3404 = vmatpush1.bf16.msra.mxu0 %v2705
      %3405 = vmatprep.subr.bf16.mxu0 0
      %3406 = vmatpush1.bf16.msra.mxu0 %v2706
      %3407 = vmatprep.subr.bf16.mxu0 0
      %3408 = vmatpush1.bf16.msra.mxu0 %v2707
      %3409 = vmatprep.subr.bf16.mxu0 0
      %3410 = vmatpush1.bf16.msra.mxu0 %v2708
      %3411 = vmatprep.subr.bf16.mxu0 0
      %3412 = vmatpush1.bf16.msra.mxu0 %v2709
      %3413 = vmatprep.subr.bf16.mxu0 0
      %3414 = vmatpush1.bf16.msra.mxu0 %v2710
      %3415 = vmatprep.subr.bf16.mxu0 0
      %3416 = vmatpush1.bf16.msra.mxu0 %v2711
      %3417 = vmatprep.subr.bf16.mxu0 0
      %3418 = vmatpush1.bf16.msra.mxu0 %v2712
      %3419 = vmatprep.mubr.bf16.mxu0 %v1806
      %3420 = vmatmul.mubr.bf16.gmra.mrb[0].mxu0 %v1805
      %v3421 = vpop.f32.mrb[0].mxu0
      %v3422 = vadd.f32 %v3133, %v3421
      %v3423 = vpop.f32.mrb[0].mxu0
      %v3424 = vpop.f32.mrb[0].mxu0
      %v3425 = vadd.f32 %v3136, %v3424
      %v3426 = vpop.f32.mrb[0].mxu0
      %3427 = vmatprep.mubr.bf16.mxu0 %v1815
      %3428 = vmatmul.mubr.bf16.gmra.mrb[0].mxu0 %v1814
      %v3429 = vpop.f32.mrb[0].mxu0
      %v3430 = vadd.f32 %v3141, %v3429
      %v3431 = vpop.f32.mrb[0].mxu0
      %v3432 = vpop.f32.mrb[0].mxu0
      %v3433 = vadd.f32 %v3144, %v3432
      %v3434 = vpop.f32.mrb[0].mxu0
      %3435 = vmatprep.mubr.bf16.mxu0 %v1824
      %3436 = vmatmul.mubr.bf16.gmra.mrb[0].mxu0 %v1823
      %v3437 = vpop.f32.mrb[0].mxu0
      %v3438 = vadd.f32 %v3149, %v3437
      %v3439 = vpop.f32.mrb[0].mxu0
      %v3440 = vpop.f32.mrb[0].mxu0
      %v3441 = vadd.f32 %v3152, %v3440
      %v3442 = vpop.f32.mrb[0].mxu0
      %3443 = vmatprep.mubr.bf16.mxu0 %v1833
      %3444 = vmatmul.mubr.bf16.gmra.mrb[0].mxu0 %v1832
      %v3445 = vpop.f32.mrb[0].mxu0
      %v3446 = vadd.f32 %v3157, %v3445
      %v3447 = vpop.f32.mrb[0].mxu0
      %v3448 = vpop.f32.mrb[0].mxu0
      %v3449 = vadd.f32 %v3160, %v3448
      %v3450 = vpop.f32.mrb[0].mxu0
      %3451 = vmatprep.mubr.bf16.mxu0 %v1842
      %3452 = vmatmul.mubr.bf16.gmra.mrb[0].mxu0 %v1841
      %v3453 = vpop.f32.mrb[0].mxu0
      %v3454 = vadd.f32 %v3165, %v3453
      %v3455 = vpop.f32.mrb[0].mxu0
      %v3456 = vpop.f32.mrb[0].mxu0
      %v3457 = vadd.f32 %v3168, %v3456
      %v3458 = vpop.f32.mrb[0].mxu0
      %3459 = vmatprep.mubr.bf16.mxu0 %v1851
      %3460 = vmatmul.mubr.bf16.gmra.mrb[0].mxu0 %v1850
      %v3461 = vpop.f32.mrb[0].mxu0
      %v3462 = vadd.f32 %v3173, %v3461
      %v3463 = vpop.f32.mrb[0].mxu0
      %v3464 = vpop.f32.mrb[0].mxu0
      %v3465 = vadd.f32 %v3176, %v3464
      %v3466 = vpop.f32.mrb[0].mxu0
      %3467 = vmatprep.mubr.bf16.mxu0 %v1860
      %3468 = vmatmul.mubr.bf16.gmra.mrb[0].mxu0 %v1859
      %v3469 = vpop.f32.mrb[0].mxu0
      %v3470 = vadd.f32 %v3181, %v3469
      %v3471 = vpop.f32.mrb[0].mxu0
      %v3472 = vpop.f32.mrb[0].mxu0
      %v3473 = vadd.f32 %v3184, %v3472
      %v3474 = vpop.f32.mrb[0].mxu0
      %3475 = vmatprep.mubr.bf16.mxu0 %v1869
      %3476 = vmatmul.mubr.bf16.gmra.mrb[0].mxu0 %v1868
      %v3477 = vpop.f32.mrb[0].mxu0
      %v3478 = vadd.f32 %v3189, %v3477
      %v3479 = vpop.f32.mrb[0].mxu0
      %v3480 = vpop.f32.mrb[0].mxu0
      %v3481 = vadd.f32 %v3192, %v3480
      %v3482 = vpop.f32.mrb[0].mxu0
      %3483 = vmatprep.mubr.bf16.mxu0 %v1878
      %3484 = vmatmul.mubr.bf16.gmra.mrb[0].mxu0 %v1877
      %v3485 = vpop.f32.mrb[0].mxu0
      %v3486 = vadd.f32 %v3197, %v3485
      %v3487 = vpop.f32.mrb[0].mxu0
      %v3488 = vpop.f32.mrb[0].mxu0
      %v3489 = vadd.f32 %v3200, %v3488
      %v3490 = vpop.f32.mrb[0].mxu0
      %3491 = vmatprep.mubr.bf16.mxu0 %v1887
      %3492 = vmatmul.mubr.bf16.gmra.mrb[0].mxu0 %v1886
      %v3493 = vpop.f32.mrb[0].mxu0
      %v3494 = vadd.f32 %v3205, %v3493
      %v3495 = vpop.f32.mrb[0].mxu0
      %v3496 = vpop.f32.mrb[0].mxu0
      %v3497 = vadd.f32 %v3208, %v3496
      %v3498 = vpop.f32.mrb[0].mxu0
      %3499 = vmatprep.mubr.bf16.mxu0 %v1896
      %3500 = vmatmul.mubr.bf16.gmra.mrb[0].mxu0 %v1895
      %v3501 = vpop.f32.mrb[0].mxu0
      %v3502 = vadd.f32 %v3213, %v3501
      %v3503 = vpop.f32.mrb[0].mxu0
      %v3504 = vpop.f32.mrb[0].mxu0
      %v3505 = vadd.f32 %v3216, %v3504
      %v3506 = vpop.f32.mrb[0].mxu0
      %3507 = vmatprep.mubr.bf16.mxu0 %v1905
      %3508 = vmatmul.mubr.bf16.gmra.mrb[0].mxu0 %v1904
      %v3509 = vpop.f32.mrb[0].mxu0
      %v3510 = vadd.f32 %v3221, %v3509
      %v3511 = vpop.f32.mrb[0].mxu0
      %v3512 = vpop.f32.mrb[0].mxu0
      %v3513 = vadd.f32 %v3224, %v3512
      %v3514 = vpop.f32.mrb[0].mxu0
      %3515 = vmatprep.mubr.bf16.mxu0 %v1914
      %3516 = vmatmul.mubr.bf16.gmra.mrb[0].mxu0 %v1913
      %v3517 = vpop.f32.mrb[0].mxu0
      %v3518 = vadd.f32 %v3229, %v3517
      %v3519 = vpop.f32.mrb[0].mxu0
      %v3520 = vpop.f32.mrb[0].mxu0
      %v3521 = vadd.f32 %v3232, %v3520
      %v3522 = vpop.f32.mrb[0].mxu0
      %3523 = vmatprep.mubr.bf16.mxu0 %v1923
      %3524 = vmatmul.mubr.bf16.gmra.mrb[0].mxu0 %v1922
      %v3525 = vpop.f32.mrb[0].mxu0
      %v3526 = vadd.f32 %v3237, %v3525
      %v3527 = vpop.f32.mrb[0].mxu0
      %v3528 = vpop.f32.mrb[0].mxu0
      %v3529 = vadd.f32 %v3240, %v3528
      %v3530 = vpop.f32.mrb[0].mxu0
      %3531 = vmatprep.mubr.bf16.mxu0 %v1932
      %3532 = vmatmul.mubr.bf16.gmra.mrb[0].mxu0 %v1931
      %v3533 = vpop.f32.mrb[0].mxu0
      %v3534 = vadd.f32 %v3245, %v3533
      %v3535 = vpop.f32.mrb[0].mxu0
      %v3536 = vpop.f32.mrb[0].mxu0
      %v3537 = vadd.f32 %v3248, %v3536
      %v3538 = vpop.f32.mrb[0].mxu0
      %3539 = vmatprep.mubr.bf16.mxu0 %v1941
      %3540 = vmatmul.mubr.bf16.gmra.mrb[0].mxu0 %v1940
      %v3541 = vpop.f32.mrb[0].mxu0
      %v3542 = vadd.f32 %v3253, %v3541
      %v3543 = vpop.f32.mrb[0].mxu0
      %v3544 = vpop.f32.mrb[0].mxu0
      %v3545 = vadd.f32 %v3256, %v3544
      %v3546 = vpop.f32.mrb[0].mxu0
      %3547 = vmatprep.mubr.bf16.mxu0 %v1950
      %3548 = vmatmul.mubr.bf16.gmra.mrb[0].mxu0 %v1949
      %v3549 = vpop.f32.mrb[0].mxu0
      %v3550 = vadd.f32 %v3261, %v3549
      %v3551 = vpop.f32.mrb[0].mxu0
      %v3552 = vpop.f32.mrb[0].mxu0
      %v3553 = vadd.f32 %v3264, %v3552
      %v3554 = vpop.f32.mrb[0].mxu0
      %3555 = vmatprep.mubr.bf16.mxu0 %v1959
      %3556 = vmatmul.mubr.bf16.gmra.mrb[0].mxu0 %v1958
      %v3557 = vpop.f32.mrb[0].mxu0
      %v3558 = vadd.f32 %v3269, %v3557
      %v3559 = vpop.f32.mrb[0].mxu0
      %v3560 = vpop.f32.mrb[0].mxu0
      %v3561 = vadd.f32 %v3272, %v3560
      %v3562 = vpop.f32.mrb[0].mxu0
      %3563 = vmatprep.mubr.bf16.mxu0 %v1968
      %3564 = vmatmul.mubr.bf16.gmra.mrb[0].mxu0 %v1967
      %v3565 = vpop.f32.mrb[0].mxu0
      %v3566 = vadd.f32 %v3277, %v3565
      %v3567 = vpop.f32.mrb[0].mxu0
      %v3568 = vpop.f32.mrb[0].mxu0
      %v3569 = vadd.f32 %v3280, %v3568
      %v3570 = vpop.f32.mrb[0].mxu0
      %3571 = vmatprep.mubr.bf16.mxu0 %v1977
      %3572 = vmatmul.mubr.bf16.gmra.mrb[0].mxu0 %v1976
      %v3573 = vpop.f32.mrb[0].mxu0
      %v3574 = vadd.f32 %v3285, %v3573
      %v3575 = vpop.f32.mrb[0].mxu0
      %v3576 = vpop.f32.mrb[0].mxu0
      %v3577 = vadd.f32 %v3288, %v3576
      %v3578 = vpop.f32.mrb[0].mxu0
      %3579 = vmatprep.mubr.bf16.mxu0 %v1986
      %3580 = vmatmul.mubr.bf16.gmra.mrb[0].mxu0 %v1985
      %v3581 = vpop.f32.mrb[0].mxu0
      %v3582 = vadd.f32 %v3293, %v3581
      %v3583 = vpop.f32.mrb[0].mxu0
      %v3584 = vpop.f32.mrb[0].mxu0
      %v3585 = vadd.f32 %v3296, %v3584
      %v3586 = vpop.f32.mrb[0].mxu0
      %3587 = vmatprep.mubr.bf16.mxu0 %v1995
      %3588 = vmatmul.mubr.bf16.gmra.mrb[0].mxu0 %v1994
      %v3589 = vpop.f32.mrb[0].mxu0
      %v3590 = vadd.f32 %v3301, %v3589
      %v3591 = vpop.f32.mrb[0].mxu0
      %v3592 = vpop.f32.mrb[0].mxu0
      %v3593 = vadd.f32 %v3304, %v3592
      %v3594 = vpop.f32.mrb[0].mxu0
      %3595 = vmatprep.mubr.bf16.mxu0 %v2004
      %3596 = vmatmul.mubr.bf16.gmra.mrb[0].mxu0 %v2003
      %v3597 = vpop.f32.mrb[0].mxu0
      %v3598 = vadd.f32 %v3309, %v3597
      %v3599 = vpop.f32.mrb[0].mxu0
      %v3600 = vpop.f32.mrb[0].mxu0
      %v3601 = vadd.f32 %v3312, %v3600
      %v3602 = vpop.f32.mrb[0].mxu0
      %3603 = vmatprep.mubr.bf16.mxu0 %v2013
      %3604 = vmatmul.mubr.bf16.gmra.mrb[0].mxu0 %v2012
      %v3605 = vpop.f32.mrb[0].mxu0
      %v3606 = vadd.f32 %v3317, %v3605
      %v3607 = vpop.f32.mrb[0].mxu0
      %v3608 = vpop.f32.mrb[0].mxu0
      %v3609 = vadd.f32 %v3320, %v3608
      %v3610 = vpop.f32.mrb[0].mxu0
      %3611 = vmatprep.mubr.bf16.mxu0 %v2022
      %3612 = vmatmul.mubr.bf16.gmra.mrb[0].mxu0 %v2021
      %v3613 = vpop.f32.mrb[0].mxu0
      %v3614 = vadd.f32 %v3325, %v3613
      %v3615 = vpop.f32.mrb[0].mxu0
      %v3616 = vpop.f32.mrb[0].mxu0
      %v3617 = vadd.f32 %v3328, %v3616
      %v3618 = vpop.f32.mrb[0].mxu0
      %3619 = vmatprep.mubr.bf16.mxu0 %v2031
      %3620 = vmatmul.mubr.bf16.gmra.mrb[0].mxu0 %v2030
      %v3621 = vpop.f32.mrb[0].mxu0
      %v3622 = vadd.f32 %v3333, %v3621
      %v3623 = vpop.f32.mrb[0].mxu0
      %v3624 = vpop.f32.mrb[0].mxu0
      %v3625 = vadd.f32 %v3336, %v3624
      %v3626 = vpop.f32.mrb[0].mxu0
      %3627 = vmatprep.mubr.bf16.mxu0 %v2040
      %3628 = vmatmul.mubr.bf16.gmra.mrb[0].mxu0 %v2039
      %v3629 = vpop.f32.mrb[0].mxu0
      %v3630 = vadd.f32 %v3341, %v3629
      %v3631 = vpop.f32.mrb[0].mxu0
      %v3632 = vpop.f32.mrb[0].mxu0
      %v3633 = vadd.f32 %v3344, %v3632
      %v3634 = vpop.f32.mrb[0].mxu0
      %3635 = vmatprep.mubr.bf16.mxu0 %v2049
      %3636 = vmatmul.mubr.bf16.gmra.mrb[0].mxu0 %v2048
      %v3637 = vpop.f32.mrb[0].mxu0
      %v3638 = vadd.f32 %v3349, %v3637
      %v3639 = vpop.f32.mrb[0].mxu0
      %v3640 = vpop.f32.mrb[0].mxu0
      %v3641 = vadd.f32 %v3352, %v3640
      %v3642 = vpop.f32.mrb[0].mxu0
      %3643 = vmatprep.mubr.bf16.mxu0 %v2058
      %3644 = vmatmul.mubr.bf16.gmra.mrb[0].mxu0 %v2057
      %v3645 = vpop.f32.mrb[0].mxu0
      %v3646 = vadd.f32 %v3357, %v3645
      %v3647 = vpop.f32.mrb[0].mxu0
      %v3648 = vpop.f32.mrb[0].mxu0
      %v3649 = vadd.f32 %v3360, %v3648
      %v3650 = vpop.f32.mrb[0].mxu0
      %3651 = vmatprep.mubr.bf16.mxu0 %v2067
      %3652 = vmatmul.mubr.bf16.gmra.mrb[0].mxu0 %v2066
      %v3653 = vpop.f32.mrb[0].mxu0
      %v3654 = vadd.f32 %v3365, %v3653
      %v3655 = vpop.f32.mrb[0].mxu0
      %v3656 = vpop.f32.mrb[0].mxu0
      %v3657 = vadd.f32 %v3368, %v3656
      %v3658 = vpop.f32.mrb[0].mxu0
      %3659 = vmatprep.mubr.bf16.mxu0 %v2076
      %3660 = vmatmul.mubr.bf16.gmra.mrb[0].mxu0 %v2075
      %v3661 = vpop.f32.mrb[0].mxu0
      %v3662 = vadd.f32 %v3373, %v3661
      %v3663 = vpop.f32.mrb[0].mxu0
      %v3664 = vpop.f32.mrb[0].mxu0
      %v3665 = vadd.f32 %v3376, %v3664
      %v3666 = vpop.f32.mrb[0].mxu0
      %3667 = vmatprep.mubr.bf16.mxu0 %v2085
      %3668 = vmatmul.mubr.bf16.gmra.mrb[0].mxu0 %v2084
      %v3669 = vpop.f32.mrb[0].mxu0
      %v3670 = vadd.f32 %v3381, %v3669
      %v3671 = vpop.f32.mrb[0].mxu0
      %v3672 = vpop.f32.mrb[0].mxu0
      %v3673 = vadd.f32 %v3384, %v3672
      %v3674 = vpop.f32.mrb[0].mxu0
      %3675 = vdwg.mxu0
      %3676 = vmatprep.subr.bf16.mxu0 0
      %3677 = vmatpush1.bf16.msra.mxu0 %v2713
      %3678 = vmatprep.subr.bf16.mxu0 0
      %3679 = vmatpush1.bf16.msra.mxu0 %v2714
      %3680 = vmatprep.subr.bf16.mxu0 0
      %3681 = vmatpush1.bf16.msra.mxu0 %v2715
      %3682 = vmatprep.subr.bf16.mxu0 0
      %3683 = vmatpush1.bf16.msra.mxu0 %v2716
      %3684 = vmatprep.subr.bf16.mxu0 0
      %3685 = vmatpush1.bf16.msra.mxu0 %v2717
      %3686 = vmatprep.subr.bf16.mxu0 0
      %3687 = vmatpush1.bf16.msra.mxu0 %v2718
      %3688 = vmatprep.subr.bf16.mxu0 0
      %3689 = vmatpush1.bf16.msra.mxu0 %v2719
      %3690 = vmatprep.subr.bf16.mxu0 0
      %3691 = vmatpush1.bf16.msra.mxu0 %v2720
      %3692 = vmatprep.subr.bf16.mxu0 0
      %3693 = vmatpush1.bf16.msra.mxu0 %v2721
      %3694 = vmatprep.subr.bf16.mxu0 0
      %3695 = vmatpush1.bf16.msra.mxu0 %v2722
      %3696 = vmatprep.subr.bf16.mxu0 0
      %3697 = vmatpush1.bf16.msra.mxu0 %v2723
      %3698 = vmatprep.subr.bf16.mxu0 0
      %3699 = vmatpush1.bf16.msra.mxu0 %v2724
      %3700 = vmatprep.subr.bf16.mxu0 0
      %3701 = vmatpush1.bf16.msra.mxu0 %v2725
      %3702 = vmatprep.subr.bf16.mxu0 0
      %3703 = vmatpush1.bf16.msra.mxu0 %v2726
      %3704 = vmatprep.subr.bf16.mxu0 0
      %3705 = vmatpush1.bf16.msra.mxu0 %v2727
      %3706 = vmatprep.subr.bf16.mxu0 0
      %3707 = vmatpush1.bf16.msra.mxu0 %v2728
      %3708 = vmatprep.mubr.bf16.mxu0 %v1808
      %3709 = vmatmul.mubr.bf16.gmra.mrb[0].mxu0 %v1807
      %v3710 = vpop.f32.mrb[0].mxu0
      %v3711 = vadd.f32 %v3422, %v3710
      %v3712 = vpop.f32.mrb[0].mxu0
      %v3713 = vpop.f32.mrb[0].mxu0
      %v3714 = vadd.f32 %v3425, %v3713
      %v3715 = vpop.f32.mrb[0].mxu0
      %3716 = vmatprep.mubr.bf16.mxu0 %v1817
      %3717 = vmatmul.mubr.bf16.gmra.mrb[0].mxu0 %v1816
      %v3718 = vpop.f32.mrb[0].mxu0
      %v3719 = vadd.f32 %v3430, %v3718
      %v3720 = vpop.f32.mrb[0].mxu0
      %v3721 = vpop.f32.mrb[0].mxu0
      %v3722 = vadd.f32 %v3433, %v3721
      %v3723 = vpop.f32.mrb[0].mxu0
      %3724 = vmatprep.mubr.bf16.mxu0 %v1826
      %3725 = vmatmul.mubr.bf16.gmra.mrb[0].mxu0 %v1825
      %v3726 = vpop.f32.mrb[0].mxu0
      %v3727 = vadd.f32 %v3438, %v3726
      %v3728 = vpop.f32.mrb[0].mxu0
      %v3729 = vpop.f32.mrb[0].mxu0
      %v3730 = vadd.f32 %v3441, %v3729
      %v3731 = vpop.f32.mrb[0].mxu0
      %3732 = vmatprep.mubr.bf16.mxu0 %v1835
      %3733 = vmatmul.mubr.bf16.gmra.mrb[0].mxu0 %v1834
      %v3734 = vpop.f32.mrb[0].mxu0
      %v3735 = vadd.f32 %v3446, %v3734
      %v3736 = vpop.f32.mrb[0].mxu0
      %v3737 = vpop.f32.mrb[0].mxu0
      %v3738 = vadd.f32 %v3449, %v3737
      %v3739 = vpop.f32.mrb[0].mxu0
      %3740 = vmatprep.mubr.bf16.mxu0 %v1844
      %3741 = vmatmul.mubr.bf16.gmra.mrb[0].mxu0 %v1843
      %v3742 = vpop.f32.mrb[0].mxu0
      %v3743 = vadd.f32 %v3454, %v3742
      %v3744 = vpop.f32.mrb[0].mxu0
      %v3745 = vpop.f32.mrb[0].mxu0
      %v3746 = vadd.f32 %v3457, %v3745
      %v3747 = vpop.f32.mrb[0].mxu0
      %3748 = vmatprep.mubr.bf16.mxu0 %v1853
      %3749 = vmatmul.mubr.bf16.gmra.mrb[0].mxu0 %v1852
      %v3750 = vpop.f32.mrb[0].mxu0
      %v3751 = vadd.f32 %v3462, %v3750
      %v3752 = vpop.f32.mrb[0].mxu0
      %v3753 = vpop.f32.mrb[0].mxu0
      %v3754 = vadd.f32 %v3465, %v3753
      %v3755 = vpop.f32.mrb[0].mxu0
      %3756 = vmatprep.mubr.bf16.mxu0 %v1862
      %3757 = vmatmul.mubr.bf16.gmra.mrb[0].mxu0 %v1861
      %v3758 = vpop.f32.mrb[0].mxu0
      %v3759 = vadd.f32 %v3470, %v3758
      %v3760 = vpop.f32.mrb[0].mxu0
      %v3761 = vpop.f32.mrb[0].mxu0
      %v3762 = vadd.f32 %v3473, %v3761
      %v3763 = vpop.f32.mrb[0].mxu0
      %3764 = vmatprep.mubr.bf16.mxu0 %v1871
      %3765 = vmatmul.mubr.bf16.gmra.mrb[0].mxu0 %v1870
      %v3766 = vpop.f32.mrb[0].mxu0
      %v3767 = vadd.f32 %v3478, %v3766
      %v3768 = vpop.f32.mrb[0].mxu0
      %v3769 = vpop.f32.mrb[0].mxu0
      %v3770 = vadd.f32 %v3481, %v3769
      %v3771 = vpop.f32.mrb[0].mxu0
      %3772 = vmatprep.mubr.bf16.mxu0 %v1880
      %3773 = vmatmul.mubr.bf16.gmra.mrb[0].mxu0 %v1879
      %v3774 = vpop.f32.mrb[0].mxu0
      %v3775 = vadd.f32 %v3486, %v3774
      %v3776 = vpop.f32.mrb[0].mxu0
      %v3777 = vpop.f32.mrb[0].mxu0
      %v3778 = vadd.f32 %v3489, %v3777
      %v3779 = vpop.f32.mrb[0].mxu0
      %3780 = vmatprep.mubr.bf16.mxu0 %v1889
      %3781 = vmatmul.mubr.bf16.gmra.mrb[0].mxu0 %v1888
      %v3782 = vpop.f32.mrb[0].mxu0
      %v3783 = vadd.f32 %v3494, %v3782
      %v3784 = vpop.f32.mrb[0].mxu0
      %v3785 = vpop.f32.mrb[0].mxu0
      %v3786 = vadd.f32 %v3497, %v3785
      %v3787 = vpop.f32.mrb[0].mxu0
      %3788 = vmatprep.mubr.bf16.mxu0 %v1898
      %3789 = vmatmul.mubr.bf16.gmra.mrb[0].mxu0 %v1897
      %v3790 = vpop.f32.mrb[0].mxu0
      %v3791 = vadd.f32 %v3502, %v3790
      %v3792 = vpop.f32.mrb[0].mxu0
      %v3793 = vpop.f32.mrb[0].mxu0
      %v3794 = vadd.f32 %v3505, %v3793
      %v3795 = vpop.f32.mrb[0].mxu0
      %3796 = vmatprep.mubr.bf16.mxu0 %v1907
      %3797 = vmatmul.mubr.bf16.gmra.mrb[0].mxu0 %v1906
      %v3798 = vpop.f32.mrb[0].mxu0
      %v3799 = vadd.f32 %v3510, %v3798
      %v3800 = vpop.f32.mrb[0].mxu0
      %v3801 = vpop.f32.mrb[0].mxu0
      %v3802 = vadd.f32 %v3513, %v3801
      %v3803 = vpop.f32.mrb[0].mxu0
      %3804 = vmatprep.mubr.bf16.mxu0 %v1916
      %3805 = vmatmul.mubr.bf16.gmra.mrb[0].mxu0 %v1915
      %v3806 = vpop.f32.mrb[0].mxu0
      %v3807 = vadd.f32 %v3518, %v3806
      %v3808 = vpop.f32.mrb[0].mxu0
      %v3809 = vpop.f32.mrb[0].mxu0
      %v3810 = vadd.f32 %v3521, %v3809
      %v3811 = vpop.f32.mrb[0].mxu0
      %3812 = vmatprep.mubr.bf16.mxu0 %v1925
      %3813 = vmatmul.mubr.bf16.gmra.mrb[0].mxu0 %v1924
      %v3814 = vpop.f32.mrb[0].mxu0
      %v3815 = vadd.f32 %v3526, %v3814
      %v3816 = vpop.f32.mrb[0].mxu0
      %v3817 = vpop.f32.mrb[0].mxu0
      %v3818 = vadd.f32 %v3529, %v3817
      %v3819 = vpop.f32.mrb[0].mxu0
      %3820 = vmatprep.mubr.bf16.mxu0 %v1934
      %3821 = vmatmul.mubr.bf16.gmra.mrb[0].mxu0 %v1933
      %v3822 = vpop.f32.mrb[0].mxu0
      %v3823 = vadd.f32 %v3534, %v3822
      %v3824 = vpop.f32.mrb[0].mxu0
      %v3825 = vpop.f32.mrb[0].mxu0
      %v3826 = vadd.f32 %v3537, %v3825
      %v3827 = vpop.f32.mrb[0].mxu0
      %3828 = vmatprep.mubr.bf16.mxu0 %v1943
      %3829 = vmatmul.mubr.bf16.gmra.mrb[0].mxu0 %v1942
      %v3830 = vpop.f32.mrb[0].mxu0
      %v3831 = vadd.f32 %v3542, %v3830
      %v3832 = vpop.f32.mrb[0].mxu0
      %v3833 = vpop.f32.mrb[0].mxu0
      %v3834 = vadd.f32 %v3545, %v3833
      %v3835 = vpop.f32.mrb[0].mxu0
      %3836 = vmatprep.mubr.bf16.mxu0 %v1952
      %3837 = vmatmul.mubr.bf16.gmra.mrb[0].mxu0 %v1951
      %v3838 = vpop.f32.mrb[0].mxu0
      %v3839 = vadd.f32 %v3550, %v3838
      %v3840 = vpop.f32.mrb[0].mxu0
      %v3841 = vpop.f32.mrb[0].mxu0
      %v3842 = vadd.f32 %v3553, %v3841
      %v3843 = vpop.f32.mrb[0].mxu0
      %3844 = vmatprep.mubr.bf16.mxu0 %v1961
      %3845 = vmatmul.mubr.bf16.gmra.mrb[0].mxu0 %v1960
      %v3846 = vpop.f32.mrb[0].mxu0
      %v3847 = vadd.f32 %v3558, %v3846
      %v3848 = vpop.f32.mrb[0].mxu0
      %v3849 = vpop.f32.mrb[0].mxu0
      %v3850 = vadd.f32 %v3561, %v3849
      %v3851 = vpop.f32.mrb[0].mxu0
      %3852 = vmatprep.mubr.bf16.mxu0 %v1970
      %3853 = vmatmul.mubr.bf16.gmra.mrb[0].mxu0 %v1969
      %v3854 = vpop.f32.mrb[0].mxu0
      %v3855 = vadd.f32 %v3566, %v3854
      %v3856 = vpop.f32.mrb[0].mxu0
      %v3857 = vpop.f32.mrb[0].mxu0
      %v3858 = vadd.f32 %v3569, %v3857
      %v3859 = vpop.f32.mrb[0].mxu0
      %3860 = vmatprep.mubr.bf16.mxu0 %v1979
      %3861 = vmatmul.mubr.bf16.gmra.mrb[0].mxu0 %v1978
      %v3862 = vpop.f32.mrb[0].mxu0
      %v3863 = vadd.f32 %v3574, %v3862
      %v3864 = vpop.f32.mrb[0].mxu0
      %v3865 = vpop.f32.mrb[0].mxu0
      %v3866 = vadd.f32 %v3577, %v3865
      %v3867 = vpop.f32.mrb[0].mxu0
      %3868 = vmatprep.mubr.bf16.mxu0 %v1988
      %3869 = vmatmul.mubr.bf16.gmra.mrb[0].mxu0 %v1987
      %v3870 = vpop.f32.mrb[0].mxu0
      %v3871 = vadd.f32 %v3582, %v3870
      %v3872 = vpop.f32.mrb[0].mxu0
      %v3873 = vpop.f32.mrb[0].mxu0
      %v3874 = vadd.f32 %v3585, %v3873
      %v3875 = vpop.f32.mrb[0].mxu0
      %3876 = vmatprep.mubr.bf16.mxu0 %v1997
      %3877 = vmatmul.mubr.bf16.gmra.mrb[0].mxu0 %v1996
      %v3878 = vpop.f32.mrb[0].mxu0
      %v3879 = vadd.f32 %v3590, %v3878
      %v3880 = vpop.f32.mrb[0].mxu0
      %v3881 = vpop.f32.mrb[0].mxu0
      %v3882 = vadd.f32 %v3593, %v3881
      %v3883 = vpop.f32.mrb[0].mxu0
      %3884 = vmatprep.mubr.bf16.mxu0 %v2006
      %3885 = vmatmul.mubr.bf16.gmra.mrb[0].mxu0 %v2005
      %v3886 = vpop.f32.mrb[0].mxu0
      %v3887 = vadd.f32 %v3598, %v3886
      %v3888 = vpop.f32.mrb[0].mxu0
      %v3889 = vpop.f32.mrb[0].mxu0
      %v3890 = vadd.f32 %v3601, %v3889
      %v3891 = vpop.f32.mrb[0].mxu0
      %3892 = vmatprep.mubr.bf16.mxu0 %v2015
      %3893 = vmatmul.mubr.bf16.gmra.mrb[0].mxu0 %v2014
      %v3894 = vpop.f32.mrb[0].mxu0
      %v3895 = vadd.f32 %v3606, %v3894
      %v3896 = vpop.f32.mrb[0].mxu0
      %v3897 = vpop.f32.mrb[0].mxu0
      %v3898 = vadd.f32 %v3609, %v3897
      %v3899 = vpop.f32.mrb[0].mxu0
      %3900 = vmatprep.mubr.bf16.mxu0 %v2024
      %3901 = vmatmul.mubr.bf16.gmra.mrb[0].mxu0 %v2023
      %v3902 = vpop.f32.mrb[0].mxu0
      %v3903 = vadd.f32 %v3614, %v3902
      %v3904 = vpop.f32.mrb[0].mxu0
      %v3905 = vpop.f32.mrb[0].mxu0
      %v3906 = vadd.f32 %v3617, %v3905
      %v3907 = vpop.f32.mrb[0].mxu0
      %3908 = vmatprep.mubr.bf16.mxu0 %v2033
      %3909 = vmatmul.mubr.bf16.gmra.mrb[0].mxu0 %v2032
      %v3910 = vpop.f32.mrb[0].mxu0
      %v3911 = vadd.f32 %v3622, %v3910
      %v3912 = vpop.f32.mrb[0].mxu0
      %v3913 = vpop.f32.mrb[0].mxu0
      %v3914 = vadd.f32 %v3625, %v3913
      %v3915 = vpop.f32.mrb[0].mxu0
      %3916 = vmatprep.mubr.bf16.mxu0 %v2042
      %3917 = vmatmul.mubr.bf16.gmra.mrb[0].mxu0 %v2041
      %v3918 = vpop.f32.mrb[0].mxu0
      %v3919 = vadd.f32 %v3630, %v3918
      %v3920 = vpop.f32.mrb[0].mxu0
      %v3921 = vpop.f32.mrb[0].mxu0
      %v3922 = vadd.f32 %v3633, %v3921
      %v3923 = vpop.f32.mrb[0].mxu0
      %3924 = vmatprep.mubr.bf16.mxu0 %v2051
      %3925 = vmatmul.mubr.bf16.gmra.mrb[0].mxu0 %v2050
      %v3926 = vpop.f32.mrb[0].mxu0
      %v3927 = vadd.f32 %v3638, %v3926
      %v3928 = vpop.f32.mrb[0].mxu0
      %v3929 = vpop.f32.mrb[0].mxu0
      %v3930 = vadd.f32 %v3641, %v3929
      %v3931 = vpop.f32.mrb[0].mxu0
      %3932 = vmatprep.mubr.bf16.mxu0 %v2060
      %3933 = vmatmul.mubr.bf16.gmra.mrb[0].mxu0 %v2059
      %v3934 = vpop.f32.mrb[0].mxu0
      %v3935 = vadd.f32 %v3646, %v3934
      %v3936 = vpop.f32.mrb[0].mxu0
      %v3937 = vpop.f32.mrb[0].mxu0
      %v3938 = vadd.f32 %v3649, %v3937
      %v3939 = vpop.f32.mrb[0].mxu0
      %3940 = vmatprep.mubr.bf16.mxu0 %v2069
      %3941 = vmatmul.mubr.bf16.gmra.mrb[0].mxu0 %v2068
      %v3942 = vpop.f32.mrb[0].mxu0
      %v3943 = vadd.f32 %v3654, %v3942
      %v3944 = vpop.f32.mrb[0].mxu0
      %v3945 = vpop.f32.mrb[0].mxu0
      %v3946 = vadd.f32 %v3657, %v3945
      %v3947 = vpop.f32.mrb[0].mxu0
      %3948 = vmatprep.mubr.bf16.mxu0 %v2078
      %3949 = vmatmul.mubr.bf16.gmra.mrb[0].mxu0 %v2077
      %v3950 = vpop.f32.mrb[0].mxu0
      %v3951 = vadd.f32 %v3662, %v3950
      %v3952 = vpop.f32.mrb[0].mxu0
      %v3953 = vpop.f32.mrb[0].mxu0
      %v3954 = vadd.f32 %v3665, %v3953
      %v3955 = vpop.f32.mrb[0].mxu0
      %3956 = vmatprep.mubr.bf16.mxu0 %v2087
      %3957 = vmatmul.mubr.bf16.gmra.mrb[0].mxu0 %v2086
      %v3958 = vpop.f32.mrb[0].mxu0
      %v3959 = vadd.f32 %v3670, %v3958
      %v3960 = vpop.f32.mrb[0].mxu0
      %v3961 = vpop.f32.mrb[0].mxu0
      %v3962 = vadd.f32 %v3673, %v3961
      %v3963 = vpop.f32.mrb[0].mxu0
      %3964 = vdwg.mxu0
      %3965 = vmatprep.subr.bf16.mxu0 0
      %3966 = vmatpush1.bf16.msra.mxu0 %v2729
      %3967 = vmatprep.subr.bf16.mxu0 0
      %3968 = vmatpush1.bf16.msra.mxu0 %v2730
      %3969 = vmatprep.subr.bf16.mxu0 0
      %3970 = vmatpush1.bf16.msra.mxu0 %v2731
      %3971 = vmatprep.subr.bf16.mxu0 0
      %3972 = vmatpush1.bf16.msra.mxu0 %v2732
      %3973 = vmatprep.subr.bf16.mxu0 0
      %3974 = vmatpush1.bf16.msra.mxu0 %v2733
      %3975 = vmatprep.subr.bf16.mxu0 0
      %3976 = vmatpush1.bf16.msra.mxu0 %v2734
      %3977 = vmatprep.subr.bf16.mxu0 0
      %3978 = vmatpush1.bf16.msra.mxu0 %v2735
      %3979 = vmatprep.subr.bf16.mxu0 0
      %3980 = vmatpush1.bf16.msra.mxu0 %v2736
      %3981 = vmatprep.subr.bf16.mxu0 0
      %3982 = vmatpush1.bf16.msra.mxu0 0
      %3983 = vmatprep.subr.bf16.mxu0 0
      %3984 = vmatpush1.bf16.msra.mxu0 0
      %3985 = vmatprep.subr.bf16.mxu0 0
      %3986 = vmatpush1.bf16.msra.mxu0 0
      %3987 = vmatprep.subr.bf16.mxu0 0
      %3988 = vmatpush1.bf16.msra.mxu0 0
      %3989 = vmatprep.subr.bf16.mxu0 0
      %3990 = vmatpush1.bf16.msra.mxu0 0
      %3991 = vmatprep.subr.bf16.mxu0 0
      %3992 = vmatpush1.bf16.msra.mxu0 0
      %3993 = vmatprep.subr.bf16.mxu0 0
      %3994 = vmatpush1.bf16.msra.mxu0 0
      %3995 = vmatprep.subr.bf16.mxu0 0
      %3996 = vmatpush1.bf16.msra.mxu0 0
      %3997 = vmatprep.mubr.bf16.mxu0 0
      %3998 = vmatmul.mubr.bf16.gmra.mrb[0].mxu0 %v1809
      %v3999 = vpop.f32.mrb[0].mxu0
      %v4000 = vadd.f32 %v3711, %v3999
      %v4001 = vpop.f32.mrb[0].mxu0
      %v4002 = vpop.f32.mrb[0].mxu0
      %v4003 = vadd.f32 %v3714, %v4002
      %v4004 = vpop.f32.mrb[0].mxu0
      %4005 = vmatprep.mubr.bf16.mxu0 0
      %4006 = vmatmul.mubr.bf16.gmra.mrb[0].mxu0 %v1818
      %v4007 = vpop.f32.mrb[0].mxu0
      %v4008 = vadd.f32 %v3719, %v4007
      %v4009 = vpop.f32.mrb[0].mxu0
      %v4010 = vpop.f32.mrb[0].mxu0
      %v4011 = vadd.f32 %v3722, %v4010
      %v4012 = vpop.f32.mrb[0].mxu0
      %4013 = vmatprep.mubr.bf16.mxu0 0
      %4014 = vmatmul.mubr.bf16.gmra.mrb[0].mxu0 %v1827
      %v4015 = vpop.f32.mrb[0].mxu0
      %v4016 = vadd.f32 %v3727, %v4015
      %v4017 = vpop.f32.mrb[0].mxu0
      %v4018 = vpop.f32.mrb[0].mxu0
      %v4019 = vadd.f32 %v3730, %v4018
      %v4020 = vpop.f32.mrb[0].mxu0
      %4021 = vmatprep.mubr.bf16.mxu0 0
      %4022 = vmatmul.mubr.bf16.gmra.mrb[0].mxu0 %v1836
      %v4023 = vpop.f32.mrb[0].mxu0
      %v4024 = vadd.f32 %v3735, %v4023
      %v4025 = vpop.f32.mrb[0].mxu0
      %v4026 = vpop.f32.mrb[0].mxu0
      %v4027 = vadd.f32 %v3738, %v4026
      %v4028 = vpop.f32.mrb[0].mxu0
      %4029 = vmatprep.mubr.bf16.mxu0 0
      %4030 = vmatmul.mubr.bf16.gmra.mrb[0].mxu0 %v1845
      %v4031 = vpop.f32.mrb[0].mxu0
      %v4032 = vadd.f32 %v3743, %v4031
      %v4033 = vpop.f32.mrb[0].mxu0
      %v4034 = vpop.f32.mrb[0].mxu0
      %v4035 = vadd.f32 %v3746, %v4034
      %v4036 = vpop.f32.mrb[0].mxu0
      %4037 = vmatprep.mubr.bf16.mxu0 0
      %4038 = vmatmul.mubr.bf16.gmra.mrb[0].mxu0 %v1854
      %v4039 = vpop.f32.mrb[0].mxu0
      %v4040 = vadd.f32 %v3751, %v4039
      %v4041 = vpop.f32.mrb[0].mxu0
      %v4042 = vpop.f32.mrb[0].mxu0
      %v4043 = vadd.f32 %v3754, %v4042
      %v4044 = vpop.f32.mrb[0].mxu0
      %4045 = vmatprep.mubr.bf16.mxu0 0
      %4046 = vmatmul.mubr.bf16.gmra.mrb[0].mxu0 %v1863
      %v4047 = vpop.f32.mrb[0].mxu0
      %v4048 = vadd.f32 %v3759, %v4047
      %v4049 = vpop.f32.mrb[0].mxu0
      %v4050 = vpop.f32.mrb[0].mxu0
      %v4051 = vadd.f32 %v3762, %v4050
      %v4052 = vpop.f32.mrb[0].mxu0
      %4053 = vmatprep.mubr.bf16.mxu0 0
      %4054 = vmatmul.mubr.bf16.gmra.mrb[0].mxu0 %v1872
      %v4055 = vpop.f32.mrb[0].mxu0
      %v4056 = vadd.f32 %v3767, %v4055
      %v4057 = vpop.f32.mrb[0].mxu0
      %v4058 = vpop.f32.mrb[0].mxu0
      %v4059 = vadd.f32 %v3770, %v4058
      %v4060 = vpop.f32.mrb[0].mxu0
      %4061 = vmatprep.mubr.bf16.mxu0 0
      %4062 = vmatmul.mubr.bf16.gmra.mrb[0].mxu0 %v1881
      %v4063 = vpop.f32.mrb[0].mxu0
      %v4064 = vadd.f32 %v3775, %v4063
      %v4065 = vpop.f32.mrb[0].mxu0
      %v4066 = vpop.f32.mrb[0].mxu0
      %v4067 = vadd.f32 %v3778, %v4066
      %v4068 = vpop.f32.mrb[0].mxu0
      %4069 = vmatprep.mubr.bf16.mxu0 0
      %4070 = vmatmul.mubr.bf16.gmra.mrb[0].mxu0 %v1890
      %v4071 = vpop.f32.mrb[0].mxu0
      %v4072 = vadd.f32 %v3783, %v4071
      %v4073 = vpop.f32.mrb[0].mxu0
      %v4074 = vpop.f32.mrb[0].mxu0
      %v4075 = vadd.f32 %v3786, %v4074
      %v4076 = vpop.f32.mrb[0].mxu0
      %4077 = vmatprep.mubr.bf16.mxu0 0
      %4078 = vmatmul.mubr.bf16.gmra.mrb[0].mxu0 %v1899
      %v4079 = vpop.f32.mrb[0].mxu0
      %v4080 = vadd.f32 %v3791, %v4079
      %v4081 = vpop.f32.mrb[0].mxu0
      %v4082 = vpop.f32.mrb[0].mxu0
      %v4083 = vadd.f32 %v3794, %v4082
      %v4084 = vpop.f32.mrb[0].mxu0
      %4085 = vmatprep.mubr.bf16.mxu0 0
      %4086 = vmatmul.mubr.bf16.gmra.mrb[0].mxu0 %v1908
      %v4087 = vpop.f32.mrb[0].mxu0
      %v4088 = vadd.f32 %v3799, %v4087
      %v4089 = vpop.f32.mrb[0].mxu0
      %v4090 = vpop.f32.mrb[0].mxu0
      %v4091 = vadd.f32 %v3802, %v4090
      %v4092 = vpop.f32.mrb[0].mxu0
      %4093 = vmatprep.mubr.bf16.mxu0 0
      %4094 = vmatmul.mubr.bf16.gmra.mrb[0].mxu0 %v1917
      %v4095 = vpop.f32.mrb[0].mxu0
      %v4096 = vadd.f32 %v3807, %v4095
      %v4097 = vpop.f32.mrb[0].mxu0
      %v4098 = vpop.f32.mrb[0].mxu0
      %v4099 = vadd.f32 %v3810, %v4098
      %v4100 = vpop.f32.mrb[0].mxu0
      %4101 = vmatprep.mubr.bf16.mxu0 0
      %4102 = vmatmul.mubr.bf16.gmra.mrb[0].mxu0 %v1926
      %v4103 = vpop.f32.mrb[0].mxu0
      %v4104 = vadd.f32 %v3815, %v4103
      %v4105 = vpop.f32.mrb[0].mxu0
      %v4106 = vpop.f32.mrb[0].mxu0
      %v4107 = vadd.f32 %v3818, %v4106
      %v4108 = vpop.f32.mrb[0].mxu0
      %4109 = vmatprep.mubr.bf16.mxu0 0
      %4110 = vmatmul.mubr.bf16.gmra.mrb[0].mxu0 %v1935
      %v4111 = vpop.f32.mrb[0].mxu0
      %v4112 = vadd.f32 %v3823, %v4111
      %v4113 = vpop.f32.mrb[0].mxu0
      %v4114 = vpop.f32.mrb[0].mxu0
      %v4115 = vadd.f32 %v3826, %v4114
      %v4116 = vpop.f32.mrb[0].mxu0
      %4117 = vmatprep.mubr.bf16.mxu0 0
      %4118 = vmatmul.mubr.bf16.gmra.mrb[0].mxu0 %v1944
      %v4119 = vpop.f32.mrb[0].mxu0
      %v4120 = vadd.f32 %v3831, %v4119
      %v4121 = vpop.f32.mrb[0].mxu0
      %v4122 = vpop.f32.mrb[0].mxu0
      %v4123 = vadd.f32 %v3834, %v4122
      %v4124 = vpop.f32.mrb[0].mxu0
      %4125 = vmatprep.mubr.bf16.mxu0 0
      %4126 = vmatmul.mubr.bf16.gmra.mrb[0].mxu0 %v1953
      %v4127 = vpop.f32.mrb[0].mxu0
      %v4128 = vadd.f32 %v3839, %v4127
      %v4129 = vpop.f32.mrb[0].mxu0
      %v4130 = vpop.f32.mrb[0].mxu0
      %v4131 = vadd.f32 %v3842, %v4130
      %v4132 = vpop.f32.mrb[0].mxu0
      %4133 = vmatprep.mubr.bf16.mxu0 0
      %4134 = vmatmul.mubr.bf16.gmra.mrb[0].mxu0 %v1962
      %v4135 = vpop.f32.mrb[0].mxu0
      %v4136 = vadd.f32 %v3847, %v4135
      %v4137 = vpop.f32.mrb[0].mxu0
      %v4138 = vpop.f32.mrb[0].mxu0
      %v4139 = vadd.f32 %v3850, %v4138
      %v4140 = vpop.f32.mrb[0].mxu0
      %4141 = vmatprep.mubr.bf16.mxu0 0
      %4142 = vmatmul.mubr.bf16.gmra.mrb[0].mxu0 %v1971
      %v4143 = vpop.f32.mrb[0].mxu0
      %v4144 = vadd.f32 %v3855, %v4143
      %v4145 = vpop.f32.mrb[0].mxu0
      %v4146 = vpop.f32.mrb[0].mxu0
      %v4147 = vadd.f32 %v3858, %v4146
      %v4148 = vpop.f32.mrb[0].mxu0
      %4149 = vmatprep.mubr.bf16.mxu0 0
      %4150 = vmatmul.mubr.bf16.gmra.mrb[0].mxu0 %v1980
      %v4151 = vpop.f32.mrb[0].mxu0
      %v4152 = vadd.f32 %v3863, %v4151
      %v4153 = vpop.f32.mrb[0].mxu0
      %v4154 = vpop.f32.mrb[0].mxu0
      %v4155 = vadd.f32 %v3866, %v4154
      %v4156 = vpop.f32.mrb[0].mxu0
      %4157 = vmatprep.mubr.bf16.mxu0 0
      %4158 = vmatmul.mubr.bf16.gmra.mrb[0].mxu0 %v1989
      %v4159 = vpop.f32.mrb[0].mxu0
      %v4160 = vadd.f32 %v3871, %v4159
      %v4161 = vpop.f32.mrb[0].mxu0
      %v4162 = vpop.f32.mrb[0].mxu0
      %v4163 = vadd.f32 %v3874, %v4162
      %v4164 = vpop.f32.mrb[0].mxu0
      %4165 = vmatprep.mubr.bf16.mxu0 0
      %4166 = vmatmul.mubr.bf16.gmra.mrb[0].mxu0 %v1998
      %v4167 = vpop.f32.mrb[0].mxu0
      %v4168 = vadd.f32 %v3879, %v4167
      %v4169 = vpop.f32.mrb[0].mxu0
      %v4170 = vpop.f32.mrb[0].mxu0
      %v4171 = vadd.f32 %v3882, %v4170
      %v4172 = vpop.f32.mrb[0].mxu0
      %4173 = vmatprep.mubr.bf16.mxu0 0
      %4174 = vmatmul.mubr.bf16.gmra.mrb[0].mxu0 %v2007
      %v4175 = vpop.f32.mrb[0].mxu0
      %v4176 = vadd.f32 %v3887, %v4175
      %v4177 = vpop.f32.mrb[0].mxu0
      %v4178 = vpop.f32.mrb[0].mxu0
      %v4179 = vadd.f32 %v3890, %v4178
      %v4180 = vpop.f32.mrb[0].mxu0
      %4181 = vmatprep.mubr.bf16.mxu0 0
      %4182 = vmatmul.mubr.bf16.gmra.mrb[0].mxu0 %v2016
      %v4183 = vpop.f32.mrb[0].mxu0
      %v4184 = vadd.f32 %v3895, %v4183
      %v4185 = vpop.f32.mrb[0].mxu0
      %v4186 = vpop.f32.mrb[0].mxu0
      %v4187 = vadd.f32 %v3898, %v4186
      %v4188 = vpop.f32.mrb[0].mxu0
      %4189 = vmatprep.mubr.bf16.mxu0 0
      %4190 = vmatmul.mubr.bf16.gmra.mrb[0].mxu0 %v2025
      %v4191 = vpop.f32.mrb[0].mxu0
      %v4192 = vadd.f32 %v3903, %v4191
      %v4193 = vpop.f32.mrb[0].mxu0
      %v4194 = vpop.f32.mrb[0].mxu0
      %v4195 = vadd.f32 %v3906, %v4194
      %v4196 = vpop.f32.mrb[0].mxu0
      %4197 = vmatprep.mubr.bf16.mxu0 0
      %4198 = vmatmul.mubr.bf16.gmra.mrb[0].mxu0 %v2034
      %v4199 = vpop.f32.mrb[0].mxu0
      %v4200 = vadd.f32 %v3911, %v4199
      %v4201 = vpop.f32.mrb[0].mxu0
      %v4202 = vpop.f32.mrb[0].mxu0
      %v4203 = vadd.f32 %v3914, %v4202
      %v4204 = vpop.f32.mrb[0].mxu0
      %4205 = vmatprep.mubr.bf16.mxu0 0
      %4206 = vmatmul.mubr.bf16.gmra.mrb[0].mxu0 %v2043
      %v4207 = vpop.f32.mrb[0].mxu0
      %v4208 = vadd.f32 %v3919, %v4207
      %v4209 = vpop.f32.mrb[0].mxu0
      %v4210 = vpop.f32.mrb[0].mxu0
      %v4211 = vadd.f32 %v3922, %v4210
      %v4212 = vpop.f32.mrb[0].mxu0
      %4213 = vmatprep.mubr.bf16.mxu0 0
      %4214 = vmatmul.mubr.bf16.gmra.mrb[0].mxu0 %v2052
      %v4215 = vpop.f32.mrb[0].mxu0
      %v4216 = vadd.f32 %v3927, %v4215
      %v4217 = vpop.f32.mrb[0].mxu0
      %v4218 = vpop.f32.mrb[0].mxu0
      %v4219 = vadd.f32 %v3930, %v4218
      %v4220 = vpop.f32.mrb[0].mxu0
      %4221 = vmatprep.mubr.bf16.mxu0 0
      %4222 = vmatmul.mubr.bf16.gmra.mrb[0].mxu0 %v2061
      %v4223 = vpop.f32.mrb[0].mxu0
      %v4224 = vadd.f32 %v3935, %v4223
      %v4225 = vpop.f32.mrb[0].mxu0
      %v4226 = vpop.f32.mrb[0].mxu0
      %v4227 = vadd.f32 %v3938, %v4226
      %v4228 = vpop.f32.mrb[0].mxu0
      %4229 = vmatprep.mubr.bf16.mxu0 0
      %4230 = vmatmul.mubr.bf16.gmra.mrb[0].mxu0 %v2070
      %v4231 = vpop.f32.mrb[0].mxu0
      %v4232 = vadd.f32 %v3943, %v4231
      %v4233 = vpop.f32.mrb[0].mxu0
      %v4234 = vpop.f32.mrb[0].mxu0
      %v4235 = vadd.f32 %v3946, %v4234
      %v4236 = vpop.f32.mrb[0].mxu0
      %4237 = vmatprep.mubr.bf16.mxu0 0
      %4238 = vmatmul.mubr.bf16.gmra.mrb[0].mxu0 %v2079
      %v4239 = vpop.f32.mrb[0].mxu0
      %v4240 = vadd.f32 %v3951, %v4239
      %v4241 = vpop.f32.mrb[0].mxu0
      %v4242 = vpop.f32.mrb[0].mxu0
      %v4243 = vadd.f32 %v3954, %v4242
      %v4244 = vpop.f32.mrb[0].mxu0
      %4245 = vmatprep.mubr.bf16.mxu0 0
      %4246 = vmatmul.mubr.bf16.gmra.mrb[0].mxu0 %v2088
      %v4247 = vpop.f32.mrb[0].mxu0
      %v4248 = vadd.f32 %v3959, %v4247
      %v4249 = vpop.f32.mrb[0].mxu0
      %v4250 = vpop.f32.mrb[0].mxu0
      %v4251 = vadd.f32 %v3962, %v4250
      %v4252 = vpop.f32.mrb[0].mxu0
      %4253 = vdwg.mxu0
      %v4254 = vadd.f32 %v377, %v4000
      %v4255 = vadd.f32 %v378, %v4003
      %v4256 = vadd.f32 %v379, %v4008
      %v4257 = vadd.f32 %v380, %v4011
      %v4258 = vadd.f32 %v381, %v4016
      %v4259 = vadd.f32 %v382, %v4019
      %v4260 = vadd.f32 %v383, %v4024
      %v4261 = vadd.f32 %v384, %v4027
      %v4262 = vadd.f32 %v385, %v4032
      %v4263 = vadd.f32 %v386, %v4035
      %v4264 = vadd.f32 %v387, %v4040
      %v4265 = vadd.f32 %v388, %v4043
      %v4266 = vadd.f32 %v389, %v4048
      %v4267 = vadd.f32 %v390, %v4051
      %v4268 = vadd.f32 %v391, %v4056
      %v4269 = vadd.f32 %v392, %v4059
      %v4270 = vadd.f32 %v393, %v4064
      %v4271 = vadd.f32 %v394, %v4067
      %v4272 = vadd.f32 %v395, %v4072
      %v4273 = vadd.f32 %v396, %v4075
      %v4274 = vadd.f32 %v397, %v4080
      %v4275 = vadd.f32 %v398, %v4083
      %v4276 = vadd.f32 %v399, %v4088
      %v4277 = vadd.f32 %v400, %v4091
      %v4278 = vadd.f32 %v401, %v4096
      %v4279 = vadd.f32 %v402, %v4099
      %v4280 = vadd.f32 %v403, %v4104
      %v4281 = vadd.f32 %v404, %v4107
      %v4282 = vadd.f32 %v405, %v4112
      %v4283 = vadd.f32 %v406, %v4115
      %v4284 = vadd.f32 %v407, %v4120
      %v4285 = vadd.f32 %v408, %v4123
      %v4286 = vadd.f32 %v409, %v4128
      %v4287 = vadd.f32 %v410, %v4131
      %v4288 = vadd.f32 %v411, %v4136
      %v4289 = vadd.f32 %v412, %v4139
      %v4290 = vadd.f32 %v413, %v4144
      %v4291 = vadd.f32 %v414, %v4147
      %v4292 = vadd.f32 %v415, %v4152
      %v4293 = vadd.f32 %v416, %v4155
      %v4294 = vadd.f32 %v417, %v4160
      %v4295 = vadd.f32 %v418, %v4163
      %v4296 = vadd.f32 %v419, %v4168
      %v4297 = vadd.f32 %v420, %v4171
      %v4298 = vadd.f32 %v421, %v4176
      %v4299 = vadd.f32 %v422, %v4179
      %v4300 = vadd.f32 %v423, %v4184
      %v4301 = vadd.f32 %v424, %v4187
      %v4302 = vadd.f32 %v425, %v4192
      %v4303 = vadd.f32 %v426, %v4195
      %v4304 = vadd.f32 %v427, %v4200
      %v4305 = vadd.f32 %v428, %v4203
      %v4306 = vadd.f32 %v429, %v4208
      %v4307 = vadd.f32 %v430, %v4211
      %v4308 = vadd.f32 %v431, %v4216
      %v4309 = vadd.f32 %v432, %v4219
      %v4310 = vadd.f32 %v433, %v4224
      %v4311 = vadd.f32 %v434, %v4227
      %v4312 = vadd.f32 %v435, %v4232
      %v4313 = vadd.f32 %v436, %v4235
      %v4314 = vadd.f32 %v437, %v4240
      %v4315 = vadd.f32 %v438, %v4243
      %v4316 = vadd.f32 %v439, %v4248
      %v4317 = vadd.f32 %v440, %v4251
      %4318 = vst [vmem:[#allocation2] sm:$0xff] %v4254
      %4319 = vst [vmem:[#allocation2 + $0x8] sm:$0xff] %v4255
      %4320 = vst [vmem:[#allocation2 + $0x10] sm:$0xff] %v4256
      %4321 = vst [vmem:[#allocation2 + $0x18] sm:$0xff] %v4257
      %4322 = vst [vmem:[#allocation2 + $0x20] sm:$0xff] %v4258
      %4323 = vst [vmem:[#allocation2 + $0x28] sm:$0xff] %v4259
      %4324 = vst [vmem:[#allocation2 + $0x30] sm:$0xff] %v4260
      %4325 = vst [vmem:[#allocation2 + $0x38] sm:$0xff] %v4261
      %4326 = vst [vmem:[#allocation2 + $0x40] sm:$0xff] %v4262
      %4327 = vst [vmem:[#allocation2 + $0x48] sm:$0xff] %v4263
      %4328 = vst [vmem:[#allocation2 + $0x50] sm:$0xff] %v4264
      %4329 = vst [vmem:[#allocation2 + $0x58] sm:$0xff] %v4265
      %4330 = vst [vmem:[#allocation2 + $0x60] sm:$0xff] %v4266
      %4331 = vst [vmem:[#allocation2 + $0x68] sm:$0xff] %v4267
      %4332 = vst [vmem:[#allocation2 + $0x70] sm:$0xff] %v4268
      %4333 = vst [vmem:[#allocation2 + $0x78] sm:$0xff] %v4269
      %4334 = vst [vmem:[#allocation2 + $0x80] sm:$0xff] %v4270
      %4335 = vst [vmem:[#allocation2 + $0x88] sm:$0xff] %v4271
      %4336 = vst [vmem:[#allocation2 + $0x90] sm:$0xff] %v4272
      %4337 = vst [vmem:[#allocation2 + $0x98] sm:$0xff] %v4273
      %4338 = vst [vmem:[#allocation2 + $0xa0] sm:$0xff] %v4274
      %4339 = vst [vmem:[#allocation2 + $0xa8] sm:$0xff] %v4275
      %4340 = vst [vmem:[#allocation2 + $0xb0] sm:$0xff] %v4276
      %4341 = vst [vmem:[#allocation2 + $0xb8] sm:$0xff] %v4277
      %4342 = vst [vmem:[#allocation2 + $0xc0] sm:$0xff] %v4278
      %4343 = vst [vmem:[#allocation2 + $0xc8] sm:$0xff] %v4279
      %4344 = vst [vmem:[#allocation2 + $0xd0] sm:$0xff] %v4280
      %4345 = vst [vmem:[#allocation2 + $0xd8] sm:$0xff] %v4281
      %4346 = vst [vmem:[#allocation2 + $0xe0] sm:$0xff] %v4282
      %4347 = vst [vmem:[#allocation2 + $0xe8] sm:$0xff] %v4283
      %4348 = vst [vmem:[#allocation2 + $0xf0] sm:$0xff] %v4284
      %4349 = vst [vmem:[#allocation2 + $0xf8] sm:$0xff] %v4285
      %4350 = vst [vmem:[#allocation2 + $0x100] sm:$0xff] %v4286
      %4351 = vst [vmem:[#allocation2 + $0x108] sm:$0xff] %v4287
      %4352 = vst [vmem:[#allocation2 + $0x110] sm:$0xff] %v4288
      %4353 = vst [vmem:[#allocation2 + $0x118] sm:$0xff] %v4289
      %4354 = vst [vmem:[#allocation2 + $0x120] sm:$0xff] %v4290
      %4355 = vst [vmem:[#allocation2 + $0x128] sm:$0xff] %v4291
      %4356 = vst [vmem:[#allocation2 + $0x130] sm:$0xff] %v4292
      %4357 = vst [vmem:[#allocation2 + $0x138] sm:$0xff] %v4293
      %4358 = vst [vmem:[#allocation2 + $0x140] sm:$0xff] %v4294
      %4359 = vst [vmem:[#allocation2 + $0x148] sm:$0xff] %v4295
      %4360 = vst [vmem:[#allocation2 + $0x150] sm:$0xff] %v4296
      %4361 = vst [vmem:[#allocation2 + $0x158] sm:$0xff] %v4297
      %4362 = vst [vmem:[#allocation2 + $0x160] sm:$0xff] %v4298
      %4363 = vst [vmem:[#allocation2 + $0x168] sm:$0xff] %v4299
      %4364 = vst [vmem:[#allocation2 + $0x170] sm:$0xff] %v4300
      %4365 = vst [vmem:[#allocation2 + $0x178] sm:$0xff] %v4301
      %4366 = vst [vmem:[#allocation2 + $0x180] sm:$0xff] %v4302
      %4367 = vst [vmem:[#allocation2 + $0x188] sm:$0xff] %v4303
      %4368 = vst [vmem:[#allocation2 + $0x190] sm:$0xff] %v4304
      %4369 = vst [vmem:[#allocation2 + $0x198] sm:$0xff] %v4305
      %4370 = vst [vmem:[#allocation2 + $0x1a0] sm:$0xff] %v4306
      %4371 = vst [vmem:[#allocation2 + $0x1a8] sm:$0xff] %v4307
      %4372 = vst [vmem:[#allocation2 + $0x1b0] sm:$0xff] %v4308
      %4373 = vst [vmem:[#allocation2 + $0x1b8] sm:$0xff] %v4309
      %4374 = vst [vmem:[#allocation2 + $0x1c0] sm:$0xff] %v4310
      %4375 = vst [vmem:[#allocation2 + $0x1c8] sm:$0xff] %v4311
      %4376 = vst [vmem:[#allocation2 + $0x1d0] sm:$0xff] %v4312
      %4377 = vst [vmem:[#allocation2 + $0x1d8] sm:$0xff] %v4313
      %4378 = vst [vmem:[#allocation2 + $0x1e0] sm:$0xff] %v4314
      %4379 = vst [vmem:[#allocation2 + $0x1e8] sm:$0xff] %v4315
      %4380 = vst [vmem:[#allocation2 + $0x1f0] sm:$0xff] %v4316
      %4381 = vst [vmem:[#allocation2 + $0x1f8] sm:$0xff] %v4317
      // Predicated region
      $region41: #{_lambda_.13} parent=35 // pred_check
        %p4382 = pneg %p309
      $region42: #{_lambda_.13} parent=35 // pred_check_branch
        %4384 = sbr.rel (%p4382) target = $region44
      $region43: #{_lambda_.13} parent=35 // pred_region
        %v4385 = vld [vmem:[#allocation2] sm:$0xff]
        %v4386 = vld [vmem:[#allocation2 + $0x8] sm:$0xff]
        %v4387 = vld [vmem:[#allocation2 + $0x10] sm:$0xff]
        %v4388 = vld [vmem:[#allocation2 + $0x18] sm:$0xff]
        %v4389 = vld [vmem:[#allocation2 + $0x20] sm:$0xff]
        %v4390 = vld [vmem:[#allocation2 + $0x28] sm:$0xff]
        %v4391 = vld [vmem:[#allocation2 + $0x30] sm:$0xff]
        %v4392 = vld [vmem:[#allocation2 + $0x38] sm:$0xff]
        %v4393 = vld [vmem:[#allocation2 + $0x40] sm:$0xff]
        %v4394 = vld [vmem:[#allocation2 + $0x48] sm:$0xff]
        %v4395 = vld [vmem:[#allocation2 + $0x50] sm:$0xff]
        %v4396 = vld [vmem:[#allocation2 + $0x58] sm:$0xff]
        %v4397 = vld [vmem:[#allocation2 + $0x60] sm:$0xff]
        %v4398 = vld [vmem:[#allocation2 + $0x68] sm:$0xff]
        %v4399 = vld [vmem:[#allocation2 + $0x70] sm:$0xff]
        %v4400 = vld [vmem:[#allocation2 + $0x78] sm:$0xff]
        %v4401 = vld [vmem:[#allocation2 + $0x80] sm:$0xff]
        %v4402 = vld [vmem:[#allocation2 + $0x88] sm:$0xff]
        %v4403 = vld [vmem:[#allocation2 + $0x90] sm:$0xff]
        %v4404 = vld [vmem:[#allocation2 + $0x98] sm:$0xff]
        %v4405 = vld [vmem:[#allocation2 + $0xa0] sm:$0xff]
        %v4406 = vld [vmem:[#allocation2 + $0xa8] sm:$0xff]
        %v4407 = vld [vmem:[#allocation2 + $0xb0] sm:$0xff]
        %v4408 = vld [vmem:[#allocation2 + $0xb8] sm:$0xff]
        %v4409 = vld [vmem:[#allocation2 + $0xc0] sm:$0xff]
        %v4410 = vld [vmem:[#allocation2 + $0xc8] sm:$0xff]
        %v4411 = vld [vmem:[#allocation2 + $0xd0] sm:$0xff]
        %v4412 = vld [vmem:[#allocation2 + $0xd8] sm:$0xff]
        %v4413 = vld [vmem:[#allocation2 + $0xe0] sm:$0xff]
        %v4414 = vld [vmem:[#allocation2 + $0xe8] sm:$0xff]
        %v4415 = vld [vmem:[#allocation2 + $0xf0] sm:$0xff]
        %v4416 = vld [vmem:[#allocation2 + $0xf8] sm:$0xff]
        %v4417 = vld [vmem:[#allocation2 + $0x100] sm:$0xff]
        %v4418 = vld [vmem:[#allocation2 + $0x108] sm:$0xff]
        %v4419 = vld [vmem:[#allocation2 + $0x110] sm:$0xff]
        %v4420 = vld [vmem:[#allocation2 + $0x118] sm:$0xff]
        %v4421 = vld [vmem:[#allocation2 + $0x120] sm:$0xff]
        %v4422 = vld [vmem:[#allocation2 + $0x128] sm:$0xff]
        %v4423 = vld [vmem:[#allocation2 + $0x130] sm:$0xff]
        %v4424 = vld [vmem:[#allocation2 + $0x138] sm:$0xff]
        %v4425 = vld [vmem:[#allocation2 + $0x140] sm:$0xff]
        %v4426 = vld [vmem:[#allocation2 + $0x148] sm:$0xff]
        %v4427 = vld [vmem:[#allocation2 + $0x150] sm:$0xff]
        %v4428 = vld [vmem:[#allocation2 + $0x158] sm:$0xff]
        %v4429 = vld [vmem:[#allocation2 + $0x160] sm:$0xff]
        %v4430 = vld [vmem:[#allocation2 + $0x168] sm:$0xff]
        %v4431 = vld [vmem:[#allocation2 + $0x170] sm:$0xff]
        %v4432 = vld [vmem:[#allocation2 + $0x178] sm:$0xff]
        %v4433 = vld [vmem:[#allocation2 + $0x180] sm:$0xff]
        %v4434 = vld [vmem:[#allocation2 + $0x188] sm:$0xff]
        %v4435 = vld [vmem:[#allocation2 + $0x190] sm:$0xff]
        %v4436 = vld [vmem:[#allocation2 + $0x198] sm:$0xff]
        %v4437 = vld [vmem:[#allocation2 + $0x1a0] sm:$0xff]
        %v4438 = vld [vmem:[#allocation2 + $0x1a8] sm:$0xff]
        %v4439 = vld [vmem:[#allocation2 + $0x1b0] sm:$0xff]
        %v4440 = vld [vmem:[#allocation2 + $0x1b8] sm:$0xff]
        %v4441 = vld [vmem:[#allocation2 + $0x1c0] sm:$0xff]
        %v4442 = vld [vmem:[#allocation2 + $0x1c8] sm:$0xff]
        %v4443 = vld [vmem:[#allocation2 + $0x1d0] sm:$0xff]
        %v4444 = vld [vmem:[#allocation2 + $0x1d8] sm:$0xff]
        %v4445 = vld [vmem:[#allocation2 + $0x1e0] sm:$0xff]
        %v4446 = vld [vmem:[#allocation2 + $0x1e8] sm:$0xff]
        %v4447 = vld [vmem:[#allocation2 + $0x1f0] sm:$0xff]
        %v4448 = vld [vmem:[#allocation2 + $0x1f8] sm:$0xff]
        %v4449 = vld [vmem:[%s295] sm:$0x1]
        %v4451 = vlaneseq
        %v4452 = vshrl.u32 %v4451, 7
        %v4453 = vsub.s32 0, %v4452
        %v4454 = vrot.slane %v4449, %v4453
        %v4456 = vmul.f32 %v4385, %v4454
        %v4457 = vmul.f32 %v4386, %v4454
        %v4458 = vmul.f32 %v4387, %v4454
        %v4459 = vmul.f32 %v4388, %v4454
        %v4460 = vmul.f32 %v4389, %v4454
        %v4461 = vmul.f32 %v4390, %v4454
        %v4462 = vmul.f32 %v4391, %v4454
        %v4463 = vmul.f32 %v4392, %v4454
        %v4464 = vmul.f32 %v4393, %v4454
        %v4465 = vmul.f32 %v4394, %v4454
        %v4466 = vmul.f32 %v4395, %v4454
        %v4467 = vmul.f32 %v4396, %v4454
        %v4468 = vmul.f32 %v4397, %v4454
        %v4469 = vmul.f32 %v4398, %v4454
        %v4470 = vmul.f32 %v4399, %v4454
        %v4471 = vmul.f32 %v4400, %v4454
        %v4472 = vmul.f32 %v4401, %v4454
        %v4473 = vmul.f32 %v4402, %v4454
        %v4474 = vmul.f32 %v4403, %v4454
        %v4475 = vmul.f32 %v4404, %v4454
        %v4476 = vmul.f32 %v4405, %v4454
        %v4477 = vmul.f32 %v4406, %v4454
        %v4478 = vmul.f32 %v4407, %v4454
        %v4479 = vmul.f32 %v4408, %v4454
        %v4480 = vmul.f32 %v4409, %v4454
        %v4481 = vmul.f32 %v4410, %v4454
        %v4482 = vmul.f32 %v4411, %v4454
        %v4483 = vmul.f32 %v4412, %v4454
        %v4484 = vmul.f32 %v4413, %v4454
        %v4485 = vmul.f32 %v4414, %v4454
        %v4486 = vmul.f32 %v4415, %v4454
        %v4487 = vmul.f32 %v4416, %v4454
        %v4488 = vmul.f32 %v4417, %v4454
        %v4489 = vmul.f32 %v4418, %v4454
        %v4490 = vmul.f32 %v4419, %v4454
        %v4491 = vmul.f32 %v4420, %v4454
        %v4492 = vmul.f32 %v4421, %v4454
        %v4493 = vmul.f32 %v4422, %v4454
        %v4494 = vmul.f32 %v4423, %v4454
        %v4495 = vmul.f32 %v4424, %v4454
        %v4496 = vmul.f32 %v4425, %v4454
        %v4497 = vmul.f32 %v4426, %v4454
        %v4498 = vmul.f32 %v4427, %v4454
        %v4499 = vmul.f32 %v4428, %v4454
        %v4500 = vmul.f32 %v4429, %v4454
        %v4501 = vmul.f32 %v4430, %v4454
        %v4502 = vmul.f32 %v4431, %v4454
        %v4503 = vmul.f32 %v4432, %v4454
        %v4504 = vmul.f32 %v4433, %v4454
        %v4505 = vmul.f32 %v4434, %v4454
        %v4506 = vmul.f32 %v4435, %v4454
        %v4507 = vmul.f32 %v4436, %v4454
        %v4508 = vmul.f32 %v4437, %v4454
        %v4509 = vmul.f32 %v4438, %v4454
        %v4510 = vmul.f32 %v4439, %v4454
        %v4511 = vmul.f32 %v4440, %v4454
        %v4512 = vmul.f32 %v4441, %v4454
        %v4513 = vmul.f32 %v4442, %v4454
        %v4514 = vmul.f32 %v4443, %v4454
        %v4515 = vmul.f32 %v4444, %v4454
        %v4516 = vmul.f32 %v4445, %v4454
        %v4517 = vmul.f32 %v4446, %v4454
        %v4518 = vmul.f32 %v4447, %v4454
        %v4519 = vmul.f32 %v4448, %v4454
        %v4520 = vld [vmem:[%s298] sm:$0x1]
        %v4522 = vlaneseq
        %v4523 = vshrl.u32 %v4522, 7
        %v4524 = vsub.s32 0, %v4523
        %v4525 = vrot.slane %v4520, %v4524
        %v4527 = vadd.f32 %v4456, %v4525
        %v4528 = vadd.f32 %v4457, %v4525
        %v4529 = vadd.f32 %v4458, %v4525
        %v4530 = vadd.f32 %v4459, %v4525
        %v4531 = vadd.f32 %v4460, %v4525
        %v4532 = vadd.f32 %v4461, %v4525
        %v4533 = vadd.f32 %v4462, %v4525
        %v4534 = vadd.f32 %v4463, %v4525
        %v4535 = vadd.f32 %v4464, %v4525
        %v4536 = vadd.f32 %v4465, %v4525
        %v4537 = vadd.f32 %v4466, %v4525
        %v4538 = vadd.f32 %v4467, %v4525
        %v4539 = vadd.f32 %v4468, %v4525
        %v4540 = vadd.f32 %v4469, %v4525
        %v4541 = vadd.f32 %v4470, %v4525
        %v4542 = vadd.f32 %v4471, %v4525
        %v4543 = vadd.f32 %v4472, %v4525
        %v4544 = vadd.f32 %v4473, %v4525
        %v4545 = vadd.f32 %v4474, %v4525
        %v4546 = vadd.f32 %v4475, %v4525
        %v4547 = vadd.f32 %v4476, %v4525
        %v4548 = vadd.f32 %v4477, %v4525
        %v4549 = vadd.f32 %v4478, %v4525
        %v4550 = vadd.f32 %v4479, %v4525
        %v4551 = vadd.f32 %v4480, %v4525
        %v4552 = vadd.f32 %v4481, %v4525
        %v4553 = vadd.f32 %v4482, %v4525
        %v4554 = vadd.f32 %v4483, %v4525
        %v4555 = vadd.f32 %v4484, %v4525
        %v4556 = vadd.f32 %v4485, %v4525
        %v4557 = vadd.f32 %v4486, %v4525
        %v4558 = vadd.f32 %v4487, %v4525
        %v4559 = vadd.f32 %v4488, %v4525
        %v4560 = vadd.f32 %v4489, %v4525
        %v4561 = vadd.f32 %v4490, %v4525
        %v4562 = vadd.f32 %v4491, %v4525
        %v4563 = vadd.f32 %v4492, %v4525
        %v4564 = vadd.f32 %v4493, %v4525
        %v4565 = vadd.f32 %v4494, %v4525
        %v4566 = vadd.f32 %v4495, %v4525
        %v4567 = vadd.f32 %v4496, %v4525
        %v4568 = vadd.f32 %v4497, %v4525
        %v4569 = vadd.f32 %v4498, %v4525
        %v4570 = vadd.f32 %v4499, %v4525
        %v4571 = vadd.f32 %v4500, %v4525
        %v4572 = vadd.f32 %v4501, %v4525
        %v4573 = vadd.f32 %v4502, %v4525
        %v4574 = vadd.f32 %v4503, %v4525
        %v4575 = vadd.f32 %v4504, %v4525
        %v4576 = vadd.f32 %v4505, %v4525
        %v4577 = vadd.f32 %v4506, %v4525
        %v4578 = vadd.f32 %v4507, %v4525
        %v4579 = vadd.f32 %v4508, %v4525
        %v4580 = vadd.f32 %v4509, %v4525
        %v4581 = vadd.f32 %v4510, %v4525
        %v4582 = vadd.f32 %v4511, %v4525
        %v4583 = vadd.f32 %v4512, %v4525
        %v4584 = vadd.f32 %v4513, %v4525
        %v4585 = vadd.f32 %v4514, %v4525
        %v4586 = vadd.f32 %v4515, %v4525
        %v4587 = vadd.f32 %v4516, %v4525
        %v4588 = vadd.f32 %v4517, %v4525
        %v4589 = vadd.f32 %v4518, %v4525
        %v4590 = vadd.f32 %v4519, %v4525
        %v4591 = vmax.f32 %v4527, 0.0
        %v4592 = vmax.f32 %v4528, 0.0
        %v4593 = vmax.f32 %v4529, 0.0
        %v4594 = vmax.f32 %v4530, 0.0
        %v4595 = vmax.f32 %v4531, 0.0
        %v4596 = vmax.f32 %v4532, 0.0
        %v4597 = vmax.f32 %v4533, 0.0
        %v4598 = vmax.f32 %v4534, 0.0
        %v4599 = vmax.f32 %v4535, 0.0
        %v4600 = vmax.f32 %v4536, 0.0
        %v4601 = vmax.f32 %v4537, 0.0
        %v4602 = vmax.f32 %v4538, 0.0
        %v4603 = vmax.f32 %v4539, 0.0
        %v4604 = vmax.f32 %v4540, 0.0
        %v4605 = vmax.f32 %v4541, 0.0
        %v4606 = vmax.f32 %v4542, 0.0
        %v4607 = vmax.f32 %v4543, 0.0
        %v4608 = vmax.f32 %v4544, 0.0
        %v4609 = vmax.f32 %v4545, 0.0
        %v4610 = vmax.f32 %v4546, 0.0
        %v4611 = vmax.f32 %v4547, 0.0
        %v4612 = vmax.f32 %v4548, 0.0
        %v4613 = vmax.f32 %v4549, 0.0
        %v4614 = vmax.f32 %v4550, 0.0
        %v4615 = vmax.f32 %v4551, 0.0
        %v4616 = vmax.f32 %v4552, 0.0
        %v4617 = vmax.f32 %v4553, 0.0
        %v4618 = vmax.f32 %v4554, 0.0
        %v4619 = vmax.f32 %v4555, 0.0
        %v4620 = vmax.f32 %v4556, 0.0
        %v4621 = vmax.f32 %v4557, 0.0
        %v4622 = vmax.f32 %v4558, 0.0
        %v4623 = vmax.f32 %v4559, 0.0
        %v4624 = vmax.f32 %v4560, 0.0
        %v4625 = vmax.f32 %v4561, 0.0
        %v4626 = vmax.f32 %v4562, 0.0
        %v4627 = vmax.f32 %v4563, 0.0
        %v4628 = vmax.f32 %v4564, 0.0
        %v4629 = vmax.f32 %v4565, 0.0
        %v4630 = vmax.f32 %v4566, 0.0
        %v4631 = vmax.f32 %v4567, 0.0
        %v4632 = vmax.f32 %v4568, 0.0
        %v4633 = vmax.f32 %v4569, 0.0
        %v4634 = vmax.f32 %v4570, 0.0
        %v4635 = vmax.f32 %v4571, 0.0
        %v4636 = vmax.f32 %v4572, 0.0
        %v4637 = vmax.f32 %v4573, 0.0
        %v4638 = vmax.f32 %v4574, 0.0
        %v4639 = vmax.f32 %v4575, 0.0
        %v4640 = vmax.f32 %v4576, 0.0
        %v4641 = vmax.f32 %v4577, 0.0
        %v4642 = vmax.f32 %v4578, 0.0
        %v4643 = vmax.f32 %v4579, 0.0
        %v4644 = vmax.f32 %v4580, 0.0
        %v4645 = vmax.f32 %v4581, 0.0
        %v4646 = vmax.f32 %v4582, 0.0
        %v4647 = vmax.f32 %v4583, 0.0
        %v4648 = vmax.f32 %v4584, 0.0
        %v4649 = vmax.f32 %v4585, 0.0
        %v4650 = vmax.f32 %v4586, 0.0
        %v4651 = vmax.f32 %v4587, 0.0
        %v4652 = vmax.f32 %v4588, 0.0
        %v4653 = vmax.f32 %v4589, 0.0
        %v4654 = vmax.f32 %v4590, 0.0
        %v4655 = vpack.c.bf16 %v4592, %v4591
        %v4656 = vpack.c.bf16 %v4594, %v4593
        %v4657 = vpack.c.bf16 %v4596, %v4595
        %v4658 = vpack.c.bf16 %v4598, %v4597
        %v4659 = vpack.c.bf16 %v4600, %v4599
        %v4660 = vpack.c.bf16 %v4602, %v4601
        %v4661 = vpack.c.bf16 %v4604, %v4603
        %v4662 = vpack.c.bf16 %v4606, %v4605
        %v4663 = vpack.c.bf16 %v4608, %v4607
        %v4664 = vpack.c.bf16 %v4610, %v4609
        %v4665 = vpack.c.bf16 %v4612, %v4611
        %v4666 = vpack.c.bf16 %v4614, %v4613
        %v4667 = vpack.c.bf16 %v4616, %v4615
        %v4668 = vpack.c.bf16 %v4618, %v4617
        %v4669 = vpack.c.bf16 %v4620, %v4619
        %v4670 = vpack.c.bf16 %v4622, %v4621
        %v4671 = vpack.c.bf16 %v4624, %v4623
        %v4672 = vpack.c.bf16 %v4626, %v4625
        %v4673 = vpack.c.bf16 %v4628, %v4627
        %v4674 = vpack.c.bf16 %v4630, %v4629
        %v4675 = vpack.c.bf16 %v4632, %v4631
        %v4676 = vpack.c.bf16 %v4634, %v4633
        %v4677 = vpack.c.bf16 %v4636, %v4635
        %v4678 = vpack.c.bf16 %v4638, %v4637
        %v4679 = vpack.c.bf16 %v4640, %v4639
        %v4680 = vpack.c.bf16 %v4642, %v4641
        %v4681 = vpack.c.bf16 %v4644, %v4643
        %v4682 = vpack.c.bf16 %v4646, %v4645
        %v4683 = vpack.c.bf16 %v4648, %v4647
        %v4684 = vpack.c.bf16 %v4650, %v4649
        %v4685 = vpack.c.bf16 %v4652, %v4651
        %v4686 = vpack.c.bf16 %v4654, %v4653
        %v4719 = vunpack.c.l.b16 %v4655
        %v4720 = vunpack.c.h.b16 %v4655
        %v4721 = vunpack.c.l.b16 %v4656
        %v4722 = vunpack.c.h.b16 %v4656
        %v4723 = vunpack.c.l.b16 %v4657
        %v4724 = vunpack.c.h.b16 %v4657
        %v4725 = vunpack.c.l.b16 %v4658
        %v4726 = vunpack.c.h.b16 %v4658
        %v4727 = vunpack.c.l.b16 %v4659
        %v4728 = vunpack.c.h.b16 %v4659
        %v4729 = vunpack.c.l.b16 %v4660
        %v4730 = vunpack.c.h.b16 %v4660
        %v4731 = vunpack.c.l.b16 %v4661
        %v4732 = vunpack.c.h.b16 %v4661
        %v4733 = vunpack.c.l.b16 %v4662
        %v4734 = vunpack.c.h.b16 %v4662
        %v4735 = vunpack.c.l.b16 %v4663
        %v4736 = vunpack.c.h.b16 %v4663
        %v4737 = vunpack.c.l.b16 %v4664
        %v4738 = vunpack.c.h.b16 %v4664
        %v4739 = vunpack.c.l.b16 %v4665
        %v4740 = vunpack.c.h.b16 %v4665
        %v4741 = vunpack.c.l.b16 %v4666
        %v4742 = vunpack.c.h.b16 %v4666
        %v4743 = vunpack.c.l.b16 %v4667
        %v4744 = vunpack.c.h.b16 %v4667
        %v4745 = vunpack.c.l.b16 %v4668
        %v4746 = vunpack.c.h.b16 %v4668
        %v4747 = vunpack.c.l.b16 %v4669
        %v4748 = vunpack.c.h.b16 %v4669
        %v4749 = vunpack.c.l.b16 %v4670
        %v4750 = vunpack.c.h.b16 %v4670
        %v4751 = vunpack.c.l.b16 %v4671
        %v4752 = vunpack.c.h.b16 %v4671
        %v4753 = vunpack.c.l.b16 %v4672
        %v4754 = vunpack.c.h.b16 %v4672
        %v4755 = vunpack.c.l.b16 %v4673
        %v4756 = vunpack.c.h.b16 %v4673
        %v4757 = vunpack.c.l.b16 %v4674
        %v4758 = vunpack.c.h.b16 %v4674
        %v4759 = vunpack.c.l.b16 %v4675
        %v4760 = vunpack.c.h.b16 %v4675
        %v4761 = vunpack.c.l.b16 %v4676
        %v4762 = vunpack.c.h.b16 %v4676
        %v4763 = vunpack.c.l.b16 %v4677
        %v4764 = vunpack.c.h.b16 %v4677
        %v4765 = vunpack.c.l.b16 %v4678
        %v4766 = vunpack.c.h.b16 %v4678
        %v4767 = vunpack.c.l.b16 %v4679
        %v4768 = vunpack.c.h.b16 %v4679
        %v4769 = vunpack.c.l.b16 %v4680
        %v4770 = vunpack.c.h.b16 %v4680
        %v4771 = vunpack.c.l.b16 %v4681
        %v4772 = vunpack.c.h.b16 %v4681
        %v4773 = vunpack.c.l.b16 %v4682
        %v4774 = vunpack.c.h.b16 %v4682
        %v4775 = vunpack.c.l.b16 %v4683
        %v4776 = vunpack.c.h.b16 %v4683
        %v4777 = vunpack.c.l.b16 %v4684
        %v4778 = vunpack.c.h.b16 %v4684
        %v4779 = vunpack.c.l.b16 %v4685
        %v4780 = vunpack.c.h.b16 %v4685
        %v4781 = vunpack.c.l.b16 %v4686
        %v4782 = vunpack.c.h.b16 %v4686
        %v4783 = vpack.c.b16 %v4719, %v4719
        %v4784 = vpack.c.b16 %v4720, %v4720
        %v4785 = vpack.c.b16 %v4721, %v4721
        %v4786 = vpack.c.b16 %v4722, %v4722
        %v4787 = vpack.c.b16 %v4723, %v4723
        %v4788 = vpack.c.b16 %v4724, %v4724
        %v4789 = vpack.c.b16 %v4725, %v4725
        %v4790 = vpack.c.b16 %v4726, %v4726
        %v4791 = vpack.c.b16 %v4727, %v4727
        %v4792 = vpack.c.b16 %v4728, %v4728
        %v4793 = vpack.c.b16 %v4729, %v4729
        %v4794 = vpack.c.b16 %v4730, %v4730
        %v4795 = vpack.c.b16 %v4731, %v4731
        %v4796 = vpack.c.b16 %v4732, %v4732
        %v4797 = vpack.c.b16 %v4733, %v4733
        %v4798 = vpack.c.b16 %v4734, %v4734
        %v4799 = vpack.c.b16 %v4735, %v4735
        %v4800 = vpack.c.b16 %v4736, %v4736
        %v4801 = vpack.c.b16 %v4737, %v4737
        %v4802 = vpack.c.b16 %v4738, %v4738
        %v4803 = vpack.c.b16 %v4739, %v4739
        %v4804 = vpack.c.b16 %v4740, %v4740
        %v4805 = vpack.c.b16 %v4741, %v4741
        %v4806 = vpack.c.b16 %v4742, %v4742
        %v4807 = vpack.c.b16 %v4743, %v4743
        %v4808 = vpack.c.b16 %v4744, %v4744
        %v4809 = vpack.c.b16 %v4745, %v4745
        %v4810 = vpack.c.b16 %v4746, %v4746
        %v4811 = vpack.c.b16 %v4747, %v4747
        %v4812 = vpack.c.b16 %v4748, %v4748
        %v4813 = vpack.c.b16 %v4749, %v4749
        %v4814 = vpack.c.b16 %v4750, %v4750
        %v4815 = vpack.c.b16 %v4751, %v4751
        %v4816 = vpack.c.b16 %v4752, %v4752
        %v4817 = vpack.c.b16 %v4753, %v4753
        %v4818 = vpack.c.b16 %v4754, %v4754
        %v4819 = vpack.c.b16 %v4755, %v4755
        %v4820 = vpack.c.b16 %v4756, %v4756
        %v4821 = vpack.c.b16 %v4757, %v4757
        %v4822 = vpack.c.b16 %v4758, %v4758
        %v4823 = vpack.c.b16 %v4759, %v4759
        %v4824 = vpack.c.b16 %v4760, %v4760
        %v4825 = vpack.c.b16 %v4761, %v4761
        %v4826 = vpack.c.b16 %v4762, %v4762
        %v4827 = vpack.c.b16 %v4763, %v4763
        %v4828 = vpack.c.b16 %v4764, %v4764
        %v4829 = vpack.c.b16 %v4765, %v4765
        %v4830 = vpack.c.b16 %v4766, %v4766
        %v4831 = vpack.c.b16 %v4767, %v4767
        %v4832 = vpack.c.b16 %v4768, %v4768
        %v4833 = vpack.c.b16 %v4769, %v4769
        %v4834 = vpack.c.b16 %v4770, %v4770
        %v4835 = vpack.c.b16 %v4771, %v4771
        %v4836 = vpack.c.b16 %v4772, %v4772
        %v4837 = vpack.c.b16 %v4773, %v4773
        %v4838 = vpack.c.b16 %v4774, %v4774
        %v4839 = vpack.c.b16 %v4775, %v4775
        %v4840 = vpack.c.b16 %v4776, %v4776
        %v4841 = vpack.c.b16 %v4777, %v4777
        %v4842 = vpack.c.b16 %v4778, %v4778
        %v4843 = vpack.c.b16 %v4779, %v4779
        %v4844 = vpack.c.b16 %v4780, %v4780
        %v4845 = vpack.c.b16 %v4781, %v4781
        %v4846 = vpack.c.b16 %v4782, %v4782
        %4911 = vst [vmem:[%s306] sm:$0xf] %v4783
        %4912 = vst [vmem:[%s306 + $0x4] sm:$0xf] %v4784
        %4913 = vst [vmem:[%s306 + $0x8] sm:$0xf] %v4785
        %4914 = vst [vmem:[%s306 + $0xc] sm:$0xf] %v4786
        %4915 = vst [vmem:[%s306 + $0x10] sm:$0xf] %v4787
        %4916 = vst [vmem:[%s306 + $0x14] sm:$0xf] %v4788
        %4917 = vst [vmem:[%s306 + $0x18] sm:$0xf] %v4789
        %4918 = vst [vmem:[%s306 + $0x1c] sm:$0xf] %v4790
        %4919 = vst [vmem:[%s306 + $0x20] sm:$0xf] %v4791
        %4920 = vst [vmem:[%s306 + $0x24] sm:$0xf] %v4792
        %4921 = vst [vmem:[%s306 + $0x28] sm:$0xf] %v4793
        %4922 = vst [vmem:[%s306 + $0x2c] sm:$0xf] %v4794
        %4923 = vst [vmem:[%s306 + $0x30] sm:$0xf] %v4795
        %4924 = vst [vmem:[%s306 + $0x34] sm:$0xf] %v4796
        %4925 = vst [vmem:[%s306 + $0x38] sm:$0xf] %v4797
        %4926 = vst [vmem:[%s306 + $0x3c] sm:$0xf] %v4798
        %4927 = vst [vmem:[%s306 + $0x40] sm:$0xf] %v4799
        %4928 = vst [vmem:[%s306 + $0x44] sm:$0xf] %v4800
        %4929 = vst [vmem:[%s306 + $0x48] sm:$0xf] %v4801
        %4930 = vst [vmem:[%s306 + $0x4c] sm:$0xf] %v4802
        %4931 = vst [vmem:[%s306 + $0x50] sm:$0xf] %v4803
        %4932 = vst [vmem:[%s306 + $0x54] sm:$0xf] %v4804
        %4933 = vst [vmem:[%s306 + $0x58] sm:$0xf] %v4805
        %4934 = vst [vmem:[%s306 + $0x5c] sm:$0xf] %v4806
        %4935 = vst [vmem:[%s306 + $0x60] sm:$0xf] %v4807
        %4936 = vst [vmem:[%s306 + $0x64] sm:$0xf] %v4808
        %4937 = vst [vmem:[%s306 + $0x68] sm:$0xf] %v4809
        %4938 = vst [vmem:[%s306 + $0x6c] sm:$0xf] %v4810
        %4939 = vst [vmem:[%s306 + $0x70] sm:$0xf] %v4811
        %4940 = vst [vmem:[%s306 + $0x74] sm:$0xf] %v4812
        %4941 = vst [vmem:[%s306 + $0x78] sm:$0xf] %v4813
        %4942 = vst [vmem:[%s306 + $0x7c] sm:$0xf] %v4814
        %4943 = vst [vmem:[%s306 + $0x80] sm:$0xf] %v4815
        %4944 = vst [vmem:[%s306 + $0x84] sm:$0xf] %v4816
        %4945 = vst [vmem:[%s306 + $0x88] sm:$0xf] %v4817
        %4946 = vst [vmem:[%s306 + $0x8c] sm:$0xf] %v4818
        %4947 = vst [vmem:[%s306 + $0x90] sm:$0xf] %v4819
        %4948 = vst [vmem:[%s306 + $0x94] sm:$0xf] %v4820
        %4949 = vst [vmem:[%s306 + $0x98] sm:$0xf] %v4821
        %4950 = vst [vmem:[%s306 + $0x9c] sm:$0xf] %v4822
        %4951 = vst [vmem:[%s306 + $0xa0] sm:$0xf] %v4823
        %4952 = vst [vmem:[%s306 + $0xa4] sm:$0xf] %v4824
        %4953 = vst [vmem:[%s306 + $0xa8] sm:$0xf] %v4825
        %4954 = vst [vmem:[%s306 + $0xac] sm:$0xf] %v4826
        %4955 = vst [vmem:[%s306 + $0xb0] sm:$0xf] %v4827
        %4956 = vst [vmem:[%s306 + $0xb4] sm:$0xf] %v4828
        %4957 = vst [vmem:[%s306 + $0xb8] sm:$0xf] %v4829
        %4958 = vst [vmem:[%s306 + $0xbc] sm:$0xf] %v4830
        %4959 = vst [vmem:[%s306 + $0xc0] sm:$0xf] %v4831
        %4960 = vst [vmem:[%s306 + $0xc4] sm:$0xf] %v4832
        %4961 = vst [vmem:[%s306 + $0xc8] sm:$0xf] %v4833
        %4962 = vst [vmem:[%s306 + $0xcc] sm:$0xf] %v4834
        %4963 = vst [vmem:[%s306 + $0xd0] sm:$0xf] %v4835
        %4964 = vst [vmem:[%s306 + $0xd4] sm:$0xf] %v4836
        %4965 = vst [vmem:[%s306 + $0xd8] sm:$0xf] %v4837
        %4966 = vst [vmem:[%s306 + $0xdc] sm:$0xf] %v4838
        %4967 = vst [vmem:[%s306 + $0xe0] sm:$0xf] %v4839
        %4968 = vst [vmem:[%s306 + $0xe4] sm:$0xf] %v4840
        %4969 = vst [vmem:[%s306 + $0xe8] sm:$0xf] %v4841
        %4970 = vst [vmem:[%s306 + $0xec] sm:$0xf] %v4842
        %4971 = vst [vmem:[%s306 + $0xf0] sm:$0xf] %v4843
        %4972 = vst [vmem:[%s306 + $0xf4] sm:$0xf] %v4844
        %4973 = vst [vmem:[%s306 + $0xf8] sm:$0xf] %v4845
        %4974 = vst [vmem:[%s306 + $0xfc] sm:$0xf] %v4846
      $region44: #{_lambda_.13} parent=35 // pred_fallthru
        _
      %s4975 = smul.u32 64, %s20
      %p4976 = scmp.lt.s32.totalorder %s4975, 127
      %s4977 = scalar_select %p4976, %s4975, 127
      %p4978 = scmp.lt.s32.totalorder %s21, 0
      %s4979 = scalar_select %p4978, %s21, 0
      %s4980 = sadd.s32 %s4979, %s4977
      %s4981 = smul.addr %s4980, 4
      %s4982 = scalar_lea.vmem %s4, %s4981
      // Predicated region
      $region45: #{_lambda_.13} parent=35 // pred_check
        %p4983 = pneg %p162
      $region46: #{_lambda_.13} parent=35 // pred_check_branch
        %4985 = sbr.rel (%p4983) target = $region48
      $region47: #{_lambda_.13} parent=35 // pred_region
        %s4986 = smul.u32 64, %s20
      $region48: #{_lambda_.13} parent=35 // pred_fallthru
        _
    $region36: #{_lambda_.13} parent=5 // pred_fallthru
      _
    %p4987 = scmp.le.s32.totalorder 2, %s10
    // Predicated region
    $region49: #{_lambda_.13} parent=5 // pred_check
      %p4988 = pneg %p4987
    $region50: #{_lambda_.13} parent=5 // pred_check_branch
      %4990 = sbr.rel (%p4988) target = $region52
    $region51: #{_lambda_.13} parent=5 // pred_region
      %s4991 = ssub.s32 %s10, 2
      // Predicated region
      $region53: #{_lambda_.13} parent=51 // pred_check
        %p4992 = pneg %p168
      $region54: #{_lambda_.13} parent=51 // pred_check_branch
        %4994 = sbr.rel (%p4992) target = $region56
      $region55: #{_lambda_.13} parent=51 // pred_region
        %s4995 = smul.u32 64, %s23
        %p4996 = scmp.lt.s32.totalorder %s4995, 127
        %s4997 = scalar_select %p4996, %s4995, 127
        %p4998 = scmp.lt.s32.totalorder %s24, 0
        %s4999 = scalar_select %p4998, %s24, 0
        %s5000 = sadd.s32 %s4999, %s4997
        %s5001 = smul.addr %s5000, 4
        %s5002 = scalar_lea.vmem %s4, %s5001
      $region56: #{_lambda_.13} parent=51 // pred_fallthru
        _
    $region52: #{_lambda_.13} parent=5 // pred_fallthru
      _
  $region6: #{_lambda_.13} parent=0 // loop_footer
    %s14 = sadd.s32 1, %s10
  $region7: #{_lambda_.13} parent=0 // loop_footer_branch
    %9 = sbr.rel target = $region3
  $region8: #{_lambda_.13} parent=0 // loop_exit
    _

// kernel: _lambda_.16
$region0: #{_lambda_.16}
  #allocation0 [shape = 'u32[]', space=smem, size = 0x4, offset = 0x4, fixed_abs, tag = 'smem constant byte address 0x4 - core index']
  #allocation1 [shape = 'u32[144,128]{1,0:T(1,128)}', space=vmem, size = 0x12000, scoped, tag = 'internal scratch']
  #allocation2 [shape = 'f32[16,128]{1,0:T(8,128)}', space=vmem, size = 0x2000, scoped, tag = 'scratch operand']
  %s0 = inlined_call_operand.vmem [shape: bf16[16,1152], index: 0, kind: input, shape index: {}]
  %s1 = inlined_call_operand.vmem [shape: bf16[1152,128], index: 1, kind: input, shape index: {}]
  %s2 = inlined_call_operand.vmem [shape: f32[1,128], index: 2, kind: input, shape index: {}]
  %s3 = inlined_call_operand.vmem [shape: f32[1,128], index: 3, kind: input, shape index: {}]
  %s4 = inlined_call_operand.vmem [shape: bf16[16,128], index: 4, kind: output, shape index: {}]
  %s5 = sld [smem:[#allocation0]]
  $region34: #{_lambda_.16} parent=0
    _
  %s7 = ssub.s32 1, %s5
  %s8 = scalar_select 0, %s7, %s5
  // Predicated region
  $region2: #{_lambda_.16} parent=0 // pred_check
    _
  $region3: #{_lambda_.16} parent=0 // pred_check_branch
    %10 = sbr.rel (0) target = $region5
  $region4: #{_lambda_.16} parent=0 // pred_region
    _
  $region5: #{_lambda_.16} parent=0 // pred_fallthru
    _
  // Predicated region
  $region6: #{_lambda_.16} parent=0 // pred_check
    _
  $region7: #{_lambda_.16} parent=0 // pred_check_branch
    %12 = sbr.rel (0) target = $region9
  $region8: #{_lambda_.16} parent=0 // pred_region
    _
  $region9: #{_lambda_.16} parent=0 // pred_fallthru
    _
  // Predicated region
  $region10: #{_lambda_.16} parent=0 // pred_check
    _
  $region11: #{_lambda_.16} parent=0 // pred_check_branch
    %14 = sbr.rel (0) target = $region13
  $region12: #{_lambda_.16} parent=0 // pred_region
    _
  $region13: #{_lambda_.16} parent=0 // pred_fallthru
    _
  // Predicated region
  $region14: #{_lambda_.16} parent=0 // pred_check
    _
  $region15: #{_lambda_.16} parent=0 // pred_check_branch
    %16 = sbr.rel (0) target = $region17
  $region16: #{_lambda_.16} parent=0 // pred_region
    _
  $region17: #{_lambda_.16} parent=0 // pred_fallthru
    _
  %p18 = scmp.eq.s32.totalorder 0, 0
  // Predicated region
  $region18: #{_lambda_.16} parent=0 // pred_check
    %p19 = pneg %p18
  $region19: #{_lambda_.16} parent=0 // pred_check_branch
    %21 = sbr.rel (%p19) target = $region21
  $region20: #{_lambda_.16} parent=0 // pred_region
    %22 = vst [vmem:[#allocation2] sm:$0xff] 0.0
    %23 = vst [vmem:[#allocation2 + $0x8] sm:$0xff] 0.0
  $region21: #{_lambda_.16} parent=0 // pred_fallthru
    _
  %v24 = vld [vmem:[#allocation2] sm:$0xff]
  %v25 = vld [vmem:[#allocation2 + $0x8] sm:$0xff]
  %v26 = vld [vmem:[%s0] sm:$0xff]
  %v27 = vld [vmem:[%s0 + $0x8] sm:$0xff]
  %v28 = vld [vmem:[%s0 + $0x10] sm:$0xff]
  %v29 = vld [vmem:[%s0 + $0x18] sm:$0xff]
  %v30 = vld [vmem:[%s0 + $0x20] sm:$0xf]
  %v31 = vld [vmem:[%s0 + $0x24] sm:$0xff]
  %v32 = vld [vmem:[%s0 + $0x2c] sm:$0xff]
  %v33 = vld [vmem:[%s0 + $0x34] sm:$0xff]
  %v34 = vld [vmem:[%s0 + $0x3c] sm:$0xff]
  %v35 = vld [vmem:[%s0 + $0x44] sm:$0xf]
  %v36 = vld [vmem:[%s1] sm:$0xf]
  %v37 = vld [vmem:[%s1 + $0x4] sm:$0xf]
  %v38 = vld [vmem:[%s1 + $0x8] sm:$0xf]
  %v39 = vld [vmem:[%s1 + $0xc] sm:$0xf]
  %v40 = vld [vmem:[%s1 + $0x10] sm:$0xf]
  %v41 = vld [vmem:[%s1 + $0x14] sm:$0xf]
  %v42 = vld [vmem:[%s1 + $0x18] sm:$0xf]
  %v43 = vld [vmem:[%s1 + $0x1c] sm:$0xf]
  %v44 = vld [vmem:[%s1 + $0x20] sm:$0xf]
  %v45 = vld [vmem:[%s1 + $0x24] sm:$0xf]
  %v46 = vld [vmem:[%s1 + $0x28] sm:$0xf]
  %v47 = vld [vmem:[%s1 + $0x2c] sm:$0xf]
  %v48 = vld [vmem:[%s1 + $0x30] sm:$0xf]
  %v49 = vld [vmem:[%s1 + $0x34] sm:$0xf]
  %v50 = vld [vmem:[%s1 + $0x38] sm:$0xf]
  %v51 = vld [vmem:[%s1 + $0x3c] sm:$0xf]
  %v52 = vld [vmem:[%s1 + $0x40] sm:$0xf]
  %v53 = vld [vmem:[%s1 + $0x44] sm:$0xf]
  %v54 = vld [vmem:[%s1 + $0x48] sm:$0xf]
  %v55 = vld [vmem:[%s1 + $0x4c] sm:$0xf]
  %v56 = vld [vmem:[%s1 + $0x50] sm:$0xf]
  %v57 = vld [vmem:[%s1 + $0x54] sm:$0xf]
  %v58 = vld [vmem:[%s1 + $0x58] sm:$0xf]
  %v59 = vld [vmem:[%s1 + $0x5c] sm:$0xf]
  %v60 = vld [vmem:[%s1 + $0x60] sm:$0xf]
  %v61 = vld [vmem:[%s1 + $0x64] sm:$0xf]
  %v62 = vld [vmem:[%s1 + $0x68] sm:$0xf]
  %v63 = vld [vmem:[%s1 + $0x6c] sm:$0xf]
  %v64 = vld [vmem:[%s1 + $0x70] sm:$0xf]
  %v65 = vld [vmem:[%s1 + $0x74] sm:$0xf]
  %v66 = vld [vmem:[%s1 + $0x78] sm:$0xf]
  %v67 = vld [vmem:[%s1 + $0x7c] sm:$0xf]
  %v68 = vld [vmem:[%s1 + $0x80] sm:$0xf]
  %v69 = vld [vmem:[%s1 + $0x84] sm:$0xf]
  %v70 = vld [vmem:[%s1 + $0x88] sm:$0xf]
  %v71 = vld [vmem:[%s1 + $0x8c] sm:$0xf]
  %v72 = vld [vmem:[%s1 + $0x90] sm:$0xf]
  %v73 = vld [vmem:[%s1 + $0x94] sm:$0xf]
  %v74 = vld [vmem:[%s1 + $0x98] sm:$0xf]
  %v75 = vld [vmem:[%s1 + $0x9c] sm:$0xf]
  %v76 = vld [vmem:[%s1 + $0xa0] sm:$0xf]
  %v77 = vld [vmem:[%s1 + $0xa4] sm:$0xf]
  %v78 = vld [vmem:[%s1 + $0xa8] sm:$0xf]
  %v79 = vld [vmem:[%s1 + $0xac] sm:$0xf]
  %v80 = vld [vmem:[%s1 + $0xb0] sm:$0xf]
  %v81 = vld [vmem:[%s1 + $0xb4] sm:$0xf]
  %v82 = vld [vmem:[%s1 + $0xb8] sm:$0xf]
  %v83 = vld [vmem:[%s1 + $0xbc] sm:$0xf]
  %v84 = vld [vmem:[%s1 + $0xc0] sm:$0xf]
  %v85 = vld [vmem:[%s1 + $0xc4] sm:$0xf]
  %v86 = vld [vmem:[%s1 + $0xc8] sm:$0xf]
  %v87 = vld [vmem:[%s1 + $0xcc] sm:$0xf]
  %v88 = vld [vmem:[%s1 + $0xd0] sm:$0xf]
  %v89 = vld [vmem:[%s1 + $0xd4] sm:$0xf]
  %v90 = vld [vmem:[%s1 + $0xd8] sm:$0xf]
  %v91 = vld [vmem:[%s1 + $0xdc] sm:$0xf]
  %v92 = vld [vmem:[%s1 + $0xe0] sm:$0xf]
  %v93 = vld [vmem:[%s1 + $0xe4] sm:$0xf]
  %v94 = vld [vmem:[%s1 + $0xe8] sm:$0xf]
  %v95 = vld [vmem:[%s1 + $0xec] sm:$0xf]
  %v96 = vld [vmem:[%s1 + $0xf0] sm:$0xf]
  %v97 = vld [vmem:[%s1 + $0xf4] sm:$0xf]
  %v98 = vld [vmem:[%s1 + $0xf8] sm:$0xf]
  %v99 = vld [vmem:[%s1 + $0xfc] sm:$0xf]
  %v100 = vld [vmem:[%s1 + $0x100] sm:$0xf]
  %v101 = vld [vmem:[%s1 + $0x104] sm:$0xf]
  %v102 = vld [vmem:[%s1 + $0x108] sm:$0xf]
  %v103 = vld [vmem:[%s1 + $0x10c] sm:$0xf]
  %v104 = vld [vmem:[%s1 + $0x110] sm:$0xf]
  %v105 = vld [vmem:[%s1 + $0x114] sm:$0xf]
  %v106 = vld [vmem:[%s1 + $0x118] sm:$0xf]
  %v107 = vld [vmem:[%s1 + $0x11c] sm:$0xf]
  %v108 = vld [vmem:[%s1 + $0x120] sm:$0xf]
  %v109 = vld [vmem:[%s1 + $0x124] sm:$0xf]
  %v110 = vld [vmem:[%s1 + $0x128] sm:$0xf]
  %v111 = vld [vmem:[%s1 + $0x12c] sm:$0xf]
  %v112 = vld [vmem:[%s1 + $0x130] sm:$0xf]
  %v113 = vld [vmem:[%s1 + $0x134] sm:$0xf]
  %v114 = vld [vmem:[%s1 + $0x138] sm:$0xf]
  %v115 = vld [vmem:[%s1 + $0x13c] sm:$0xf]
  %v116 = vld [vmem:[%s1 + $0x140] sm:$0xf]
  %v117 = vld [vmem:[%s1 + $0x144] sm:$0xf]
  %v118 = vld [vmem:[%s1 + $0x148] sm:$0xf]
  %v119 = vld [vmem:[%s1 + $0x14c] sm:$0xf]
  %v120 = vld [vmem:[%s1 + $0x150] sm:$0xf]
  %v121 = vld [vmem:[%s1 + $0x154] sm:$0xf]
  %v122 = vld [vmem:[%s1 + $0x158] sm:$0xf]
  %v123 = vld [vmem:[%s1 + $0x15c] sm:$0xf]
  %v124 = vld [vmem:[%s1 + $0x160] sm:$0xf]
  %v125 = vld [vmem:[%s1 + $0x164] sm:$0xf]
  %v126 = vld [vmem:[%s1 + $0x168] sm:$0xf]
  %v127 = vld [vmem:[%s1 + $0x16c] sm:$0xf]
  %v128 = vld [vmem:[%s1 + $0x170] sm:$0xf]
  %v129 = vld [vmem:[%s1 + $0x174] sm:$0xf]
  %v130 = vld [vmem:[%s1 + $0x178] sm:$0xf]
  %v131 = vld [vmem:[%s1 + $0x17c] sm:$0xf]
  %v132 = vld [vmem:[%s1 + $0x180] sm:$0xf]
  %v133 = vld [vmem:[%s1 + $0x184] sm:$0xf]
  %v134 = vld [vmem:[%s1 + $0x188] sm:$0xf]
  %v135 = vld [vmem:[%s1 + $0x18c] sm:$0xf]
  %v136 = vld [vmem:[%s1 + $0x190] sm:$0xf]
  %v137 = vld [vmem:[%s1 + $0x194] sm:$0xf]
  %v138 = vld [vmem:[%s1 + $0x198] sm:$0xf]
  %v139 = vld [vmem:[%s1 + $0x19c] sm:$0xf]
  %v140 = vld [vmem:[%s1 + $0x1a0] sm:$0xf]
  %v141 = vld [vmem:[%s1 + $0x1a4] sm:$0xf]
  %v142 = vld [vmem:[%s1 + $0x1a8] sm:$0xf]
  %v143 = vld [vmem:[%s1 + $0x1ac] sm:$0xf]
  %v144 = vld [vmem:[%s1 + $0x1b0] sm:$0xf]
  %v145 = vld [vmem:[%s1 + $0x1b4] sm:$0xf]
  %v146 = vld [vmem:[%s1 + $0x1b8] sm:$0xf]
  %v147 = vld [vmem:[%s1 + $0x1bc] sm:$0xf]
  %v148 = vld [vmem:[%s1 + $0x1c0] sm:$0xf]
  %v149 = vld [vmem:[%s1 + $0x1c4] sm:$0xf]
  %v150 = vld [vmem:[%s1 + $0x1c8] sm:$0xf]
  %v151 = vld [vmem:[%s1 + $0x1cc] sm:$0xf]
  %v152 = vld [vmem:[%s1 + $0x1d0] sm:$0xf]
  %v153 = vld [vmem:[%s1 + $0x1d4] sm:$0xf]
  %v154 = vld [vmem:[%s1 + $0x1d8] sm:$0xf]
  %v155 = vld [vmem:[%s1 + $0x1dc] sm:$0xf]
  %v156 = vld [vmem:[%s1 + $0x1e0] sm:$0xf]
  %v157 = vld [vmem:[%s1 + $0x1e4] sm:$0xf]
  %v158 = vld [vmem:[%s1 + $0x1e8] sm:$0xf]
  %v159 = vld [vmem:[%s1 + $0x1ec] sm:$0xf]
  %v160 = vld [vmem:[%s1 + $0x1f0] sm:$0xf]
  %v161 = vld [vmem:[%s1 + $0x1f4] sm:$0xf]
  %v162 = vld [vmem:[%s1 + $0x1f8] sm:$0xf]
  %v163 = vld [vmem:[%s1 + $0x1fc] sm:$0xf]
  %v164 = vld [vmem:[%s1 + $0x200] sm:$0xf]
  %v165 = vld [vmem:[%s1 + $0x204] sm:$0xf]
  %v166 = vld [vmem:[%s1 + $0x208] sm:$0xf]
  %v167 = vld [vmem:[%s1 + $0x20c] sm:$0xf]
  %v168 = vld [vmem:[%s1 + $0x210] sm:$0xf]
  %v169 = vld [vmem:[%s1 + $0x214] sm:$0xf]
  %v170 = vld [vmem:[%s1 + $0x218] sm:$0xf]
  %v171 = vld [vmem:[%s1 + $0x21c] sm:$0xf]
  %v172 = vld [vmem:[%s1 + $0x220] sm:$0xf]
  %v173 = vld [vmem:[%s1 + $0x224] sm:$0xf]
  %v174 = vld [vmem:[%s1 + $0x228] sm:$0xf]
  %v175 = vld [vmem:[%s1 + $0x22c] sm:$0xf]
  %v176 = vld [vmem:[%s1 + $0x230] sm:$0xf]
  %v177 = vld [vmem:[%s1 + $0x234] sm:$0xf]
  %v178 = vld [vmem:[%s1 + $0x238] sm:$0xf]
  %v179 = vld [vmem:[%s1 + $0x23c] sm:$0xf]
  %v190 = vunpack.c.l.b16 %v26
  %v191 = vunpack.c.h.b16 %v26
  %v192 = vunpack.c.l.b16 %v27
  %v193 = vunpack.c.h.b16 %v27
  %v194 = vunpack.c.l.b16 %v28
  %v195 = vunpack.c.h.b16 %v28
  %v196 = vunpack.c.l.b16 %v29
  %v197 = vunpack.c.h.b16 %v29
  %v198 = vunpack.c.l.b16 %v30
  %v199 = vunpack.c.l.b16 %v31
  %v200 = vunpack.c.h.b16 %v31
  %v201 = vunpack.c.l.b16 %v32
  %v202 = vunpack.c.h.b16 %v32
  %v203 = vunpack.c.l.b16 %v33
  %v204 = vunpack.c.h.b16 %v33
  %v205 = vunpack.c.l.b16 %v34
  %v206 = vunpack.c.h.b16 %v34
  %v207 = vunpack.c.l.b16 %v35
  %v208 = vpack.c.b16 %v199, %v190
  %v209 = vpack.c.b16 %v200, %v191
  %v210 = vpack.c.b16 %v201, %v192
  %v211 = vpack.c.b16 %v202, %v193
  %v212 = vpack.c.b16 %v203, %v194
  %v213 = vpack.c.b16 %v204, %v195
  %v214 = vpack.c.b16 %v205, %v196
  %v215 = vpack.c.b16 %v206, %v197
  %v216 = vpack.c.b16 %v207, %v198
  %v370 = vunpack.c.l.b16 %v36
  %v371 = vunpack.c.l.b16 %v37
  %v372 = vunpack.c.l.b16 %v38
  %v373 = vunpack.c.l.b16 %v39
  %v374 = vunpack.c.l.b16 %v40
  %v375 = vunpack.c.l.b16 %v41
  %v376 = vunpack.c.l.b16 %v42
  %v377 = vunpack.c.l.b16 %v43
  %v378 = vunpack.c.l.b16 %v44
  %v379 = vunpack.c.l.b16 %v45
  %v380 = vunpack.c.l.b16 %v46
  %v381 = vunpack.c.l.b16 %v47
  %v382 = vunpack.c.l.b16 %v48
  %v383 = vunpack.c.l.b16 %v49
  %v384 = vunpack.c.l.b16 %v50
  %v385 = vunpack.c.l.b16 %v51
  %v386 = vunpack.c.l.b16 %v52
  %v387 = vunpack.c.l.b16 %v53
  %v388 = vunpack.c.l.b16 %v54
  %v389 = vunpack.c.l.b16 %v55
  %v390 = vunpack.c.l.b16 %v56
  %v391 = vunpack.c.l.b16 %v57
  %v392 = vunpack.c.l.b16 %v58
  %v393 = vunpack.c.l.b16 %v59
  %v394 = vunpack.c.l.b16 %v60
  %v395 = vunpack.c.l.b16 %v61
  %v396 = vunpack.c.l.b16 %v62
  %v397 = vunpack.c.l.b16 %v63
  %v398 = vunpack.c.l.b16 %v64
  %v399 = vunpack.c.l.b16 %v65
  %v400 = vunpack.c.l.b16 %v66
  %v401 = vunpack.c.l.b16 %v67
  %v402 = vunpack.c.l.b16 %v68
  %v403 = vunpack.c.l.b16 %v69
  %v404 = vunpack.c.l.b16 %v70
  %v405 = vunpack.c.l.b16 %v71
  %v406 = vunpack.c.l.b16 %v72
  %v407 = vunpack.c.l.b16 %v73
  %v408 = vunpack.c.l.b16 %v74
  %v409 = vunpack.c.l.b16 %v75
  %v410 = vunpack.c.l.b16 %v76
  %v411 = vunpack.c.l.b16 %v77
  %v412 = vunpack.c.l.b16 %v78
  %v413 = vunpack.c.l.b16 %v79
  %v414 = vunpack.c.l.b16 %v80
  %v415 = vunpack.c.l.b16 %v81
  %v416 = vunpack.c.l.b16 %v82
  %v417 = vunpack.c.l.b16 %v83
  %v418 = vunpack.c.l.b16 %v84
  %v419 = vunpack.c.l.b16 %v85
  %v420 = vunpack.c.l.b16 %v86
  %v421 = vunpack.c.l.b16 %v87
  %v422 = vunpack.c.l.b16 %v88
  %v423 = vunpack.c.l.b16 %v89
  %v424 = vunpack.c.l.b16 %v90
  %v425 = vunpack.c.l.b16 %v91
  %v426 = vunpack.c.l.b16 %v92
  %v427 = vunpack.c.l.b16 %v93
  %v428 = vunpack.c.l.b16 %v94
  %v429 = vunpack.c.l.b16 %v95
  %v430 = vunpack.c.l.b16 %v96
  %v431 = vunpack.c.l.b16 %v97
  %v432 = vunpack.c.l.b16 %v98
  %v433 = vunpack.c.l.b16 %v99
  %v434 = vunpack.c.l.b16 %v100
  %v435 = vunpack.c.l.b16 %v101
  %v436 = vunpack.c.l.b16 %v102
  %v437 = vunpack.c.l.b16 %v103
  %v438 = vunpack.c.l.b16 %v104
  %v439 = vunpack.c.l.b16 %v105
  %v440 = vunpack.c.l.b16 %v106
  %v441 = vunpack.c.l.b16 %v107
  %v442 = vunpack.c.l.b16 %v108
  %v443 = vunpack.c.l.b16 %v109
  %v444 = vunpack.c.l.b16 %v110
  %v445 = vunpack.c.l.b16 %v111
  %v446 = vunpack.c.l.b16 %v112
  %v447 = vunpack.c.l.b16 %v113
  %v448 = vunpack.c.l.b16 %v114
  %v449 = vunpack.c.l.b16 %v115
  %v450 = vunpack.c.l.b16 %v116
  %v451 = vunpack.c.l.b16 %v117
  %v452 = vunpack.c.l.b16 %v118
  %v453 = vunpack.c.l.b16 %v119
  %v454 = vunpack.c.l.b16 %v120
  %v455 = vunpack.c.l.b16 %v121
  %v456 = vunpack.c.l.b16 %v122
  %v457 = vunpack.c.l.b16 %v123
  %v458 = vunpack.c.l.b16 %v124
  %v459 = vunpack.c.l.b16 %v125
  %v460 = vunpack.c.l.b16 %v126
  %v461 = vunpack.c.l.b16 %v127
  %v462 = vunpack.c.l.b16 %v128
  %v463 = vunpack.c.l.b16 %v129
  %v464 = vunpack.c.l.b16 %v130
  %v465 = vunpack.c.l.b16 %v131
  %v466 = vunpack.c.l.b16 %v132
  %v467 = vunpack.c.l.b16 %v133
  %v468 = vunpack.c.l.b16 %v134
  %v469 = vunpack.c.l.b16 %v135
  %v470 = vunpack.c.l.b16 %v136
  %v471 = vunpack.c.l.b16 %v137
  %v472 = vunpack.c.l.b16 %v138
  %v473 = vunpack.c.l.b16 %v139
  %v474 = vunpack.c.l.b16 %v140
  %v475 = vunpack.c.l.b16 %v141
  %v476 = vunpack.c.l.b16 %v142
  %v477 = vunpack.c.l.b16 %v143
  %v478 = vunpack.c.l.b16 %v144
  %v479 = vunpack.c.l.b16 %v145
  %v480 = vunpack.c.l.b16 %v146
  %v481 = vunpack.c.l.b16 %v147
  %v482 = vunpack.c.l.b16 %v148
  %v483 = vunpack.c.l.b16 %v149
  %v484 = vunpack.c.l.b16 %v150
  %v485 = vunpack.c.l.b16 %v151
  %v486 = vunpack.c.l.b16 %v152
  %v487 = vunpack.c.l.b16 %v153
  %v488 = vunpack.c.l.b16 %v154
  %v489 = vunpack.c.l.b16 %v155
  %v490 = vunpack.c.l.b16 %v156
  %v491 = vunpack.c.l.b16 %v157
  %v492 = vunpack.c.l.b16 %v158
  %v493 = vunpack.c.l.b16 %v159
  %v494 = vunpack.c.l.b16 %v160
  %v495 = vunpack.c.l.b16 %v161
  %v496 = vunpack.c.l.b16 %v162
  %v497 = vunpack.c.l.b16 %v163
  %v498 = vunpack.c.l.b16 %v164
  %v499 = vunpack.c.l.b16 %v165
  %v500 = vunpack.c.l.b16 %v166
  %v501 = vunpack.c.l.b16 %v167
  %v502 = vunpack.c.l.b16 %v168
  %v503 = vunpack.c.l.b16 %v169
  %v504 = vunpack.c.l.b16 %v170
  %v505 = vunpack.c.l.b16 %v171
  %v506 = vunpack.c.l.b16 %v172
  %v507 = vunpack.c.l.b16 %v173
  %v508 = vunpack.c.l.b16 %v174
  %v509 = vunpack.c.l.b16 %v175
  %v510 = vunpack.c.l.b16 %v176
  %v511 = vunpack.c.l.b16 %v177
  %v512 = vunpack.c.l.b16 %v178
  %v513 = vunpack.c.l.b16 %v179
  %v514 = vpack.c.b16 %v371, %v370
  %v515 = vpack.c.b16 %v373, %v372
  %v516 = vpack.c.b16 %v375, %v374
  %v517 = vpack.c.b16 %v377, %v376
  %v518 = vpack.c.b16 %v379, %v378
  %v519 = vpack.c.b16 %v381, %v380
  %v520 = vpack.c.b16 %v383, %v382
  %v521 = vpack.c.b16 %v385, %v384
  %v522 = vpack.c.b16 %v387, %v386
  %v523 = vpack.c.b16 %v389, %v388
  %v524 = vpack.c.b16 %v391, %v390
  %v525 = vpack.c.b16 %v393, %v392
  %v526 = vpack.c.b16 %v395, %v394
  %v527 = vpack.c.b16 %v397, %v396
  %v528 = vpack.c.b16 %v399, %v398
  %v529 = vpack.c.b16 %v401, %v400
  %v530 = vpack.c.b16 %v403, %v402
  %v531 = vpack.c.b16 %v405, %v404
  %v532 = vpack.c.b16 %v407, %v406
  %v533 = vpack.c.b16 %v409, %v408
  %v534 = vpack.c.b16 %v411, %v410
  %v535 = vpack.c.b16 %v413, %v412
  %v536 = vpack.c.b16 %v415, %v414
  %v537 = vpack.c.b16 %v417, %v416
  %v538 = vpack.c.b16 %v419, %v418
  %v539 = vpack.c.b16 %v421, %v420
  %v540 = vpack.c.b16 %v423, %v422
  %v541 = vpack.c.b16 %v425, %v424
  %v542 = vpack.c.b16 %v427, %v426
  %v543 = vpack.c.b16 %v429, %v428
  %v544 = vpack.c.b16 %v431, %v430
  %v545 = vpack.c.b16 %v433, %v432
  %v546 = vpack.c.b16 %v435, %v434
  %v547 = vpack.c.b16 %v437, %v436
  %v548 = vpack.c.b16 %v439, %v438
  %v549 = vpack.c.b16 %v441, %v440
  %v550 = vpack.c.b16 %v443, %v442
  %v551 = vpack.c.b16 %v445, %v444
  %v552 = vpack.c.b16 %v447, %v446
  %v553 = vpack.c.b16 %v449, %v448
  %v554 = vpack.c.b16 %v451, %v450
  %v555 = vpack.c.b16 %v453, %v452
  %v556 = vpack.c.b16 %v455, %v454
  %v557 = vpack.c.b16 %v457, %v456
  %v558 = vpack.c.b16 %v459, %v458
  %v559 = vpack.c.b16 %v461, %v460
  %v560 = vpack.c.b16 %v463, %v462
  %v561 = vpack.c.b16 %v465, %v464
  %v562 = vpack.c.b16 %v467, %v466
  %v563 = vpack.c.b16 %v469, %v468
  %v564 = vpack.c.b16 %v471, %v470
  %v565 = vpack.c.b16 %v473, %v472
  %v566 = vpack.c.b16 %v475, %v474
  %v567 = vpack.c.b16 %v477, %v476
  %v568 = vpack.c.b16 %v479, %v478
  %v569 = vpack.c.b16 %v481, %v480
  %v570 = vpack.c.b16 %v483, %v482
  %v571 = vpack.c.b16 %v485, %v484
  %v572 = vpack.c.b16 %v487, %v486
  %v573 = vpack.c.b16 %v489, %v488
  %v574 = vpack.c.b16 %v491, %v490
  %v575 = vpack.c.b16 %v493, %v492
  %v576 = vpack.c.b16 %v495, %v494
  %v577 = vpack.c.b16 %v497, %v496
  %v578 = vpack.c.b16 %v499, %v498
  %v579 = vpack.c.b16 %v501, %v500
  %v580 = vpack.c.b16 %v503, %v502
  %v581 = vpack.c.b16 %v505, %v504
  %v582 = vpack.c.b16 %v507, %v506
  %v583 = vpack.c.b16 %v509, %v508
  %v584 = vpack.c.b16 %v511, %v510
  %v585 = vpack.c.b16 %v513, %v512
  %658 = vmatprep.subr.bf16.mxu0 0
  %659 = vmatpush1.bf16.msra.mxu0 %v514
  %660 = vmatprep.subr.bf16.mxu0 0
  %661 = vmatpush1.bf16.msra.mxu0 %v515
  %662 = vmatprep.subr.bf16.mxu0 0
  %663 = vmatpush1.bf16.msra.mxu0 %v516
  %664 = vmatprep.subr.bf16.mxu0 0
  %665 = vmatpush1.bf16.msra.mxu0 %v517
  %666 = vmatprep.subr.bf16.mxu0 0
  %667 = vmatpush1.bf16.msra.mxu0 %v518
  %668 = vmatprep.subr.bf16.mxu0 0
  %669 = vmatpush1.bf16.msra.mxu0 %v519
  %670 = vmatprep.subr.bf16.mxu0 0
  %671 = vmatpush1.bf16.msra.mxu0 %v520
  %672 = vmatprep.subr.bf16.mxu0 0
  %673 = vmatpush1.bf16.msra.mxu0 %v521
  %674 = vmatprep.subr.bf16.mxu0 0
  %675 = vmatpush1.bf16.msra.mxu0 %v522
  %676 = vmatprep.subr.bf16.mxu0 0
  %677 = vmatpush1.bf16.msra.mxu0 %v523
  %678 = vmatprep.subr.bf16.mxu0 0
  %679 = vmatpush1.bf16.msra.mxu0 %v524
  %680 = vmatprep.subr.bf16.mxu0 0
  %681 = vmatpush1.bf16.msra.mxu0 %v525
  %682 = vmatprep.subr.bf16.mxu0 0
  %683 = vmatpush1.bf16.msra.mxu0 %v526
  %684 = vmatprep.subr.bf16.mxu0 0
  %685 = vmatpush1.bf16.msra.mxu0 %v527
  %686 = vmatprep.subr.bf16.mxu0 0
  %687 = vmatpush1.bf16.msra.mxu0 %v528
  %688 = vmatprep.subr.bf16.mxu0 0
  %689 = vmatpush1.bf16.msra.mxu0 %v529
  %690 = vmatprep.mubr.bf16.mxu0 %v209
  %691 = vmatmul.mubr.bf16.gmra.mrb[0].mxu0 %v208
  %v692 = vpop.f32.mrb[0].mxu0
  %v693 = vadd.f32 0.0, %v692
  %v694 = vpop.f32.mrb[0].mxu0
  %v695 = vpop.f32.mrb[0].mxu0
  %v696 = vadd.f32 0.0, %v695
  %v697 = vpop.f32.mrb[0].mxu0
  %698 = vdwg.mxu0
  %699 = vmatprep.subr.bf16.mxu0 0
  %700 = vmatpush1.bf16.msra.mxu0 %v530
  %701 = vmatprep.subr.bf16.mxu0 0
  %702 = vmatpush1.bf16.msra.mxu0 %v531
  %703 = vmatprep.subr.bf16.mxu0 0
  %704 = vmatpush1.bf16.msra.mxu0 %v532
  %705 = vmatprep.subr.bf16.mxu0 0
  %706 = vmatpush1.bf16.msra.mxu0 %v533
  %707 = vmatprep.subr.bf16.mxu0 0
  %708 = vmatpush1.bf16.msra.mxu0 %v534
  %709 = vmatprep.subr.bf16.mxu0 0
  %710 = vmatpush1.bf16.msra.mxu0 %v535
  %711 = vmatprep.subr.bf16.mxu0 0
  %712 = vmatpush1.bf16.msra.mxu0 %v536
  %713 = vmatprep.subr.bf16.mxu0 0
  %714 = vmatpush1.bf16.msra.mxu0 %v537
  %715 = vmatprep.subr.bf16.mxu0 0
  %716 = vmatpush1.bf16.msra.mxu0 %v538
  %717 = vmatprep.subr.bf16.mxu0 0
  %718 = vmatpush1.bf16.msra.mxu0 %v539
  %719 = vmatprep.subr.bf16.mxu0 0
  %720 = vmatpush1.bf16.msra.mxu0 %v540
  %721 = vmatprep.subr.bf16.mxu0 0
  %722 = vmatpush1.bf16.msra.mxu0 %v541
  %723 = vmatprep.subr.bf16.mxu0 0
  %724 = vmatpush1.bf16.msra.mxu0 %v542
  %725 = vmatprep.subr.bf16.mxu0 0
  %726 = vmatpush1.bf16.msra.mxu0 %v543
  %727 = vmatprep.subr.bf16.mxu0 0
  %728 = vmatpush1.bf16.msra.mxu0 %v544
  %729 = vmatprep.subr.bf16.mxu0 0
  %730 = vmatpush1.bf16.msra.mxu0 %v545
  %731 = vmatprep.mubr.bf16.mxu0 %v211
  %732 = vmatmul.mubr.bf16.gmra.mrb[0].mxu0 %v210
  %v733 = vpop.f32.mrb[0].mxu0
  %v734 = vadd.f32 %v693, %v733
  %v735 = vpop.f32.mrb[0].mxu0
  %v736 = vpop.f32.mrb[0].mxu0
  %v737 = vadd.f32 %v696, %v736
  %v738 = vpop.f32.mrb[0].mxu0
  %739 = vdwg.mxu0
  %740 = vmatprep.subr.bf16.mxu0 0
  %741 = vmatpush1.bf16.msra.mxu0 %v546
  %742 = vmatprep.subr.bf16.mxu0 0
  %743 = vmatpush1.bf16.msra.mxu0 %v547
  %744 = vmatprep.subr.bf16.mxu0 0
  %745 = vmatpush1.bf16.msra.mxu0 %v548
  %746 = vmatprep.subr.bf16.mxu0 0
  %747 = vmatpush1.bf16.msra.mxu0 %v549
  %748 = vmatprep.subr.bf16.mxu0 0
  %749 = vmatpush1.bf16.msra.mxu0 %v550
  %750 = vmatprep.subr.bf16.mxu0 0
  %751 = vmatpush1.bf16.msra.mxu0 %v551
  %752 = vmatprep.subr.bf16.mxu0 0
  %753 = vmatpush1.bf16.msra.mxu0 %v552
  %754 = vmatprep.subr.bf16.mxu0 0
  %755 = vmatpush1.bf16.msra.mxu0 %v553
  %756 = vmatprep.subr.bf16.mxu0 0
  %757 = vmatpush1.bf16.msra.mxu0 %v554
  %758 = vmatprep.subr.bf16.mxu0 0
  %759 = vmatpush1.bf16.msra.mxu0 %v555
  %760 = vmatprep.subr.bf16.mxu0 0
  %761 = vmatpush1.bf16.msra.mxu0 %v556
  %762 = vmatprep.subr.bf16.mxu0 0
  %763 = vmatpush1.bf16.msra.mxu0 %v557
  %764 = vmatprep.subr.bf16.mxu0 0
  %765 = vmatpush1.bf16.msra.mxu0 %v558
  %766 = vmatprep.subr.bf16.mxu0 0
  %767 = vmatpush1.bf16.msra.mxu0 %v559
  %768 = vmatprep.subr.bf16.mxu0 0
  %769 = vmatpush1.bf16.msra.mxu0 %v560
  %770 = vmatprep.subr.bf16.mxu0 0
  %771 = vmatpush1.bf16.msra.mxu0 %v561
  %772 = vmatprep.mubr.bf16.mxu0 %v213
  %773 = vmatmul.mubr.bf16.gmra.mrb[0].mxu0 %v212
  %v774 = vpop.f32.mrb[0].mxu0
  %v775 = vadd.f32 %v734, %v774
  %v776 = vpop.f32.mrb[0].mxu0
  %v777 = vpop.f32.mrb[0].mxu0
  %v778 = vadd.f32 %v737, %v777
  %v779 = vpop.f32.mrb[0].mxu0
  %780 = vdwg.mxu0
  %781 = vmatprep.subr.bf16.mxu0 0
  %782 = vmatpush1.bf16.msra.mxu0 %v562
  %783 = vmatprep.subr.bf16.mxu0 0
  %784 = vmatpush1.bf16.msra.mxu0 %v563
  %785 = vmatprep.subr.bf16.mxu0 0
  %786 = vmatpush1.bf16.msra.mxu0 %v564
  %787 = vmatprep.subr.bf16.mxu0 0
  %788 = vmatpush1.bf16.msra.mxu0 %v565
  %789 = vmatprep.subr.bf16.mxu0 0
  %790 = vmatpush1.bf16.msra.mxu0 %v566
  %791 = vmatprep.subr.bf16.mxu0 0
  %792 = vmatpush1.bf16.msra.mxu0 %v567
  %793 = vmatprep.subr.bf16.mxu0 0
  %794 = vmatpush1.bf16.msra.mxu0 %v568
  %795 = vmatprep.subr.bf16.mxu0 0
  %796 = vmatpush1.bf16.msra.mxu0 %v569
  %797 = vmatprep.subr.bf16.mxu0 0
  %798 = vmatpush1.bf16.msra.mxu0 %v570
  %799 = vmatprep.subr.bf16.mxu0 0
  %800 = vmatpush1.bf16.msra.mxu0 %v571
  %801 = vmatprep.subr.bf16.mxu0 0
  %802 = vmatpush1.bf16.msra.mxu0 %v572
  %803 = vmatprep.subr.bf16.mxu0 0
  %804 = vmatpush1.bf16.msra.mxu0 %v573
  %805 = vmatprep.subr.bf16.mxu0 0
  %806 = vmatpush1.bf16.msra.mxu0 %v574
  %807 = vmatprep.subr.bf16.mxu0 0
  %808 = vmatpush1.bf16.msra.mxu0 %v575
  %809 = vmatprep.subr.bf16.mxu0 0
  %810 = vmatpush1.bf16.msra.mxu0 %v576
  %811 = vmatprep.subr.bf16.mxu0 0
  %812 = vmatpush1.bf16.msra.mxu0 %v577
  %813 = vmatprep.mubr.bf16.mxu0 %v215
  %814 = vmatmul.mubr.bf16.gmra.mrb[0].mxu0 %v214
  %v815 = vpop.f32.mrb[0].mxu0
  %v816 = vadd.f32 %v775, %v815
  %v817 = vpop.f32.mrb[0].mxu0
  %v818 = vpop.f32.mrb[0].mxu0
  %v819 = vadd.f32 %v778, %v818
  %v820 = vpop.f32.mrb[0].mxu0
  %821 = vdwg.mxu0
  %822 = vmatprep.subr.bf16.mxu0 0
  %823 = vmatpush1.bf16.msra.mxu0 %v578
  %824 = vmatprep.subr.bf16.mxu0 0
  %825 = vmatpush1.bf16.msra.mxu0 %v579
  %826 = vmatprep.subr.bf16.mxu0 0
  %827 = vmatpush1.bf16.msra.mxu0 %v580
  %828 = vmatprep.subr.bf16.mxu0 0
  %829 = vmatpush1.bf16.msra.mxu0 %v581
  %830 = vmatprep.subr.bf16.mxu0 0
  %831 = vmatpush1.bf16.msra.mxu0 %v582
  %832 = vmatprep.subr.bf16.mxu0 0
  %833 = vmatpush1.bf16.msra.mxu0 %v583
  %834 = vmatprep.subr.bf16.mxu0 0
  %835 = vmatpush1.bf16.msra.mxu0 %v584
  %836 = vmatprep.subr.bf16.mxu0 0
  %837 = vmatpush1.bf16.msra.mxu0 %v585
  %838 = vmatprep.subr.bf16.mxu0 0
  %839 = vmatpush1.bf16.msra.mxu0 0
  %840 = vmatprep.subr.bf16.mxu0 0
  %841 = vmatpush1.bf16.msra.mxu0 0
  %842 = vmatprep.subr.bf16.mxu0 0
  %843 = vmatpush1.bf16.msra.mxu0 0
  %844 = vmatprep.subr.bf16.mxu0 0
  %845 = vmatpush1.bf16.msra.mxu0 0
  %846 = vmatprep.subr.bf16.mxu0 0
  %847 = vmatpush1.bf16.msra.mxu0 0
  %848 = vmatprep.subr.bf16.mxu0 0
  %849 = vmatpush1.bf16.msra.mxu0 0
  %850 = vmatprep.subr.bf16.mxu0 0
  %851 = vmatpush1.bf16.msra.mxu0 0
  %852 = vmatprep.subr.bf16.mxu0 0
  %853 = vmatpush1.bf16.msra.mxu0 0
  %854 = vmatprep.mubr.bf16.mxu0 0
  %855 = vmatmul.mubr.bf16.gmra.mrb[0].mxu0 %v216
  %v856 = vpop.f32.mrb[0].mxu0
  %v857 = vadd.f32 %v816, %v856
  %v858 = vpop.f32.mrb[0].mxu0
  %v859 = vpop.f32.mrb[0].mxu0
  %v860 = vadd.f32 %v819, %v859
  %v861 = vpop.f32.mrb[0].mxu0
  %862 = vdwg.mxu0
  %v863 = vadd.f32 %v24, %v857
  %v864 = vadd.f32 %v25, %v860
  %865 = vst [vmem:[#allocation2] sm:$0xff] %v863
  %866 = vst [vmem:[#allocation2 + $0x8] sm:$0xff] %v864
  // Predicated region
  $region22: #{_lambda_.16} parent=0 // pred_check
    %p867 = pneg %p18
  $region23: #{_lambda_.16} parent=0 // pred_check_branch
    %869 = sbr.rel (%p867) target = $region25
  $region24: #{_lambda_.16} parent=0 // pred_region
    %v870 = vld [vmem:[#allocation2] sm:$0xff]
    %v871 = vld [vmem:[#allocation2 + $0x8] sm:$0xff]
    %v872 = vld [vmem:[%s2] sm:$0x1]
    %v874 = vlaneseq
    %v875 = vshrl.u32 %v874, 7
    %v876 = vsub.s32 0, %v875
    %v877 = vrot.slane %v872, %v876
    %v879 = vmul.f32 %v870, %v877
    %v880 = vmul.f32 %v871, %v877
    %v881 = vld [vmem:[%s3] sm:$0x1]
    %v883 = vlaneseq
    %v884 = vshrl.u32 %v883, 7
    %v885 = vsub.s32 0, %v884
    %v886 = vrot.slane %v881, %v885
    %v888 = vadd.f32 %v879, %v886
    %v889 = vadd.f32 %v880, %v886
    %v890 = vmax.f32 %v888, 0.0
    %v891 = vmax.f32 %v889, 0.0
    %v892 = vpack.c.bf16 %v891, %v890
    %v894 = vunpack.c.l.b16 %v892
    %v895 = vunpack.c.h.b16 %v892
    %v896 = vpack.c.b16 %v894, %v894
    %v897 = vpack.c.b16 %v895, %v895
    %900 = vst [vmem:[%s4] sm:$0xf] %v896
    %901 = vst [vmem:[%s4 + $0x4] sm:$0xf] %v897
  $region25: #{_lambda_.16} parent=0 // pred_fallthru
    _
  // Predicated region
  $region26: #{_lambda_.16} parent=0 // pred_check
    _
  $region27: #{_lambda_.16} parent=0 // pred_check_branch
    %903 = sbr.rel (0) target = $region29
  $region28: #{_lambda_.16} parent=0 // pred_region
    _
  $region29: #{_lambda_.16} parent=0 // pred_fallthru
    _
  // Predicated region
  $region30: #{_lambda_.16} parent=0 // pred_check
    _
  $region31: #{_lambda_.16} parent=0 // pred_check_branch
    %905 = sbr.rel (0) target = $region33
  $region32: #{_lambda_.16} parent=0 // pred_region
    _
  $region33: #{_lambda_.16} parent=0 // pred_fallthru
    _

// kernel: _lambda_.17
$region0: #{_lambda_.17}
  #allocation0 [shape = 'u32[]', space=smem, size = 0x4, offset = 0x4, fixed_abs, tag = 'smem constant byte address 0x4 - core index']
  #allocation1 [shape = 'u32[144,128]{1,0:T(1,128)}', space=vmem, size = 0x12000, scoped, tag = 'internal scratch']
  #allocation2 [shape = 'f32[16,128]{1,0:T(8,128)}', space=vmem, size = 0x2000, scoped, tag = 'scratch operand']
  %s0 = inlined_call_operand.vmem [shape: bf16[16,128], index: 0, kind: input, shape index: {}]
  %s1 = inlined_call_operand.vmem [shape: bf16[128,128], index: 1, kind: input, shape index: {}]
  %s2 = inlined_call_operand.vmem [shape: f32[1,128], index: 2, kind: input, shape index: {}]
  %s3 = inlined_call_operand.vmem [shape: f32[1,128], index: 3, kind: input, shape index: {}]
  %s4 = inlined_call_operand.vmem [shape: bf16[16,128], index: 4, kind: output, shape index: {}]
  %s5 = sld [smem:[#allocation0]]
  $region34: #{_lambda_.17} parent=0
    _
  %s7 = ssub.s32 1, %s5
  %s8 = scalar_select 0, %s7, %s5
  // Predicated region
  $region2: #{_lambda_.17} parent=0 // pred_check
    _
  $region3: #{_lambda_.17} parent=0 // pred_check_branch
    %10 = sbr.rel (0) target = $region5
  $region4: #{_lambda_.17} parent=0 // pred_region
    _
  $region5: #{_lambda_.17} parent=0 // pred_fallthru
    _
  // Predicated region
  $region6: #{_lambda_.17} parent=0 // pred_check
    _
  $region7: #{_lambda_.17} parent=0 // pred_check_branch
    %12 = sbr.rel (0) target = $region9
  $region8: #{_lambda_.17} parent=0 // pred_region
    _
  $region9: #{_lambda_.17} parent=0 // pred_fallthru
    _
  // Predicated region
  $region10: #{_lambda_.17} parent=0 // pred_check
    _
  $region11: #{_lambda_.17} parent=0 // pred_check_branch
    %14 = sbr.rel (0) target = $region13
  $region12: #{_lambda_.17} parent=0 // pred_region
    _
  $region13: #{_lambda_.17} parent=0 // pred_fallthru
    _
  // Predicated region
  $region14: #{_lambda_.17} parent=0 // pred_check
    _
  $region15: #{_lambda_.17} parent=0 // pred_check_branch
    %16 = sbr.rel (0) target = $region17
  $region16: #{_lambda_.17} parent=0 // pred_region
    _
  $region17: #{_lambda_.17} parent=0 // pred_fallthru
    _
  %p18 = scmp.eq.s32.totalorder 0, 0
  // Predicated region
  $region18: #{_lambda_.17} parent=0 // pred_check
    %p19 = pneg %p18
  $region19: #{_lambda_.17} parent=0 // pred_check_branch
    %21 = sbr.rel (%p19) target = $region21
  $region20: #{_lambda_.17} parent=0 // pred_region
    %22 = vst [vmem:[#allocation2] sm:$0xff] 0.0
    %23 = vst [vmem:[#allocation2 + $0x8] sm:$0xff] 0.0
  $region21: #{_lambda_.17} parent=0 // pred_fallthru
    _
  %v24 = vld [vmem:[#allocation2] sm:$0xff]
  %v25 = vld [vmem:[#allocation2 + $0x8] sm:$0xff]
  %v26 = vld [vmem:[%s0] sm:$0xf]
  %v27 = vld [vmem:[%s0 + $0x4] sm:$0xf]
  %v28 = vld [vmem:[%s1] sm:$0xf]
  %v29 = vld [vmem:[%s1 + $0x4] sm:$0xf]
  %v30 = vld [vmem:[%s1 + $0x8] sm:$0xf]
  %v31 = vld [vmem:[%s1 + $0xc] sm:$0xf]
  %v32 = vld [vmem:[%s1 + $0x10] sm:$0xf]
  %v33 = vld [vmem:[%s1 + $0x14] sm:$0xf]
  %v34 = vld [vmem:[%s1 + $0x18] sm:$0xf]
  %v35 = vld [vmem:[%s1 + $0x1c] sm:$0xf]
  %v36 = vld [vmem:[%s1 + $0x20] sm:$0xf]
  %v37 = vld [vmem:[%s1 + $0x24] sm:$0xf]
  %v38 = vld [vmem:[%s1 + $0x28] sm:$0xf]
  %v39 = vld [vmem:[%s1 + $0x2c] sm:$0xf]
  %v40 = vld [vmem:[%s1 + $0x30] sm:$0xf]
  %v41 = vld [vmem:[%s1 + $0x34] sm:$0xf]
  %v42 = vld [vmem:[%s1 + $0x38] sm:$0xf]
  %v43 = vld [vmem:[%s1 + $0x3c] sm:$0xf]
  %v46 = vunpack.c.l.b16 %v26
  %v47 = vunpack.c.l.b16 %v27
  %v48 = vpack.c.b16 %v47, %v46
  %v66 = vunpack.c.l.b16 %v28
  %v67 = vunpack.c.l.b16 %v29
  %v68 = vunpack.c.l.b16 %v30
  %v69 = vunpack.c.l.b16 %v31
  %v70 = vunpack.c.l.b16 %v32
  %v71 = vunpack.c.l.b16 %v33
  %v72 = vunpack.c.l.b16 %v34
  %v73 = vunpack.c.l.b16 %v35
  %v74 = vunpack.c.l.b16 %v36
  %v75 = vunpack.c.l.b16 %v37
  %v76 = vunpack.c.l.b16 %v38
  %v77 = vunpack.c.l.b16 %v39
  %v78 = vunpack.c.l.b16 %v40
  %v79 = vunpack.c.l.b16 %v41
  %v80 = vunpack.c.l.b16 %v42
  %v81 = vunpack.c.l.b16 %v43
  %v82 = vpack.c.b16 %v67, %v66
  %v83 = vpack.c.b16 %v69, %v68
  %v84 = vpack.c.b16 %v71, %v70
  %v85 = vpack.c.b16 %v73, %v72
  %v86 = vpack.c.b16 %v75, %v74
  %v87 = vpack.c.b16 %v77, %v76
  %v88 = vpack.c.b16 %v79, %v78
  %v89 = vpack.c.b16 %v81, %v80
  %98 = vmatprep.subr.bf16.mxu0 0
  %99 = vmatpush1.bf16.msra.mxu0 %v82
  %100 = vmatprep.subr.bf16.mxu0 0
  %101 = vmatpush1.bf16.msra.mxu0 %v83
  %102 = vmatprep.subr.bf16.mxu0 0
  %103 = vmatpush1.bf16.msra.mxu0 %v84
  %104 = vmatprep.subr.bf16.mxu0 0
  %105 = vmatpush1.bf16.msra.mxu0 %v85
  %106 = vmatprep.subr.bf16.mxu0 0
  %107 = vmatpush1.bf16.msra.mxu0 %v86
  %108 = vmatprep.subr.bf16.mxu0 0
  %109 = vmatpush1.bf16.msra.mxu0 %v87
  %110 = vmatprep.subr.bf16.mxu0 0
  %111 = vmatpush1.bf16.msra.mxu0 %v88
  %112 = vmatprep.subr.bf16.mxu0 0
  %113 = vmatpush1.bf16.msra.mxu0 %v89
  %114 = vmatprep.subr.bf16.mxu0 0
  %115 = vmatpush1.bf16.msra.mxu0 0
  %116 = vmatprep.subr.bf16.mxu0 0
  %117 = vmatpush1.bf16.msra.mxu0 0
  %118 = vmatprep.subr.bf16.mxu0 0
  %119 = vmatpush1.bf16.msra.mxu0 0
  %120 = vmatprep.subr.bf16.mxu0 0
  %121 = vmatpush1.bf16.msra.mxu0 0
  %122 = vmatprep.subr.bf16.mxu0 0
  %123 = vmatpush1.bf16.msra.mxu0 0
  %124 = vmatprep.subr.bf16.mxu0 0
  %125 = vmatpush1.bf16.msra.mxu0 0
  %126 = vmatprep.subr.bf16.mxu0 0
  %127 = vmatpush1.bf16.msra.mxu0 0
  %128 = vmatprep.subr.bf16.mxu0 0
  %129 = vmatpush1.bf16.msra.mxu0 0
  %130 = vmatprep.mubr.bf16.mxu0 0
  %131 = vmatmul.mubr.bf16.gmra.mrb[0].mxu0 %v48
  %v132 = vpop.f32.mrb[0].mxu0
  %v133 = vadd.f32 0.0, %v132
  %v134 = vpop.f32.mrb[0].mxu0
  %v135 = vpop.f32.mrb[0].mxu0
  %v136 = vadd.f32 0.0, %v135
  %v137 = vpop.f32.mrb[0].mxu0
  %138 = vdwg.mxu0
  %v139 = vadd.f32 %v24, %v133
  %v140 = vadd.f32 %v25, %v136
  %141 = vst [vmem:[#allocation2] sm:$0xff] %v139
  %142 = vst [vmem:[#allocation2 + $0x8] sm:$0xff] %v140
  // Predicated region
  $region22: #{_lambda_.17} parent=0 // pred_check
    %p143 = pneg %p18
  $region23: #{_lambda_.17} parent=0 // pred_check_branch
    %145 = sbr.rel (%p143) target = $region25
  $region24: #{_lambda_.17} parent=0 // pred_region
    %v146 = vld [vmem:[#allocation2] sm:$0xff]
    %v147 = vld [vmem:[#allocation2 + $0x8] sm:$0xff]
    %v148 = vld [vmem:[%s2] sm:$0x1]
    %v150 = vlaneseq
    %v151 = vshrl.u32 %v150, 7
    %v152 = vsub.s32 0, %v151
    %v153 = vrot.slane %v148, %v152
    %v155 = vmul.f32 %v146, %v153
    %v156 = vmul.f32 %v147, %v153
    %v157 = vld [vmem:[%s3] sm:$0x1]
    %v159 = vlaneseq
    %v160 = vshrl.u32 %v159, 7
    %v161 = vsub.s32 0, %v160
    %v162 = vrot.slane %v157, %v161
    %v164 = vadd.f32 %v155, %v162
    %v165 = vadd.f32 %v156, %v162
    %v166 = vpack.c.bf16 %v165, %v164
    %v168 = vunpack.c.l.b16 %v166
    %v169 = vunpack.c.h.b16 %v166
    %v170 = vpack.c.b16 %v168, %v168
    %v171 = vpack.c.b16 %v169, %v169
    %174 = vst [vmem:[%s4] sm:$0xf] %v170
    %175 = vst [vmem:[%s4 + $0x4] sm:$0xf] %v171
  $region25: #{_lambda_.17} parent=0 // pred_fallthru
    _
  // Predicated region
  $region26: #{_lambda_.17} parent=0 // pred_check
    _
  $region27: #{_lambda_.17} parent=0 // pred_check_branch
    %177 = sbr.rel (0) target = $region29
  $region28: #{_lambda_.17} parent=0 // pred_region
    _
  $region29: #{_lambda_.17} parent=0 // pred_fallthru
    _
  // Predicated region
  $region30: #{_lambda_.17} parent=0 // pred_check
    _
  $region31: #{_lambda_.17} parent=0 // pred_check_branch
    %179 = sbr.rel (0) target = $region33
  $region32: #{_lambda_.17} parent=0 // pred_region
    _
  $region33: #{_lambda_.17} parent=0 // pred_fallthru
    _

// kernel: _lambda_.18
$region0: #{_lambda_.18}
  #allocation0 [shape = 'u32[]', space=smem, size = 0x4, offset = 0x4, fixed_abs, tag = 'smem constant byte address 0x4 - core index']
  #allocation1 [shape = 'u32[144,128]{1,0:T(1,128)}', space=vmem, size = 0x12000, scoped, tag = 'internal scratch']
  #allocation2 [shape = 'f32[16,128]{1,0:T(8,128)}', space=vmem, size = 0x2000, scoped, tag = 'scratch operand']
  %s0 = inlined_call_operand.vmem [shape: bf16[16,3456], index: 0, kind: input, shape index: {}]
  %s1 = inlined_call_operand.vmem [shape: bf16[3456,128], index: 1, kind: input, shape index: {}]
  %s2 = inlined_call_operand.vmem [shape: f32[1,128], index: 2, kind: input, shape index: {}]
  %s3 = inlined_call_operand.vmem [shape: f32[1,128], index: 3, kind: input, shape index: {}]
  %s4 = inlined_call_operand.vmem [shape: bf16[16,128], index: 4, kind: input, shape index: {}]
  %s5 = inlined_call_operand.vmem [shape: bf16[16,128], index: 5, kind: output, shape index: {}]
  %s6 = sld [smem:[#allocation0]]
  $region87: #{_lambda_.18} parent=0
    _
  %s8 = ssub.s32 1, %s6
  %s9 = scalar_select 0, %s8, %s6
  $region1: #{_lambda_.18} parent=0
    #allocation3 [shape = 'u8[24576]{0}', space=vmem, size = 0x6000, scoped, tag = 'input window, operand 0']
    loop: start=0, step=1, limit=11
    $region2: #{_lambda_.18} parent=1 // loop_pre_header
      _
    $region3: #{_lambda_.18} parent=1 // loop_header
      %s11 = sphi 0, %s15
      %p12 = scmp.ge.s32.totalorder %s11, 11
      %s18 = sphi 0, %s37
      %s19 = sphi 0, %s33
      %s20 = sphi 0, %s29
      %s21 = sphi 0, %s18
      %s22 = sphi 0, %s19
      %s23 = sphi 0, %s20
      %s24 = sphi 0, %s21
      %s25 = sphi 0, %s22
      %s26 = sphi 0, %s23
      %s42 = sphi 0, %s44
      %s45 = sphi 0, %s42
      %s46 = sphi 0, %s45
      %s62 = sphi 0, %s46
      %s70 = sphi 0, %s72
      %s73 = sphi 0, %s70
      %s74 = sphi 0, %s73
      %s90 = sphi 0, %s74
      %s96 = sphi 0, %s98
      %s99 = sphi 0, %s96
      %s100 = sphi 0, %s99
      %s116 = sphi 0, %s100
      %s122 = sphi 0, %s124
      %s125 = sphi 0, %s122
      %s126 = sphi 0, %s125
      %s142 = sphi 0, %s126
      %s150 = sphi 0, %s152
      %s153 = sphi 0, %s150
      %s154 = sphi 0, %s153
      %s170 = sphi 0, %s154
      %s178 = sphi 0, %s180
      %s181 = sphi 0, %s178
      %s182 = sphi 0, %s181
      %s198 = sphi 0, %s182
    $region4: #{_lambda_.18} parent=1 // loop_header_branch
      %14 = sbr.rel (%p12) target = $region8
    $region5: #{_lambda_.18} parent=1 // loop_body
      %s16 = ssub.s32 %s11, 1
      %s17 = ssub.s32 %s11, 2
      %s27 = sadd.s32 1, %s20
      %p28 = scmp.ge.s32.totalorder %s27, 9
      %s29 = scalar_select %p28, 0, %s27
      %s30 = sadd.s32 1, %s19
      %s31 = scalar_select %p28, %s30, %s19
      %p32 = scmp.ge.s32.totalorder %s31, 1
      %s33 = scalar_select %p32, 0, %s31
      %s34 = sadd.s32 1, %s18
      %s35 = scalar_select %p32, %s34, %s18
      %p36 = scmp.ge.s32.totalorder %s35, 1
      %s37 = scalar_select %p36, 0, %s35
      %s38 = ssub.s32 %s18, %s37
      %s39 = ssub.s32 %s20, %s29
      %s40 = sor.u32 %s38, %s39
      %p41 = scmp.eq.s32.totalorder %s40, 0
      %s43 = sadd.s32 %s42, 1
      %s44 = scalar_select %p41, %s42, %s43
      %p47 = pneg %p41
      %p48 = scmp.eq.s32.totalorder %s11, 8
      %p49 = por %p47, %p48
      %p50 = scmp.ne.s32.totalorder %s42, %s45
      %p51 = scmp.eq.s32.totalorder %s11, 0
      %p52 = por %p50, %p51
      %p53 = scmp.ne.s32.totalorder %s42, %s45
      %p54 = scmp.eq.s32.totalorder %s16, 8
      %p55 = por %p53, %p54
      %p56 = scmp.ne.s32.totalorder %s45, %s46
      %p57 = scmp.eq.s32.totalorder %s16, 0
      %p58 = por %p56, %p57
      %p59 = scmp.ne.s32.totalorder %s45, %s46
      %p60 = scmp.eq.s32.totalorder %s17, 8
      %p61 = por %p59, %p60
      %p63 = scmp.ne.s32.totalorder %s46, %s62
      %p64 = scmp.eq.s32.totalorder %s17, 0
      %p65 = por %p63, %p64
      %s66 = ssub.s32 %s20, %s29
      %s67 = ssub.s32 %s19, %s33
      %s68 = sor.u32 %s66, %s67
      %p69 = scmp.eq.s32.totalorder %s68, 0
      %s71 = sadd.s32 %s70, 1
      %s72 = scalar_select %p69, %s70, %s71
      %p75 = pneg %p69
      %p76 = scmp.eq.s32.totalorder %s11, 8
      %p77 = por %p75, %p76
      %p78 = scmp.ne.s32.totalorder %s70, %s73
      %p79 = scmp.eq.s32.totalorder %s11, 0
      %p80 = por %p78, %p79
      %p81 = scmp.ne.s32.totalorder %s70, %s73
      %p82 = scmp.eq.s32.totalorder %s16, 8
      %p83 = por %p81, %p82
      %p84 = scmp.ne.s32.totalorder %s73, %s74
      %p85 = scmp.eq.s32.totalorder %s16, 0
      %p86 = por %p84, %p85
      %p87 = scmp.ne.s32.totalorder %s73, %s74
      %p88 = scmp.eq.s32.totalorder %s17, 8
      %p89 = por %p87, %p88
      %p91 = scmp.ne.s32.totalorder %s74, %s90
      %p92 = scmp.eq.s32.totalorder %s17, 0
      %p93 = por %p91, %p92
      %s94 = ssub.s32 %s19, %s33
      %p95 = scmp.eq.s32.totalorder %s94, 0
      %s97 = sadd.s32 %s96, 1
      %s98 = scalar_select %p95, %s96, %s97
      %p101 = pneg %p95
      %p102 = scmp.eq.s32.totalorder %s11, 8
      %p103 = por %p101, %p102
      %p104 = scmp.ne.s32.totalorder %s96, %s99
      %p105 = scmp.eq.s32.totalorder %s11, 0
      %p106 = por %p104, %p105
      %p107 = scmp.ne.s32.totalorder %s96, %s99
      %p108 = scmp.eq.s32.totalorder %s16, 8
      %p109 = por %p107, %p108
      %p110 = scmp.ne.s32.totalorder %s99, %s100
      %p111 = scmp.eq.s32.totalorder %s16, 0
      %p112 = por %p110, %p111
      %p113 = scmp.ne.s32.totalorder %s99, %s100
      %p114 = scmp.eq.s32.totalorder %s17, 8
      %p115 = por %p113, %p114
      %p117 = scmp.ne.s32.totalorder %s100, %s116
      %p118 = scmp.eq.s32.totalorder %s17, 0
      %p119 = por %p117, %p118
      %s120 = ssub.s32 %s19, %s33
      %p121 = scmp.eq.s32.totalorder %s120, 0
      %s123 = sadd.s32 %s122, 1
      %s124 = scalar_select %p121, %s122, %s123
      %p127 = pneg %p121
      %p128 = scmp.eq.s32.totalorder %s11, 8
      %p129 = por %p127, %p128
      %p130 = scmp.ne.s32.totalorder %s122, %s125
      %p131 = scmp.eq.s32.totalorder %s11, 0
      %p132 = por %p130, %p131
      %p133 = scmp.ne.s32.totalorder %s122, %s125
      %p134 = scmp.eq.s32.totalorder %s16, 8
      %p135 = por %p133, %p134
      %p136 = scmp.ne.s32.totalorder %s125, %s126
      %p137 = scmp.eq.s32.totalorder %s16, 0
      %p138 = por %p136, %p137
      %p139 = scmp.ne.s32.totalorder %s125, %s126
      %p140 = scmp.eq.s32.totalorder %s17, 8
      %p141 = por %p139, %p140
      %p143 = scmp.ne.s32.totalorder %s126, %s142
      %p144 = scmp.eq.s32.totalorder %s17, 0
      %p145 = por %p143, %p144
      %s146 = ssub.s32 %s18, %s37
      %s147 = ssub.s32 %s19, %s33
      %s148 = sor.u32 %s146, %s147
      %p149 = scmp.eq.s32.totalorder %s148, 0
      %s151 = sadd.s32 %s150, 1
      %s152 = scalar_select %p149, %s150, %s151
      %p155 = pneg %p149
      %p156 = scmp.eq.s32.totalorder %s11, 8
      %p157 = por %p155, %p156
      %p158 = scmp.ne.s32.totalorder %s150, %s153
      %p159 = scmp.eq.s32.totalorder %s11, 0
      %p160 = por %p158, %p159
      %p161 = scmp.ne.s32.totalorder %s150, %s153
      %p162 = scmp.eq.s32.totalorder %s16, 8
      %p163 = por %p161, %p162
      %p164 = scmp.ne.s32.totalorder %s153, %s154
      %p165 = scmp.eq.s32.totalorder %s16, 0
      %p166 = por %p164, %p165
      %p167 = scmp.ne.s32.totalorder %s153, %s154
      %p168 = scmp.eq.s32.totalorder %s17, 8
      %p169 = por %p167, %p168
      %p171 = scmp.ne.s32.totalorder %s154, %s170
      %p172 = scmp.eq.s32.totalorder %s17, 0
      %p173 = por %p171, %p172
      %s174 = ssub.s32 %s18, %s37
      %s175 = ssub.s32 %s19, %s33
      %s176 = sor.u32 %s174, %s175
      %p177 = scmp.eq.s32.totalorder %s176, 0
      %s179 = sadd.s32 %s178, 1
      %s180 = scalar_select %p177, %s178, %s179
      %p183 = pneg %p177
      %p184 = scmp.eq.s32.totalorder %s11, 8
      %p185 = por %p183, %p184
      %p186 = scmp.ne.s32.totalorder %s178, %s181
      %p187 = scmp.eq.s32.totalorder %s11, 0
      %p188 = por %p186, %p187
      %p189 = scmp.ne.s32.totalorder %s178, %s181
      %p190 = scmp.eq.s32.totalorder %s16, 8
      %p191 = por %p189, %p190
      %p192 = scmp.ne.s32.totalorder %s181, %s182
      %p193 = scmp.eq.s32.totalorder %s16, 0
      %p194 = por %p192, %p193
      %p195 = scmp.ne.s32.totalorder %s181, %s182
      %p196 = scmp.eq.s32.totalorder %s17, 8
      %p197 = por %p195, %p196
      %p199 = scmp.ne.s32.totalorder %s182, %s198
      %p200 = scmp.eq.s32.totalorder %s17, 0
      %p201 = por %p199, %p200
      %p202 = scmp.le.s32.totalorder 1, %s11
      %p203 = scmp.lt.s32.totalorder %s11, 10
      %p204 = pnand %p202, %p203
      %p205 = pneg %p204
      // Predicated region
      $region9: #{_lambda_.18} parent=5 // pred_check
        _
      $region10: #{_lambda_.18} parent=5 // pred_check_branch
        %207 = sbr.rel (%p204) target = $region12
      $region11: #{_lambda_.18} parent=5 // pred_region
        %s208 = ssub.s32 %s11, 1
        // Predicated region
        $region13: #{_lambda_.18} parent=11 // pred_check
          %p209 = pneg %p112
        $region14: #{_lambda_.18} parent=11 // pred_check_branch
          %211 = sbr.rel (%p209) target = $region16
        $region15: #{_lambda_.18} parent=11 // pred_region
          %p212 = scmp.lt.s32.totalorder %s22, 0
          %s213 = scalar_select %p212, %s22, 0
          %s214 = scalar_lea.vmem %s2, %s213
        $region16: #{_lambda_.18} parent=11 // pred_fallthru
          _
        // Predicated region
        $region17: #{_lambda_.18} parent=11 // pred_check
          %p215 = pneg %p138
        $region18: #{_lambda_.18} parent=11 // pred_check_branch
          %217 = sbr.rel (%p215) target = $region20
        $region19: #{_lambda_.18} parent=11 // pred_region
          %p218 = scmp.lt.s32.totalorder %s22, 0
          %s219 = scalar_select %p218, %s22, 0
          %s220 = scalar_lea.vmem %s3, %s219
        $region20: #{_lambda_.18} parent=11 // pred_fallthru
          _
        // Predicated region
        $region21: #{_lambda_.18} parent=11 // pred_check
          %p221 = pneg %p166
        $region22: #{_lambda_.18} parent=11 // pred_check_branch
          %223 = sbr.rel (%p221) target = $region24
        $region23: #{_lambda_.18} parent=11 // pred_region
          %s224 = smul.u32 2, %s21
          %p225 = scmp.lt.s32.totalorder %s224, 1
          %s226 = scalar_select %p225, %s224, 1
          %p227 = scmp.lt.s32.totalorder %s22, 0
          %s228 = scalar_select %p227, %s22, 0
          %s229 = sadd.s32 %s228, %s226
          %s230 = smul.addr %s229, 4
          %s231 = scalar_lea.vmem %s4, %s230
          %s232 = smul.u32 2, %s21
        $region24: #{_lambda_.18} parent=11 // pred_fallthru
          _
      $region12: #{_lambda_.18} parent=5 // pred_fallthru
        _
      %p233 = scmp.lt.s32.totalorder %s11, 9
      // Predicated region
      $region25: #{_lambda_.18} parent=5 // pred_check
        %p234 = pneg %p233
      $region26: #{_lambda_.18} parent=5 // pred_check_branch
        %236 = sbr.rel (%p234) target = $region28
      $region27: #{_lambda_.18} parent=5 // pred_region
        // Predicated region
        $region29: #{_lambda_.18} parent=27 // pred_check
          %p237 = pneg %p52
        $region30: #{_lambda_.18} parent=27 // pred_check_branch
          %239 = sbr.rel (%p237) target = $region32
        $region31: #{_lambda_.18} parent=27 // pred_region
          %s240 = sand.u32 %s42, 1
          %s241 = sand.u32 %s42, 1
          %s242 = smul.addr %s241, 24
          %s243 = scalar_lea.vmem [#allocation3], %s242
          %s244 = smul.u32 2, %s18
          %s245 = smul.u32 3, %s20
          %s246 = smul.addr %s244, 27
          %s247 = sadd.s32 %s245, %s246
          %s248 = smul.addr %s247, 4
          %s249 = scalar_lea.vmem %s0, %s248
          // Predicated region
          $region33: #{_lambda_.18} parent=31 // pred_check
            _
          $region34: #{_lambda_.18} parent=31 // pred_check_branch
            %251 = sbr.rel (0) target = $region36
          $region35: #{_lambda_.18} parent=31 // pred_region
            // Predicated region
            $region37: #{_lambda_.18} parent=35 // pred_check
              _
            $region38: #{_lambda_.18} parent=35 // pred_check_branch
              %253 = sbr.rel (0) target = $region40
            $region39: #{_lambda_.18} parent=35 // pred_region
              %s254 = scalar_lea.vmem %s249, 8
              %s255 = scalar_lea.vmem %s243, 8 [#allocation3]
              loop: start=0, step=1, limit=1
              $region41: #{_lambda_.18} parent=39 // loop_pre_header
                _
              $region42: #{_lambda_.18} parent=39 // loop_header
                %s257 = sphi 0, %s261
                %p258 = scmp.ge.s32.totalorder %s257, 1
                %s262 = sphi %s249, %s249
                %s263 = sphi %s243, %s243
              $region43: #{_lambda_.18} parent=39 // loop_header_branch
                %260 = sbr.rel (%p258) target = $region47
              $region44: #{_lambda_.18} parent=39 // loop_body
                %v264 = vld [vmem:[%s262] sm:$0xff]
                %265 = vst [vmem:[%s263] sm:$0xff] %v264
                %v266 = vld [vmem:[%s262 + $0x6c] sm:$0xff]
                %267 = vst [vmem:[%s263 + $0xc] sm:$0xff] %v266
              $region45: #{_lambda_.18} parent=39 // loop_footer
                %s261 = sadd.s32 1, %s257
              $region46: #{_lambda_.18} parent=39 // loop_footer_branch
                %256 = sbr.rel target = $region42
              $region47: #{_lambda_.18} parent=39 // loop_exit
                _
              loop: start=0, step=1, limit=1
              $region48: #{_lambda_.18} parent=39 // loop_pre_header
                _
              $region49: #{_lambda_.18} parent=39 // loop_header
                %s270 = sphi 0, %s274
                %p271 = scmp.ge.s32.totalorder %s270, 1
                %s275 = sphi %s254, %s254
                %s276 = sphi %s255, %s255
              $region50: #{_lambda_.18} parent=39 // loop_header_branch
                %273 = sbr.rel (%p271) target = $region54
              $region51: #{_lambda_.18} parent=39 // loop_body
                %v277 = vld [vmem:[%s275] sm:$0xf]
                %278 = vst [vmem:[%s276] sm:$0xf] %v277
                %v279 = vld [vmem:[%s275 + $0x6c] sm:$0xf]
                %280 = vst [vmem:[%s276 + $0xc] sm:$0xf] %v279
              $region52: #{_lambda_.18} parent=39 // loop_footer
                %s274 = sadd.s32 1, %s270
              $region53: #{_lambda_.18} parent=39 // loop_footer_branch
                %269 = sbr.rel target = $region49
              $region54: #{_lambda_.18} parent=39 // loop_exit
                _
            $region40: #{_lambda_.18} parent=35 // pred_fallthru
              _
          $region36: #{_lambda_.18} parent=31 // pred_fallthru
            _
          %281 = vnop
        $region32: #{_lambda_.18} parent=27 // pred_fallthru
          _
        // Predicated region
        $region55: #{_lambda_.18} parent=27 // pred_check
          %p282 = pneg %p80
        $region56: #{_lambda_.18} parent=27 // pred_check_branch
          %284 = sbr.rel (%p282) target = $region58
        $region57: #{_lambda_.18} parent=27 // pred_region
          %s285 = smul.u32 48, %s20
          %p286 = scmp.lt.s32.totalorder %s285, 431
          %s287 = scalar_select %p286, %s285, 431
          %p288 = scmp.lt.s32.totalorder %s19, 0
          %s289 = scalar_select %p288, %s19, 0
          %s290 = sadd.s32 %s289, %s287
          %s291 = smul.addr %s290, 4
          %s292 = scalar_lea.vmem %s1, %s291
          %s293 = smul.u32 48, %s20
        $region58: #{_lambda_.18} parent=27 // pred_fallthru
          _
      $region28: #{_lambda_.18} parent=5 // pred_fallthru
        _
      %p294 = scmp.le.s32.totalorder 1, %s11
      %p295 = scmp.lt.s32.totalorder %s11, 10
      %p296 = pnand %p294, %p295
      %p297 = pneg %p296
      // Predicated region
      $region59: #{_lambda_.18} parent=5 // pred_check
        _
      $region60: #{_lambda_.18} parent=5 // pred_check_branch
        %299 = sbr.rel (%p296) target = $region62
      $region61: #{_lambda_.18} parent=5 // pred_region
        %s300 = ssub.s32 %s11, 1
        %s301 = sand.u32 %s45, 1
        %s302 = sand.u32 %s45, 1
        %s303 = smul.addr %s302, 24
        %s304 = scalar_lea.vmem [#allocation3], %s303
        // Predicated region
        $region63: #{_lambda_.18} parent=61 // pred_check
          %p305 = pneg %p58
        $region64: #{_lambda_.18} parent=61 // pred_check_branch
          %307 = sbr.rel (%p305) target = $region66
        $region65: #{_lambda_.18} parent=61 // pred_region
          _
        $region66: #{_lambda_.18} parent=61 // pred_fallthru
          _
        %s308 = sand.u32 %s45, 1
        %s309 = sand.u32 %s45, 1
        %s310 = smul.addr %s309, 24
        %s311 = scalar_lea.vmem [#allocation3], %s310
        %p312 = pneg %p58
        %p313 = pneg %p55
        %s314 = smul.u32 48, %s23
        %p315 = scmp.lt.s32.totalorder %s314, 431
        %s316 = scalar_select %p315, %s314, 431
        %p317 = scmp.lt.s32.totalorder %s22, 0
        %s318 = scalar_select %p317, %s22, 0
        %s319 = sadd.s32 %s318, %s316
        %s320 = smul.addr %s319, 4
        %s321 = scalar_lea.vmem %s1, %s320
        %p322 = pneg %p86
        %p323 = pneg %p83
        %p324 = scmp.lt.s32.totalorder %s22, 0
        %s325 = scalar_select %p324, %s22, 0
        %s326 = scalar_lea.vmem %s2, %s325
        %p327 = pneg %p112
        %p328 = pneg %p109
        %p329 = scmp.lt.s32.totalorder %s22, 0
        %s330 = scalar_select %p329, %s22, 0
        %s331 = scalar_lea.vmem %s3, %s330
        %p332 = pneg %p138
        %p333 = pneg %p135
        %s334 = smul.u32 2, %s21
        %p335 = scmp.lt.s32.totalorder %s334, 1
        %s336 = scalar_select %p335, %s334, 1
        %p337 = scmp.lt.s32.totalorder %s22, 0
        %s338 = scalar_select %p337, %s22, 0
        %s339 = sadd.s32 %s338, %s336
        %s340 = smul.addr %s339, 4
        %s341 = scalar_lea.vmem %s4, %s340
        %p342 = pneg %p166
        %p343 = pneg %p163
        %p344 = pneg %p194
        %p345 = pneg %p191
        %s346 = smul.u32 2, %s21
        %p347 = scmp.lt.s32.totalorder %s346, 1
        %s348 = scalar_select %p347, %s346, 1
        %p349 = scmp.lt.s32.totalorder %s22, 0
        %s350 = scalar_select %p349, %s22, 0
        %s351 = sadd.s32 %s350, %s348
        %s352 = smul.addr %s351, 4
        %s353 = scalar_lea.vmem %s5, %s352
        %s354 = smul.u32 2, %s21
        %s355 = smul.u32 3, %s23
        %s356 = smul.u32 48, %s23
        %p357 = scmp.lt.s32.totalorder %s356, 431
        %s358 = scalar_select %p357, %s356, 431
        %p359 = scmp.lt.s32.totalorder %s22, 0
        %s360 = scalar_select %p359, %s22, 0
        %s361 = sadd.s32 %s360, %s358
        %s362 = smul.addr %s361, 4
        %s363 = scalar_lea.vmem %s1, %s362
        %s364 = smul.u32 48, %s23
        %p365 = scmp.lt.s32.totalorder %s22, 0
        %s366 = scalar_select %p365, %s22, 0
        %s367 = scalar_lea.vmem %s2, %s366
        %p368 = scmp.lt.s32.totalorder %s22, 0
        %s369 = scalar_select %p368, %s22, 0
        %s370 = scalar_lea.vmem %s3, %s369
        %s371 = smul.u32 2, %s21
        %p372 = scmp.lt.s32.totalorder %s371, 1
        %s373 = scalar_select %p372, %s371, 1
        %p374 = scmp.lt.s32.totalorder %s22, 0
        %s375 = scalar_select %p374, %s22, 0
        %s376 = sadd.s32 %s375, %s373
        %s377 = smul.addr %s376, 4
        %s378 = scalar_lea.vmem %s4, %s377
        %s379 = smul.u32 2, %s21
        %s380 = smul.u32 2, %s21
        %p381 = scmp.lt.s32.totalorder %s380, 1
        %s382 = scalar_select %p381, %s380, 1
        %p383 = scmp.lt.s32.totalorder %s22, 0
        %s384 = scalar_select %p383, %s22, 0
        %s385 = sadd.s32 %s384, %s382
        %s386 = smul.addr %s385, 4
        %s387 = scalar_lea.vmem %s5, %s386
        %s388 = smul.u32 2, %s21
        %p390 = scmp.eq.s32.totalorder %s23, 0
        // Predicated region
        $region67: #{_lambda_.18} parent=61 // pred_check
          %p391 = pneg %p390
        $region68: #{_lambda_.18} parent=61 // pred_check_branch
          %393 = sbr.rel (%p391) target = $region70
        $region69: #{_lambda_.18} parent=61 // pred_region
          %394 = vst [vmem:[#allocation2] sm:$0xff] 0.0
          %395 = vst [vmem:[#allocation2 + $0x8] sm:$0xff] 0.0
        $region70: #{_lambda_.18} parent=61 // pred_fallthru
          _
        %v396 = vld [vmem:[#allocation2] sm:$0xff]
        %v397 = vld [vmem:[#allocation2 + $0x8] sm:$0xff]
        %v398 = vld [vmem:[%s304] sm:$0xff]
        %v399 = vld [vmem:[%s304 + $0x8] sm:$0xf]
        %v400 = vld [vmem:[%s304 + $0xc] sm:$0xff]
        %v401 = vld [vmem:[%s304 + $0x14] sm:$0xf]
        %v402 = vld [vmem:[%s363] sm:$0xf]
        %v403 = vld [vmem:[%s363 + $0x4] sm:$0xf]
        %v404 = vld [vmem:[%s363 + $0x8] sm:$0xf]
        %v405 = vld [vmem:[%s363 + $0xc] sm:$0xf]
        %v406 = vld [vmem:[%s363 + $0x10] sm:$0xf]
        %v407 = vld [vmem:[%s363 + $0x14] sm:$0xf]
        %v408 = vld [vmem:[%s363 + $0x18] sm:$0xf]
        %v409 = vld [vmem:[%s363 + $0x1c] sm:$0xf]
        %v410 = vld [vmem:[%s363 + $0x20] sm:$0xf]
        %v411 = vld [vmem:[%s363 + $0x24] sm:$0xf]
        %v412 = vld [vmem:[%s363 + $0x28] sm:$0xf]
        %v413 = vld [vmem:[%s363 + $0x2c] sm:$0xf]
        %v414 = vld [vmem:[%s363 + $0x30] sm:$0xf]
        %v415 = vld [vmem:[%s363 + $0x34] sm:$0xf]
        %v416 = vld [vmem:[%s363 + $0x38] sm:$0xf]
        %v417 = vld [vmem:[%s363 + $0x3c] sm:$0xf]
        %v418 = vld [vmem:[%s363 + $0x40] sm:$0xf]
        %v419 = vld [vmem:[%s363 + $0x44] sm:$0xf]
        %v420 = vld [vmem:[%s363 + $0x48] sm:$0xf]
        %v421 = vld [vmem:[%s363 + $0x4c] sm:$0xf]
        %v422 = vld [vmem:[%s363 + $0x50] sm:$0xf]
        %v423 = vld [vmem:[%s363 + $0x54] sm:$0xf]
        %v424 = vld [vmem:[%s363 + $0x58] sm:$0xf]
        %v425 = vld [vmem:[%s363 + $0x5c] sm:$0xf]
        %v426 = vld [vmem:[%s363 + $0x60] sm:$0xf]
        %v427 = vld [vmem:[%s363 + $0x64] sm:$0xf]
        %v428 = vld [vmem:[%s363 + $0x68] sm:$0xf]
        %v429 = vld [vmem:[%s363 + $0x6c] sm:$0xf]
        %v430 = vld [vmem:[%s363 + $0x70] sm:$0xf]
        %v431 = vld [vmem:[%s363 + $0x74] sm:$0xf]
        %v432 = vld [vmem:[%s363 + $0x78] sm:$0xf]
        %v433 = vld [vmem:[%s363 + $0x7c] sm:$0xf]
        %v434 = vld [vmem:[%s363 + $0x80] sm:$0xf]
        %v435 = vld [vmem:[%s363 + $0x84] sm:$0xf]
        %v436 = vld [vmem:[%s363 + $0x88] sm:$0xf]
        %v437 = vld [vmem:[%s363 + $0x8c] sm:$0xf]
        %v438 = vld [vmem:[%s363 + $0x90] sm:$0xf]
        %v439 = vld [vmem:[%s363 + $0x94] sm:$0xf]
        %v440 = vld [vmem:[%s363 + $0x98] sm:$0xf]
        %v441 = vld [vmem:[%s363 + $0x9c] sm:$0xf]
        %v442 = vld [vmem:[%s363 + $0xa0] sm:$0xf]
        %v443 = vld [vmem:[%s363 + $0xa4] sm:$0xf]
        %v444 = vld [vmem:[%s363 + $0xa8] sm:$0xf]
        %v445 = vld [vmem:[%s363 + $0xac] sm:$0xf]
        %v446 = vld [vmem:[%s363 + $0xb0] sm:$0xf]
        %v447 = vld [vmem:[%s363 + $0xb4] sm:$0xf]
        %v448 = vld [vmem:[%s363 + $0xb8] sm:$0xf]
        %v449 = vld [vmem:[%s363 + $0xbc] sm:$0xf]
        %v454 = vunpack.c.l.b16 %v398
        %v455 = vunpack.c.h.b16 %v398
        %v456 = vunpack.c.l.b16 %v399
        %v457 = vunpack.c.l.b16 %v400
        %v458 = vunpack.c.h.b16 %v400
        %v459 = vunpack.c.l.b16 %v401
        %v460 = vpack.c.b16 %v457, %v454
        %v461 = vpack.c.b16 %v458, %v455
        %v462 = vpack.c.b16 %v459, %v456
        %v514 = vunpack.c.l.b16 %v402
        %v515 = vunpack.c.l.b16 %v403
        %v516 = vunpack.c.l.b16 %v404
        %v517 = vunpack.c.l.b16 %v405
        %v518 = vunpack.c.l.b16 %v406
        %v519 = vunpack.c.l.b16 %v407
        %v520 = vunpack.c.l.b16 %v408
        %v521 = vunpack.c.l.b16 %v409
        %v522 = vunpack.c.l.b16 %v410
        %v523 = vunpack.c.l.b16 %v411
        %v524 = vunpack.c.l.b16 %v412
        %v525 = vunpack.c.l.b16 %v413
        %v526 = vunpack.c.l.b16 %v414
        %v527 = vunpack.c.l.b16 %v415
        %v528 = vunpack.c.l.b16 %v416
        %v529 = vunpack.c.l.b16 %v417
        %v530 = vunpack.c.l.b16 %v418
        %v531 = vunpack.c.l.b16 %v419
        %v532 = vunpack.c.l.b16 %v420
        %v533 = vunpack.c.l.b16 %v421
        %v534 = vunpack.c.l.b16 %v422
        %v535 = vunpack.c.l.b16 %v423
        %v536 = vunpack.c.l.b16 %v424
        %v537 = vunpack.c.l.b16 %v425
        %v538 = vunpack.c.l.b16 %v426
        %v539 = vunpack.c.l.b16 %v427
        %v540 = vunpack.c.l.b16 %v428
        %v541 = vunpack.c.l.b16 %v429
        %v542 = vunpack.c.l.b16 %v430
        %v543 = vunpack.c.l.b16 %v431
        %v544 = vunpack.c.l.b16 %v432
        %v545 = vunpack.c.l.b16 %v433
        %v546 = vunpack.c.l.b16 %v434
        %v547 = vunpack.c.l.b16 %v435
        %v548 = vunpack.c.l.b16 %v436
        %v549 = vunpack.c.l.b16 %v437
        %v550 = vunpack.c.l.b16 %v438
        %v551 = vunpack.c.l.b16 %v439
        %v552 = vunpack.c.l.b16 %v440
        %v553 = vunpack.c.l.b16 %v441
        %v554 = vunpack.c.l.b16 %v442
        %v555 = vunpack.c.l.b16 %v443
        %v556 = vunpack.c.l.b16 %v444
        %v557 = vunpack.c.l.b16 %v445
        %v558 = vunpack.c.l.b16 %v446
        %v559 = vunpack.c.l.b16 %v447
        %v560 = vunpack.c.l.b16 %v448
        %v561 = vunpack.c.l.b16 %v449
        %v562 = vpack.c.b16 %v515, %v514
        %v563 = vpack.c.b16 %v517, %v516
        %v564 = vpack.c.b16 %v519, %v518
        %v565 = vpack.c.b16 %v521, %v520
        %v566 = vpack.c.b16 %v523, %v522
        %v567 = vpack.c.b16 %v525, %v524
        %v568 = vpack.c.b16 %v527, %v526
        %v569 = vpack.c.b16 %v529, %v528
        %v570 = vpack.c.b16 %v531, %v530
        %v571 = vpack.c.b16 %v533, %v532
        %v572 = vpack.c.b16 %v535, %v534
        %v573 = vpack.c.b16 %v537, %v536
        %v574 = vpack.c.b16 %v539, %v538
        %v575 = vpack.c.b16 %v541, %v540
        %v576 = vpack.c.b16 %v543, %v542
        %v577 = vpack.c.b16 %v545, %v544
        %v578 = vpack.c.b16 %v547, %v546
        %v579 = vpack.c.b16 %v549, %v548
        %v580 = vpack.c.b16 %v551, %v550
        %v581 = vpack.c.b16 %v553, %v552
        %v582 = vpack.c.b16 %v555, %v554
        %v583 = vpack.c.b16 %v557, %v556
        %v584 = vpack.c.b16 %v559, %v558
        %v585 = vpack.c.b16 %v561, %v560
        %610 = vmatprep.subr.bf16.mxu0 0
        %611 = vmatpush1.bf16.msra.mxu0 %v562
        %612 = vmatprep.subr.bf16.mxu0 0
        %613 = vmatpush1.bf16.msra.mxu0 %v563
        %614 = vmatprep.subr.bf16.mxu0 0
        %615 = vmatpush1.bf16.msra.mxu0 %v564
        %616 = vmatprep.subr.bf16.mxu0 0
        %617 = vmatpush1.bf16.msra.mxu0 %v565
        %618 = vmatprep.subr.bf16.mxu0 0
        %619 = vmatpush1.bf16.msra.mxu0 %v566
        %620 = vmatprep.subr.bf16.mxu0 0
        %621 = vmatpush1.bf16.msra.mxu0 %v567
        %622 = vmatprep.subr.bf16.mxu0 0
        %623 = vmatpush1.bf16.msra.mxu0 %v568
        %624 = vmatprep.subr.bf16.mxu0 0
        %625 = vmatpush1.bf16.msra.mxu0 %v569
        %626 = vmatprep.subr.bf16.mxu0 0
        %627 = vmatpush1.bf16.msra.mxu0 %v570
        %628 = vmatprep.subr.bf16.mxu0 0
        %629 = vmatpush1.bf16.msra.mxu0 %v571
        %630 = vmatprep.subr.bf16.mxu0 0
        %631 = vmatpush1.bf16.msra.mxu0 %v572
        %632 = vmatprep.subr.bf16.mxu0 0
        %633 = vmatpush1.bf16.msra.mxu0 %v573
        %634 = vmatprep.subr.bf16.mxu0 0
        %635 = vmatpush1.bf16.msra.mxu0 %v574
        %636 = vmatprep.subr.bf16.mxu0 0
        %637 = vmatpush1.bf16.msra.mxu0 %v575
        %638 = vmatprep.subr.bf16.mxu0 0
        %639 = vmatpush1.bf16.msra.mxu0 %v576
        %640 = vmatprep.subr.bf16.mxu0 0
        %641 = vmatpush1.bf16.msra.mxu0 %v577
        %642 = vmatprep.mubr.bf16.mxu0 %v461
        %643 = vmatmul.mubr.bf16.gmra.mrb[0].mxu0 %v460
        %v644 = vpop.f32.mrb[0].mxu0
        %v645 = vadd.f32 0.0, %v644
        %v646 = vpop.f32.mrb[0].mxu0
        %v647 = vpop.f32.mrb[0].mxu0
        %v648 = vadd.f32 0.0, %v647
        %v649 = vpop.f32.mrb[0].mxu0
        %650 = vdwg.mxu0
        %651 = vmatprep.subr.bf16.mxu0 0
        %652 = vmatpush1.bf16.msra.mxu0 %v578
        %653 = vmatprep.subr.bf16.mxu0 0
        %654 = vmatpush1.bf16.msra.mxu0 %v579
        %655 = vmatprep.subr.bf16.mxu0 0
        %656 = vmatpush1.bf16.msra.mxu0 %v580
        %657 = vmatprep.subr.bf16.mxu0 0
        %658 = vmatpush1.bf16.msra.mxu0 %v581
        %659 = vmatprep.subr.bf16.mxu0 0
        %660 = vmatpush1.bf16.msra.mxu0 %v582
        %661 = vmatprep.subr.bf16.mxu0 0
        %662 = vmatpush1.bf16.msra.mxu0 %v583
        %663 = vmatprep.subr.bf16.mxu0 0
        %664 = vmatpush1.bf16.msra.mxu0 %v584
        %665 = vmatprep.subr.bf16.mxu0 0
        %666 = vmatpush1.bf16.msra.mxu0 %v585
        %667 = vmatprep.subr.bf16.mxu0 0
        %668 = vmatpush1.bf16.msra.mxu0 0
        %669 = vmatprep.subr.bf16.mxu0 0
        %670 = vmatpush1.bf16.msra.mxu0 0
        %671 = vmatprep.subr.bf16.mxu0 0
        %672 = vmatpush1.bf16.msra.mxu0 0
        %673 = vmatprep.subr.bf16.mxu0 0
        %674 = vmatpush1.bf16.msra.mxu0 0
        %675 = vmatprep.subr.bf16.mxu0 0
        %676 = vmatpush1.bf16.msra.mxu0 0
        %677 = vmatprep.subr.bf16.mxu0 0
        %678 = vmatpush1.bf16.msra.mxu0 0
        %679 = vmatprep.subr.bf16.mxu0 0
        %680 = vmatpush1.bf16.msra.mxu0 0
        %681 = vmatprep.subr.bf16.mxu0 0
        %682 = vmatpush1.bf16.msra.mxu0 0
        %683 = vmatprep.mubr.bf16.mxu0 0
        %684 = vmatmul.mubr.bf16.gmra.mrb[0].mxu0 %v462
        %v685 = vpop.f32.mrb[0].mxu0
        %v686 = vadd.f32 %v645, %v685
        %v687 = vpop.f32.mrb[0].mxu0
        %v688 = vpop.f32.mrb[0].mxu0
        %v689 = vadd.f32 %v648, %v688
        %v690 = vpop.f32.mrb[0].mxu0
        %691 = vdwg.mxu0
        %v692 = vadd.f32 %v396, %v686
        %v693 = vadd.f32 %v397, %v689
        %694 = vst [vmem:[#allocation2] sm:$0xff] %v692
        %695 = vst [vmem:[#allocation2 + $0x8] sm:$0xff] %v693
        %p696 = scmp.eq.s32.totalorder %s23, 8
        // Predicated region
        $region71: #{_lambda_.18} parent=61 // pred_check
          %p697 = pneg %p696
        $region72: #{_lambda_.18} parent=61 // pred_check_branch
          %699 = sbr.rel (%p697) target = $region74
        $region73: #{_lambda_.18} parent=61 // pred_region
          %v700 = vld [vmem:[#allocation2] sm:$0xff]
          %v701 = vld [vmem:[#allocation2 + $0x8] sm:$0xff]
          %v702 = vld [vmem:[%s367] sm:$0x1]
          %v704 = vlaneseq
          %v705 = vshrl.u32 %v704, 7
          %v706 = vsub.s32 0, %v705
          %v707 = vrot.slane %v702, %v706
          %v709 = vmul.f32 %v700, %v707
          %v710 = vmul.f32 %v701, %v707
          %v711 = vld [vmem:[%s370] sm:$0x1]
          %v713 = vlaneseq
          %v714 = vshrl.u32 %v713, 7
          %v715 = vsub.s32 0, %v714
          %v716 = vrot.slane %v711, %v715
          %v718 = vadd.f32 %v709, %v716
          %v719 = vadd.f32 %v710, %v716
          %v720 = vld [vmem:[%s378] sm:$0xf]
          %v721 = vld [vmem:[%s378 + $0x4] sm:$0xf]
          %v722 = vunpack.c.l.bf16 %v720
          %v723 = vunpack.c.l.bf16 %v721
          %v724 = vadd.f32 %v718, %v722
          %v725 = vadd.f32 %v719, %v723
          %v726 = vmax.f32 %v724, 0.0
          %v727 = vmax.f32 %v725, 0.0
          %v728 = vpack.c.bf16 %v727, %v726
          %v730 = vunpack.c.l.b16 %v728
          %v731 = vunpack.c.h.b16 %v728
          %v732 = vpack.c.b16 %v730, %v730
          %v733 = vpack.c.b16 %v731, %v731
          %736 = vst [vmem:[%s387] sm:$0xf] %v732
          %737 = vst [vmem:[%s387 + $0x4] sm:$0xf] %v733
        $region74: #{_lambda_.18} parent=61 // pred_fallthru
          _
        %s738 = smul.u32 2, %s21
        %p739 = scmp.lt.s32.totalorder %s738, 1
        %s740 = scalar_select %p739, %s738, 1
        %p741 = scmp.lt.s32.totalorder %s22, 0
        %s742 = scalar_select %p741, %s22, 0
        %s743 = sadd.s32 %s742, %s740
        %s744 = smul.addr %s743, 4
        %s745 = scalar_lea.vmem %s5, %s744
        // Predicated region
        $region75: #{_lambda_.18} parent=61 // pred_check
          %p746 = pneg %p191
        $region76: #{_lambda_.18} parent=61 // pred_check_branch
          %748 = sbr.rel (%p746) target = $region78
        $region77: #{_lambda_.18} parent=61 // pred_region
          %s749 = smul.u32 2, %s21
        $region78: #{_lambda_.18} parent=61 // pred_fallthru
          _
        // Predicated region
        $region79: #{_lambda_.18} parent=61 // pred_check
          %p750 = pneg %p191
        $region80: #{_lambda_.18} parent=61 // pred_check_branch
          %752 = sbr.rel (%p750) target = $region82
        $region81: #{_lambda_.18} parent=61 // pred_region
          %s753 = smul.u32 2, %s21
          %p754 = scmp.lt.s32.totalorder %s753, 1
          %s755 = scalar_select %p754, %s753, 1
          %p756 = scmp.lt.s32.totalorder %s22, 0
          %s757 = scalar_select %p756, %s22, 0
          %s758 = sadd.s32 %s757, %s755
          %s759 = smul.addr %s758, 4
          %s760 = scalar_lea.vmem %s5, %s759
        $region82: #{_lambda_.18} parent=61 // pred_fallthru
          _
      $region62: #{_lambda_.18} parent=5 // pred_fallthru
        _
      %p761 = scmp.le.s32.totalorder 2, %s11
      // Predicated region
      $region83: #{_lambda_.18} parent=5 // pred_check
        %p762 = pneg %p761
      $region84: #{_lambda_.18} parent=5 // pred_check_branch
        %764 = sbr.rel (%p762) target = $region86
      $region85: #{_lambda_.18} parent=5 // pred_region
        %s765 = ssub.s32 %s11, 2
      $region86: #{_lambda_.18} parent=5 // pred_fallthru
        _
    $region6: #{_lambda_.18} parent=1 // loop_footer
      %s15 = sadd.s32 1, %s11
    $region7: #{_lambda_.18} parent=1 // loop_footer_branch
      %10 = sbr.rel target = $region3
    $region8: #{_lambda_.18} parent=1 // loop_exit
      _

// kernel: _lambda_.19
$region0: #{_lambda_.19}
  #allocation0 [shape = 'u32[]', space=smem, size = 0x4, offset = 0x4, fixed_abs, tag = 'smem constant byte address 0x4 - core index']
  #allocation1 [shape = 'u32[144,128]{1,0:T(1,128)}', space=vmem, size = 0x12000, scoped, tag = 'internal scratch']
  #allocation2 [shape = 'f32[8,128]{1,0:T(8,128)}', space=vmem, size = 0x1000, scoped, tag = 'scratch operand']
  %s0 = inlined_call_operand.vmem [shape: bf16[8,1152], index: 0, kind: input, shape index: {}]
  %s1 = inlined_call_operand.vmem [shape: bf16[1152,128], index: 1, kind: input, shape index: {}]
  %s2 = inlined_call_operand.vmem [shape: f32[1,128], index: 2, kind: input, shape index: {}]
  %s3 = inlined_call_operand.vmem [shape: f32[1,128], index: 3, kind: input, shape index: {}]
  %s4 = inlined_call_operand.vmem [shape: bf16[8,128], index: 4, kind: output, shape index: {}]
  %s5 = sld [smem:[#allocation0]]
  $region34: #{_lambda_.19} parent=0
    _
  %s7 = ssub.s32 1, %s5
  %s8 = scalar_select 0, %s7, %s5
  // Predicated region
  $region2: #{_lambda_.19} parent=0 // pred_check
    _
  $region3: #{_lambda_.19} parent=0 // pred_check_branch
    %10 = sbr.rel (0) target = $region5
  $region4: #{_lambda_.19} parent=0 // pred_region
    _
  $region5: #{_lambda_.19} parent=0 // pred_fallthru
    _
  // Predicated region
  $region6: #{_lambda_.19} parent=0 // pred_check
    _
  $region7: #{_lambda_.19} parent=0 // pred_check_branch
    %12 = sbr.rel (0) target = $region9
  $region8: #{_lambda_.19} parent=0 // pred_region
    _
  $region9: #{_lambda_.19} parent=0 // pred_fallthru
    _
  // Predicated region
  $region10: #{_lambda_.19} parent=0 // pred_check
    _
  $region11: #{_lambda_.19} parent=0 // pred_check_branch
    %14 = sbr.rel (0) target = $region13
  $region12: #{_lambda_.19} parent=0 // pred_region
    _
  $region13: #{_lambda_.19} parent=0 // pred_fallthru
    _
  // Predicated region
  $region14: #{_lambda_.19} parent=0 // pred_check
    _
  $region15: #{_lambda_.19} parent=0 // pred_check_branch
    %16 = sbr.rel (0) target = $region17
  $region16: #{_lambda_.19} parent=0 // pred_region
    _
  $region17: #{_lambda_.19} parent=0 // pred_fallthru
    _
  %p18 = scmp.eq.s32.totalorder 0, 0
  // Predicated region
  $region18: #{_lambda_.19} parent=0 // pred_check
    %p19 = pneg %p18
  $region19: #{_lambda_.19} parent=0 // pred_check_branch
    %21 = sbr.rel (%p19) target = $region21
  $region20: #{_lambda_.19} parent=0 // pred_region
    %22 = vst [vmem:[#allocation2] sm:$0xff] 0.0
  $region21: #{_lambda_.19} parent=0 // pred_fallthru
    _
  %v23 = vld [vmem:[#allocation2] sm:$0xff]
  %v24 = vld [vmem:[%s0] sm:$0xff]
  %v25 = vld [vmem:[%s0 + $0x8] sm:$0xff]
  %v26 = vld [vmem:[%s0 + $0x10] sm:$0xff]
  %v27 = vld [vmem:[%s0 + $0x18] sm:$0xff]
  %v28 = vld [vmem:[%s0 + $0x20] sm:$0xf]
  %v29 = vld [vmem:[%s1] sm:$0xf]
  %v30 = vld [vmem:[%s1 + $0x4] sm:$0xf]
  %v31 = vld [vmem:[%s1 + $0x8] sm:$0xf]
  %v32 = vld [vmem:[%s1 + $0xc] sm:$0xf]
  %v33 = vld [vmem:[%s1 + $0x10] sm:$0xf]
  %v34 = vld [vmem:[%s1 + $0x14] sm:$0xf]
  %v35 = vld [vmem:[%s1 + $0x18] sm:$0xf]
  %v36 = vld [vmem:[%s1 + $0x1c] sm:$0xf]
  %v37 = vld [vmem:[%s1 + $0x20] sm:$0xf]
  %v38 = vld [vmem:[%s1 + $0x24] sm:$0xf]
  %v39 = vld [vmem:[%s1 + $0x28] sm:$0xf]
  %v40 = vld [vmem:[%s1 + $0x2c] sm:$0xf]
  %v41 = vld [vmem:[%s1 + $0x30] sm:$0xf]
  %v42 = vld [vmem:[%s1 + $0x34] sm:$0xf]
  %v43 = vld [vmem:[%s1 + $0x38] sm:$0xf]
  %v44 = vld [vmem:[%s1 + $0x3c] sm:$0xf]
  %v45 = vld [vmem:[%s1 + $0x40] sm:$0xf]
  %v46 = vld [vmem:[%s1 + $0x44] sm:$0xf]
  %v47 = vld [vmem:[%s1 + $0x48] sm:$0xf]
  %v48 = vld [vmem:[%s1 + $0x4c] sm:$0xf]
  %v49 = vld [vmem:[%s1 + $0x50] sm:$0xf]
  %v50 = vld [vmem:[%s1 + $0x54] sm:$0xf]
  %v51 = vld [vmem:[%s1 + $0x58] sm:$0xf]
  %v52 = vld [vmem:[%s1 + $0x5c] sm:$0xf]
  %v53 = vld [vmem:[%s1 + $0x60] sm:$0xf]
  %v54 = vld [vmem:[%s1 + $0x64] sm:$0xf]
  %v55 = vld [vmem:[%s1 + $0x68] sm:$0xf]
  %v56 = vld [vmem:[%s1 + $0x6c] sm:$0xf]
  %v57 = vld [vmem:[%s1 + $0x70] sm:$0xf]
  %v58 = vld [vmem:[%s1 + $0x74] sm:$0xf]
  %v59 = vld [vmem:[%s1 + $0x78] sm:$0xf]
  %v60 = vld [vmem:[%s1 + $0x7c] sm:$0xf]
  %v61 = vld [vmem:[%s1 + $0x80] sm:$0xf]
  %v62 = vld [vmem:[%s1 + $0x84] sm:$0xf]
  %v63 = vld [vmem:[%s1 + $0x88] sm:$0xf]
  %v64 = vld [vmem:[%s1 + $0x8c] sm:$0xf]
  %v65 = vld [vmem:[%s1 + $0x90] sm:$0xf]
  %v66 = vld [vmem:[%s1 + $0x94] sm:$0xf]
  %v67 = vld [vmem:[%s1 + $0x98] sm:$0xf]
  %v68 = vld [vmem:[%s1 + $0x9c] sm:$0xf]
  %v69 = vld [vmem:[%s1 + $0xa0] sm:$0xf]
  %v70 = vld [vmem:[%s1 + $0xa4] sm:$0xf]
  %v71 = vld [vmem:[%s1 + $0xa8] sm:$0xf]
  %v72 = vld [vmem:[%s1 + $0xac] sm:$0xf]
  %v73 = vld [vmem:[%s1 + $0xb0] sm:$0xf]
  %v74 = vld [vmem:[%s1 + $0xb4] sm:$0xf]
  %v75 = vld [vmem:[%s1 + $0xb8] sm:$0xf]
  %v76 = vld [vmem:[%s1 + $0xbc] sm:$0xf]
  %v77 = vld [vmem:[%s1 + $0xc0] sm:$0xf]
  %v78 = vld [vmem:[%s1 + $0xc4] sm:$0xf]
  %v79 = vld [vmem:[%s1 + $0xc8] sm:$0xf]
  %v80 = vld [vmem:[%s1 + $0xcc] sm:$0xf]
  %v81 = vld [vmem:[%s1 + $0xd0] sm:$0xf]
  %v82 = vld [vmem:[%s1 + $0xd4] sm:$0xf]
  %v83 = vld [vmem:[%s1 + $0xd8] sm:$0xf]
  %v84 = vld [vmem:[%s1 + $0xdc] sm:$0xf]
  %v85 = vld [vmem:[%s1 + $0xe0] sm:$0xf]
  %v86 = vld [vmem:[%s1 + $0xe4] sm:$0xf]
  %v87 = vld [vmem:[%s1 + $0xe8] sm:$0xf]
  %v88 = vld [vmem:[%s1 + $0xec] sm:$0xf]
  %v89 = vld [vmem:[%s1 + $0xf0] sm:$0xf]
  %v90 = vld [vmem:[%s1 + $0xf4] sm:$0xf]
  %v91 = vld [vmem:[%s1 + $0xf8] sm:$0xf]
  %v92 = vld [vmem:[%s1 + $0xfc] sm:$0xf]
  %v93 = vld [vmem:[%s1 + $0x100] sm:$0xf]
  %v94 = vld [vmem:[%s1 + $0x104] sm:$0xf]
  %v95 = vld [vmem:[%s1 + $0x108] sm:$0xf]
  %v96 = vld [vmem:[%s1 + $0x10c] sm:$0xf]
  %v97 = vld [vmem:[%s1 + $0x110] sm:$0xf]
  %v98 = vld [vmem:[%s1 + $0x114] sm:$0xf]
  %v99 = vld [vmem:[%s1 + $0x118] sm:$0xf]
  %v100 = vld [vmem:[%s1 + $0x11c] sm:$0xf]
  %v101 = vld [vmem:[%s1 + $0x120] sm:$0xf]
  %v102 = vld [vmem:[%s1 + $0x124] sm:$0xf]
  %v103 = vld [vmem:[%s1 + $0x128] sm:$0xf]
  %v104 = vld [vmem:[%s1 + $0x12c] sm:$0xf]
  %v105 = vld [vmem:[%s1 + $0x130] sm:$0xf]
  %v106 = vld [vmem:[%s1 + $0x134] sm:$0xf]
  %v107 = vld [vmem:[%s1 + $0x138] sm:$0xf]
  %v108 = vld [vmem:[%s1 + $0x13c] sm:$0xf]
  %v109 = vld [vmem:[%s1 + $0x140] sm:$0xf]
  %v110 = vld [vmem:[%s1 + $0x144] sm:$0xf]
  %v111 = vld [vmem:[%s1 + $0x148] sm:$0xf]
  %v112 = vld [vmem:[%s1 + $0x14c] sm:$0xf]
  %v113 = vld [vmem:[%s1 + $0x150] sm:$0xf]
  %v114 = vld [vmem:[%s1 + $0x154] sm:$0xf]
  %v115 = vld [vmem:[%s1 + $0x158] sm:$0xf]
  %v116 = vld [vmem:[%s1 + $0x15c] sm:$0xf]
  %v117 = vld [vmem:[%s1 + $0x160] sm:$0xf]
  %v118 = vld [vmem:[%s1 + $0x164] sm:$0xf]
  %v119 = vld [vmem:[%s1 + $0x168] sm:$0xf]
  %v120 = vld [vmem:[%s1 + $0x16c] sm:$0xf]
  %v121 = vld [vmem:[%s1 + $0x170] sm:$0xf]
  %v122 = vld [vmem:[%s1 + $0x174] sm:$0xf]
  %v123 = vld [vmem:[%s1 + $0x178] sm:$0xf]
  %v124 = vld [vmem:[%s1 + $0x17c] sm:$0xf]
  %v125 = vld [vmem:[%s1 + $0x180] sm:$0xf]
  %v126 = vld [vmem:[%s1 + $0x184] sm:$0xf]
  %v127 = vld [vmem:[%s1 + $0x188] sm:$0xf]
  %v128 = vld [vmem:[%s1 + $0x18c] sm:$0xf]
  %v129 = vld [vmem:[%s1 + $0x190] sm:$0xf]
  %v130 = vld [vmem:[%s1 + $0x194] sm:$0xf]
  %v131 = vld [vmem:[%s1 + $0x198] sm:$0xf]
  %v132 = vld [vmem:[%s1 + $0x19c] sm:$0xf]
  %v133 = vld [vmem:[%s1 + $0x1a0] sm:$0xf]
  %v134 = vld [vmem:[%s1 + $0x1a4] sm:$0xf]
  %v135 = vld [vmem:[%s1 + $0x1a8] sm:$0xf]
  %v136 = vld [vmem:[%s1 + $0x1ac] sm:$0xf]
  %v137 = vld [vmem:[%s1 + $0x1b0] sm:$0xf]
  %v138 = vld [vmem:[%s1 + $0x1b4] sm:$0xf]
  %v139 = vld [vmem:[%s1 + $0x1b8] sm:$0xf]
  %v140 = vld [vmem:[%s1 + $0x1bc] sm:$0xf]
  %v141 = vld [vmem:[%s1 + $0x1c0] sm:$0xf]
  %v142 = vld [vmem:[%s1 + $0x1c4] sm:$0xf]
  %v143 = vld [vmem:[%s1 + $0x1c8] sm:$0xf]
  %v144 = vld [vmem:[%s1 + $0x1cc] sm:$0xf]
  %v145 = vld [vmem:[%s1 + $0x1d0] sm:$0xf]
  %v146 = vld [vmem:[%s1 + $0x1d4] sm:$0xf]
  %v147 = vld [vmem:[%s1 + $0x1d8] sm:$0xf]
  %v148 = vld [vmem:[%s1 + $0x1dc] sm:$0xf]
  %v149 = vld [vmem:[%s1 + $0x1e0] sm:$0xf]
  %v150 = vld [vmem:[%s1 + $0x1e4] sm:$0xf]
  %v151 = vld [vmem:[%s1 + $0x1e8] sm:$0xf]
  %v152 = vld [vmem:[%s1 + $0x1ec] sm:$0xf]
  %v153 = vld [vmem:[%s1 + $0x1f0] sm:$0xf]
  %v154 = vld [vmem:[%s1 + $0x1f4] sm:$0xf]
  %v155 = vld [vmem:[%s1 + $0x1f8] sm:$0xf]
  %v156 = vld [vmem:[%s1 + $0x1fc] sm:$0xf]
  %v157 = vld [vmem:[%s1 + $0x200] sm:$0xf]
  %v158 = vld [vmem:[%s1 + $0x204] sm:$0xf]
  %v159 = vld [vmem:[%s1 + $0x208] sm:$0xf]
  %v160 = vld [vmem:[%s1 + $0x20c] sm:$0xf]
  %v161 = vld [vmem:[%s1 + $0x210] sm:$0xf]
  %v162 = vld [vmem:[%s1 + $0x214] sm:$0xf]
  %v163 = vld [vmem:[%s1 + $0x218] sm:$0xf]
  %v164 = vld [vmem:[%s1 + $0x21c] sm:$0xf]
  %v165 = vld [vmem:[%s1 + $0x220] sm:$0xf]
  %v166 = vld [vmem:[%s1 + $0x224] sm:$0xf]
  %v167 = vld [vmem:[%s1 + $0x228] sm:$0xf]
  %v168 = vld [vmem:[%s1 + $0x22c] sm:$0xf]
  %v169 = vld [vmem:[%s1 + $0x230] sm:$0xf]
  %v170 = vld [vmem:[%s1 + $0x234] sm:$0xf]
  %v171 = vld [vmem:[%s1 + $0x238] sm:$0xf]
  %v172 = vld [vmem:[%s1 + $0x23c] sm:$0xf]
  %v178 = vunpack.c.l.b16 %v24
  %v179 = vunpack.c.h.b16 %v24
  %v180 = vunpack.c.l.b16 %v25
  %v181 = vunpack.c.h.b16 %v25
  %v182 = vunpack.c.l.b16 %v26
  %v183 = vunpack.c.h.b16 %v26
  %v184 = vunpack.c.l.b16 %v27
  %v185 = vunpack.c.h.b16 %v27
  %v186 = vunpack.c.l.b16 %v28
  %v187 = vpack.c.b16 %v178, %v178
  %v188 = vpack.c.b16 %v179, %v179
  %v189 = vpack.c.b16 %v180, %v180
  %v190 = vpack.c.b16 %v181, %v181
  %v191 = vpack.c.b16 %v182, %v182
  %v192 = vpack.c.b16 %v183, %v183
  %v193 = vpack.c.b16 %v184, %v184
  %v194 = vpack.c.b16 %v185, %v185
  %v195 = vpack.c.b16 %v186, %v186
  %v349 = vunpack.c.l.b16 %v29
  %v350 = vunpack.c.l.b16 %v30
  %v351 = vunpack.c.l.b16 %v31
  %v352 = vunpack.c.l.b16 %v32
  %v353 = vunpack.c.l.b16 %v33
  %v354 = vunpack.c.l.b16 %v34
  %v355 = vunpack.c.l.b16 %v35
  %v356 = vunpack.c.l.b16 %v36
  %v357 = vunpack.c.l.b16 %v37
  %v358 = vunpack.c.l.b16 %v38
  %v359 = vunpack.c.l.b16 %v39
  %v360 = vunpack.c.l.b16 %v40
  %v361 = vunpack.c.l.b16 %v41
  %v362 = vunpack.c.l.b16 %v42
  %v363 = vunpack.c.l.b16 %v43
  %v364 = vunpack.c.l.b16 %v44
  %v365 = vunpack.c.l.b16 %v45
  %v366 = vunpack.c.l.b16 %v46
  %v367 = vunpack.c.l.b16 %v47
  %v368 = vunpack.c.l.b16 %v48
  %v369 = vunpack.c.l.b16 %v49
  %v370 = vunpack.c.l.b16 %v50
  %v371 = vunpack.c.l.b16 %v51
  %v372 = vunpack.c.l.b16 %v52
  %v373 = vunpack.c.l.b16 %v53
  %v374 = vunpack.c.l.b16 %v54
  %v375 = vunpack.c.l.b16 %v55
  %v376 = vunpack.c.l.b16 %v56
  %v377 = vunpack.c.l.b16 %v57
  %v378 = vunpack.c.l.b16 %v58
  %v379 = vunpack.c.l.b16 %v59
  %v380 = vunpack.c.l.b16 %v60
  %v381 = vunpack.c.l.b16 %v61
  %v382 = vunpack.c.l.b16 %v62
  %v383 = vunpack.c.l.b16 %v63
  %v384 = vunpack.c.l.b16 %v64
  %v385 = vunpack.c.l.b16 %v65
  %v386 = vunpack.c.l.b16 %v66
  %v387 = vunpack.c.l.b16 %v67
  %v388 = vunpack.c.l.b16 %v68
  %v389 = vunpack.c.l.b16 %v69
  %v390 = vunpack.c.l.b16 %v70
  %v391 = vunpack.c.l.b16 %v71
  %v392 = vunpack.c.l.b16 %v72
  %v393 = vunpack.c.l.b16 %v73
  %v394 = vunpack.c.l.b16 %v74
  %v395 = vunpack.c.l.b16 %v75
  %v396 = vunpack.c.l.b16 %v76
  %v397 = vunpack.c.l.b16 %v77
  %v398 = vunpack.c.l.b16 %v78
  %v399 = vunpack.c.l.b16 %v79
  %v400 = vunpack.c.l.b16 %v80
  %v401 = vunpack.c.l.b16 %v81
  %v402 = vunpack.c.l.b16 %v82
  %v403 = vunpack.c.l.b16 %v83
  %v404 = vunpack.c.l.b16 %v84
  %v405 = vunpack.c.l.b16 %v85
  %v406 = vunpack.c.l.b16 %v86
  %v407 = vunpack.c.l.b16 %v87
  %v408 = vunpack.c.l.b16 %v88
  %v409 = vunpack.c.l.b16 %v89
  %v410 = vunpack.c.l.b16 %v90
  %v411 = vunpack.c.l.b16 %v91
  %v412 = vunpack.c.l.b16 %v92
  %v413 = vunpack.c.l.b16 %v93
  %v414 = vunpack.c.l.b16 %v94
  %v415 = vunpack.c.l.b16 %v95
  %v416 = vunpack.c.l.b16 %v96
  %v417 = vunpack.c.l.b16 %v97
  %v418 = vunpack.c.l.b16 %v98
  %v419 = vunpack.c.l.b16 %v99
  %v420 = vunpack.c.l.b16 %v100
  %v421 = vunpack.c.l.b16 %v101
  %v422 = vunpack.c.l.b16 %v102
  %v423 = vunpack.c.l.b16 %v103
  %v424 = vunpack.c.l.b16 %v104
  %v425 = vunpack.c.l.b16 %v105
  %v426 = vunpack.c.l.b16 %v106
  %v427 = vunpack.c.l.b16 %v107
  %v428 = vunpack.c.l.b16 %v108
  %v429 = vunpack.c.l.b16 %v109
  %v430 = vunpack.c.l.b16 %v110
  %v431 = vunpack.c.l.b16 %v111
  %v432 = vunpack.c.l.b16 %v112
  %v433 = vunpack.c.l.b16 %v113
  %v434 = vunpack.c.l.b16 %v114
  %v435 = vunpack.c.l.b16 %v115
  %v436 = vunpack.c.l.b16 %v116
  %v437 = vunpack.c.l.b16 %v117
  %v438 = vunpack.c.l.b16 %v118
  %v439 = vunpack.c.l.b16 %v119
  %v440 = vunpack.c.l.b16 %v120
  %v441 = vunpack.c.l.b16 %v121
  %v442 = vunpack.c.l.b16 %v122
  %v443 = vunpack.c.l.b16 %v123
  %v444 = vunpack.c.l.b16 %v124
  %v445 = vunpack.c.l.b16 %v125
  %v446 = vunpack.c.l.b16 %v126
  %v447 = vunpack.c.l.b16 %v127
  %v448 = vunpack.c.l.b16 %v128
  %v449 = vunpack.c.l.b16 %v129
  %v450 = vunpack.c.l.b16 %v130
  %v451 = vunpack.c.l.b16 %v131
  %v452 = vunpack.c.l.b16 %v132
  %v453 = vunpack.c.l.b16 %v133
  %v454 = vunpack.c.l.b16 %v134
  %v455 = vunpack.c.l.b16 %v135
  %v456 = vunpack.c.l.b16 %v136
  %v457 = vunpack.c.l.b16 %v137
  %v458 = vunpack.c.l.b16 %v138
  %v459 = vunpack.c.l.b16 %v139
  %v460 = vunpack.c.l.b16 %v140
  %v461 = vunpack.c.l.b16 %v141
  %v462 = vunpack.c.l.b16 %v142
  %v463 = vunpack.c.l.b16 %v143
  %v464 = vunpack.c.l.b16 %v144
  %v465 = vunpack.c.l.b16 %v145
  %v466 = vunpack.c.l.b16 %v146
  %v467 = vunpack.c.l.b16 %v147
  %v468 = vunpack.c.l.b16 %v148
  %v469 = vunpack.c.l.b16 %v149
  %v470 = vunpack.c.l.b16 %v150
  %v471 = vunpack.c.l.b16 %v151
  %v472 = vunpack.c.l.b16 %v152
  %v473 = vunpack.c.l.b16 %v153
  %v474 = vunpack.c.l.b16 %v154
  %v475 = vunpack.c.l.b16 %v155
  %v476 = vunpack.c.l.b16 %v156
  %v477 = vunpack.c.l.b16 %v157
  %v478 = vunpack.c.l.b16 %v158
  %v479 = vunpack.c.l.b16 %v159
  %v480 = vunpack.c.l.b16 %v160
  %v481 = vunpack.c.l.b16 %v161
  %v482 = vunpack.c.l.b16 %v162
  %v483 = vunpack.c.l.b16 %v163
  %v484 = vunpack.c.l.b16 %v164
  %v485 = vunpack.c.l.b16 %v165
  %v486 = vunpack.c.l.b16 %v166
  %v487 = vunpack.c.l.b16 %v167
  %v488 = vunpack.c.l.b16 %v168
  %v489 = vunpack.c.l.b16 %v169
  %v490 = vunpack.c.l.b16 %v170
  %v491 = vunpack.c.l.b16 %v171
  %v492 = vunpack.c.l.b16 %v172
  %v493 = vpack.c.b16 %v350, %v349
  %v494 = vpack.c.b16 %v352, %v351
  %v495 = vpack.c.b16 %v354, %v353
  %v496 = vpack.c.b16 %v356, %v355
  %v497 = vpack.c.b16 %v358, %v357
  %v498 = vpack.c.b16 %v360, %v359
  %v499 = vpack.c.b16 %v362, %v361
  %v500 = vpack.c.b16 %v364, %v363
  %v501 = vpack.c.b16 %v366, %v365
  %v502 = vpack.c.b16 %v368, %v367
  %v503 = vpack.c.b16 %v370, %v369
  %v504 = vpack.c.b16 %v372, %v371
  %v505 = vpack.c.b16 %v374, %v373
  %v506 = vpack.c.b16 %v376, %v375
  %v507 = vpack.c.b16 %v378, %v377
  %v508 = vpack.c.b16 %v380, %v379
  %v509 = vpack.c.b16 %v382, %v381
  %v510 = vpack.c.b16 %v384, %v383
  %v511 = vpack.c.b16 %v386, %v385
  %v512 = vpack.c.b16 %v388, %v387
  %v513 = vpack.c.b16 %v390, %v389
  %v514 = vpack.c.b16 %v392, %v391
  %v515 = vpack.c.b16 %v394, %v393
  %v516 = vpack.c.b16 %v396, %v395
  %v517 = vpack.c.b16 %v398, %v397
  %v518 = vpack.c.b16 %v400, %v399
  %v519 = vpack.c.b16 %v402, %v401
  %v520 = vpack.c.b16 %v404, %v403
  %v521 = vpack.c.b16 %v406, %v405
  %v522 = vpack.c.b16 %v408, %v407
  %v523 = vpack.c.b16 %v410, %v409
  %v524 = vpack.c.b16 %v412, %v411
  %v525 = vpack.c.b16 %v414, %v413
  %v526 = vpack.c.b16 %v416, %v415
  %v527 = vpack.c.b16 %v418, %v417
  %v528 = vpack.c.b16 %v420, %v419
  %v529 = vpack.c.b16 %v422, %v421
  %v530 = vpack.c.b16 %v424, %v423
  %v531 = vpack.c.b16 %v426, %v425
  %v532 = vpack.c.b16 %v428, %v427
  %v533 = vpack.c.b16 %v430, %v429
  %v534 = vpack.c.b16 %v432, %v431
  %v535 = vpack.c.b16 %v434, %v433
  %v536 = vpack.c.b16 %v436, %v435
  %v537 = vpack.c.b16 %v438, %v437
  %v538 = vpack.c.b16 %v440, %v439
  %v539 = vpack.c.b16 %v442, %v441
  %v540 = vpack.c.b16 %v444, %v443
  %v541 = vpack.c.b16 %v446, %v445
  %v542 = vpack.c.b16 %v448, %v447
  %v543 = vpack.c.b16 %v450, %v449
  %v544 = vpack.c.b16 %v452, %v451
  %v545 = vpack.c.b16 %v454, %v453
  %v546 = vpack.c.b16 %v456, %v455
  %v547 = vpack.c.b16 %v458, %v457
  %v548 = vpack.c.b16 %v460, %v459
  %v549 = vpack.c.b16 %v462, %v461
  %v550 = vpack.c.b16 %v464, %v463
  %v551 = vpack.c.b16 %v466, %v465
  %v552 = vpack.c.b16 %v468, %v467
  %v553 = vpack.c.b16 %v470, %v469
  %v554 = vpack.c.b16 %v472, %v471
  %v555 = vpack.c.b16 %v474, %v473
  %v556 = vpack.c.b16 %v476, %v475
  %v557 = vpack.c.b16 %v478, %v477
  %v558 = vpack.c.b16 %v480, %v479
  %v559 = vpack.c.b16 %v482, %v481
  %v560 = vpack.c.b16 %v484, %v483
  %v561 = vpack.c.b16 %v486, %v485
  %v562 = vpack.c.b16 %v488, %v487
  %v563 = vpack.c.b16 %v490, %v489
  %v564 = vpack.c.b16 %v492, %v491
  %637 = vmatprep.subr.bf16.mxu0 0
  %638 = vmatpush1.bf16.msra.mxu0 %v493
  %639 = vmatprep.subr.bf16.mxu0 0
  %640 = vmatpush1.bf16.msra.mxu0 %v494
  %641 = vmatprep.subr.bf16.mxu0 0
  %642 = vmatpush1.bf16.msra.mxu0 %v495
  %643 = vmatprep.subr.bf16.mxu0 0
  %644 = vmatpush1.bf16.msra.mxu0 %v496
  %645 = vmatprep.subr.bf16.mxu0 0
  %646 = vmatpush1.bf16.msra.mxu0 %v497
  %647 = vmatprep.subr.bf16.mxu0 0
  %648 = vmatpush1.bf16.msra.mxu0 %v498
  %649 = vmatprep.subr.bf16.mxu0 0
  %650 = vmatpush1.bf16.msra.mxu0 %v499
  %651 = vmatprep.subr.bf16.mxu0 0
  %652 = vmatpush1.bf16.msra.mxu0 %v500
  %653 = vmatprep.subr.bf16.mxu0 0
  %654 = vmatpush1.bf16.msra.mxu0 %v501
  %655 = vmatprep.subr.bf16.mxu0 0
  %656 = vmatpush1.bf16.msra.mxu0 %v502
  %657 = vmatprep.subr.bf16.mxu0 0
  %658 = vmatpush1.bf16.msra.mxu0 %v503
  %659 = vmatprep.subr.bf16.mxu0 0
  %660 = vmatpush1.bf16.msra.mxu0 %v504
  %661 = vmatprep.subr.bf16.mxu0 0
  %662 = vmatpush1.bf16.msra.mxu0 %v505
  %663 = vmatprep.subr.bf16.mxu0 0
  %664 = vmatpush1.bf16.msra.mxu0 %v506
  %665 = vmatprep.subr.bf16.mxu0 0
  %666 = vmatpush1.bf16.msra.mxu0 %v507
  %667 = vmatprep.subr.bf16.mxu0 0
  %668 = vmatpush1.bf16.msra.mxu0 %v508
  %669 = vmatprep.mubr.bf16.mxu0 %v188
  %670 = vmatmul.mubr.bf16.gmra.mrb[0].mxu0 %v187
  %v671 = vpop.f32.mrb[0].mxu0
  %v672 = vadd.f32 0.0, %v671
  %v673 = vpop.f32.mrb[0].mxu0
  %v674 = vpop.f32.mrb[0].mxu0
  %v675 = vpop.f32.mrb[0].mxu0
  %676 = vdwg.mxu0
  %677 = vmatprep.subr.bf16.mxu0 0
  %678 = vmatpush1.bf16.msra.mxu0 %v509
  %679 = vmatprep.subr.bf16.mxu0 0
  %680 = vmatpush1.bf16.msra.mxu0 %v510
  %681 = vmatprep.subr.bf16.mxu0 0
  %682 = vmatpush1.bf16.msra.mxu0 %v511
  %683 = vmatprep.subr.bf16.mxu0 0
  %684 = vmatpush1.bf16.msra.mxu0 %v512
  %685 = vmatprep.subr.bf16.mxu0 0
  %686 = vmatpush1.bf16.msra.mxu0 %v513
  %687 = vmatprep.subr.bf16.mxu0 0
  %688 = vmatpush1.bf16.msra.mxu0 %v514
  %689 = vmatprep.subr.bf16.mxu0 0
  %690 = vmatpush1.bf16.msra.mxu0 %v515
  %691 = vmatprep.subr.bf16.mxu0 0
  %692 = vmatpush1.bf16.msra.mxu0 %v516
  %693 = vmatprep.subr.bf16.mxu0 0
  %694 = vmatpush1.bf16.msra.mxu0 %v517
  %695 = vmatprep.subr.bf16.mxu0 0
  %696 = vmatpush1.bf16.msra.mxu0 %v518
  %697 = vmatprep.subr.bf16.mxu0 0
  %698 = vmatpush1.bf16.msra.mxu0 %v519
  %699 = vmatprep.subr.bf16.mxu0 0
  %700 = vmatpush1.bf16.msra.mxu0 %v520
  %701 = vmatprep.subr.bf16.mxu0 0
  %702 = vmatpush1.bf16.msra.mxu0 %v521
  %703 = vmatprep.subr.bf16.mxu0 0
  %704 = vmatpush1.bf16.msra.mxu0 %v522
  %705 = vmatprep.subr.bf16.mxu0 0
  %706 = vmatpush1.bf16.msra.mxu0 %v523
  %707 = vmatprep.subr.bf16.mxu0 0
  %708 = vmatpush1.bf16.msra.mxu0 %v524
  %709 = vmatprep.mubr.bf16.mxu0 %v190
  %710 = vmatmul.mubr.bf16.gmra.mrb[0].mxu0 %v189
  %v711 = vpop.f32.mrb[0].mxu0
  %v712 = vadd.f32 %v672, %v711
  %v713 = vpop.f32.mrb[0].mxu0
  %v714 = vpop.f32.mrb[0].mxu0
  %v715 = vpop.f32.mrb[0].mxu0
  %716 = vdwg.mxu0
  %717 = vmatprep.subr.bf16.mxu0 0
  %718 = vmatpush1.bf16.msra.mxu0 %v525
  %719 = vmatprep.subr.bf16.mxu0 0
  %720 = vmatpush1.bf16.msra.mxu0 %v526
  %721 = vmatprep.subr.bf16.mxu0 0
  %722 = vmatpush1.bf16.msra.mxu0 %v527
  %723 = vmatprep.subr.bf16.mxu0 0
  %724 = vmatpush1.bf16.msra.mxu0 %v528
  %725 = vmatprep.subr.bf16.mxu0 0
  %726 = vmatpush1.bf16.msra.mxu0 %v529
  %727 = vmatprep.subr.bf16.mxu0 0
  %728 = vmatpush1.bf16.msra.mxu0 %v530
  %729 = vmatprep.subr.bf16.mxu0 0
  %730 = vmatpush1.bf16.msra.mxu0 %v531
  %731 = vmatprep.subr.bf16.mxu0 0
  %732 = vmatpush1.bf16.msra.mxu0 %v532
  %733 = vmatprep.subr.bf16.mxu0 0
  %734 = vmatpush1.bf16.msra.mxu0 %v533
  %735 = vmatprep.subr.bf16.mxu0 0
  %736 = vmatpush1.bf16.msra.mxu0 %v534
  %737 = vmatprep.subr.bf16.mxu0 0
  %738 = vmatpush1.bf16.msra.mxu0 %v535
  %739 = vmatprep.subr.bf16.mxu0 0
  %740 = vmatpush1.bf16.msra.mxu0 %v536
  %741 = vmatprep.subr.bf16.mxu0 0
  %742 = vmatpush1.bf16.msra.mxu0 %v537
  %743 = vmatprep.subr.bf16.mxu0 0
  %744 = vmatpush1.bf16.msra.mxu0 %v538
  %745 = vmatprep.subr.bf16.mxu0 0
  %746 = vmatpush1.bf16.msra.mxu0 %v539
  %747 = vmatprep.subr.bf16.mxu0 0
  %748 = vmatpush1.bf16.msra.mxu0 %v540
  %749 = vmatprep.mubr.bf16.mxu0 %v192
  %750 = vmatmul.mubr.bf16.gmra.mrb[0].mxu0 %v191
  %v751 = vpop.f32.mrb[0].mxu0
  %v752 = vadd.f32 %v712, %v751
  %v753 = vpop.f32.mrb[0].mxu0
  %v754 = vpop.f32.mrb[0].mxu0
  %v755 = vpop.f32.mrb[0].mxu0
  %756 = vdwg.mxu0
  %757 = vmatprep.subr.bf16.mxu0 0
  %758 = vmatpush1.bf16.msra.mxu0 %v541
  %759 = vmatprep.subr.bf16.mxu0 0
  %760 = vmatpush1.bf16.msra.mxu0 %v542
  %761 = vmatprep.subr.bf16.mxu0 0
  %762 = vmatpush1.bf16.msra.mxu0 %v543
  %763 = vmatprep.subr.bf16.mxu0 0
  %764 = vmatpush1.bf16.msra.mxu0 %v544
  %765 = vmatprep.subr.bf16.mxu0 0
  %766 = vmatpush1.bf16.msra.mxu0 %v545
  %767 = vmatprep.subr.bf16.mxu0 0
  %768 = vmatpush1.bf16.msra.mxu0 %v546
  %769 = vmatprep.subr.bf16.mxu0 0
  %770 = vmatpush1.bf16.msra.mxu0 %v547
  %771 = vmatprep.subr.bf16.mxu0 0
  %772 = vmatpush1.bf16.msra.mxu0 %v548
  %773 = vmatprep.subr.bf16.mxu0 0
  %774 = vmatpush1.bf16.msra.mxu0 %v549
  %775 = vmatprep.subr.bf16.mxu0 0
  %776 = vmatpush1.bf16.msra.mxu0 %v550
  %777 = vmatprep.subr.bf16.mxu0 0
  %778 = vmatpush1.bf16.msra.mxu0 %v551
  %779 = vmatprep.subr.bf16.mxu0 0
  %780 = vmatpush1.bf16.msra.mxu0 %v552
  %781 = vmatprep.subr.bf16.mxu0 0
  %782 = vmatpush1.bf16.msra.mxu0 %v553
  %783 = vmatprep.subr.bf16.mxu0 0
  %784 = vmatpush1.bf16.msra.mxu0 %v554
  %785 = vmatprep.subr.bf16.mxu0 0
  %786 = vmatpush1.bf16.msra.mxu0 %v555
  %787 = vmatprep.subr.bf16.mxu0 0
  %788 = vmatpush1.bf16.msra.mxu0 %v556
  %789 = vmatprep.mubr.bf16.mxu0 %v194
  %790 = vmatmul.mubr.bf16.gmra.mrb[0].mxu0 %v193
  %v791 = vpop.f32.mrb[0].mxu0
  %v792 = vadd.f32 %v752, %v791
  %v793 = vpop.f32.mrb[0].mxu0
  %v794 = vpop.f32.mrb[0].mxu0
  %v795 = vpop.f32.mrb[0].mxu0
  %796 = vdwg.mxu0
  %797 = vmatprep.subr.bf16.mxu0 0
  %798 = vmatpush1.bf16.msra.mxu0 %v557
  %799 = vmatprep.subr.bf16.mxu0 0
  %800 = vmatpush1.bf16.msra.mxu0 %v558
  %801 = vmatprep.subr.bf16.mxu0 0
  %802 = vmatpush1.bf16.msra.mxu0 %v559
  %803 = vmatprep.subr.bf16.mxu0 0
  %804 = vmatpush1.bf16.msra.mxu0 %v560
  %805 = vmatprep.subr.bf16.mxu0 0
  %806 = vmatpush1.bf16.msra.mxu0 %v561
  %807 = vmatprep.subr.bf16.mxu0 0
  %808 = vmatpush1.bf16.msra.mxu0 %v562
  %809 = vmatprep.subr.bf16.mxu0 0
  %810 = vmatpush1.bf16.msra.mxu0 %v563
  %811 = vmatprep.subr.bf16.mxu0 0
  %812 = vmatpush1.bf16.msra.mxu0 %v564
  %813 = vmatprep.subr.bf16.mxu0 0
  %814 = vmatpush1.bf16.msra.mxu0 0
  %815 = vmatprep.subr.bf16.mxu0 0
  %816 = vmatpush1.bf16.msra.mxu0 0
  %817 = vmatprep.subr.bf16.mxu0 0
  %818 = vmatpush1.bf16.msra.mxu0 0
  %819 = vmatprep.subr.bf16.mxu0 0
  %820 = vmatpush1.bf16.msra.mxu0 0
  %821 = vmatprep.subr.bf16.mxu0 0
  %822 = vmatpush1.bf16.msra.mxu0 0
  %823 = vmatprep.subr.bf16.mxu0 0
  %824 = vmatpush1.bf16.msra.mxu0 0
  %825 = vmatprep.subr.bf16.mxu0 0
  %826 = vmatpush1.bf16.msra.mxu0 0
  %827 = vmatprep.subr.bf16.mxu0 0
  %828 = vmatpush1.bf16.msra.mxu0 0
  %829 = vmatprep.mubr.bf16.mxu0 0
  %830 = vmatmul.mubr.bf16.gmra.mrb[0].mxu0 %v195
  %v831 = vpop.f32.mrb[0].mxu0
  %v832 = vadd.f32 %v792, %v831
  %v833 = vpop.f32.mrb[0].mxu0
  %v834 = vpop.f32.mrb[0].mxu0
  %v835 = vpop.f32.mrb[0].mxu0
  %836 = vdwg.mxu0
  %v837 = vadd.f32 %v23, %v832
  %838 = vst [vmem:[#allocation2] sm:$0xff] %v837
  // Predicated region
  $region22: #{_lambda_.19} parent=0 // pred_check
    %p839 = pneg %p18
  $region23: #{_lambda_.19} parent=0 // pred_check_branch
    %841 = sbr.rel (%p839) target = $region25
  $region24: #{_lambda_.19} parent=0 // pred_region
    %v842 = vld [vmem:[#allocation2] sm:$0xff]
    %v843 = vld [vmem:[%s2] sm:$0x1]
    %v845 = vlaneseq
    %v846 = vshrl.u32 %v845, 7
    %v847 = vsub.s32 0, %v846
    %v848 = vrot.slane %v843, %v847
    %v850 = vmul.f32 %v842, %v848
    %v851 = vld [vmem:[%s3] sm:$0x1]
    %v853 = vlaneseq
    %v854 = vshrl.u32 %v853, 7
    %v855 = vsub.s32 0, %v854
    %v856 = vrot.slane %v851, %v855
    %v858 = vadd.f32 %v850, %v856
    %v859 = vmax.f32 %v858, 0.0
    %v860 = vpack.c.bf16 %v859, %v859
    %861 = vst [vmem:[%s4] sm:$0xf] %v860
  $region25: #{_lambda_.19} parent=0 // pred_fallthru
    _
  // Predicated region
  $region26: #{_lambda_.19} parent=0 // pred_check
    _
  $region27: #{_lambda_.19} parent=0 // pred_check_branch
    %863 = sbr.rel (0) target = $region29
  $region28: #{_lambda_.19} parent=0 // pred_region
    _
  $region29: #{_lambda_.19} parent=0 // pred_fallthru
    _
  // Predicated region
  $region30: #{_lambda_.19} parent=0 // pred_check
    _
  $region31: #{_lambda_.19} parent=0 // pred_check_branch
    %865 = sbr.rel (0) target = $region33
  $region32: #{_lambda_.19} parent=0 // pred_region
    _
  $region33: #{_lambda_.19} parent=0 // pred_fallthru
    _

// kernel: _lambda_.20
$region0: #{_lambda_.20}
  #allocation0 [shape = 'u32[]', space=smem, size = 0x4, offset = 0x4, fixed_abs, tag = 'smem constant byte address 0x4 - core index']
  #allocation1 [shape = 'u32[144,128]{1,0:T(1,128)}', space=vmem, size = 0x12000, scoped, tag = 'internal scratch']
  #allocation2 [shape = 'f32[8,128]{1,0:T(8,128)}', space=vmem, size = 0x1000, scoped, tag = 'scratch operand']
  %s0 = inlined_call_operand.vmem [shape: bf16[8,128], index: 0, kind: input, shape index: {}]
  %s1 = inlined_call_operand.vmem [shape: bf16[128,128], index: 1, kind: input, shape index: {}]
  %s2 = inlined_call_operand.vmem [shape: f32[1,128], index: 2, kind: input, shape index: {}]
  %s3 = inlined_call_operand.vmem [shape: f32[1,128], index: 3, kind: input, shape index: {}]
  %s4 = inlined_call_operand.vmem [shape: bf16[8,128], index: 4, kind: output, shape index: {}]
  %s5 = sld [smem:[#allocation0]]
  $region34: #{_lambda_.20} parent=0
    _
  %s7 = ssub.s32 1, %s5
  %s8 = scalar_select 0, %s7, %s5
  // Predicated region
  $region2: #{_lambda_.20} parent=0 // pred_check
    _
  $region3: #{_lambda_.20} parent=0 // pred_check_branch
    %10 = sbr.rel (0) target = $region5
  $region4: #{_lambda_.20} parent=0 // pred_region
    _
  $region5: #{_lambda_.20} parent=0 // pred_fallthru
    _
  // Predicated region
  $region6: #{_lambda_.20} parent=0 // pred_check
    _
  $region7: #{_lambda_.20} parent=0 // pred_check_branch
    %12 = sbr.rel (0) target = $region9
  $region8: #{_lambda_.20} parent=0 // pred_region
    _
  $region9: #{_lambda_.20} parent=0 // pred_fallthru
    _
  // Predicated region
  $region10: #{_lambda_.20} parent=0 // pred_check
    _
  $region11: #{_lambda_.20} parent=0 // pred_check_branch
    %14 = sbr.rel (0) target = $region13
  $region12: #{_lambda_.20} parent=0 // pred_region
    _
  $region13: #{_lambda_.20} parent=0 // pred_fallthru
    _
  // Predicated region
  $region14: #{_lambda_.20} parent=0 // pred_check
    _
  $region15: #{_lambda_.20} parent=0 // pred_check_branch
    %16 = sbr.rel (0) target = $region17
  $region16: #{_lambda_.20} parent=0 // pred_region
    _
  $region17: #{_lambda_.20} parent=0 // pred_fallthru
    _
  %p18 = scmp.eq.s32.totalorder 0, 0
  // Predicated region
  $region18: #{_lambda_.20} parent=0 // pred_check
    %p19 = pneg %p18
  $region19: #{_lambda_.20} parent=0 // pred_check_branch
    %21 = sbr.rel (%p19) target = $region21
  $region20: #{_lambda_.20} parent=0 // pred_region
    %22 = vst [vmem:[#allocation2] sm:$0xff] 0.0
  $region21: #{_lambda_.20} parent=0 // pred_fallthru
    _
  %v23 = vld [vmem:[#allocation2] sm:$0xff]
  %v24 = vld [vmem:[%s0] sm:$0xf]
  %v25 = vld [vmem:[%s1] sm:$0xf]
  %v26 = vld [vmem:[%s1 + $0x4] sm:$0xf]
  %v27 = vld [vmem:[%s1 + $0x8] sm:$0xf]
  %v28 = vld [vmem:[%s1 + $0xc] sm:$0xf]
  %v29 = vld [vmem:[%s1 + $0x10] sm:$0xf]
  %v30 = vld [vmem:[%s1 + $0x14] sm:$0xf]
  %v31 = vld [vmem:[%s1 + $0x18] sm:$0xf]
  %v32 = vld [vmem:[%s1 + $0x1c] sm:$0xf]
  %v33 = vld [vmem:[%s1 + $0x20] sm:$0xf]
  %v34 = vld [vmem:[%s1 + $0x24] sm:$0xf]
  %v35 = vld [vmem:[%s1 + $0x28] sm:$0xf]
  %v36 = vld [vmem:[%s1 + $0x2c] sm:$0xf]
  %v37 = vld [vmem:[%s1 + $0x30] sm:$0xf]
  %v38 = vld [vmem:[%s1 + $0x34] sm:$0xf]
  %v39 = vld [vmem:[%s1 + $0x38] sm:$0xf]
  %v40 = vld [vmem:[%s1 + $0x3c] sm:$0xf]
  %v57 = vunpack.c.l.b16 %v25
  %v58 = vunpack.c.l.b16 %v26
  %v59 = vunpack.c.l.b16 %v27
  %v60 = vunpack.c.l.b16 %v28
  %v61 = vunpack.c.l.b16 %v29
  %v62 = vunpack.c.l.b16 %v30
  %v63 = vunpack.c.l.b16 %v31
  %v64 = vunpack.c.l.b16 %v32
  %v65 = vunpack.c.l.b16 %v33
  %v66 = vunpack.c.l.b16 %v34
  %v67 = vunpack.c.l.b16 %v35
  %v68 = vunpack.c.l.b16 %v36
  %v69 = vunpack.c.l.b16 %v37
  %v70 = vunpack.c.l.b16 %v38
  %v71 = vunpack.c.l.b16 %v39
  %v72 = vunpack.c.l.b16 %v40
  %v73 = vpack.c.b16 %v58, %v57
  %v74 = vpack.c.b16 %v60, %v59
  %v75 = vpack.c.b16 %v62, %v61
  %v76 = vpack.c.b16 %v64, %v63
  %v77 = vpack.c.b16 %v66, %v65
  %v78 = vpack.c.b16 %v68, %v67
  %v79 = vpack.c.b16 %v70, %v69
  %v80 = vpack.c.b16 %v72, %v71
  %89 = vmatprep.subr.bf16.mxu0 0
  %90 = vmatpush1.bf16.msra.mxu0 %v73
  %91 = vmatprep.subr.bf16.mxu0 0
  %92 = vmatpush1.bf16.msra.mxu0 %v74
  %93 = vmatprep.subr.bf16.mxu0 0
  %94 = vmatpush1.bf16.msra.mxu0 %v75
  %95 = vmatprep.subr.bf16.mxu0 0
  %96 = vmatpush1.bf16.msra.mxu0 %v76
  %97 = vmatprep.subr.bf16.mxu0 0
  %98 = vmatpush1.bf16.msra.mxu0 %v77
  %99 = vmatprep.subr.bf16.mxu0 0
  %100 = vmatpush1.bf16.msra.mxu0 %v78
  %101 = vmatprep.subr.bf16.mxu0 0
  %102 = vmatpush1.bf16.msra.mxu0 %v79
  %103 = vmatprep.subr.bf16.mxu0 0
  %104 = vmatpush1.bf16.msra.mxu0 %v80
  %105 = vmatprep.subr.bf16.mxu0 0
  %106 = vmatpush1.bf16.msra.mxu0 0
  %107 = vmatprep.subr.bf16.mxu0 0
  %108 = vmatpush1.bf16.msra.mxu0 0
  %109 = vmatprep.subr.bf16.mxu0 0
  %110 = vmatpush1.bf16.msra.mxu0 0
  %111 = vmatprep.subr.bf16.mxu0 0
  %112 = vmatpush1.bf16.msra.mxu0 0
  %113 = vmatprep.subr.bf16.mxu0 0
  %114 = vmatpush1.bf16.msra.mxu0 0
  %115 = vmatprep.subr.bf16.mxu0 0
  %116 = vmatpush1.bf16.msra.mxu0 0
  %117 = vmatprep.subr.bf16.mxu0 0
  %118 = vmatpush1.bf16.msra.mxu0 0
  %119 = vmatprep.subr.bf16.mxu0 0
  %120 = vmatpush1.bf16.msra.mxu0 0
  %121 = vmatprep.mubr.bf16.mxu0 0
  %122 = vmatmul.mubr.bf16.gmra.mrb[0].mxu0 %v24
  %v123 = vpop.f32.mrb[0].mxu0
  %v124 = vadd.f32 0.0, %v123
  %v125 = vpop.f32.mrb[0].mxu0
  %v126 = vpop.f32.mrb[0].mxu0
  %v127 = vpop.f32.mrb[0].mxu0
  %128 = vdwg.mxu0
  %v129 = vadd.f32 %v23, %v124
  %130 = vst [vmem:[#allocation2] sm:$0xff] %v129
  // Predicated region
  $region22: #{_lambda_.20} parent=0 // pred_check
    %p131 = pneg %p18
  $region23: #{_lambda_.20} parent=0 // pred_check_branch
    %133 = sbr.rel (%p131) target = $region25
  $region24: #{_lambda_.20} parent=0 // pred_region
    %v134 = vld [vmem:[#allocation2] sm:$0xff]
    %v135 = vld [vmem:[%s2] sm:$0x1]
    %v137 = vlaneseq
    %v138 = vshrl.u32 %v137, 7
    %v139 = vsub.s32 0, %v138
    %v140 = vrot.slane %v135, %v139
    %v142 = vmul.f32 %v134, %v140
    %v143 = vld [vmem:[%s3] sm:$0x1]
    %v145 = vlaneseq
    %v146 = vshrl.u32 %v145, 7
    %v147 = vsub.s32 0, %v146
    %v148 = vrot.slane %v143, %v147
    %v150 = vadd.f32 %v142, %v148
    %v151 = vpack.c.bf16 %v150, %v150
    %152 = vst [vmem:[%s4] sm:$0xf] %v151
  $region25: #{_lambda_.20} parent=0 // pred_fallthru
    _
  // Predicated region
  $region26: #{_lambda_.20} parent=0 // pred_check
    _
  $region27: #{_lambda_.20} parent=0 // pred_check_branch
    %154 = sbr.rel (0) target = $region29
  $region28: #{_lambda_.20} parent=0 // pred_region
    _
  $region29: #{_lambda_.20} parent=0 // pred_fallthru
    _
  // Predicated region
  $region30: #{_lambda_.20} parent=0 // pred_check
    _
  $region31: #{_lambda_.20} parent=0 // pred_check_branch
    %156 = sbr.rel (0) target = $region33
  $region32: #{_lambda_.20} parent=0 // pred_region
    _
  $region33: #{_lambda_.20} parent=0 // pred_fallthru
    _

// kernel: _lambda_.21
$region0: #{_lambda_.21}
  #allocation0 [shape = 'u32[]', space=smem, size = 0x4, offset = 0x4, fixed_abs, tag = 'smem constant byte address 0x4 - core index']
  #allocation1 [shape = 'u32[144,128]{1,0:T(1,128)}', space=vmem, size = 0x12000, scoped, tag = 'internal scratch']
  #allocation2 [shape = 'f32[8,128]{1,0:T(8,128)}', space=vmem, size = 0x1000, scoped, tag = 'scratch operand']
  %s0 = inlined_call_operand.vmem [shape: bf16[8,3456], index: 0, kind: input, shape index: {}]
  %s1 = inlined_call_operand.vmem [shape: bf16[3456,128], index: 1, kind: input, shape index: {}]
  %s2 = inlined_call_operand.vmem [shape: f32[1,128], index: 2, kind: input, shape index: {}]
  %s3 = inlined_call_operand.vmem [shape: f32[1,128], index: 3, kind: input, shape index: {}]
  %s4 = inlined_call_operand.vmem [shape: bf16[8,128], index: 4, kind: input, shape index: {}]
  %s5 = inlined_call_operand.vmem [shape: bf16[8,128], index: 5, kind: output, shape index: {}]
  %s6 = sld [smem:[#allocation0]]
  $region61: #{_lambda_.21} parent=0
    _
  %s8 = ssub.s32 1, %s6
  %s9 = scalar_select 0, %s8, %s6
  loop: start=0, step=1, limit=11
  $region2: #{_lambda_.21} parent=0 // loop_pre_header
    _
  $region3: #{_lambda_.21} parent=0 // loop_header
    %s11 = sphi 0, %s15
    %p12 = scmp.ge.s32.totalorder %s11, 11
    %s18 = sphi 0, %s37
    %s19 = sphi 0, %s33
    %s20 = sphi 0, %s29
    %s21 = sphi 0, %s18
    %s22 = sphi 0, %s19
    %s23 = sphi 0, %s20
    %s24 = sphi 0, %s21
    %s25 = sphi 0, %s22
    %s26 = sphi 0, %s23
    %s42 = sphi 0, %s44
    %s45 = sphi 0, %s42
    %s46 = sphi 0, %s45
    %s62 = sphi 0, %s46
    %s70 = sphi 0, %s72
    %s73 = sphi 0, %s70
    %s74 = sphi 0, %s73
    %s90 = sphi 0, %s74
    %s96 = sphi 0, %s98
    %s99 = sphi 0, %s96
    %s100 = sphi 0, %s99
    %s116 = sphi 0, %s100
    %s122 = sphi 0, %s124
    %s125 = sphi 0, %s122
    %s126 = sphi 0, %s125
    %s142 = sphi 0, %s126
    %s150 = sphi 0, %s152
    %s153 = sphi 0, %s150
    %s154 = sphi 0, %s153
    %s170 = sphi 0, %s154
    %s178 = sphi 0, %s180
    %s181 = sphi 0, %s178
    %s182 = sphi 0, %s181
    %s198 = sphi 0, %s182
  $region4: #{_lambda_.21} parent=0 // loop_header_branch
    %14 = sbr.rel (%p12) target = $region8
  $region5: #{_lambda_.21} parent=0 // loop_body
    %s16 = ssub.s32 %s11, 1
    %s17 = ssub.s32 %s11, 2
    %s27 = sadd.s32 1, %s20
    %p28 = scmp.ge.s32.totalorder %s27, 9
    %s29 = scalar_select %p28, 0, %s27
    %s30 = sadd.s32 1, %s19
    %s31 = scalar_select %p28, %s30, %s19
    %p32 = scmp.ge.s32.totalorder %s31, 1
    %s33 = scalar_select %p32, 0, %s31
    %s34 = sadd.s32 1, %s18
    %s35 = scalar_select %p32, %s34, %s18
    %p36 = scmp.ge.s32.totalorder %s35, 1
    %s37 = scalar_select %p36, 0, %s35
    %s38 = ssub.s32 %s18, %s37
    %s39 = ssub.s32 %s20, %s29
    %s40 = sor.u32 %s38, %s39
    %p41 = scmp.eq.s32.totalorder %s40, 0
    %s43 = sadd.s32 %s42, 1
    %s44 = scalar_select %p41, %s42, %s43
    %p47 = pneg %p41
    %p48 = scmp.eq.s32.totalorder %s11, 8
    %p49 = por %p47, %p48
    %p50 = scmp.ne.s32.totalorder %s42, %s45
    %p51 = scmp.eq.s32.totalorder %s11, 0
    %p52 = por %p50, %p51
    %p53 = scmp.ne.s32.totalorder %s42, %s45
    %p54 = scmp.eq.s32.totalorder %s16, 8
    %p55 = por %p53, %p54
    %p56 = scmp.ne.s32.totalorder %s45, %s46
    %p57 = scmp.eq.s32.totalorder %s16, 0
    %p58 = por %p56, %p57
    %p59 = scmp.ne.s32.totalorder %s45, %s46
    %p60 = scmp.eq.s32.totalorder %s17, 8
    %p61 = por %p59, %p60
    %p63 = scmp.ne.s32.totalorder %s46, %s62
    %p64 = scmp.eq.s32.totalorder %s17, 0
    %p65 = por %p63, %p64
    %s66 = ssub.s32 %s20, %s29
    %s67 = ssub.s32 %s19, %s33
    %s68 = sor.u32 %s66, %s67
    %p69 = scmp.eq.s32.totalorder %s68, 0
    %s71 = sadd.s32 %s70, 1
    %s72 = scalar_select %p69, %s70, %s71
    %p75 = pneg %p69
    %p76 = scmp.eq.s32.totalorder %s11, 8
    %p77 = por %p75, %p76
    %p78 = scmp.ne.s32.totalorder %s70, %s73
    %p79 = scmp.eq.s32.totalorder %s11, 0
    %p80 = por %p78, %p79
    %p81 = scmp.ne.s32.totalorder %s70, %s73
    %p82 = scmp.eq.s32.totalorder %s16, 8
    %p83 = por %p81, %p82
    %p84 = scmp.ne.s32.totalorder %s73, %s74
    %p85 = scmp.eq.s32.totalorder %s16, 0
    %p86 = por %p84, %p85
    %p87 = scmp.ne.s32.totalorder %s73, %s74
    %p88 = scmp.eq.s32.totalorder %s17, 8
    %p89 = por %p87, %p88
    %p91 = scmp.ne.s32.totalorder %s74, %s90
    %p92 = scmp.eq.s32.totalorder %s17, 0
    %p93 = por %p91, %p92
    %s94 = ssub.s32 %s19, %s33
    %p95 = scmp.eq.s32.totalorder %s94, 0
    %s97 = sadd.s32 %s96, 1
    %s98 = scalar_select %p95, %s96, %s97
    %p101 = pneg %p95
    %p102 = scmp.eq.s32.totalorder %s11, 8
    %p103 = por %p101, %p102
    %p104 = scmp.ne.s32.totalorder %s96, %s99
    %p105 = scmp.eq.s32.totalorder %s11, 0
    %p106 = por %p104, %p105
    %p107 = scmp.ne.s32.totalorder %s96, %s99
    %p108 = scmp.eq.s32.totalorder %s16, 8
    %p109 = por %p107, %p108
    %p110 = scmp.ne.s32.totalorder %s99, %s100
    %p111 = scmp.eq.s32.totalorder %s16, 0
    %p112 = por %p110, %p111
    %p113 = scmp.ne.s32.totalorder %s99, %s100
    %p114 = scmp.eq.s32.totalorder %s17, 8
    %p115 = por %p113, %p114
    %p117 = scmp.ne.s32.totalorder %s100, %s116
    %p118 = scmp.eq.s32.totalorder %s17, 0
    %p119 = por %p117, %p118
    %s120 = ssub.s32 %s19, %s33
    %p121 = scmp.eq.s32.totalorder %s120, 0
    %s123 = sadd.s32 %s122, 1
    %s124 = scalar_select %p121, %s122, %s123
    %p127 = pneg %p121
    %p128 = scmp.eq.s32.totalorder %s11, 8
    %p129 = por %p127, %p128
    %p130 = scmp.ne.s32.totalorder %s122, %s125
    %p131 = scmp.eq.s32.totalorder %s11, 0
    %p132 = por %p130, %p131
    %p133 = scmp.ne.s32.totalorder %s122, %s125
    %p134 = scmp.eq.s32.totalorder %s16, 8
    %p135 = por %p133, %p134
    %p136 = scmp.ne.s32.totalorder %s125, %s126
    %p137 = scmp.eq.s32.totalorder %s16, 0
    %p138 = por %p136, %p137
    %p139 = scmp.ne.s32.totalorder %s125, %s126
    %p140 = scmp.eq.s32.totalorder %s17, 8
    %p141 = por %p139, %p140
    %p143 = scmp.ne.s32.totalorder %s126, %s142
    %p144 = scmp.eq.s32.totalorder %s17, 0
    %p145 = por %p143, %p144
    %s146 = ssub.s32 %s18, %s37
    %s147 = ssub.s32 %s19, %s33
    %s148 = sor.u32 %s146, %s147
    %p149 = scmp.eq.s32.totalorder %s148, 0
    %s151 = sadd.s32 %s150, 1
    %s152 = scalar_select %p149, %s150, %s151
    %p155 = pneg %p149
    %p156 = scmp.eq.s32.totalorder %s11, 8
    %p157 = por %p155, %p156
    %p158 = scmp.ne.s32.totalorder %s150, %s153
    %p159 = scmp.eq.s32.totalorder %s11, 0
    %p160 = por %p158, %p159
    %p161 = scmp.ne.s32.totalorder %s150, %s153
    %p162 = scmp.eq.s32.totalorder %s16, 8
    %p163 = por %p161, %p162
    %p164 = scmp.ne.s32.totalorder %s153, %s154
    %p165 = scmp.eq.s32.totalorder %s16, 0
    %p166 = por %p164, %p165
    %p167 = scmp.ne.s32.totalorder %s153, %s154
    %p168 = scmp.eq.s32.totalorder %s17, 8
    %p169 = por %p167, %p168
    %p171 = scmp.ne.s32.totalorder %s154, %s170
    %p172 = scmp.eq.s32.totalorder %s17, 0
    %p173 = por %p171, %p172
    %s174 = ssub.s32 %s18, %s37
    %s175 = ssub.s32 %s19, %s33
    %s176 = sor.u32 %s174, %s175
    %p177 = scmp.eq.s32.totalorder %s176, 0
    %s179 = sadd.s32 %s178, 1
    %s180 = scalar_select %p177, %s178, %s179
    %p183 = pneg %p177
    %p184 = scmp.eq.s32.totalorder %s11, 8
    %p185 = por %p183, %p184
    %p186 = scmp.ne.s32.totalorder %s178, %s181
    %p187 = scmp.eq.s32.totalorder %s11, 0
    %p188 = por %p186, %p187
    %p189 = scmp.ne.s32.totalorder %s178, %s181
    %p190 = scmp.eq.s32.totalorder %s16, 8
    %p191 = por %p189, %p190
    %p192 = scmp.ne.s32.totalorder %s181, %s182
    %p193 = scmp.eq.s32.totalorder %s16, 0
    %p194 = por %p192, %p193
    %p195 = scmp.ne.s32.totalorder %s181, %s182
    %p196 = scmp.eq.s32.totalorder %s17, 8
    %p197 = por %p195, %p196
    %p199 = scmp.ne.s32.totalorder %s182, %s198
    %p200 = scmp.eq.s32.totalorder %s17, 0
    %p201 = por %p199, %p200
    %p202 = scmp.le.s32.totalorder 1, %s11
    %p203 = scmp.lt.s32.totalorder %s11, 10
    %p204 = pnand %p202, %p203
    %p205 = pneg %p204
    // Predicated region
    $region9: #{_lambda_.21} parent=5 // pred_check
      _
    $region10: #{_lambda_.21} parent=5 // pred_check_branch
      %207 = sbr.rel (%p204) target = $region12
    $region11: #{_lambda_.21} parent=5 // pred_region
      %s208 = ssub.s32 %s11, 1
      // Predicated region
      $region13: #{_lambda_.21} parent=11 // pred_check
        %p209 = pneg %p112
      $region14: #{_lambda_.21} parent=11 // pred_check_branch
        %211 = sbr.rel (%p209) target = $region16
      $region15: #{_lambda_.21} parent=11 // pred_region
        %p212 = scmp.lt.s32.totalorder %s22, 0
        %s213 = scalar_select %p212, %s22, 0
        %s214 = scalar_lea.vmem %s2, %s213
      $region16: #{_lambda_.21} parent=11 // pred_fallthru
        _
      // Predicated region
      $region17: #{_lambda_.21} parent=11 // pred_check
        %p215 = pneg %p138
      $region18: #{_lambda_.21} parent=11 // pred_check_branch
        %217 = sbr.rel (%p215) target = $region20
      $region19: #{_lambda_.21} parent=11 // pred_region
        %p218 = scmp.lt.s32.totalorder %s22, 0
        %s219 = scalar_select %p218, %s22, 0
        %s220 = scalar_lea.vmem %s3, %s219
      $region20: #{_lambda_.21} parent=11 // pred_fallthru
        _
      // Predicated region
      $region21: #{_lambda_.21} parent=11 // pred_check
        %p221 = pneg %p166
      $region22: #{_lambda_.21} parent=11 // pred_check_branch
        %223 = sbr.rel (%p221) target = $region24
      $region23: #{_lambda_.21} parent=11 // pred_region
        %p224 = scmp.lt.s32.totalorder %s21, 0
        %s225 = scalar_select %p224, %s21, 0
        %p226 = scmp.lt.s32.totalorder %s22, 0
        %s227 = scalar_select %p226, %s22, 0
        %s228 = sadd.s32 %s227, %s225
        %s229 = smul.addr %s228, 4
        %s230 = scalar_lea.vmem %s4, %s229
      $region24: #{_lambda_.21} parent=11 // pred_fallthru
        _
    $region12: #{_lambda_.21} parent=5 // pred_fallthru
      _
    %p231 = scmp.lt.s32.totalorder %s11, 9
    // Predicated region
    $region25: #{_lambda_.21} parent=5 // pred_check
      %p232 = pneg %p231
    $region26: #{_lambda_.21} parent=5 // pred_check_branch
      %234 = sbr.rel (%p232) target = $region28
    $region27: #{_lambda_.21} parent=5 // pred_region
      // Predicated region
      $region29: #{_lambda_.21} parent=27 // pred_check
        %p235 = pneg %p52
      $region30: #{_lambda_.21} parent=27 // pred_check_branch
        %237 = sbr.rel (%p235) target = $region32
      $region31: #{_lambda_.21} parent=27 // pred_region
        %s238 = smul.u32 3, %s20
        %p239 = scmp.lt.s32.totalorder %s18, 0
        %s240 = scalar_select %p239, %s18, 0
        %p241 = scmp.lt.s32.totalorder %s238, 26
        %s242 = scalar_select %p241, %s238, 26
        %s243 = smul.addr %s240, 27
        %s244 = sadd.s32 %s242, %s243
        %s245 = smul.addr %s244, 4
        %s246 = scalar_lea.vmem %s0, %s245
        %s247 = smul.u32 3, %s20
      $region32: #{_lambda_.21} parent=27 // pred_fallthru
        _
      // Predicated region
      $region33: #{_lambda_.21} parent=27 // pred_check
        %p248 = pneg %p80
      $region34: #{_lambda_.21} parent=27 // pred_check_branch
        %250 = sbr.rel (%p248) target = $region36
      $region35: #{_lambda_.21} parent=27 // pred_region
        %s251 = smul.u32 48, %s20
        %p252 = scmp.lt.s32.totalorder %s251, 431
        %s253 = scalar_select %p252, %s251, 431
        %p254 = scmp.lt.s32.totalorder %s19, 0
        %s255 = scalar_select %p254, %s19, 0
        %s256 = sadd.s32 %s255, %s253
        %s257 = smul.addr %s256, 4
        %s258 = scalar_lea.vmem %s1, %s257
        %s259 = smul.u32 48, %s20
      $region36: #{_lambda_.21} parent=27 // pred_fallthru
        _
    $region28: #{_lambda_.21} parent=5 // pred_fallthru
      _
    %p260 = scmp.le.s32.totalorder 1, %s11
    %p261 = scmp.lt.s32.totalorder %s11, 10
    %p262 = pnand %p260, %p261
    %p263 = pneg %p262
    // Predicated region
    $region37: #{_lambda_.21} parent=5 // pred_check
      _
    $region38: #{_lambda_.21} parent=5 // pred_check_branch
      %265 = sbr.rel (%p262) target = $region40
    $region39: #{_lambda_.21} parent=5 // pred_region
      %s266 = ssub.s32 %s11, 1
      %s267 = smul.u32 3, %s23
      %p268 = scmp.lt.s32.totalorder %s21, 0
      %s269 = scalar_select %p268, %s21, 0
      %p270 = scmp.lt.s32.totalorder %s267, 26
      %s271 = scalar_select %p270, %s267, 26
      %s272 = smul.addr %s269, 27
      %s273 = sadd.s32 %s271, %s272
      %s274 = smul.addr %s273, 4
      %s275 = scalar_lea.vmem %s0, %s274
      %p276 = pneg %p58
      %p277 = pneg %p55
      %s278 = smul.u32 48, %s23
      %p279 = scmp.lt.s32.totalorder %s278, 431
      %s280 = scalar_select %p279, %s278, 431
      %p281 = scmp.lt.s32.totalorder %s22, 0
      %s282 = scalar_select %p281, %s22, 0
      %s283 = sadd.s32 %s282, %s280
      %s284 = smul.addr %s283, 4
      %s285 = scalar_lea.vmem %s1, %s284
      %p286 = pneg %p86
      %p287 = pneg %p83
      %p288 = scmp.lt.s32.totalorder %s22, 0
      %s289 = scalar_select %p288, %s22, 0
      %s290 = scalar_lea.vmem %s2, %s289
      %p291 = pneg %p112
      %p292 = pneg %p109
      %p293 = scmp.lt.s32.totalorder %s22, 0
      %s294 = scalar_select %p293, %s22, 0
      %s295 = scalar_lea.vmem %s3, %s294
      %p296 = pneg %p138
      %p297 = pneg %p135
      %p298 = scmp.lt.s32.totalorder %s21, 0
      %s299 = scalar_select %p298, %s21, 0
      %p300 = scmp.lt.s32.totalorder %s22, 0
      %s301 = scalar_select %p300, %s22, 0
      %s302 = sadd.s32 %s301, %s299
      %s303 = smul.addr %s302, 4
      %s304 = scalar_lea.vmem %s4, %s303
      %p305 = pneg %p166
      %p306 = pneg %p163
      %p307 = pneg %p194
      %p308 = pneg %p191
      %p309 = scmp.lt.s32.totalorder %s21, 0
      %s310 = scalar_select %p309, %s21, 0
      %p311 = scmp.lt.s32.totalorder %s22, 0
      %s312 = scalar_select %p311, %s22, 0
      %s313 = sadd.s32 %s312, %s310
      %s314 = smul.addr %s313, 4
      %s315 = scalar_lea.vmem %s5, %s314
      %s316 = smul.u32 3, %s23
      %p317 = scmp.lt.s32.totalorder %s21, 0
      %s318 = scalar_select %p317, %s21, 0
      %p319 = scmp.lt.s32.totalorder %s316, 26
      %s320 = scalar_select %p319, %s316, 26
      %s321 = smul.addr %s318, 27
      %s322 = sadd.s32 %s320, %s321
      %s323 = smul.addr %s322, 4
      %s324 = scalar_lea.vmem %s0, %s323
      %s325 = smul.u32 3, %s23
      %s326 = smul.u32 48, %s23
      %p327 = scmp.lt.s32.totalorder %s326, 431
      %s328 = scalar_select %p327, %s326, 431
      %p329 = scmp.lt.s32.totalorder %s22, 0
      %s330 = scalar_select %p329, %s22, 0
      %s331 = sadd.s32 %s330, %s328
      %s332 = smul.addr %s331, 4
      %s333 = scalar_lea.vmem %s1, %s332
      %s334 = smul.u32 48, %s23
      %p335 = scmp.lt.s32.totalorder %s22, 0
      %s336 = scalar_select %p335, %s22, 0
      %s337 = scalar_lea.vmem %s2, %s336
      %p338 = scmp.lt.s32.totalorder %s22, 0
      %s339 = scalar_select %p338, %s22, 0
      %s340 = scalar_lea.vmem %s3, %s339
      %p341 = scmp.lt.s32.totalorder %s21, 0
      %s342 = scalar_select %p341, %s21, 0
      %p343 = scmp.lt.s32.totalorder %s22, 0
      %s344 = scalar_select %p343, %s22, 0
      %s345 = sadd.s32 %s344, %s342
      %s346 = smul.addr %s345, 4
      %s347 = scalar_lea.vmem %s4, %s346
      %p348 = scmp.lt.s32.totalorder %s21, 0
      %s349 = scalar_select %p348, %s21, 0
      %p350 = scmp.lt.s32.totalorder %s22, 0
      %s351 = scalar_select %p350, %s22, 0
      %s352 = sadd.s32 %s351, %s349
      %s353 = smul.addr %s352, 4
      %s354 = scalar_lea.vmem %s5, %s353
      %p356 = scmp.eq.s32.totalorder %s23, 0
      // Predicated region
      $region41: #{_lambda_.21} parent=39 // pred_check
        %p357 = pneg %p356
      $region42: #{_lambda_.21} parent=39 // pred_check_branch
        %359 = sbr.rel (%p357) target = $region44
      $region43: #{_lambda_.21} parent=39 // pred_region
        %360 = vst [vmem:[#allocation2] sm:$0xff] 0.0
      $region44: #{_lambda_.21} parent=39 // pred_fallthru
        _
      %v361 = vld [vmem:[#allocation2] sm:$0xff]
      %v362 = vld [vmem:[%s324] sm:$0xff]
      %v363 = vld [vmem:[%s324 + $0x8] sm:$0xf]
      %v364 = vld [vmem:[%s333] sm:$0xf]
      %v365 = vld [vmem:[%s333 + $0x4] sm:$0xf]
      %v366 = vld [vmem:[%s333 + $0x8] sm:$0xf]
      %v367 = vld [vmem:[%s333 + $0xc] sm:$0xf]
      %v368 = vld [vmem:[%s333 + $0x10] sm:$0xf]
      %v369 = vld [vmem:[%s333 + $0x14] sm:$0xf]
      %v370 = vld [vmem:[%s333 + $0x18] sm:$0xf]
      %v371 = vld [vmem:[%s333 + $0x1c] sm:$0xf]
      %v372 = vld [vmem:[%s333 + $0x20] sm:$0xf]
      %v373 = vld [vmem:[%s333 + $0x24] sm:$0xf]
      %v374 = vld [vmem:[%s333 + $0x28] sm:$0xf]
      %v375 = vld [vmem:[%s333 + $0x2c] sm:$0xf]
      %v376 = vld [vmem:[%s333 + $0x30] sm:$0xf]
      %v377 = vld [vmem:[%s333 + $0x34] sm:$0xf]
      %v378 = vld [vmem:[%s333 + $0x38] sm:$0xf]
      %v379 = vld [vmem:[%s333 + $0x3c] sm:$0xf]
      %v380 = vld [vmem:[%s333 + $0x40] sm:$0xf]
      %v381 = vld [vmem:[%s333 + $0x44] sm:$0xf]
      %v382 = vld [vmem:[%s333 + $0x48] sm:$0xf]
      %v383 = vld [vmem:[%s333 + $0x4c] sm:$0xf]
      %v384 = vld [vmem:[%s333 + $0x50] sm:$0xf]
      %v385 = vld [vmem:[%s333 + $0x54] sm:$0xf]
      %v386 = vld [vmem:[%s333 + $0x58] sm:$0xf]
      %v387 = vld [vmem:[%s333 + $0x5c] sm:$0xf]
      %v388 = vld [vmem:[%s333 + $0x60] sm:$0xf]
      %v389 = vld [vmem:[%s333 + $0x64] sm:$0xf]
      %v390 = vld [vmem:[%s333 + $0x68] sm:$0xf]
      %v391 = vld [vmem:[%s333 + $0x6c] sm:$0xf]
      %v392 = vld [vmem:[%s333 + $0x70] sm:$0xf]
      %v393 = vld [vmem:[%s333 + $0x74] sm:$0xf]
      %v394 = vld [vmem:[%s333 + $0x78] sm:$0xf]
      %v395 = vld [vmem:[%s333 + $0x7c] sm:$0xf]
      %v396 = vld [vmem:[%s333 + $0x80] sm:$0xf]
      %v397 = vld [vmem:[%s333 + $0x84] sm:$0xf]
      %v398 = vld [vmem:[%s333 + $0x88] sm:$0xf]
      %v399 = vld [vmem:[%s333 + $0x8c] sm:$0xf]
      %v400 = vld [vmem:[%s333 + $0x90] sm:$0xf]
      %v401 = vld [vmem:[%s333 + $0x94] sm:$0xf]
      %v402 = vld [vmem:[%s333 + $0x98] sm:$0xf]
      %v403 = vld [vmem:[%s333 + $0x9c] sm:$0xf]
      %v404 = vld [vmem:[%s333 + $0xa0] sm:$0xf]
      %v405 = vld [vmem:[%s333 + $0xa4] sm:$0xf]
      %v406 = vld [vmem:[%s333 + $0xa8] sm:$0xf]
      %v407 = vld [vmem:[%s333 + $0xac] sm:$0xf]
      %v408 = vld [vmem:[%s333 + $0xb0] sm:$0xf]
      %v409 = vld [vmem:[%s333 + $0xb4] sm:$0xf]
      %v410 = vld [vmem:[%s333 + $0xb8] sm:$0xf]
      %v411 = vld [vmem:[%s333 + $0xbc] sm:$0xf]
      %v414 = vunpack.c.l.b16 %v362
      %v415 = vunpack.c.h.b16 %v362
      %v416 = vunpack.c.l.b16 %v363
      %v417 = vpack.c.b16 %v414, %v414
      %v418 = vpack.c.b16 %v415, %v415
      %v419 = vpack.c.b16 %v416, %v416
      %v471 = vunpack.c.l.b16 %v364
      %v472 = vunpack.c.l.b16 %v365
      %v473 = vunpack.c.l.b16 %v366
      %v474 = vunpack.c.l.b16 %v367
      %v475 = vunpack.c.l.b16 %v368
      %v476 = vunpack.c.l.b16 %v369
      %v477 = vunpack.c.l.b16 %v370
      %v478 = vunpack.c.l.b16 %v371
      %v479 = vunpack.c.l.b16 %v372
      %v480 = vunpack.c.l.b16 %v373
      %v481 = vunpack.c.l.b16 %v374
      %v482 = vunpack.c.l.b16 %v375
      %v483 = vunpack.c.l.b16 %v376
      %v484 = vunpack.c.l.b16 %v377
      %v485 = vunpack.c.l.b16 %v378
      %v486 = vunpack.c.l.b16 %v379
      %v487 = vunpack.c.l.b16 %v380
      %v488 = vunpack.c.l.b16 %v381
      %v489 = vunpack.c.l.b16 %v382
      %v490 = vunpack.c.l.b16 %v383
      %v491 = vunpack.c.l.b16 %v384
      %v492 = vunpack.c.l.b16 %v385
      %v493 = vunpack.c.l.b16 %v386
      %v494 = vunpack.c.l.b16 %v387
      %v495 = vunpack.c.l.b16 %v388
      %v496 = vunpack.c.l.b16 %v389
      %v497 = vunpack.c.l.b16 %v390
      %v498 = vunpack.c.l.b16 %v391
      %v499 = vunpack.c.l.b16 %v392
      %v500 = vunpack.c.l.b16 %v393
      %v501 = vunpack.c.l.b16 %v394
      %v502 = vunpack.c.l.b16 %v395
      %v503 = vunpack.c.l.b16 %v396
      %v504 = vunpack.c.l.b16 %v397
      %v505 = vunpack.c.l.b16 %v398
      %v506 = vunpack.c.l.b16 %v399
      %v507 = vunpack.c.l.b16 %v400
      %v508 = vunpack.c.l.b16 %v401
      %v509 = vunpack.c.l.b16 %v402
      %v510 = vunpack.c.l.b16 %v403
      %v511 = vunpack.c.l.b16 %v404
      %v512 = vunpack.c.l.b16 %v405
      %v513 = vunpack.c.l.b16 %v406
      %v514 = vunpack.c.l.b16 %v407
      %v515 = vunpack.c.l.b16 %v408
      %v516 = vunpack.c.l.b16 %v409
      %v517 = vunpack.c.l.b16 %v410
      %v518 = vunpack.c.l.b16 %v411
      %v519 = vpack.c.b16 %v472, %v471
      %v520 = vpack.c.b16 %v474, %v473
      %v521 = vpack.c.b16 %v476, %v475
      %v522 = vpack.c.b16 %v478, %v477
      %v523 = vpack.c.b16 %v480, %v479
      %v524 = vpack.c.b16 %v482, %v481
      %v525 = vpack.c.b16 %v484, %v483
      %v526 = vpack.c.b16 %v486, %v485
      %v527 = vpack.c.b16 %v488, %v487
      %v528 = vpack.c.b16 %v490, %v489
      %v529 = vpack.c.b16 %v492, %v491
      %v530 = vpack.c.b16 %v494, %v493
      %v531 = vpack.c.b16 %v496, %v495
      %v532 = vpack.c.b16 %v498, %v497
      %v533 = vpack.c.b16 %v500, %v499
      %v534 = vpack.c.b16 %v502, %v501
      %v535 = vpack.c.b16 %v504, %v503
      %v536 = vpack.c.b16 %v506, %v505
      %v537 = vpack.c.b16 %v508, %v507
      %v538 = vpack.c.b16 %v510, %v509
      %v539 = vpack.c.b16 %v512, %v511
      %v540 = vpack.c.b16 %v514, %v513
      %v541 = vpack.c.b16 %v516, %v515
      %v542 = vpack.c.b16 %v518, %v517
      %567 = vmatprep.subr.bf16.mxu0 0
      %568 = vmatpush1.bf16.msra.mxu0 %v519
      %569 = vmatprep.subr.bf16.mxu0 0
      %570 = vmatpush1.bf16.msra.mxu0 %v520
      %571 = vmatprep.subr.bf16.mxu0 0
      %572 = vmatpush1.bf16.msra.mxu0 %v521
      %573 = vmatprep.subr.bf16.mxu0 0
      %574 = vmatpush1.bf16.msra.mxu0 %v522
      %575 = vmatprep.subr.bf16.mxu0 0
      %576 = vmatpush1.bf16.msra.mxu0 %v523
      %577 = vmatprep.subr.bf16.mxu0 0
      %578 = vmatpush1.bf16.msra.mxu0 %v524
      %579 = vmatprep.subr.bf16.mxu0 0
      %580 = vmatpush1.bf16.msra.mxu0 %v525
      %581 = vmatprep.subr.bf16.mxu0 0
      %582 = vmatpush1.bf16.msra.mxu0 %v526
      %583 = vmatprep.subr.bf16.mxu0 0
      %584 = vmatpush1.bf16.msra.mxu0 %v527
      %585 = vmatprep.subr.bf16.mxu0 0
      %586 = vmatpush1.bf16.msra.mxu0 %v528
      %587 = vmatprep.subr.bf16.mxu0 0
      %588 = vmatpush1.bf16.msra.mxu0 %v529
      %589 = vmatprep.subr.bf16.mxu0 0
      %590 = vmatpush1.bf16.msra.mxu0 %v530
      %591 = vmatprep.subr.bf16.mxu0 0
      %592 = vmatpush1.bf16.msra.mxu0 %v531
      %593 = vmatprep.subr.bf16.mxu0 0
      %594 = vmatpush1.bf16.msra.mxu0 %v532
      %595 = vmatprep.subr.bf16.mxu0 0
      %596 = vmatpush1.bf16.msra.mxu0 %v533
      %597 = vmatprep.subr.bf16.mxu0 0
      %598 = vmatpush1.bf16.msra.mxu0 %v534
      %599 = vmatprep.mubr.bf16.mxu0 %v418
      %600 = vmatmul.mubr.bf16.gmra.mrb[0].mxu0 %v417
      %v601 = vpop.f32.mrb[0].mxu0
      %v602 = vadd.f32 0.0, %v601
      %v603 = vpop.f32.mrb[0].mxu0
      %v604 = vpop.f32.mrb[0].mxu0
      %v605 = vpop.f32.mrb[0].mxu0
      %606 = vdwg.mxu0
      %607 = vmatprep.subr.bf16.mxu0 0
      %608 = vmatpush1.bf16.msra.mxu0 %v535
      %609 = vmatprep.subr.bf16.mxu0 0
      %610 = vmatpush1.bf16.msra.mxu0 %v536
      %611 = vmatprep.subr.bf16.mxu0 0
      %612 = vmatpush1.bf16.msra.mxu0 %v537
      %613 = vmatprep.subr.bf16.mxu0 0
      %614 = vmatpush1.bf16.msra.mxu0 %v538
      %615 = vmatprep.subr.bf16.mxu0 0
      %616 = vmatpush1.bf16.msra.mxu0 %v539
      %617 = vmatprep.subr.bf16.mxu0 0
      %618 = vmatpush1.bf16.msra.mxu0 %v540
      %619 = vmatprep.subr.bf16.mxu0 0
      %620 = vmatpush1.bf16.msra.mxu0 %v541
      %621 = vmatprep.subr.bf16.mxu0 0
      %622 = vmatpush1.bf16.msra.mxu0 %v542
      %623 = vmatprep.subr.bf16.mxu0 0
      %624 = vmatpush1.bf16.msra.mxu0 0
      %625 = vmatprep.subr.bf16.mxu0 0
      %626 = vmatpush1.bf16.msra.mxu0 0
      %627 = vmatprep.subr.bf16.mxu0 0
      %628 = vmatpush1.bf16.msra.mxu0 0
      %629 = vmatprep.subr.bf16.mxu0 0
      %630 = vmatpush1.bf16.msra.mxu0 0
      %631 = vmatprep.subr.bf16.mxu0 0
      %632 = vmatpush1.bf16.msra.mxu0 0
      %633 = vmatprep.subr.bf16.mxu0 0
      %634 = vmatpush1.bf16.msra.mxu0 0
      %635 = vmatprep.subr.bf16.mxu0 0
      %636 = vmatpush1.bf16.msra.mxu0 0
      %637 = vmatprep.subr.bf16.mxu0 0
      %638 = vmatpush1.bf16.msra.mxu0 0
      %639 = vmatprep.mubr.bf16.mxu0 0
      %640 = vmatmul.mubr.bf16.gmra.mrb[0].mxu0 %v419
      %v641 = vpop.f32.mrb[0].mxu0
      %v642 = vadd.f32 %v602, %v641
      %v643 = vpop.f32.mrb[0].mxu0
      %v644 = vpop.f32.mrb[0].mxu0
      %v645 = vpop.f32.mrb[0].mxu0
      %646 = vdwg.mxu0
      %v647 = vadd.f32 %v361, %v642
      %648 = vst [vmem:[#allocation2] sm:$0xff] %v647
      %p649 = scmp.eq.s32.totalorder %s23, 8
      // Predicated region
      $region45: #{_lambda_.21} parent=39 // pred_check
        %p650 = pneg %p649
      $region46: #{_lambda_.21} parent=39 // pred_check_branch
        %652 = sbr.rel (%p650) target = $region48
      $region47: #{_lambda_.21} parent=39 // pred_region
        %v653 = vld [vmem:[#allocation2] sm:$0xff]
        %v654 = vld [vmem:[%s337] sm:$0x1]
        %v656 = vlaneseq
        %v657 = vshrl.u32 %v656, 7
        %v658 = vsub.s32 0, %v657
        %v659 = vrot.slane %v654, %v658
        %v661 = vmul.f32 %v653, %v659
        %v662 = vld [vmem:[%s340] sm:$0x1]
        %v664 = vlaneseq
        %v665 = vshrl.u32 %v664, 7
        %v666 = vsub.s32 0, %v665
        %v667 = vrot.slane %v662, %v666
        %v669 = vadd.f32 %v661, %v667
        %v670 = vld [vmem:[%s347] sm:$0xf]
        %v671 = vunpack.c.l.bf16 %v670
        %v672 = vadd.f32 %v669, %v671
        %v673 = vmax.f32 %v672, 0.0
        %v674 = vpack.c.bf16 %v673, %v673
        %675 = vst [vmem:[%s354] sm:$0xf] %v674
      $region48: #{_lambda_.21} parent=39 // pred_fallthru
        _
      %p676 = scmp.lt.s32.totalorder %s21, 0
      %s677 = scalar_select %p676, %s21, 0
      %p678 = scmp.lt.s32.totalorder %s22, 0
      %s679 = scalar_select %p678, %s22, 0
      %s680 = sadd.s32 %s679, %s677
      %s681 = smul.addr %s680, 4
      %s682 = scalar_lea.vmem %s5, %s681
      // Predicated region
      $region49: #{_lambda_.21} parent=39 // pred_check
        %p683 = pneg %p191
      $region50: #{_lambda_.21} parent=39 // pred_check_branch
        %685 = sbr.rel (%p683) target = $region52
      $region51: #{_lambda_.21} parent=39 // pred_region
        _
      $region52: #{_lambda_.21} parent=39 // pred_fallthru
        _
      // Predicated region
      $region53: #{_lambda_.21} parent=39 // pred_check
        %p686 = pneg %p191
      $region54: #{_lambda_.21} parent=39 // pred_check_branch
        %688 = sbr.rel (%p686) target = $region56
      $region55: #{_lambda_.21} parent=39 // pred_region
        %p689 = scmp.lt.s32.totalorder %s21, 0
        %s690 = scalar_select %p689, %s21, 0
        %p691 = scmp.lt.s32.totalorder %s22, 0
        %s692 = scalar_select %p691, %s22, 0
        %s693 = sadd.s32 %s692, %s690
        %s694 = smul.addr %s693, 4
        %s695 = scalar_lea.vmem %s5, %s694
      $region56: #{_lambda_.21} parent=39 // pred_fallthru
        _
    $region40: #{_lambda_.21} parent=5 // pred_fallthru
      _
    %p696 = scmp.le.s32.totalorder 2, %s11
    // Predicated region
    $region57: #{_lambda_.21} parent=5 // pred_check
      %p697 = pneg %p696
    $region58: #{_lambda_.21} parent=5 // pred_check_branch
      %699 = sbr.rel (%p697) target = $region60
    $region59: #{_lambda_.21} parent=5 // pred_region
      %s700 = ssub.s32 %s11, 2
    $region60: #{_lambda_.21} parent=5 // pred_fallthru
      _
  $region6: #{_lambda_.21} parent=0 // loop_footer
    %s15 = sadd.s32 1, %s11
  $region7: #{_lambda_.21} parent=0 // loop_footer_branch
    %10 = sbr.rel target = $region3
  $region8: #{_lambda_.21} parent=0 // loop_exit
    _

// kernel: _lambda_.25
$region0: #{_lambda_.25}
  #allocation0 [shape = 'u32[]', space=smem, size = 0x4, offset = 0x4, fixed_abs, tag = 'smem constant byte address 0x4 - core index']
  #allocation1 [shape = 'u32[144,128]{1,0:T(1,128)}', space=vmem, size = 0x12000, scoped, tag = 'internal scratch']
  %s0 = inlined_call_operand.vmem [shape: bf16[2,1,128], index: 0, kind: input, shape index: {}]
  %s1 = inlined_call_operand.hbm [shape: f32[2,128], index: 1, kind: output, shape index: {}]
  %s2 = sld [smem:[#allocation0]]
  $region14: #{_lambda_.25} parent=0
    _
  %s4 = ssub.s32 1, %s2
  %s5 = scalar_select 0, %s4, %s2
  $region1: #{_lambda_.25} parent=0
    #allocation2 [shape = 'u8[1024]{0}', space=vmem, size = 0x400, scoped, tag = 'output window, operand 0, single buffered']
    #allocation3 [shape = 's32[1]{0}', space=sflag, size = 0x4, scoped, tag = 'scoped memory for _lambda_.25']
    %6 = vsyncpa [#allocation3], 0
    // Predicated region
    $region2: #{_lambda_.25} parent=1 // pred_check
      _
    $region3: #{_lambda_.25} parent=1 // pred_check_branch
      %8 = sbr.rel (0) target = $region5
    $region4: #{_lambda_.25} parent=1 // pred_region
      _
    $region5: #{_lambda_.25} parent=1 // pred_fallthru
      _
    %v9 = vld [vmem:[%s0] sm:$0x1]
    %v10 = vld [vmem:[%s0 + $0x1] sm:$0x1]
    %v11 = vunpack.c.l.bf16 %v9
    %v12 = vunpack.c.l.bf16 %v10
    %v13 = vadd.f32 %v11, 0.0
    %v14 = vadd.f32 %v12, 0.0
    %v17 = vlaneseq
    %v18 = vshrl.u32 %v17, 7
    %v19 = vsub.s32 0, %v18
    %v20 = vrot.slane %v13, %v19
    %v21 = vlaneseq
    %v22 = vshrl.u32 %v21, 7
    %v23 = vsub.s32 0, %v22
    %v24 = vrot.slane %v14, %v23
    %vm25 = vcmask 1041409
    %v26 = vsel %vm25, %v24, %v20
    %28 = vst [vmem:[#allocation2] sm:$0x3] %v26
    // Predicated region
    $region6: #{_lambda_.25} parent=1 // pred_check
      _
    $region7: #{_lambda_.25} parent=1 // pred_check_branch
      %30 = sbr.rel (0) target = $region9
    $region8: #{_lambda_.25} parent=1 // pred_region
      %s32 = ssub.s32 32, 32
      %33 = vsyncadd [#allocation3], %s32
      %s35 = sshll.u32 [#allocation2], 4
      %s36 = int_to_ptr.vmem [resolvable:$true] %s35
      %38 = dma.vmem_to_hbm [thread:$0]  %s36, 32, %s1, [#allocation3]
    $region9: #{_lambda_.25} parent=1 // pred_fallthru
      _
    // Predicated region
    $region10: #{_lambda_.25} parent=1 // pred_check
      _
    $region11: #{_lambda_.25} parent=1 // pred_check_branch
      %40 = sbr.rel (0) target = $region13
    $region12: #{_lambda_.25} parent=1 // pred_region
      %41 = dma.done [#allocation3], 32
    $region13: #{_lambda_.25} parent=1 // pred_fallthru
      _
    %42 = vsyncpa [#allocation3], 1

</llo_original>
